<compile_context>
chip_gen: v6e
topology: v6e:2x2x1
jax: 0.10.0
libtpu: 0.0.40
codegen_flags: <defaults>
</compile_context>

<pallas_src>
import functools
import math

import jax
import jax.numpy as jnp
from jax import lax
from jax.experimental import pallas as pl
from jax.experimental.pallas import tpu as pltpu


_MIB = 1024 * 1024
# Fuse the node-feature gather into the kernel (VMEM-resident bf16 table +
# one-hot MXU gather) only while the table stays small; otherwise fall back to
# a wrapper-side bf16 gather + bf16 feature streaming.
_FUSED_TABLE_BYTES_MAX = 4 * _MIB
_FUSED_TABLE_ROWS_MAX = 4096


def _round_up(x, m):
    return (x + m - 1) // m * m


def _physical_vmem_cap():
    """7/8 of physical per-core VMEM (generation aware); conservative fallback."""
    try:
        phys = int(pltpu.get_tpu_info().vmem_capacity_bytes)
    except Exception:
        phys = 64 * _MIB          # v7x has the smallest per-core VMEM (64 MiB)
    return (phys // 8) * 7


def _choose_tiles(batch, seq_len, target_rows=512):
    """Pick a batch tile so tb*seq_len ~= 512 tokens: fills v6e/v7x's 256x256 MXU
    (2-4 passes of v5e's 128x128) and amortizes the ~0.35us per-step overhead.
    Multi-tile grids are marked "parallel" so v7x's two TensorCores split them."""
    batch_p8 = _round_up(batch, 8)
    tb = max(8, (max(1, target_rows // max(seq_len, 1)) // 8) * 8)
    if tb >= batch_p8:
        return batch_p8, batch_p8, 1          # whole batch in one grid step
    batch_p = _round_up(batch, tb)
    return tb, batch_p, batch_p // tb


def _vmem_estimate(tb, seq_len, n_feat, d, n_nodes_p, fused):
    """Per-step VMEM footprint, including double-buffering and f32 intermediates."""
    m = tb * seq_len
    est = 0
    est += 2 * (m * 4 if fused else m * n_feat * 2)      # streamed input (x2 bufs)
    est += 2 * (2 * tb * 4)                              # packed output tile
    # Resident weights/biases (default pipeline still allocates 2 buffers each).
    # TODO(synk): pl.Buffered(1) on these constant-index operands would halve
    # this; skipped to keep lowering maximally portable (footprint ~2-3 MiB).
    est += 2 * ((d * n_feat + d * d) * 2 + (3 * d + n_feat + 1) * 4)
    if fused:
        est += 2 * (n_nodes_p * n_feat * 2)              # bf16 node-feature table
        est += m * n_nodes_p * (4 + 2)                   # iota + one-hot values
    est += m * n_feat * (4 + 2 + 4 + 4)                  # feats f32/bf16, recon, diff
    est += m * d * (4 + 2)                               # enc f32 + bf16
    est += tb * d * 8                                    # pooled, h
    return est


def _head_and_loss(feats_lo, tb, seq_len, w_ae, b1, b2, w_fc, b_fc, w_p, b_p):
    """Shared math: tied auto-encoder embedding + mean-pool + FC/tanh + predictor.

    feats_lo: (tb*seq_len, n_feat) bf16.  Returns per-row sigmoid prediction
    (tb,) and per-row reconstruction SSE (tb,), both f32.
    """
    m, n_feat = feats_lo.shape
    d = w_ae.shape[0]
    feats_f32 = feats_lo.astype(jnp.float32)

    # Encoder: feats @ W_ae.T expressed via contraction dims (no transposed
    # weight copy ever materializes in VMEM).
    enc = lax.dot_general(feats_lo, w_ae, (((1,), (1,)), ((), ())),
                          preferred_element_type=jnp.float32)
    enc = jnp.tanh(enc + b1)                                    # (M, D) f32

    # Decoder (tied weights): enc @ W_ae.  Per-row SSE reduced fully in-kernel
    # (lane reduce then lane reduce) so recon/diff never leave VMEM.
    recon = lax.dot_general(enc.astype(jnp.bfloat16), w_ae,
                            (((1,), (0,)), ((), ())),
                            preferred_element_type=jnp.float32) + b2
    diff = recon - feats_f32
    sq = diff * diff
    sse_row = jnp.sum(jnp.sum(sq.reshape(tb, seq_len, n_feat), axis=2), axis=1)

    # Classifier head.
    pooled = jnp.mean(enc.reshape(tb, seq_len, d), axis=1)      # (tb, D) f32
    h = lax.dot_general(pooled.astype(jnp.bfloat16), w_fc,
                        (((1,), (1,)), ((), ())),
                        preferred_element_type=jnp.float32)
    h = jnp.tanh(h + b_fc)
    # Single-output predictor: VPU mul + lane reduce (skip an N=1 MXU matmul).
    logit = jnp.sum(h * w_p, axis=-1) + b_p                     # (tb,)
    pred = 1.0 / (1.0 + jnp.exp(-logit))
    return pred, sse_row


def _store_outputs(out_ref, pred, sse_row, tb, lane_dense):
    if lane_dense:
        # Lane-dense (2, tb) slab: unmasked lane stores + dense writeback DMA.
        out_ref[0:1, :] = pred.reshape(1, tb)
        out_ref[1:2, :] = sse_row.reshape(1, tb)
    else:
        out_ref[:, 0:1] = pred.reshape(tb, 1)
        out_ref[:, 1:2] = sse_row.reshape(tb, 1)


def _make_fused_kernel(tb, seq_len, lane_dense):
    def kernel(ids_ref, table_ref, w_ae_ref, b1_ref, b2_ref,
               w_fc_ref, b_fc_ref, w_p_ref, b_p_ref, out_ref):
        m = tb * seq_len
        n_nodes_p = table_ref.shape[0]
        # Fused gather: one-hot(ids) @ table on the MXU.  The bf16 table is
        # VMEM-resident (DMA'd once); only the tiny ids column streams per
        # step, so the (M, n_feat) feature tile never round-trips through HBM.
        ids = ids_ref[...]                                      # (M, 1) int32
        node_iota = lax.broadcasted_iota(jnp.int32, (m, n_nodes_p), 1)
        onehot = jnp.where(node_iota == ids, 1.0, 0.0).astype(jnp.bfloat16)
        feats = lax.dot_general(onehot, table_ref[...],
                                (((1,), (0,)), ((), ())),
                                preferred_element_type=jnp.float32)
        pred, sse_row = _head_and_loss(
            feats.astype(jnp.bfloat16), tb, seq_len,
            w_ae_ref[...], b1_ref[...], b2_ref[...],
            w_fc_ref[...], b_fc_ref[...], w_p_ref[...], b_p_ref[0])
        _store_outputs(out_ref, pred, sse_row, tb, lane_dense)
    return kernel


def _make_streamed_kernel(tb, seq_len, lane_dense):
    def kernel(feats_ref, w_ae_ref, b1_ref, b2_ref,
               w_fc_ref, b_fc_ref, w_p_ref, b_p_ref, out_ref):
        pred, sse_row = _head_and_loss(
            feats_ref[...], tb, seq_len,
            w_ae_ref[...], b1_ref[...], b2_ref[...],
            w_fc_ref[...], b_fc_ref[...], w_p_ref[...], b_p_ref[0])
        _store_outputs(out_ref, pred, sse_row, tb, lane_dense)
    return kernel


@functools.partial(jax.jit, static_argnames=("vmem_cap",))
def _classifier_forward_impl(ids, node_features, w_ae, b1, b2, w_fc, b_fc,
                             w_p, b_p, *, vmem_cap):
    batch, seq_len = ids.shape
    d, n_feat = w_ae.shape
    n_nodes = node_features.shape[0]

    tb, batch_p, n_tiles = _choose_tiles(batch, seq_len)
    m = tb * seq_len
    # Lane-dense (2, batch_p) outputs need the lane block (tb) to be a multiple
    # of 128 or span the whole array; otherwise fall back to (batch_p, 2).
    lane_dense = (n_tiles == 1) or (tb % 128 == 0)

    ids32 = ids.astype(jnp.int32)
    if batch_p != batch:
        ids32 = jnp.pad(ids32, ((0, batch_p - batch), (0, 0)))

    # bf16 node-feature table / matmul weights: halves HBM traffic and VMEM
    # residency; f32 MXU accumulation keeps precision.  (Documented bf16
    # rounding of the reconstruction target, mirrored in the reference.)
    table_lo = node_features.astype(jnp.bfloat16)
    n_nodes_p = _round_up(n_nodes, 128)       # aligned contraction dim for gather
    if n_nodes_p != n_nodes:
        table_lo = jnp.pad(table_lo, ((0, n_nodes_p - n_nodes), (0, 0)))

    w_ae_lo = w_ae.astype(jnp.bfloat16)
    w_fc_lo = w_fc.astype(jnp.bfloat16)
    w_p_f32 = w_p.reshape(1, d).astype(jnp.float32)
    b1_2d = b1.reshape(1, d).astype(jnp.float32)
    b2_2d = b2.reshape(1, n_feat).astype(jnp.float32)
    b_fc_2d = b_fc.reshape(1, d).astype(jnp.float32)
    b_p_1d = b_p.reshape(1).astype(jnp.float32)

    # Resident operands: constant index_map -> DMA'd once, VMEM-resident.
    resident = lambda shape: pl.BlockSpec(shape, lambda b: (0,) * len(shape))
    weight_specs = [
        resident((d, n_feat)),                               # W_ae (bf16)
        resident((1, d)),                                    # b1
        resident((1, n_feat)),                               # b2
        resident((d, d)),                                    # W_fc (bf16)
        resident((1, d)),                                    # b_fc
        resident((1, d)),                                    # W_p (f32)
        pl.BlockSpec(memory_space=pltpu.MemorySpace.SMEM),   # b_p scalar
    ]
    weight_args = (w_ae_lo, b1_2d, b2_2d, w_fc_lo, b_fc_2d, w_p_f32, b_p_1d)

    fuse_gather = (n_nodes_p * n_feat * 2 <= _FUSED_TABLE_BYTES_MAX
                   and n_nodes_p <= _FUSED_TABLE_ROWS_MAX)

    if fuse_gather:
        kernel = _make_fused_kernel(tb, seq_len, lane_dense)
        ids_col = ids32.reshape(batch_p * seq_len, 1)
        in_specs = [pl.BlockSpec((m, 1), lambda b: (b, 0)),
                    resident((n_nodes_p, n_feat))] + weight_specs
        args = (ids_col, table_lo) + weight_args
    else:
        # TODO(synk): for tables too large for VMEM residency, a manual
        # double-buffered row-gather DMA (memory_space=pl.ANY +
        # pltpu.make_async_copy) would avoid this wrapper-side XLA gather.
        feats = jnp.take(table_lo, ids32, axis=0)        # (Bp, L, n_feat) bf16
        feats = feats.reshape(batch_p * seq_len, n_feat)
        kernel = _make_streamed_kernel(tb, seq_len, lane_dense)
        in_specs = [pl.BlockSpec((m, n_feat), lambda b: (b, 0))] + weight_specs
        args = (feats,) + weight_args

    if lane_dense:
        out_shape = jax.ShapeDtypeStruct((2, batch_p), jnp.float32)
        out_spec = pl.BlockSpec((2, tb), lambda b: (0, b))
    else:
        out_shape = jax.ShapeDtypeStruct((batch_p, 2), jnp.float32)
        out_spec = pl.BlockSpec((tb, 2), lambda b: (b, 0))

    est = _vmem_estimate(tb, seq_len, n_feat, d, n_nodes_p, fuse_gather)
    # Always set an explicit scoped-VMEM budget (covers v5e's 16 MiB default),
    # capped at 7/8 of physical VMEM so it stays legal on v7x (64 MiB).
    vmem_limit = int(min(vmem_cap, max(32 * _MIB, 2 * est)))

    out = pl.pallas_call(
        kernel,
        out_shape=out_shape,
        grid_spec=pltpu.PrefetchScalarGridSpec(
            num_scalar_prefetch=0,
            grid=(n_tiles,),
            in_specs=in_specs,
            out_specs=out_spec),
        compiler_params=pltpu.CompilerParams(
            dimension_semantics=("parallel",),
            vmem_limit_bytes=vmem_limit),
    )(*args)

    if lane_dense:
        pred = out[0, :batch].reshape(batch, 1)
        sse = out[1, :batch]
    else:
        pred = out[:batch, 0].reshape(batch, 1)
        sse = out[:batch, 1]
    recon_loss = jnp.sum(sse) / (batch * seq_len * n_feat)
    return pred, recon_loss


def classifier_forward(ids, node_features, w_ae, b1, b2, w_fc, b_fc, w_p, b_p):
    """ids: (B, L) int; node_features: (n_nodes, n_feat); returns (pred, recon_loss)."""
    return _classifier_forward_impl(ids, node_features, w_ae, b1, b2, w_fc,
                                    b_fc, w_p, b_p,
                                    vmem_cap=_physical_vmem_cap())


def classifier_reference(ids, node_features, w_ae, b1, b2, w_fc, b_fc, w_p, b_p):
    """Plain-JAX reference with the same dtype policy (bf16 features/weights,
    f32 accumulation) as the kernel."""
    batch, seq_len = ids.shape
    d, n_feat = w_ae.shape
    feats_lo = node_features.astype(jnp.bfloat16)[ids].reshape(
        batch * seq_len, n_feat)
    feats = feats_lo.astype(jnp.float32)
    w_ae_lo = w_ae.astype(jnp.bfloat16)
    enc = jnp.tanh(
        lax.dot_general(feats_lo, w_ae_lo, (((1,), (1,)), ((), ())),
                        preferred_element_type=jnp.float32) + b1)
    recon = lax.dot_general(enc.astype(jnp.bfloat16), w_ae_lo,
                            (((1,), (0,)), ((), ())),
                            preferred_element_type=jnp.float32) + b2
    recon_loss = jnp.mean((recon - feats) ** 2)
    pooled = jnp.mean(enc.reshape(batch, seq_len, d), axis=1)
    h = jnp.tanh(
        lax.dot_general(pooled.astype(jnp.bfloat16), w_fc.astype(jnp.bfloat16),
                        (((1,), (1,)), ((), ())),
                        preferred_element_type=jnp.float32) + b_fc)
    logit = jnp.sum(h * w_p.reshape(1, d), axis=-1, keepdims=True) + b_p.reshape(1, 1)
    return 1.0 / (1.0 + jnp.exp(-logit)), recon_loss


def init_params(key, n_feat, d):
    """Mirror PyTorch nn.Linear reset_parameters (bound = 1/sqrt(fan_in))."""
    kw, kb1, kb2, kfc, kbfc, kp, kbp = jax.random.split(key, 7)
    ae_b = 1.0 / math.sqrt(n_feat)
    w_ae = jax.random.uniform(kw, (d, n_feat), jnp.float32, -ae_b, ae_b)
    b1 = jax.random.uniform(kb1, (d,), jnp.float32, -ae_b, ae_b)
    dec_b = 1.0 / math.sqrt(d)
    b2 = jax.random.uniform(kb2, (n_feat,), jnp.float32, -dec_b, dec_b)
    fc_b = 1.0 / math.sqrt(d)
    w_fc = jax.random.uniform(kfc, (d, d), jnp.float32, -fc_b, fc_b)
    b_fc = jax.random.uniform(kbfc, (d,), jnp.float32, -fc_b, fc_b)
    w_p = jax.random.uniform(kp, (1, d), jnp.float32, -fc_b, fc_b)
    b_p = jax.random.uniform(kbp, (1,), jnp.float32, -fc_b, fc_b)
    return w_ae, b1, b2, w_fc, b_fc, w_p, b_p


if __name__ == "__main__":
    # Small demo shapes consistent with the module: d_model=128, out_f=3.
    BATCH, SEQ = 32, 8
    D_MODEL, OUT_F = 128, 3
    D = D_MODEL * OUT_F          # 384  (multiple of 128)
    N_FEAT = 512                 # node feature dim (multiple of 128)
    N_NODES = 1000

    key = jax.random.PRNGKey(0)
    k_ids, k_tab, k_par = jax.random.split(key, 3)
    ids = jax.random.randint(k_ids, (BATCH, SEQ), 0, N_NODES, dtype=jnp.int32)
    node_features = jax.random.normal(k_tab, (N_NODES, N_FEAT), jnp.float32)
    w_ae, b1, b2, w_fc, b_fc, w_p, b_p = init_params(k_par, N_FEAT, D)

    pred, recon_loss = classifier_forward(
        ids, node_features, w_ae, b1, b2, w_fc, b_fc, w_p, b_p)
    jax.block_until_ready((pred, recon_loss))

    pred_ref, loss_ref = classifier_reference(
        ids, node_features, w_ae, b1, b2, w_fc, b_fc, w_p, b_p)

    assert pred.shape == (BATCH, 1)
    assert jnp.allclose(pred, pred_ref, atol=1e-2, rtol=1e-2), (
        float(jnp.max(jnp.abs(pred - pred_ref))))
    assert jnp.allclose(recon_loss, loss_ref, atol=1e-2, rtol=1e-2), (
        float(recon_loss), float(loss_ref))

    print("KERNEL_OK")
</pallas_src>

<mosaic_0001>
module attributes {stable_mosaic.version = 11 : i64} {
  func.func @kernel(%arg0: i32, %arg1: memref<256x1xi32, #tpu.memory_space<vmem>>, %arg2: memref<1024x512xbf16, #tpu.memory_space<vmem>>, %arg3: memref<384x512xbf16, #tpu.memory_space<vmem>>, %arg4: memref<1x384xf32, #tpu.memory_space<vmem>>, %arg5: memref<1x512xf32, #tpu.memory_space<vmem>>, %arg6: memref<384x384xbf16, #tpu.memory_space<vmem>>, %arg7: memref<1x384xf32, #tpu.memory_space<vmem>>, %arg8: memref<1x384xf32, #tpu.memory_space<vmem>>, %arg9: memref<1xf32, #tpu.memory_space<smem>>, %arg10: memref<2x32xf32, #tpu.memory_space<vmem>>) attributes {dimension_semantics = [#tpu.dimension_semantics<parallel>], iteration_bounds = array<i64: 1>, scalar_prefetch = 0 : i64, scratch_operands = 0 : i64, tpu.core_type = #tpu.core_type<tc>, window_params = [{transform_indices = @transform_0, window_bounds = array<i64: 256, 1>}, {pipeline_mode = #tpu.pipeline_mode<synchronous>, transform_indices = @transform_1, window_bounds = array<i64: 1024, 512>}, {pipeline_mode = #tpu.pipeline_mode<synchronous>, transform_indices = @transform_2, window_bounds = array<i64: 384, 512>}, {pipeline_mode = #tpu.pipeline_mode<synchronous>, transform_indices = @transform_3, window_bounds = array<i64: 1, 384>}, {pipeline_mode = #tpu.pipeline_mode<synchronous>, transform_indices = @transform_4, window_bounds = array<i64: 1, 512>}, {pipeline_mode = #tpu.pipeline_mode<synchronous>, transform_indices = @transform_5, window_bounds = array<i64: 384, 384>}, {pipeline_mode = #tpu.pipeline_mode<synchronous>, transform_indices = @transform_6, window_bounds = array<i64: 1, 384>}, {pipeline_mode = #tpu.pipeline_mode<synchronous>, transform_indices = @transform_7, window_bounds = array<i64: 1, 384>}, {transform_indices = @transform_8, window_bounds = array<i64: 1>}, {transform_indices = @transform_9, window_bounds = array<i64: 2, 32>}]} {
    %c0 = arith.constant 0 : index
    %c0_0 = arith.constant 0 : index
    %0 = vector.load %arg1[%c0, %c0_0] : memref<256x1xi32, #tpu.memory_space<vmem>>, vector<256x1xi32>
    %1 = tpu.iota {dimensions = array<i32: 1>} : vector<256x1024xi32>
    %2 = vector.broadcast %0 : vector<256x1xi32> to vector<256x1024xi32>
    %3 = arith.cmpi eq, %1, %2 : vector<256x1024xi32>
    %cst = arith.constant 1.000000e+00 : f32
    %cst_1 = arith.constant 0.000000e+00 : f32
    %4 = vector.broadcast %cst : f32 to vector<256x1024xf32>
    %5 = vector.broadcast %cst_1 : f32 to vector<256x1024xf32>
    %6 = arith.select %3, %4, %5 : vector<256x1024xi1>, vector<256x1024xf32>
    %7 = arith.truncf %6 : vector<256x1024xf32> to vector<256x1024xbf16>
    %c0_2 = arith.constant 0 : index
    %c0_3 = arith.constant 0 : index
    %8 = vector.load %arg2[%c0_2, %c0_3] : memref<1024x512xbf16, #tpu.memory_space<vmem>>, vector<1024x512xbf16>
    %cst_4 = arith.constant dense<0.000000e+00> : vector<256x512xf32>
    %9 = tpu.matmul %7, %8, %cst_4 {dimension_numbers = #tpu.dot_dimension_numbers<[1], [0], [0], [1], [0, 0, 1, 1], [], []>} : vector<256x1024xbf16>, vector<1024x512xbf16>, vector<256x512xf32> -> vector<256x512xf32>
    %10 = arith.truncf %9 : vector<256x512xf32> to vector<256x512xbf16>
    %c0_5 = arith.constant 0 : index
    %c0_6 = arith.constant 0 : index
    %11 = vector.load %arg3[%c0_5, %c0_6] : memref<384x512xbf16, #tpu.memory_space<vmem>>, vector<384x512xbf16>
    %c0_7 = arith.constant 0 : index
    %c0_8 = arith.constant 0 : index
    %12 = vector.load %arg4[%c0_7, %c0_8] : memref<1x384xf32, #tpu.memory_space<vmem>>, vector<1x384xf32>
    %c0_9 = arith.constant 0 : index
    %c0_10 = arith.constant 0 : index
    %13 = vector.load %arg5[%c0_9, %c0_10] : memref<1x512xf32, #tpu.memory_space<vmem>>, vector<1x512xf32>
    %c0_11 = arith.constant 0 : index
    %c0_12 = arith.constant 0 : index
    %14 = vector.load %arg6[%c0_11, %c0_12] : memref<384x384xbf16, #tpu.memory_space<vmem>>, vector<384x384xbf16>
    %c0_13 = arith.constant 0 : index
    %c0_14 = arith.constant 0 : index
    %15 = vector.load %arg7[%c0_13, %c0_14] : memref<1x384xf32, #tpu.memory_space<vmem>>, vector<1x384xf32>
    %c0_15 = arith.constant 0 : index
    %c0_16 = arith.constant 0 : index
    %16 = vector.load %arg8[%c0_15, %c0_16] : memref<1x384xf32, #tpu.memory_space<vmem>>, vector<1x384xf32>
    %c0_17 = arith.constant 0 : index
    %17 = memref.load %arg9[%c0_17] : memref<1xf32, #tpu.memory_space<smem>>
    %18 = arith.extf %10 : vector<256x512xbf16> to vector<256x512xf32>
    %cst_18 = arith.constant dense<0.000000e+00> : vector<256x384xf32>
    %19 = tpu.matmul %10, %11, %cst_18 {dimension_numbers = #tpu.dot_dimension_numbers<[1], [1], [0], [0], [0, 0, 1, 0], [], []>} : vector<256x512xbf16>, vector<384x512xbf16>, vector<256x384xf32> -> vector<256x384xf32>
    %20 = vector.broadcast %12 : vector<1x384xf32> to vector<256x384xf32>
    %21 = arith.addf %19, %20 : vector<256x384xf32>
    %22 = math.tanh %21 : vector<256x384xf32>
    %23 = arith.truncf %22 : vector<256x384xf32> to vector<256x384xbf16>
    %cst_19 = arith.constant dense<0.000000e+00> : vector<256x512xf32>
    %24 = tpu.matmul %23, %11, %cst_19 {dimension_numbers = #tpu.dot_dimension_numbers<[1], [0], [0], [1], [0, 0, 1, 1], [], []>} : vector<256x384xbf16>, vector<384x512xbf16>, vector<256x512xf32> -> vector<256x512xf32>
    %25 = vector.broadcast %13 : vector<1x512xf32> to vector<256x512xf32>
    %26 = arith.addf %24, %25 : vector<256x512xf32>
    %27 = arith.subf %26, %18 : vector<256x512xf32>
    %28 = arith.mulf %27, %27 : vector<256x512xf32>
    %29 = vector.shape_cast %28 : vector<256x512xf32> to vector<32x8x512xf32>
    %cst_20 = arith.constant dense<0.000000e+00> : vector<32x8xf32>
    %30 = vector.multi_reduction <add>, %29, %cst_20 [2] : vector<32x8x512xf32> to vector<32x8xf32>
    %cst_21 = arith.constant dense<0.000000e+00> : vector<32xf32>
    %31 = vector.multi_reduction <add>, %30, %cst_21 [1] : vector<32x8xf32> to vector<32xf32>
    %32 = vector.shape_cast %22 : vector<256x384xf32> to vector<32x8x384xf32>
    %cst_22 = arith.constant dense<0.000000e+00> : vector<32x384xf32>
    %33 = vector.multi_reduction <add>, %32, %cst_22 [1] : vector<32x8x384xf32> to vector<32x384xf32>
    %cst_23 = arith.constant 8.000000e+00 : f32
    %34 = vector.broadcast %cst_23 : f32 to vector<32x384xf32>
    %35 = arith.divf %33, %34 : vector<32x384xf32>
    %36 = arith.truncf %35 : vector<32x384xf32> to vector<32x384xbf16>
    %cst_24 = arith.constant dense<0.000000e+00> : vector<32x384xf32>
    %37 = tpu.matmul %36, %14, %cst_24 {dimension_numbers = #tpu.dot_dimension_numbers<[1], [1], [0], [0], [0, 0, 1, 0], [], []>} : vector<32x384xbf16>, vector<384x384xbf16>, vector<32x384xf32> -> vector<32x384xf32>
    %38 = vector.broadcast %15 : vector<1x384xf32> to vector<32x384xf32>
    %39 = arith.addf %37, %38 : vector<32x384xf32>
    %40 = math.tanh %39 : vector<32x384xf32>
    %41 = vector.broadcast %16 : vector<1x384xf32> to vector<32x384xf32>
    %42 = arith.mulf %40, %41 : vector<32x384xf32>
    %cst_25 = arith.constant dense<0.000000e+00> : vector<32xf32>
    %43 = vector.multi_reduction <add>, %42, %cst_25 [1] : vector<32x384xf32> to vector<32xf32>
    %44 = vector.broadcast %17 : f32 to vector<32xf32>
    %45 = arith.addf %43, %44 : vector<32xf32>
    %cst_26 = arith.constant 0.000000e+00 : f32
    %46 = vector.broadcast %cst_26 : f32 to vector<32xf32>
    %47 = arith.subf %46, %45 : vector<32xf32>
    %48 = math.exp %47 : vector<32xf32>
    %cst_27 = arith.constant 1.000000e+00 : f32
    %49 = vector.broadcast %cst_27 : f32 to vector<32xf32>
    %50 = arith.addf %49, %48 : vector<32xf32>
    %cst_28 = arith.constant 1.000000e+00 : f32
    %51 = vector.broadcast %cst_28 : f32 to vector<32xf32>
    %52 = arith.divf %51, %50 : vector<32xf32>
    %53 = vector.shape_cast %52 : vector<32xf32> to vector<1x32xf32>
    %c0_29 = arith.constant 0 : index
    %c0_30 = arith.constant 0 : index
    %54 = vector.load %arg10[%c0_29, %c0_30] : memref<2x32xf32, #tpu.memory_space<vmem>>, vector<1x32xf32>
    tpu.vector_store %arg10[%c0_29, %c0_30], %53 {strides = array<i32>} : memref<2x32xf32, #tpu.memory_space<vmem>>, vector<1x32xf32>,
    %55 = vector.shape_cast %31 : vector<32xf32> to vector<1x32xf32>
    %c1 = arith.constant 1 : index
    %c0_31 = arith.constant 0 : index
    %56 = vector.load %arg10[%c1, %c0_31] : memref<2x32xf32, #tpu.memory_space<vmem>>, vector<1x32xf32>
    tpu.vector_store %arg10[%c1, %c0_31], %55 {strides = array<i32>} : memref<2x32xf32, #tpu.memory_space<vmem>>, vector<1x32xf32>,
    return
  }
  func.func @transform_0(%arg0: i32) -> (i32, i32) {
    %c0_i32 = arith.constant 0 : i32
    %c0_i32_0 = arith.constant 0 : i32
    return %arg0, %c0_i32 : i32, i32
  }
  func.func @transform_1(%arg0: i32) -> (i32, i32) {
    %c0_i32 = arith.constant 0 : i32
    %c0_i32_0 = arith.constant 0 : i32
    %c0_i32_1 = arith.constant 0 : i32
    return %c0_i32, %c0_i32_0 : i32, i32
  }
  func.func @transform_2(%arg0: i32) -> (i32, i32) {
    %c0_i32 = arith.constant 0 : i32
    %c0_i32_0 = arith.constant 0 : i32
    %c0_i32_1 = arith.constant 0 : i32
    return %c0_i32, %c0_i32_0 : i32, i32
  }
  func.func @transform_3(%arg0: i32) -> (i32, i32) {
    %c0_i32 = arith.constant 0 : i32
    %c0_i32_0 = arith.constant 0 : i32
    %c0_i32_1 = arith.constant 0 : i32
    return %c0_i32, %c0_i32_0 : i32, i32
  }
  func.func @transform_4(%arg0: i32) -> (i32, i32) {
    %c0_i32 = arith.constant 0 : i32
    %c0_i32_0 = arith.constant 0 : i32
    %c0_i32_1 = arith.constant 0 : i32
    return %c0_i32, %c0_i32_0 : i32, i32
  }
  func.func @transform_5(%arg0: i32) -> (i32, i32) {
    %c0_i32 = arith.constant 0 : i32
    %c0_i32_0 = arith.constant 0 : i32
    %c0_i32_1 = arith.constant 0 : i32
    return %c0_i32, %c0_i32_0 : i32, i32
  }
  func.func @transform_6(%arg0: i32) -> (i32, i32) {
    %c0_i32 = arith.constant 0 : i32
    %c0_i32_0 = arith.constant 0 : i32
    %c0_i32_1 = arith.constant 0 : i32
    return %c0_i32, %c0_i32_0 : i32, i32
  }
  func.func @transform_7(%arg0: i32) -> (i32, i32) {
    %c0_i32 = arith.constant 0 : i32
    %c0_i32_0 = arith.constant 0 : i32
    %c0_i32_1 = arith.constant 0 : i32
    return %c0_i32, %c0_i32_0 : i32, i32
  }
  func.func @transform_8(%arg0: i32) -> i32 {
    %c0_i32 = arith.constant 0 : i32
    %c0_i32_0 = arith.constant 0 : i32
    return %c0_i32 : i32
  }
  func.func @transform_9(%arg0: i32) -> (i32, i32) {
    %c0_i32 = arith.constant 0 : i32
    %c0_i32_0 = arith.constant 0 : i32
    return %c0_i32, %arg0 : i32, i32
  }
}

</mosaic_0001>

<llo_original>
// kernel: _classifier_forward_impl.1
$region0: #{_classifier_forward_impl.1}
  #allocation0 [shape = 'u32[]', space=smem, size = 0x4, offset = 0x4, fixed_abs, tag = 'smem constant byte address 0x4 - core index']
  #allocation1 [shape = 'u32[144,128]{1,0:T(1,128)}', space=vmem, size = 0x12000, scoped, tag = 'internal scratch']
  #allocation2 [shape = 'f32[1]{0:T(128)S(6)}', space=smem, size = 0x200, scoped, tag = 'scoped memory for _classifier_forward_impl.1']
  %s0 = inlined_call_operand.vmem [shape: s32[256,1], index: 0, kind: input, shape index: {}]
  %s1 = inlined_call_operand.vmem [shape: bf16[1024,512], index: 1, kind: input, shape index: {}]
  %s2 = inlined_call_operand.vmem [shape: bf16[384,512], index: 2, kind: input, shape index: {}]
  %s3 = inlined_call_operand.vmem [shape: f32[1,384], index: 3, kind: input, shape index: {}]
  %s4 = inlined_call_operand.vmem [shape: f32[1,512], index: 4, kind: input, shape index: {}]
  %s5 = inlined_call_operand.vmem [shape: bf16[384,384], index: 5, kind: input, shape index: {}]
  %s6 = inlined_call_operand.vmem [shape: f32[1,384], index: 6, kind: input, shape index: {}]
  %s7 = inlined_call_operand.vmem [shape: f32[1,384], index: 7, kind: input, shape index: {}]
  %s8 = inlined_call_operand.<no memory space> [shape: f32[1], index: 8, kind: input, shape index: {}]
  %s9 = inlined_call_operand.vmem [shape: f32[2,32], index: 9, kind: output, shape index: {}]
  %s10 = sld [smem:[#allocation0]]
  $region46: #{_classifier_forward_impl.1} parent=0
    _
  %s12 = ssub.s32 1, %s10
  %s13 = scalar_select 0, %s12, %s10
  %14 = sst [smem:[#allocation2]] %s8
  // Predicated region
  $region2: #{_classifier_forward_impl.1} parent=0 // pred_check
    _
  $region3: #{_classifier_forward_impl.1} parent=0 // pred_check_branch
    %16 = sbr.rel (0) target = $region5
  $region4: #{_classifier_forward_impl.1} parent=0 // pred_region
    _
  $region5: #{_classifier_forward_impl.1} parent=0 // pred_fallthru
    _
  // Predicated region
  $region6: #{_classifier_forward_impl.1} parent=0 // pred_check
    _
  $region7: #{_classifier_forward_impl.1} parent=0 // pred_check_branch
    %18 = sbr.rel (0) target = $region9
  $region8: #{_classifier_forward_impl.1} parent=0 // pred_region
    _
  $region9: #{_classifier_forward_impl.1} parent=0 // pred_fallthru
    _
  // Predicated region
  $region10: #{_classifier_forward_impl.1} parent=0 // pred_check
    _
  $region11: #{_classifier_forward_impl.1} parent=0 // pred_check_branch
    %20 = sbr.rel (0) target = $region13
  $region12: #{_classifier_forward_impl.1} parent=0 // pred_region
    _
  $region13: #{_classifier_forward_impl.1} parent=0 // pred_fallthru
    _
  // Predicated region
  $region14: #{_classifier_forward_impl.1} parent=0 // pred_check
    _
  $region15: #{_classifier_forward_impl.1} parent=0 // pred_check_branch
    %22 = sbr.rel (0) target = $region17
  $region16: #{_classifier_forward_impl.1} parent=0 // pred_region
    _
  $region17: #{_classifier_forward_impl.1} parent=0 // pred_fallthru
    _
  // Predicated region
  $region18: #{_classifier_forward_impl.1} parent=0 // pred_check
    _
  $region19: #{_classifier_forward_impl.1} parent=0 // pred_check_branch
    %24 = sbr.rel (0) target = $region21
  $region20: #{_classifier_forward_impl.1} parent=0 // pred_region
    _
  $region21: #{_classifier_forward_impl.1} parent=0 // pred_fallthru
    _
  // Predicated region
  $region22: #{_classifier_forward_impl.1} parent=0 // pred_check
    _
  $region23: #{_classifier_forward_impl.1} parent=0 // pred_check_branch
    %26 = sbr.rel (0) target = $region25
  $region24: #{_classifier_forward_impl.1} parent=0 // pred_region
    _
  $region25: #{_classifier_forward_impl.1} parent=0 // pred_fallthru
    _
  // Predicated region
  $region26: #{_classifier_forward_impl.1} parent=0 // pred_check
    _
  $region27: #{_classifier_forward_impl.1} parent=0 // pred_check_branch
    %28 = sbr.rel (0) target = $region29
  $region28: #{_classifier_forward_impl.1} parent=0 // pred_region
    _
  $region29: #{_classifier_forward_impl.1} parent=0 // pred_fallthru
    _
  // Predicated region
  $region30: #{_classifier_forward_impl.1} parent=0 // pred_check
    _
  $region31: #{_classifier_forward_impl.1} parent=0 // pred_check_branch
    %30 = sbr.rel (0) target = $region33
  $region32: #{_classifier_forward_impl.1} parent=0 // pred_region
    _
  $region33: #{_classifier_forward_impl.1} parent=0 // pred_fallthru
    _
  // Predicated region
  $region34: #{_classifier_forward_impl.1} parent=0 // pred_check
    _
  $region35: #{_classifier_forward_impl.1} parent=0 // pred_check_branch
    %32 = sbr.rel (0) target = $region37
  $region36: #{_classifier_forward_impl.1} parent=0 // pred_region
    _
  $region37: #{_classifier_forward_impl.1} parent=0 // pred_fallthru
    _
  %v34 = vld [vmem:[%s0] sm:$0xff]
  %v35 = vld [vmem:[%s0 + $0x8] sm:$0xff]
  %v36 = vld [vmem:[%s0 + $0x10] sm:$0xff]
  %v37 = vld [vmem:[%s0 + $0x18] sm:$0xff]
  %v38 = vld [vmem:[%s0 + $0x20] sm:$0xff]
  %v39 = vld [vmem:[%s0 + $0x28] sm:$0xff]
  %v40 = vld [vmem:[%s0 + $0x30] sm:$0xff]
  %v41 = vld [vmem:[%s0 + $0x38] sm:$0xff]
  %v42 = vld [vmem:[%s0 + $0x40] sm:$0xff]
  %v43 = vld [vmem:[%s0 + $0x48] sm:$0xff]
  %v44 = vld [vmem:[%s0 + $0x50] sm:$0xff]
  %v45 = vld [vmem:[%s0 + $0x58] sm:$0xff]
  %v46 = vld [vmem:[%s0 + $0x60] sm:$0xff]
  %v47 = vld [vmem:[%s0 + $0x68] sm:$0xff]
  %v48 = vld [vmem:[%s0 + $0x70] sm:$0xff]
  %v49 = vld [vmem:[%s0 + $0x78] sm:$0xff]
  %v50 = vld [vmem:[%s0 + $0x80] sm:$0xff]
  %v51 = vld [vmem:[%s0 + $0x88] sm:$0xff]
  %v52 = vld [vmem:[%s0 + $0x90] sm:$0xff]
  %v53 = vld [vmem:[%s0 + $0x98] sm:$0xff]
  %v54 = vld [vmem:[%s0 + $0xa0] sm:$0xff]
  %v55 = vld [vmem:[%s0 + $0xa8] sm:$0xff]
  %v56 = vld [vmem:[%s0 + $0xb0] sm:$0xff]
  %v57 = vld [vmem:[%s0 + $0xb8] sm:$0xff]
  %v58 = vld [vmem:[%s0 + $0xc0] sm:$0xff]
  %v59 = vld [vmem:[%s0 + $0xc8] sm:$0xff]
  %v60 = vld [vmem:[%s0 + $0xd0] sm:$0xff]
  %v61 = vld [vmem:[%s0 + $0xd8] sm:$0xff]
  %v62 = vld [vmem:[%s0 + $0xe0] sm:$0xff]
  %v63 = vld [vmem:[%s0 + $0xe8] sm:$0xff]
  %v64 = vld [vmem:[%s0 + $0xf0] sm:$0xff]
  %v65 = vld [vmem:[%s0 + $0xf8] sm:$0xff]
  %v66 = vlaneseq
  %v67 = vand.u32 %v66, 127
  %v68 = vadd.s32 %v67, 128
  %v69 = vadd.s32 %v67, 256
  %v70 = vadd.s32 %v67, 384
  %v71 = vadd.s32 %v67, 512
  %v72 = vadd.s32 %v67, 640
  %v73 = vadd.s32 %v67, 768
  %v74 = vadd.s32 %v67, 896
  %75 = vset.pattern.permute.xlu0 0
  %76 = vperm.xlu0 %75, %v34
  %v77 = vpop.permute.xlu0 %76
  %78 = vset.pattern.permute.xlu0 0
  %79 = vperm.xlu0 %78, %v35
  %v80 = vpop.permute.xlu0 %79
  %81 = vset.pattern.permute.xlu0 0
  %82 = vperm.xlu0 %81, %v36
  %v83 = vpop.permute.xlu0 %82
  %84 = vset.pattern.permute.xlu0 0
  %85 = vperm.xlu0 %84, %v37
  %v86 = vpop.permute.xlu0 %85
  %87 = vset.pattern.permute.xlu0 0
  %88 = vperm.xlu0 %87, %v38
  %v89 = vpop.permute.xlu0 %88
  %90 = vset.pattern.permute.xlu0 0
  %91 = vperm.xlu0 %90, %v39
  %v92 = vpop.permute.xlu0 %91
  %93 = vset.pattern.permute.xlu0 0
  %94 = vperm.xlu0 %93, %v40
  %v95 = vpop.permute.xlu0 %94
  %96 = vset.pattern.permute.xlu0 0
  %97 = vperm.xlu0 %96, %v41
  %v98 = vpop.permute.xlu0 %97
  %99 = vset.pattern.permute.xlu0 0
  %100 = vperm.xlu0 %99, %v42
  %v101 = vpop.permute.xlu0 %100
  %102 = vset.pattern.permute.xlu0 0
  %103 = vperm.xlu0 %102, %v43
  %v104 = vpop.permute.xlu0 %103
  %105 = vset.pattern.permute.xlu0 0
  %106 = vperm.xlu0 %105, %v44
  %v107 = vpop.permute.xlu0 %106
  %108 = vset.pattern.permute.xlu0 0
  %109 = vperm.xlu0 %108, %v45
  %v110 = vpop.permute.xlu0 %109
  %111 = vset.pattern.permute.xlu0 0
  %112 = vperm.xlu0 %111, %v46
  %v113 = vpop.permute.xlu0 %112
  %114 = vset.pattern.permute.xlu0 0
  %115 = vperm.xlu0 %114, %v47
  %v116 = vpop.permute.xlu0 %115
  %117 = vset.pattern.permute.xlu0 0
  %118 = vperm.xlu0 %117, %v48
  %v119 = vpop.permute.xlu0 %118
  %120 = vset.pattern.permute.xlu0 0
  %121 = vperm.xlu0 %120, %v49
  %v122 = vpop.permute.xlu0 %121
  %123 = vset.pattern.permute.xlu0 0
  %124 = vperm.xlu0 %123, %v50
  %v125 = vpop.permute.xlu0 %124
  %126 = vset.pattern.permute.xlu0 0
  %127 = vperm.xlu0 %126, %v51
  %v128 = vpop.permute.xlu0 %127
  %129 = vset.pattern.permute.xlu0 0
  %130 = vperm.xlu0 %129, %v52
  %v131 = vpop.permute.xlu0 %130
  %132 = vset.pattern.permute.xlu0 0
  %133 = vperm.xlu0 %132, %v53
  %v134 = vpop.permute.xlu0 %133
  %135 = vset.pattern.permute.xlu0 0
  %136 = vperm.xlu0 %135, %v54
  %v137 = vpop.permute.xlu0 %136
  %138 = vset.pattern.permute.xlu0 0
  %139 = vperm.xlu0 %138, %v55
  %v140 = vpop.permute.xlu0 %139
  %141 = vset.pattern.permute.xlu0 0
  %142 = vperm.xlu0 %141, %v56
  %v143 = vpop.permute.xlu0 %142
  %144 = vset.pattern.permute.xlu0 0
  %145 = vperm.xlu0 %144, %v57
  %v146 = vpop.permute.xlu0 %145
  %147 = vset.pattern.permute.xlu0 0
  %148 = vperm.xlu0 %147, %v58
  %v149 = vpop.permute.xlu0 %148
  %150 = vset.pattern.permute.xlu0 0
  %151 = vperm.xlu0 %150, %v59
  %v152 = vpop.permute.xlu0 %151
  %153 = vset.pattern.permute.xlu0 0
  %154 = vperm.xlu0 %153, %v60
  %v155 = vpop.permute.xlu0 %154
  %156 = vset.pattern.permute.xlu0 0
  %157 = vperm.xlu0 %156, %v61
  %v158 = vpop.permute.xlu0 %157
  %159 = vset.pattern.permute.xlu0 0
  %160 = vperm.xlu0 %159, %v62
  %v161 = vpop.permute.xlu0 %160
  %162 = vset.pattern.permute.xlu0 0
  %163 = vperm.xlu0 %162, %v63
  %v164 = vpop.permute.xlu0 %163
  %165 = vset.pattern.permute.xlu0 0
  %166 = vperm.xlu0 %165, %v64
  %v167 = vpop.permute.xlu0 %166
  %168 = vset.pattern.permute.xlu0 0
  %169 = vperm.xlu0 %168, %v65
  %v170 = vpop.permute.xlu0 %169
  %vm171 = vcmp.eq.s32.totalorder %v67, %v77
  %vm172 = vcmp.eq.s32.totalorder %v68, %v77
  %vm173 = vcmp.eq.s32.totalorder %v69, %v77
  %vm174 = vcmp.eq.s32.totalorder %v70, %v77
  %vm175 = vcmp.eq.s32.totalorder %v71, %v77
  %vm176 = vcmp.eq.s32.totalorder %v72, %v77
  %vm177 = vcmp.eq.s32.totalorder %v73, %v77
  %vm178 = vcmp.eq.s32.totalorder %v74, %v77
  %vm179 = vcmp.eq.s32.totalorder %v67, %v80
  %vm180 = vcmp.eq.s32.totalorder %v68, %v80
  %vm181 = vcmp.eq.s32.totalorder %v69, %v80
  %vm182 = vcmp.eq.s32.totalorder %v70, %v80
  %vm183 = vcmp.eq.s32.totalorder %v71, %v80
  %vm184 = vcmp.eq.s32.totalorder %v72, %v80
  %vm185 = vcmp.eq.s32.totalorder %v73, %v80
  %vm186 = vcmp.eq.s32.totalorder %v74, %v80
  %vm187 = vcmp.eq.s32.totalorder %v67, %v83
  %vm188 = vcmp.eq.s32.totalorder %v68, %v83
  %vm189 = vcmp.eq.s32.totalorder %v69, %v83
  %vm190 = vcmp.eq.s32.totalorder %v70, %v83
  %vm191 = vcmp.eq.s32.totalorder %v71, %v83
  %vm192 = vcmp.eq.s32.totalorder %v72, %v83
  %vm193 = vcmp.eq.s32.totalorder %v73, %v83
  %vm194 = vcmp.eq.s32.totalorder %v74, %v83
  %vm195 = vcmp.eq.s32.totalorder %v67, %v86
  %vm196 = vcmp.eq.s32.totalorder %v68, %v86
  %vm197 = vcmp.eq.s32.totalorder %v69, %v86
  %vm198 = vcmp.eq.s32.totalorder %v70, %v86
  %vm199 = vcmp.eq.s32.totalorder %v71, %v86
  %vm200 = vcmp.eq.s32.totalorder %v72, %v86
  %vm201 = vcmp.eq.s32.totalorder %v73, %v86
  %vm202 = vcmp.eq.s32.totalorder %v74, %v86
  %vm203 = vcmp.eq.s32.totalorder %v67, %v89
  %vm204 = vcmp.eq.s32.totalorder %v68, %v89
  %vm205 = vcmp.eq.s32.totalorder %v69, %v89
  %vm206 = vcmp.eq.s32.totalorder %v70, %v89
  %vm207 = vcmp.eq.s32.totalorder %v71, %v89
  %vm208 = vcmp.eq.s32.totalorder %v72, %v89
  %vm209 = vcmp.eq.s32.totalorder %v73, %v89
  %vm210 = vcmp.eq.s32.totalorder %v74, %v89
  %vm211 = vcmp.eq.s32.totalorder %v67, %v92
  %vm212 = vcmp.eq.s32.totalorder %v68, %v92
  %vm213 = vcmp.eq.s32.totalorder %v69, %v92
  %vm214 = vcmp.eq.s32.totalorder %v70, %v92
  %vm215 = vcmp.eq.s32.totalorder %v71, %v92
  %vm216 = vcmp.eq.s32.totalorder %v72, %v92
  %vm217 = vcmp.eq.s32.totalorder %v73, %v92
  %vm218 = vcmp.eq.s32.totalorder %v74, %v92
  %vm219 = vcmp.eq.s32.totalorder %v67, %v95
  %vm220 = vcmp.eq.s32.totalorder %v68, %v95
  %vm221 = vcmp.eq.s32.totalorder %v69, %v95
  %vm222 = vcmp.eq.s32.totalorder %v70, %v95
  %vm223 = vcmp.eq.s32.totalorder %v71, %v95
  %vm224 = vcmp.eq.s32.totalorder %v72, %v95
  %vm225 = vcmp.eq.s32.totalorder %v73, %v95
  %vm226 = vcmp.eq.s32.totalorder %v74, %v95
  %vm227 = vcmp.eq.s32.totalorder %v67, %v98
  %vm228 = vcmp.eq.s32.totalorder %v68, %v98
  %vm229 = vcmp.eq.s32.totalorder %v69, %v98
  %vm230 = vcmp.eq.s32.totalorder %v70, %v98
  %vm231 = vcmp.eq.s32.totalorder %v71, %v98
  %vm232 = vcmp.eq.s32.totalorder %v72, %v98
  %vm233 = vcmp.eq.s32.totalorder %v73, %v98
  %vm234 = vcmp.eq.s32.totalorder %v74, %v98
  %vm235 = vcmp.eq.s32.totalorder %v67, %v101
  %vm236 = vcmp.eq.s32.totalorder %v68, %v101
  %vm237 = vcmp.eq.s32.totalorder %v69, %v101
  %vm238 = vcmp.eq.s32.totalorder %v70, %v101
  %vm239 = vcmp.eq.s32.totalorder %v71, %v101
  %vm240 = vcmp.eq.s32.totalorder %v72, %v101
  %vm241 = vcmp.eq.s32.totalorder %v73, %v101
  %vm242 = vcmp.eq.s32.totalorder %v74, %v101
  %vm243 = vcmp.eq.s32.totalorder %v67, %v104
  %vm244 = vcmp.eq.s32.totalorder %v68, %v104
  %vm245 = vcmp.eq.s32.totalorder %v69, %v104
  %vm246 = vcmp.eq.s32.totalorder %v70, %v104
  %vm247 = vcmp.eq.s32.totalorder %v71, %v104
  %vm248 = vcmp.eq.s32.totalorder %v72, %v104
  %vm249 = vcmp.eq.s32.totalorder %v73, %v104
  %vm250 = vcmp.eq.s32.totalorder %v74, %v104
  %vm251 = vcmp.eq.s32.totalorder %v67, %v107
  %vm252 = vcmp.eq.s32.totalorder %v68, %v107
  %vm253 = vcmp.eq.s32.totalorder %v69, %v107
  %vm254 = vcmp.eq.s32.totalorder %v70, %v107
  %vm255 = vcmp.eq.s32.totalorder %v71, %v107
  %vm256 = vcmp.eq.s32.totalorder %v72, %v107
  %vm257 = vcmp.eq.s32.totalorder %v73, %v107
  %vm258 = vcmp.eq.s32.totalorder %v74, %v107
  %vm259 = vcmp.eq.s32.totalorder %v67, %v110
  %vm260 = vcmp.eq.s32.totalorder %v68, %v110
  %vm261 = vcmp.eq.s32.totalorder %v69, %v110
  %vm262 = vcmp.eq.s32.totalorder %v70, %v110
  %vm263 = vcmp.eq.s32.totalorder %v71, %v110
  %vm264 = vcmp.eq.s32.totalorder %v72, %v110
  %vm265 = vcmp.eq.s32.totalorder %v73, %v110
  %vm266 = vcmp.eq.s32.totalorder %v74, %v110
  %vm267 = vcmp.eq.s32.totalorder %v67, %v113
  %vm268 = vcmp.eq.s32.totalorder %v68, %v113
  %vm269 = vcmp.eq.s32.totalorder %v69, %v113
  %vm270 = vcmp.eq.s32.totalorder %v70, %v113
  %vm271 = vcmp.eq.s32.totalorder %v71, %v113
  %vm272 = vcmp.eq.s32.totalorder %v72, %v113
  %vm273 = vcmp.eq.s32.totalorder %v73, %v113
  %vm274 = vcmp.eq.s32.totalorder %v74, %v113
  %vm275 = vcmp.eq.s32.totalorder %v67, %v116
  %vm276 = vcmp.eq.s32.totalorder %v68, %v116
  %vm277 = vcmp.eq.s32.totalorder %v69, %v116
  %vm278 = vcmp.eq.s32.totalorder %v70, %v116
  %vm279 = vcmp.eq.s32.totalorder %v71, %v116
  %vm280 = vcmp.eq.s32.totalorder %v72, %v116
  %vm281 = vcmp.eq.s32.totalorder %v73, %v116
  %vm282 = vcmp.eq.s32.totalorder %v74, %v116
  %vm283 = vcmp.eq.s32.totalorder %v67, %v119
  %vm284 = vcmp.eq.s32.totalorder %v68, %v119
  %vm285 = vcmp.eq.s32.totalorder %v69, %v119
  %vm286 = vcmp.eq.s32.totalorder %v70, %v119
  %vm287 = vcmp.eq.s32.totalorder %v71, %v119
  %vm288 = vcmp.eq.s32.totalorder %v72, %v119
  %vm289 = vcmp.eq.s32.totalorder %v73, %v119
  %vm290 = vcmp.eq.s32.totalorder %v74, %v119
  %vm291 = vcmp.eq.s32.totalorder %v67, %v122
  %vm292 = vcmp.eq.s32.totalorder %v68, %v122
  %vm293 = vcmp.eq.s32.totalorder %v69, %v122
  %vm294 = vcmp.eq.s32.totalorder %v70, %v122
  %vm295 = vcmp.eq.s32.totalorder %v71, %v122
  %vm296 = vcmp.eq.s32.totalorder %v72, %v122
  %vm297 = vcmp.eq.s32.totalorder %v73, %v122
  %vm298 = vcmp.eq.s32.totalorder %v74, %v122
  %vm299 = vcmp.eq.s32.totalorder %v67, %v125
  %vm300 = vcmp.eq.s32.totalorder %v68, %v125
  %vm301 = vcmp.eq.s32.totalorder %v69, %v125
  %vm302 = vcmp.eq.s32.totalorder %v70, %v125
  %vm303 = vcmp.eq.s32.totalorder %v71, %v125
  %vm304 = vcmp.eq.s32.totalorder %v72, %v125
  %vm305 = vcmp.eq.s32.totalorder %v73, %v125
  %vm306 = vcmp.eq.s32.totalorder %v74, %v125
  %vm307 = vcmp.eq.s32.totalorder %v67, %v128
  %vm308 = vcmp.eq.s32.totalorder %v68, %v128
  %vm309 = vcmp.eq.s32.totalorder %v69, %v128
  %vm310 = vcmp.eq.s32.totalorder %v70, %v128
  %vm311 = vcmp.eq.s32.totalorder %v71, %v128
  %vm312 = vcmp.eq.s32.totalorder %v72, %v128
  %vm313 = vcmp.eq.s32.totalorder %v73, %v128
  %vm314 = vcmp.eq.s32.totalorder %v74, %v128
  %vm315 = vcmp.eq.s32.totalorder %v67, %v131
  %vm316 = vcmp.eq.s32.totalorder %v68, %v131
  %vm317 = vcmp.eq.s32.totalorder %v69, %v131
  %vm318 = vcmp.eq.s32.totalorder %v70, %v131
  %vm319 = vcmp.eq.s32.totalorder %v71, %v131
  %vm320 = vcmp.eq.s32.totalorder %v72, %v131
  %vm321 = vcmp.eq.s32.totalorder %v73, %v131
  %vm322 = vcmp.eq.s32.totalorder %v74, %v131
  %vm323 = vcmp.eq.s32.totalorder %v67, %v134
  %vm324 = vcmp.eq.s32.totalorder %v68, %v134
  %vm325 = vcmp.eq.s32.totalorder %v69, %v134
  %vm326 = vcmp.eq.s32.totalorder %v70, %v134
  %vm327 = vcmp.eq.s32.totalorder %v71, %v134
  %vm328 = vcmp.eq.s32.totalorder %v72, %v134
  %vm329 = vcmp.eq.s32.totalorder %v73, %v134
  %vm330 = vcmp.eq.s32.totalorder %v74, %v134
  %vm331 = vcmp.eq.s32.totalorder %v67, %v137
  %vm332 = vcmp.eq.s32.totalorder %v68, %v137
  %vm333 = vcmp.eq.s32.totalorder %v69, %v137
  %vm334 = vcmp.eq.s32.totalorder %v70, %v137
  %vm335 = vcmp.eq.s32.totalorder %v71, %v137
  %vm336 = vcmp.eq.s32.totalorder %v72, %v137
  %vm337 = vcmp.eq.s32.totalorder %v73, %v137
  %vm338 = vcmp.eq.s32.totalorder %v74, %v137
  %vm339 = vcmp.eq.s32.totalorder %v67, %v140
  %vm340 = vcmp.eq.s32.totalorder %v68, %v140
  %vm341 = vcmp.eq.s32.totalorder %v69, %v140
  %vm342 = vcmp.eq.s32.totalorder %v70, %v140
  %vm343 = vcmp.eq.s32.totalorder %v71, %v140
  %vm344 = vcmp.eq.s32.totalorder %v72, %v140
  %vm345 = vcmp.eq.s32.totalorder %v73, %v140
  %vm346 = vcmp.eq.s32.totalorder %v74, %v140
  %vm347 = vcmp.eq.s32.totalorder %v67, %v143
  %vm348 = vcmp.eq.s32.totalorder %v68, %v143
  %vm349 = vcmp.eq.s32.totalorder %v69, %v143
  %vm350 = vcmp.eq.s32.totalorder %v70, %v143
  %vm351 = vcmp.eq.s32.totalorder %v71, %v143
  %vm352 = vcmp.eq.s32.totalorder %v72, %v143
  %vm353 = vcmp.eq.s32.totalorder %v73, %v143
  %vm354 = vcmp.eq.s32.totalorder %v74, %v143
  %vm355 = vcmp.eq.s32.totalorder %v67, %v146
  %vm356 = vcmp.eq.s32.totalorder %v68, %v146
  %vm357 = vcmp.eq.s32.totalorder %v69, %v146
  %vm358 = vcmp.eq.s32.totalorder %v70, %v146
  %vm359 = vcmp.eq.s32.totalorder %v71, %v146
  %vm360 = vcmp.eq.s32.totalorder %v72, %v146
  %vm361 = vcmp.eq.s32.totalorder %v73, %v146
  %vm362 = vcmp.eq.s32.totalorder %v74, %v146
  %vm363 = vcmp.eq.s32.totalorder %v67, %v149
  %vm364 = vcmp.eq.s32.totalorder %v68, %v149
  %vm365 = vcmp.eq.s32.totalorder %v69, %v149
  %vm366 = vcmp.eq.s32.totalorder %v70, %v149
  %vm367 = vcmp.eq.s32.totalorder %v71, %v149
  %vm368 = vcmp.eq.s32.totalorder %v72, %v149
  %vm369 = vcmp.eq.s32.totalorder %v73, %v149
  %vm370 = vcmp.eq.s32.totalorder %v74, %v149
  %vm371 = vcmp.eq.s32.totalorder %v67, %v152
  %vm372 = vcmp.eq.s32.totalorder %v68, %v152
  %vm373 = vcmp.eq.s32.totalorder %v69, %v152
  %vm374 = vcmp.eq.s32.totalorder %v70, %v152
  %vm375 = vcmp.eq.s32.totalorder %v71, %v152
  %vm376 = vcmp.eq.s32.totalorder %v72, %v152
  %vm377 = vcmp.eq.s32.totalorder %v73, %v152
  %vm378 = vcmp.eq.s32.totalorder %v74, %v152
  %vm379 = vcmp.eq.s32.totalorder %v67, %v155
  %vm380 = vcmp.eq.s32.totalorder %v68, %v155
  %vm381 = vcmp.eq.s32.totalorder %v69, %v155
  %vm382 = vcmp.eq.s32.totalorder %v70, %v155
  %vm383 = vcmp.eq.s32.totalorder %v71, %v155
  %vm384 = vcmp.eq.s32.totalorder %v72, %v155
  %vm385 = vcmp.eq.s32.totalorder %v73, %v155
  %vm386 = vcmp.eq.s32.totalorder %v74, %v155
  %vm387 = vcmp.eq.s32.totalorder %v67, %v158
  %vm388 = vcmp.eq.s32.totalorder %v68, %v158
  %vm389 = vcmp.eq.s32.totalorder %v69, %v158
  %vm390 = vcmp.eq.s32.totalorder %v70, %v158
  %vm391 = vcmp.eq.s32.totalorder %v71, %v158
  %vm392 = vcmp.eq.s32.totalorder %v72, %v158
  %vm393 = vcmp.eq.s32.totalorder %v73, %v158
  %vm394 = vcmp.eq.s32.totalorder %v74, %v158
  %vm395 = vcmp.eq.s32.totalorder %v67, %v161
  %vm396 = vcmp.eq.s32.totalorder %v68, %v161
  %vm397 = vcmp.eq.s32.totalorder %v69, %v161
  %vm398 = vcmp.eq.s32.totalorder %v70, %v161
  %vm399 = vcmp.eq.s32.totalorder %v71, %v161
  %vm400 = vcmp.eq.s32.totalorder %v72, %v161
  %vm401 = vcmp.eq.s32.totalorder %v73, %v161
  %vm402 = vcmp.eq.s32.totalorder %v74, %v161
  %vm403 = vcmp.eq.s32.totalorder %v67, %v164
  %vm404 = vcmp.eq.s32.totalorder %v68, %v164
  %vm405 = vcmp.eq.s32.totalorder %v69, %v164
  %vm406 = vcmp.eq.s32.totalorder %v70, %v164
  %vm407 = vcmp.eq.s32.totalorder %v71, %v164
  %vm408 = vcmp.eq.s32.totalorder %v72, %v164
  %vm409 = vcmp.eq.s32.totalorder %v73, %v164
  %vm410 = vcmp.eq.s32.totalorder %v74, %v164
  %vm411 = vcmp.eq.s32.totalorder %v67, %v167
  %vm412 = vcmp.eq.s32.totalorder %v68, %v167
  %vm413 = vcmp.eq.s32.totalorder %v69, %v167
  %vm414 = vcmp.eq.s32.totalorder %v70, %v167
  %vm415 = vcmp.eq.s32.totalorder %v71, %v167
  %vm416 = vcmp.eq.s32.totalorder %v72, %v167
  %vm417 = vcmp.eq.s32.totalorder %v73, %v167
  %vm418 = vcmp.eq.s32.totalorder %v74, %v167
  %vm419 = vcmp.eq.s32.totalorder %v67, %v170
  %vm420 = vcmp.eq.s32.totalorder %v68, %v170
  %vm421 = vcmp.eq.s32.totalorder %v69, %v170
  %vm422 = vcmp.eq.s32.totalorder %v70, %v170
  %vm423 = vcmp.eq.s32.totalorder %v71, %v170
  %vm424 = vcmp.eq.s32.totalorder %v72, %v170
  %vm425 = vcmp.eq.s32.totalorder %v73, %v170
  %vm426 = vcmp.eq.s32.totalorder %v74, %v170
  %v427 = vsel %vm171, 1.0, 0.0
  %v428 = vsel %vm172, 1.0, 0.0
  %v429 = vsel %vm173, 1.0, 0.0
  %v430 = vsel %vm174, 1.0, 0.0
  %v431 = vsel %vm175, 1.0, 0.0
  %v432 = vsel %vm176, 1.0, 0.0
  %v433 = vsel %vm177, 1.0, 0.0
  %v434 = vsel %vm178, 1.0, 0.0
  %v435 = vsel %vm179, 1.0, 0.0
  %v436 = vsel %vm180, 1.0, 0.0
  %v437 = vsel %vm181, 1.0, 0.0
  %v438 = vsel %vm182, 1.0, 0.0
  %v439 = vsel %vm183, 1.0, 0.0
  %v440 = vsel %vm184, 1.0, 0.0
  %v441 = vsel %vm185, 1.0, 0.0
  %v442 = vsel %vm186, 1.0, 0.0
  %v443 = vsel %vm187, 1.0, 0.0
  %v444 = vsel %vm188, 1.0, 0.0
  %v445 = vsel %vm189, 1.0, 0.0
  %v446 = vsel %vm190, 1.0, 0.0
  %v447 = vsel %vm191, 1.0, 0.0
  %v448 = vsel %vm192, 1.0, 0.0
  %v449 = vsel %vm193, 1.0, 0.0
  %v450 = vsel %vm194, 1.0, 0.0
  %v451 = vsel %vm195, 1.0, 0.0
  %v452 = vsel %vm196, 1.0, 0.0
  %v453 = vsel %vm197, 1.0, 0.0
  %v454 = vsel %vm198, 1.0, 0.0
  %v455 = vsel %vm199, 1.0, 0.0
  %v456 = vsel %vm200, 1.0, 0.0
  %v457 = vsel %vm201, 1.0, 0.0
  %v458 = vsel %vm202, 1.0, 0.0
  %v459 = vsel %vm203, 1.0, 0.0
  %v460 = vsel %vm204, 1.0, 0.0
  %v461 = vsel %vm205, 1.0, 0.0
  %v462 = vsel %vm206, 1.0, 0.0
  %v463 = vsel %vm207, 1.0, 0.0
  %v464 = vsel %vm208, 1.0, 0.0
  %v465 = vsel %vm209, 1.0, 0.0
  %v466 = vsel %vm210, 1.0, 0.0
  %v467 = vsel %vm211, 1.0, 0.0
  %v468 = vsel %vm212, 1.0, 0.0
  %v469 = vsel %vm213, 1.0, 0.0
  %v470 = vsel %vm214, 1.0, 0.0
  %v471 = vsel %vm215, 1.0, 0.0
  %v472 = vsel %vm216, 1.0, 0.0
  %v473 = vsel %vm217, 1.0, 0.0
  %v474 = vsel %vm218, 1.0, 0.0
  %v475 = vsel %vm219, 1.0, 0.0
  %v476 = vsel %vm220, 1.0, 0.0
  %v477 = vsel %vm221, 1.0, 0.0
  %v478 = vsel %vm222, 1.0, 0.0
  %v479 = vsel %vm223, 1.0, 0.0
  %v480 = vsel %vm224, 1.0, 0.0
  %v481 = vsel %vm225, 1.0, 0.0
  %v482 = vsel %vm226, 1.0, 0.0
  %v483 = vsel %vm227, 1.0, 0.0
  %v484 = vsel %vm228, 1.0, 0.0
  %v485 = vsel %vm229, 1.0, 0.0
  %v486 = vsel %vm230, 1.0, 0.0
  %v487 = vsel %vm231, 1.0, 0.0
  %v488 = vsel %vm232, 1.0, 0.0
  %v489 = vsel %vm233, 1.0, 0.0
  %v490 = vsel %vm234, 1.0, 0.0
  %v491 = vsel %vm235, 1.0, 0.0
  %v492 = vsel %vm236, 1.0, 0.0
  %v493 = vsel %vm237, 1.0, 0.0
  %v494 = vsel %vm238, 1.0, 0.0
  %v495 = vsel %vm239, 1.0, 0.0
  %v496 = vsel %vm240, 1.0, 0.0
  %v497 = vsel %vm241, 1.0, 0.0
  %v498 = vsel %vm242, 1.0, 0.0
  %v499 = vsel %vm243, 1.0, 0.0
  %v500 = vsel %vm244, 1.0, 0.0
  %v501 = vsel %vm245, 1.0, 0.0
  %v502 = vsel %vm246, 1.0, 0.0
  %v503 = vsel %vm247, 1.0, 0.0
  %v504 = vsel %vm248, 1.0, 0.0
  %v505 = vsel %vm249, 1.0, 0.0
  %v506 = vsel %vm250, 1.0, 0.0
  %v507 = vsel %vm251, 1.0, 0.0
  %v508 = vsel %vm252, 1.0, 0.0
  %v509 = vsel %vm253, 1.0, 0.0
  %v510 = vsel %vm254, 1.0, 0.0
  %v511 = vsel %vm255, 1.0, 0.0
  %v512 = vsel %vm256, 1.0, 0.0
  %v513 = vsel %vm257, 1.0, 0.0
  %v514 = vsel %vm258, 1.0, 0.0
  %v515 = vsel %vm259, 1.0, 0.0
  %v516 = vsel %vm260, 1.0, 0.0
  %v517 = vsel %vm261, 1.0, 0.0
  %v518 = vsel %vm262, 1.0, 0.0
  %v519 = vsel %vm263, 1.0, 0.0
  %v520 = vsel %vm264, 1.0, 0.0
  %v521 = vsel %vm265, 1.0, 0.0
  %v522 = vsel %vm266, 1.0, 0.0
  %v523 = vsel %vm267, 1.0, 0.0
  %v524 = vsel %vm268, 1.0, 0.0
  %v525 = vsel %vm269, 1.0, 0.0
  %v526 = vsel %vm270, 1.0, 0.0
  %v527 = vsel %vm271, 1.0, 0.0
  %v528 = vsel %vm272, 1.0, 0.0
  %v529 = vsel %vm273, 1.0, 0.0
  %v530 = vsel %vm274, 1.0, 0.0
  %v531 = vsel %vm275, 1.0, 0.0
  %v532 = vsel %vm276, 1.0, 0.0
  %v533 = vsel %vm277, 1.0, 0.0
  %v534 = vsel %vm278, 1.0, 0.0
  %v535 = vsel %vm279, 1.0, 0.0
  %v536 = vsel %vm280, 1.0, 0.0
  %v537 = vsel %vm281, 1.0, 0.0
  %v538 = vsel %vm282, 1.0, 0.0
  %v539 = vsel %vm283, 1.0, 0.0
  %v540 = vsel %vm284, 1.0, 0.0
  %v541 = vsel %vm285, 1.0, 0.0
  %v542 = vsel %vm286, 1.0, 0.0
  %v543 = vsel %vm287, 1.0, 0.0
  %v544 = vsel %vm288, 1.0, 0.0
  %v545 = vsel %vm289, 1.0, 0.0
  %v546 = vsel %vm290, 1.0, 0.0
  %v547 = vsel %vm291, 1.0, 0.0
  %v548 = vsel %vm292, 1.0, 0.0
  %v549 = vsel %vm293, 1.0, 0.0
  %v550 = vsel %vm294, 1.0, 0.0
  %v551 = vsel %vm295, 1.0, 0.0
  %v552 = vsel %vm296, 1.0, 0.0
  %v553 = vsel %vm297, 1.0, 0.0
  %v554 = vsel %vm298, 1.0, 0.0
  %v555 = vsel %vm299, 1.0, 0.0
  %v556 = vsel %vm300, 1.0, 0.0
  %v557 = vsel %vm301, 1.0, 0.0
  %v558 = vsel %vm302, 1.0, 0.0
  %v559 = vsel %vm303, 1.0, 0.0
  %v560 = vsel %vm304, 1.0, 0.0
  %v561 = vsel %vm305, 1.0, 0.0
  %v562 = vsel %vm306, 1.0, 0.0
  %v563 = vsel %vm307, 1.0, 0.0
  %v564 = vsel %vm308, 1.0, 0.0
  %v565 = vsel %vm309, 1.0, 0.0
  %v566 = vsel %vm310, 1.0, 0.0
  %v567 = vsel %vm311, 1.0, 0.0
  %v568 = vsel %vm312, 1.0, 0.0
  %v569 = vsel %vm313, 1.0, 0.0
  %v570 = vsel %vm314, 1.0, 0.0
  %v571 = vsel %vm315, 1.0, 0.0
  %v572 = vsel %vm316, 1.0, 0.0
  %v573 = vsel %vm317, 1.0, 0.0
  %v574 = vsel %vm318, 1.0, 0.0
  %v575 = vsel %vm319, 1.0, 0.0
  %v576 = vsel %vm320, 1.0, 0.0
  %v577 = vsel %vm321, 1.0, 0.0
  %v578 = vsel %vm322, 1.0, 0.0
  %v579 = vsel %vm323, 1.0, 0.0
  %v580 = vsel %vm324, 1.0, 0.0
  %v581 = vsel %vm325, 1.0, 0.0
  %v582 = vsel %vm326, 1.0, 0.0
  %v583 = vsel %vm327, 1.0, 0.0
  %v584 = vsel %vm328, 1.0, 0.0
  %v585 = vsel %vm329, 1.0, 0.0
  %v586 = vsel %vm330, 1.0, 0.0
  %v587 = vsel %vm331, 1.0, 0.0
  %v588 = vsel %vm332, 1.0, 0.0
  %v589 = vsel %vm333, 1.0, 0.0
  %v590 = vsel %vm334, 1.0, 0.0
  %v591 = vsel %vm335, 1.0, 0.0
  %v592 = vsel %vm336, 1.0, 0.0
  %v593 = vsel %vm337, 1.0, 0.0
  %v594 = vsel %vm338, 1.0, 0.0
  %v595 = vsel %vm339, 1.0, 0.0
  %v596 = vsel %vm340, 1.0, 0.0
  %v597 = vsel %vm341, 1.0, 0.0
  %v598 = vsel %vm342, 1.0, 0.0
  %v599 = vsel %vm343, 1.0, 0.0
  %v600 = vsel %vm344, 1.0, 0.0
  %v601 = vsel %vm345, 1.0, 0.0
  %v602 = vsel %vm346, 1.0, 0.0
  %v603 = vsel %vm347, 1.0, 0.0
  %v604 = vsel %vm348, 1.0, 0.0
  %v605 = vsel %vm349, 1.0, 0.0
  %v606 = vsel %vm350, 1.0, 0.0
  %v607 = vsel %vm351, 1.0, 0.0
  %v608 = vsel %vm352, 1.0, 0.0
  %v609 = vsel %vm353, 1.0, 0.0
  %v610 = vsel %vm354, 1.0, 0.0
  %v611 = vsel %vm355, 1.0, 0.0
  %v612 = vsel %vm356, 1.0, 0.0
  %v613 = vsel %vm357, 1.0, 0.0
  %v614 = vsel %vm358, 1.0, 0.0
  %v615 = vsel %vm359, 1.0, 0.0
  %v616 = vsel %vm360, 1.0, 0.0
  %v617 = vsel %vm361, 1.0, 0.0
  %v618 = vsel %vm362, 1.0, 0.0
  %v619 = vsel %vm363, 1.0, 0.0
  %v620 = vsel %vm364, 1.0, 0.0
  %v621 = vsel %vm365, 1.0, 0.0
  %v622 = vsel %vm366, 1.0, 0.0
  %v623 = vsel %vm367, 1.0, 0.0
  %v624 = vsel %vm368, 1.0, 0.0
  %v625 = vsel %vm369, 1.0, 0.0
  %v626 = vsel %vm370, 1.0, 0.0
  %v627 = vsel %vm371, 1.0, 0.0
  %v628 = vsel %vm372, 1.0, 0.0
  %v629 = vsel %vm373, 1.0, 0.0
  %v630 = vsel %vm374, 1.0, 0.0
  %v631 = vsel %vm375, 1.0, 0.0
  %v632 = vsel %vm376, 1.0, 0.0
  %v633 = vsel %vm377, 1.0, 0.0
  %v634 = vsel %vm378, 1.0, 0.0
  %v635 = vsel %vm379, 1.0, 0.0
  %v636 = vsel %vm380, 1.0, 0.0
  %v637 = vsel %vm381, 1.0, 0.0
  %v638 = vsel %vm382, 1.0, 0.0
  %v639 = vsel %vm383, 1.0, 0.0
  %v640 = vsel %vm384, 1.0, 0.0
  %v641 = vsel %vm385, 1.0, 0.0
  %v642 = vsel %vm386, 1.0, 0.0
  %v643 = vsel %vm387, 1.0, 0.0
  %v644 = vsel %vm388, 1.0, 0.0
  %v645 = vsel %vm389, 1.0, 0.0
  %v646 = vsel %vm390, 1.0, 0.0
  %v647 = vsel %vm391, 1.0, 0.0
  %v648 = vsel %vm392, 1.0, 0.0
  %v649 = vsel %vm393, 1.0, 0.0
  %v650 = vsel %vm394, 1.0, 0.0
  %v651 = vsel %vm395, 1.0, 0.0
  %v652 = vsel %vm396, 1.0, 0.0
  %v653 = vsel %vm397, 1.0, 0.0
  %v654 = vsel %vm398, 1.0, 0.0
  %v655 = vsel %vm399, 1.0, 0.0
  %v656 = vsel %vm400, 1.0, 0.0
  %v657 = vsel %vm401, 1.0, 0.0
  %v658 = vsel %vm402, 1.0, 0.0
  %v659 = vsel %vm403, 1.0, 0.0
  %v660 = vsel %vm404, 1.0, 0.0
  %v661 = vsel %vm405, 1.0, 0.0
  %v662 = vsel %vm406, 1.0, 0.0
  %v663 = vsel %vm407, 1.0, 0.0
  %v664 = vsel %vm408, 1.0, 0.0
  %v665 = vsel %vm409, 1.0, 0.0
  %v666 = vsel %vm410, 1.0, 0.0
  %v667 = vsel %vm411, 1.0, 0.0
  %v668 = vsel %vm412, 1.0, 0.0
  %v669 = vsel %vm413, 1.0, 0.0
  %v670 = vsel %vm414, 1.0, 0.0
  %v671 = vsel %vm415, 1.0, 0.0
  %v672 = vsel %vm416, 1.0, 0.0
  %v673 = vsel %vm417, 1.0, 0.0
  %v674 = vsel %vm418, 1.0, 0.0
  %v675 = vsel %vm419, 1.0, 0.0
  %v676 = vsel %vm420, 1.0, 0.0
  %v677 = vsel %vm421, 1.0, 0.0
  %v678 = vsel %vm422, 1.0, 0.0
  %v679 = vsel %vm423, 1.0, 0.0
  %v680 = vsel %vm424, 1.0, 0.0
  %v681 = vsel %vm425, 1.0, 0.0
  %v682 = vsel %vm426, 1.0, 0.0
  %v683 = vpack.c.bf16 %v435, %v427
  %v684 = vpack.c.bf16 %v436, %v428
  %v685 = vpack.c.bf16 %v437, %v429
  %v686 = vpack.c.bf16 %v438, %v430
  %v687 = vpack.c.bf16 %v439, %v431
  %v688 = vpack.c.bf16 %v440, %v432
  %v689 = vpack.c.bf16 %v441, %v433
  %v690 = vpack.c.bf16 %v442, %v434
  %v691 = vpack.c.bf16 %v451, %v443
  %v692 = vpack.c.bf16 %v452, %v444
  %v693 = vpack.c.bf16 %v453, %v445
  %v694 = vpack.c.bf16 %v454, %v446
  %v695 = vpack.c.bf16 %v455, %v447
  %v696 = vpack.c.bf16 %v456, %v448
  %v697 = vpack.c.bf16 %v457, %v449
  %v698 = vpack.c.bf16 %v458, %v450
  %v699 = vpack.c.bf16 %v467, %v459
  %v700 = vpack.c.bf16 %v468, %v460
  %v701 = vpack.c.bf16 %v469, %v461
  %v702 = vpack.c.bf16 %v470, %v462
  %v703 = vpack.c.bf16 %v471, %v463
  %v704 = vpack.c.bf16 %v472, %v464
  %v705 = vpack.c.bf16 %v473, %v465
  %v706 = vpack.c.bf16 %v474, %v466
  %v707 = vpack.c.bf16 %v483, %v475
  %v708 = vpack.c.bf16 %v484, %v476
  %v709 = vpack.c.bf16 %v485, %v477
  %v710 = vpack.c.bf16 %v486, %v478
  %v711 = vpack.c.bf16 %v487, %v479
  %v712 = vpack.c.bf16 %v488, %v480
  %v713 = vpack.c.bf16 %v489, %v481
  %v714 = vpack.c.bf16 %v490, %v482
  %v715 = vpack.c.bf16 %v499, %v491
  %v716 = vpack.c.bf16 %v500, %v492
  %v717 = vpack.c.bf16 %v501, %v493
  %v718 = vpack.c.bf16 %v502, %v494
  %v719 = vpack.c.bf16 %v503, %v495
  %v720 = vpack.c.bf16 %v504, %v496
  %v721 = vpack.c.bf16 %v505, %v497
  %v722 = vpack.c.bf16 %v506, %v498
  %v723 = vpack.c.bf16 %v515, %v507
  %v724 = vpack.c.bf16 %v516, %v508
  %v725 = vpack.c.bf16 %v517, %v509
  %v726 = vpack.c.bf16 %v518, %v510
  %v727 = vpack.c.bf16 %v519, %v511
  %v728 = vpack.c.bf16 %v520, %v512
  %v729 = vpack.c.bf16 %v521, %v513
  %v730 = vpack.c.bf16 %v522, %v514
  %v731 = vpack.c.bf16 %v531, %v523
  %v732 = vpack.c.bf16 %v532, %v524
  %v733 = vpack.c.bf16 %v533, %v525
  %v734 = vpack.c.bf16 %v534, %v526
  %v735 = vpack.c.bf16 %v535, %v527
  %v736 = vpack.c.bf16 %v536, %v528
  %v737 = vpack.c.bf16 %v537, %v529
  %v738 = vpack.c.bf16 %v538, %v530
  %v739 = vpack.c.bf16 %v547, %v539
  %v740 = vpack.c.bf16 %v548, %v540
  %v741 = vpack.c.bf16 %v549, %v541
  %v742 = vpack.c.bf16 %v550, %v542
  %v743 = vpack.c.bf16 %v551, %v543
  %v744 = vpack.c.bf16 %v552, %v544
  %v745 = vpack.c.bf16 %v553, %v545
  %v746 = vpack.c.bf16 %v554, %v546
  %v747 = vpack.c.bf16 %v563, %v555
  %v748 = vpack.c.bf16 %v564, %v556
  %v749 = vpack.c.bf16 %v565, %v557
  %v750 = vpack.c.bf16 %v566, %v558
  %v751 = vpack.c.bf16 %v567, %v559
  %v752 = vpack.c.bf16 %v568, %v560
  %v753 = vpack.c.bf16 %v569, %v561
  %v754 = vpack.c.bf16 %v570, %v562
  %v755 = vpack.c.bf16 %v579, %v571
  %v756 = vpack.c.bf16 %v580, %v572
  %v757 = vpack.c.bf16 %v581, %v573
  %v758 = vpack.c.bf16 %v582, %v574
  %v759 = vpack.c.bf16 %v583, %v575
  %v760 = vpack.c.bf16 %v584, %v576
  %v761 = vpack.c.bf16 %v585, %v577
  %v762 = vpack.c.bf16 %v586, %v578
  %v763 = vpack.c.bf16 %v595, %v587
  %v764 = vpack.c.bf16 %v596, %v588
  %v765 = vpack.c.bf16 %v597, %v589
  %v766 = vpack.c.bf16 %v598, %v590
  %v767 = vpack.c.bf16 %v599, %v591
  %v768 = vpack.c.bf16 %v600, %v592
  %v769 = vpack.c.bf16 %v601, %v593
  %v770 = vpack.c.bf16 %v602, %v594
  %v771 = vpack.c.bf16 %v611, %v603
  %v772 = vpack.c.bf16 %v612, %v604
  %v773 = vpack.c.bf16 %v613, %v605
  %v774 = vpack.c.bf16 %v614, %v606
  %v775 = vpack.c.bf16 %v615, %v607
  %v776 = vpack.c.bf16 %v616, %v608
  %v777 = vpack.c.bf16 %v617, %v609
  %v778 = vpack.c.bf16 %v618, %v610
  %v779 = vpack.c.bf16 %v627, %v619
  %v780 = vpack.c.bf16 %v628, %v620
  %v781 = vpack.c.bf16 %v629, %v621
  %v782 = vpack.c.bf16 %v630, %v622
  %v783 = vpack.c.bf16 %v631, %v623
  %v784 = vpack.c.bf16 %v632, %v624
  %v785 = vpack.c.bf16 %v633, %v625
  %v786 = vpack.c.bf16 %v634, %v626
  %v787 = vpack.c.bf16 %v643, %v635
  %v788 = vpack.c.bf16 %v644, %v636
  %v789 = vpack.c.bf16 %v645, %v637
  %v790 = vpack.c.bf16 %v646, %v638
  %v791 = vpack.c.bf16 %v647, %v639
  %v792 = vpack.c.bf16 %v648, %v640
  %v793 = vpack.c.bf16 %v649, %v641
  %v794 = vpack.c.bf16 %v650, %v642
  %v795 = vpack.c.bf16 %v659, %v651
  %v796 = vpack.c.bf16 %v660, %v652
  %v797 = vpack.c.bf16 %v661, %v653
  %v798 = vpack.c.bf16 %v662, %v654
  %v799 = vpack.c.bf16 %v663, %v655
  %v800 = vpack.c.bf16 %v664, %v656
  %v801 = vpack.c.bf16 %v665, %v657
  %v802 = vpack.c.bf16 %v666, %v658
  %v803 = vpack.c.bf16 %v675, %v667
  %v804 = vpack.c.bf16 %v676, %v668
  %v805 = vpack.c.bf16 %v677, %v669
  %v806 = vpack.c.bf16 %v678, %v670
  %v807 = vpack.c.bf16 %v679, %v671
  %v808 = vpack.c.bf16 %v680, %v672
  %v809 = vpack.c.bf16 %v681, %v673
  %v810 = vpack.c.bf16 %v682, %v674
  %v811 = vld [vmem:[%s1] sm:$0xff]
  %v812 = vld [vmem:[%s1 + $0x8] sm:$0xff]
  %v813 = vld [vmem:[%s1 + $0x10] sm:$0xff]
  %v814 = vld [vmem:[%s1 + $0x18] sm:$0xff]
  %v815 = vld [vmem:[%s1 + $0x20] sm:$0xff]
  %v816 = vld [vmem:[%s1 + $0x28] sm:$0xff]
  %v817 = vld [vmem:[%s1 + $0x30] sm:$0xff]
  %v818 = vld [vmem:[%s1 + $0x38] sm:$0xff]
  %v819 = vld [vmem:[%s1 + $0x40] sm:$0xff]
  %v820 = vld [vmem:[%s1 + $0x48] sm:$0xff]
  %v821 = vld [vmem:[%s1 + $0x50] sm:$0xff]
  %v822 = vld [vmem:[%s1 + $0x58] sm:$0xff]
  %v823 = vld [vmem:[%s1 + $0x60] sm:$0xff]
  %v824 = vld [vmem:[%s1 + $0x68] sm:$0xff]
  %v825 = vld [vmem:[%s1 + $0x70] sm:$0xff]
  %v826 = vld [vmem:[%s1 + $0x78] sm:$0xff]
  %v827 = vld [vmem:[%s1 + $0x80] sm:$0xff]
  %v828 = vld [vmem:[%s1 + $0x88] sm:$0xff]
  %v829 = vld [vmem:[%s1 + $0x90] sm:$0xff]
  %v830 = vld [vmem:[%s1 + $0x98] sm:$0xff]
  %v831 = vld [vmem:[%s1 + $0xa0] sm:$0xff]
  %v832 = vld [vmem:[%s1 + $0xa8] sm:$0xff]
  %v833 = vld [vmem:[%s1 + $0xb0] sm:$0xff]
  %v834 = vld [vmem:[%s1 + $0xb8] sm:$0xff]
  %v835 = vld [vmem:[%s1 + $0xc0] sm:$0xff]
  %v836 = vld [vmem:[%s1 + $0xc8] sm:$0xff]
  %v837 = vld [vmem:[%s1 + $0xd0] sm:$0xff]
  %v838 = vld [vmem:[%s1 + $0xd8] sm:$0xff]
  %v839 = vld [vmem:[%s1 + $0xe0] sm:$0xff]
  %v840 = vld [vmem:[%s1 + $0xe8] sm:$0xff]
  %v841 = vld [vmem:[%s1 + $0xf0] sm:$0xff]
  %v842 = vld [vmem:[%s1 + $0xf8] sm:$0xff]
  %v843 = vld [vmem:[%s1 + $0x100] sm:$0xff]
  %v844 = vld [vmem:[%s1 + $0x108] sm:$0xff]
  %v845 = vld [vmem:[%s1 + $0x110] sm:$0xff]
  %v846 = vld [vmem:[%s1 + $0x118] sm:$0xff]
  %v847 = vld [vmem:[%s1 + $0x120] sm:$0xff]
  %v848 = vld [vmem:[%s1 + $0x128] sm:$0xff]
  %v849 = vld [vmem:[%s1 + $0x130] sm:$0xff]
  %v850 = vld [vmem:[%s1 + $0x138] sm:$0xff]
  %v851 = vld [vmem:[%s1 + $0x140] sm:$0xff]
  %v852 = vld [vmem:[%s1 + $0x148] sm:$0xff]
  %v853 = vld [vmem:[%s1 + $0x150] sm:$0xff]
  %v854 = vld [vmem:[%s1 + $0x158] sm:$0xff]
  %v855 = vld [vmem:[%s1 + $0x160] sm:$0xff]
  %v856 = vld [vmem:[%s1 + $0x168] sm:$0xff]
  %v857 = vld [vmem:[%s1 + $0x170] sm:$0xff]
  %v858 = vld [vmem:[%s1 + $0x178] sm:$0xff]
  %v859 = vld [vmem:[%s1 + $0x180] sm:$0xff]
  %v860 = vld [vmem:[%s1 + $0x188] sm:$0xff]
  %v861 = vld [vmem:[%s1 + $0x190] sm:$0xff]
  %v862 = vld [vmem:[%s1 + $0x198] sm:$0xff]
  %v863 = vld [vmem:[%s1 + $0x1a0] sm:$0xff]
  %v864 = vld [vmem:[%s1 + $0x1a8] sm:$0xff]
  %v865 = vld [vmem:[%s1 + $0x1b0] sm:$0xff]
  %v866 = vld [vmem:[%s1 + $0x1b8] sm:$0xff]
  %v867 = vld [vmem:[%s1 + $0x1c0] sm:$0xff]
  %v868 = vld [vmem:[%s1 + $0x1c8] sm:$0xff]
  %v869 = vld [vmem:[%s1 + $0x1d0] sm:$0xff]
  %v870 = vld [vmem:[%s1 + $0x1d8] sm:$0xff]
  %v871 = vld [vmem:[%s1 + $0x1e0] sm:$0xff]
  %v872 = vld [vmem:[%s1 + $0x1e8] sm:$0xff]
  %v873 = vld [vmem:[%s1 + $0x1f0] sm:$0xff]
  %v874 = vld [vmem:[%s1 + $0x1f8] sm:$0xff]
  %v875 = vld [vmem:[%s1 + $0x200] sm:$0xff]
  %v876 = vld [vmem:[%s1 + $0x208] sm:$0xff]
  %v877 = vld [vmem:[%s1 + $0x210] sm:$0xff]
  %v878 = vld [vmem:[%s1 + $0x218] sm:$0xff]
  %v879 = vld [vmem:[%s1 + $0x220] sm:$0xff]
  %v880 = vld [vmem:[%s1 + $0x228] sm:$0xff]
  %v881 = vld [vmem:[%s1 + $0x230] sm:$0xff]
  %v882 = vld [vmem:[%s1 + $0x238] sm:$0xff]
  %v883 = vld [vmem:[%s1 + $0x240] sm:$0xff]
  %v884 = vld [vmem:[%s1 + $0x248] sm:$0xff]
  %v885 = vld [vmem:[%s1 + $0x250] sm:$0xff]
  %v886 = vld [vmem:[%s1 + $0x258] sm:$0xff]
  %v887 = vld [vmem:[%s1 + $0x260] sm:$0xff]
  %v888 = vld [vmem:[%s1 + $0x268] sm:$0xff]
  %v889 = vld [vmem:[%s1 + $0x270] sm:$0xff]
  %v890 = vld [vmem:[%s1 + $0x278] sm:$0xff]
  %v891 = vld [vmem:[%s1 + $0x280] sm:$0xff]
  %v892 = vld [vmem:[%s1 + $0x288] sm:$0xff]
  %v893 = vld [vmem:[%s1 + $0x290] sm:$0xff]
  %v894 = vld [vmem:[%s1 + $0x298] sm:$0xff]
  %v895 = vld [vmem:[%s1 + $0x2a0] sm:$0xff]
  %v896 = vld [vmem:[%s1 + $0x2a8] sm:$0xff]
  %v897 = vld [vmem:[%s1 + $0x2b0] sm:$0xff]
  %v898 = vld [vmem:[%s1 + $0x2b8] sm:$0xff]
  %v899 = vld [vmem:[%s1 + $0x2c0] sm:$0xff]
  %v900 = vld [vmem:[%s1 + $0x2c8] sm:$0xff]
  %v901 = vld [vmem:[%s1 + $0x2d0] sm:$0xff]
  %v902 = vld [vmem:[%s1 + $0x2d8] sm:$0xff]
  %v903 = vld [vmem:[%s1 + $0x2e0] sm:$0xff]
  %v904 = vld [vmem:[%s1 + $0x2e8] sm:$0xff]
  %v905 = vld [vmem:[%s1 + $0x2f0] sm:$0xff]
  %v906 = vld [vmem:[%s1 + $0x2f8] sm:$0xff]
  %v907 = vld [vmem:[%s1 + $0x300] sm:$0xff]
  %v908 = vld [vmem:[%s1 + $0x308] sm:$0xff]
  %v909 = vld [vmem:[%s1 + $0x310] sm:$0xff]
  %v910 = vld [vmem:[%s1 + $0x318] sm:$0xff]
  %v911 = vld [vmem:[%s1 + $0x320] sm:$0xff]
  %v912 = vld [vmem:[%s1 + $0x328] sm:$0xff]
  %v913 = vld [vmem:[%s1 + $0x330] sm:$0xff]
  %v914 = vld [vmem:[%s1 + $0x338] sm:$0xff]
  %v915 = vld [vmem:[%s1 + $0x340] sm:$0xff]
  %v916 = vld [vmem:[%s1 + $0x348] sm:$0xff]
  %v917 = vld [vmem:[%s1 + $0x350] sm:$0xff]
  %v918 = vld [vmem:[%s1 + $0x358] sm:$0xff]
  %v919 = vld [vmem:[%s1 + $0x360] sm:$0xff]
  %v920 = vld [vmem:[%s1 + $0x368] sm:$0xff]
  %v921 = vld [vmem:[%s1 + $0x370] sm:$0xff]
  %v922 = vld [vmem:[%s1 + $0x378] sm:$0xff]
  %v923 = vld [vmem:[%s1 + $0x380] sm:$0xff]
  %v924 = vld [vmem:[%s1 + $0x388] sm:$0xff]
  %v925 = vld [vmem:[%s1 + $0x390] sm:$0xff]
  %v926 = vld [vmem:[%s1 + $0x398] sm:$0xff]
  %v927 = vld [vmem:[%s1 + $0x3a0] sm:$0xff]
  %v928 = vld [vmem:[%s1 + $0x3a8] sm:$0xff]
  %v929 = vld [vmem:[%s1 + $0x3b0] sm:$0xff]
  %v930 = vld [vmem:[%s1 + $0x3b8] sm:$0xff]
  %v931 = vld [vmem:[%s1 + $0x3c0] sm:$0xff]
  %v932 = vld [vmem:[%s1 + $0x3c8] sm:$0xff]
  %v933 = vld [vmem:[%s1 + $0x3d0] sm:$0xff]
  %v934 = vld [vmem:[%s1 + $0x3d8] sm:$0xff]
  %v935 = vld [vmem:[%s1 + $0x3e0] sm:$0xff]
  %v936 = vld [vmem:[%s1 + $0x3e8] sm:$0xff]
  %v937 = vld [vmem:[%s1 + $0x3f0] sm:$0xff]
  %v938 = vld [vmem:[%s1 + $0x3f8] sm:$0xff]
  %v939 = vld [vmem:[%s1 + $0x400] sm:$0xff]
  %v940 = vld [vmem:[%s1 + $0x408] sm:$0xff]
  %v941 = vld [vmem:[%s1 + $0x410] sm:$0xff]
  %v942 = vld [vmem:[%s1 + $0x418] sm:$0xff]
  %v943 = vld [vmem:[%s1 + $0x420] sm:$0xff]
  %v944 = vld [vmem:[%s1 + $0x428] sm:$0xff]
  %v945 = vld [vmem:[%s1 + $0x430] sm:$0xff]
  %v946 = vld [vmem:[%s1 + $0x438] sm:$0xff]
  %v947 = vld [vmem:[%s1 + $0x440] sm:$0xff]
  %v948 = vld [vmem:[%s1 + $0x448] sm:$0xff]
  %v949 = vld [vmem:[%s1 + $0x450] sm:$0xff]
  %v950 = vld [vmem:[%s1 + $0x458] sm:$0xff]
  %v951 = vld [vmem:[%s1 + $0x460] sm:$0xff]
  %v952 = vld [vmem:[%s1 + $0x468] sm:$0xff]
  %v953 = vld [vmem:[%s1 + $0x470] sm:$0xff]
  %v954 = vld [vmem:[%s1 + $0x478] sm:$0xff]
  %v955 = vld [vmem:[%s1 + $0x480] sm:$0xff]
  %v956 = vld [vmem:[%s1 + $0x488] sm:$0xff]
  %v957 = vld [vmem:[%s1 + $0x490] sm:$0xff]
  %v958 = vld [vmem:[%s1 + $0x498] sm:$0xff]
  %v959 = vld [vmem:[%s1 + $0x4a0] sm:$0xff]
  %v960 = vld [vmem:[%s1 + $0x4a8] sm:$0xff]
  %v961 = vld [vmem:[%s1 + $0x4b0] sm:$0xff]
  %v962 = vld [vmem:[%s1 + $0x4b8] sm:$0xff]
  %v963 = vld [vmem:[%s1 + $0x4c0] sm:$0xff]
  %v964 = vld [vmem:[%s1 + $0x4c8] sm:$0xff]
  %v965 = vld [vmem:[%s1 + $0x4d0] sm:$0xff]
  %v966 = vld [vmem:[%s1 + $0x4d8] sm:$0xff]
  %v967 = vld [vmem:[%s1 + $0x4e0] sm:$0xff]
  %v968 = vld [vmem:[%s1 + $0x4e8] sm:$0xff]
  %v969 = vld [vmem:[%s1 + $0x4f0] sm:$0xff]
  %v970 = vld [vmem:[%s1 + $0x4f8] sm:$0xff]
  %v971 = vld [vmem:[%s1 + $0x500] sm:$0xff]
  %v972 = vld [vmem:[%s1 + $0x508] sm:$0xff]
  %v973 = vld [vmem:[%s1 + $0x510] sm:$0xff]
  %v974 = vld [vmem:[%s1 + $0x518] sm:$0xff]
  %v975 = vld [vmem:[%s1 + $0x520] sm:$0xff]
  %v976 = vld [vmem:[%s1 + $0x528] sm:$0xff]
  %v977 = vld [vmem:[%s1 + $0x530] sm:$0xff]
  %v978 = vld [vmem:[%s1 + $0x538] sm:$0xff]
  %v979 = vld [vmem:[%s1 + $0x540] sm:$0xff]
  %v980 = vld [vmem:[%s1 + $0x548] sm:$0xff]
  %v981 = vld [vmem:[%s1 + $0x550] sm:$0xff]
  %v982 = vld [vmem:[%s1 + $0x558] sm:$0xff]
  %v983 = vld [vmem:[%s1 + $0x560] sm:$0xff]
  %v984 = vld [vmem:[%s1 + $0x568] sm:$0xff]
  %v985 = vld [vmem:[%s1 + $0x570] sm:$0xff]
  %v986 = vld [vmem:[%s1 + $0x578] sm:$0xff]
  %v987 = vld [vmem:[%s1 + $0x580] sm:$0xff]
  %v988 = vld [vmem:[%s1 + $0x588] sm:$0xff]
  %v989 = vld [vmem:[%s1 + $0x590] sm:$0xff]
  %v990 = vld [vmem:[%s1 + $0x598] sm:$0xff]
  %v991 = vld [vmem:[%s1 + $0x5a0] sm:$0xff]
  %v992 = vld [vmem:[%s1 + $0x5a8] sm:$0xff]
  %v993 = vld [vmem:[%s1 + $0x5b0] sm:$0xff]
  %v994 = vld [vmem:[%s1 + $0x5b8] sm:$0xff]
  %v995 = vld [vmem:[%s1 + $0x5c0] sm:$0xff]
  %v996 = vld [vmem:[%s1 + $0x5c8] sm:$0xff]
  %v997 = vld [vmem:[%s1 + $0x5d0] sm:$0xff]
  %v998 = vld [vmem:[%s1 + $0x5d8] sm:$0xff]
  %v999 = vld [vmem:[%s1 + $0x5e0] sm:$0xff]
  %v1000 = vld [vmem:[%s1 + $0x5e8] sm:$0xff]
  %v1001 = vld [vmem:[%s1 + $0x5f0] sm:$0xff]
  %v1002 = vld [vmem:[%s1 + $0x5f8] sm:$0xff]
  %v1003 = vld [vmem:[%s1 + $0x600] sm:$0xff]
  %v1004 = vld [vmem:[%s1 + $0x608] sm:$0xff]
  %v1005 = vld [vmem:[%s1 + $0x610] sm:$0xff]
  %v1006 = vld [vmem:[%s1 + $0x618] sm:$0xff]
  %v1007 = vld [vmem:[%s1 + $0x620] sm:$0xff]
  %v1008 = vld [vmem:[%s1 + $0x628] sm:$0xff]
  %v1009 = vld [vmem:[%s1 + $0x630] sm:$0xff]
  %v1010 = vld [vmem:[%s1 + $0x638] sm:$0xff]
  %v1011 = vld [vmem:[%s1 + $0x640] sm:$0xff]
  %v1012 = vld [vmem:[%s1 + $0x648] sm:$0xff]
  %v1013 = vld [vmem:[%s1 + $0x650] sm:$0xff]
  %v1014 = vld [vmem:[%s1 + $0x658] sm:$0xff]
  %v1015 = vld [vmem:[%s1 + $0x660] sm:$0xff]
  %v1016 = vld [vmem:[%s1 + $0x668] sm:$0xff]
  %v1017 = vld [vmem:[%s1 + $0x670] sm:$0xff]
  %v1018 = vld [vmem:[%s1 + $0x678] sm:$0xff]
  %v1019 = vld [vmem:[%s1 + $0x680] sm:$0xff]
  %v1020 = vld [vmem:[%s1 + $0x688] sm:$0xff]
  %v1021 = vld [vmem:[%s1 + $0x690] sm:$0xff]
  %v1022 = vld [vmem:[%s1 + $0x698] sm:$0xff]
  %v1023 = vld [vmem:[%s1 + $0x6a0] sm:$0xff]
  %v1024 = vld [vmem:[%s1 + $0x6a8] sm:$0xff]
  %v1025 = vld [vmem:[%s1 + $0x6b0] sm:$0xff]
  %v1026 = vld [vmem:[%s1 + $0x6b8] sm:$0xff]
  %v1027 = vld [vmem:[%s1 + $0x6c0] sm:$0xff]
  %v1028 = vld [vmem:[%s1 + $0x6c8] sm:$0xff]
  %v1029 = vld [vmem:[%s1 + $0x6d0] sm:$0xff]
  %v1030 = vld [vmem:[%s1 + $0x6d8] sm:$0xff]
  %v1031 = vld [vmem:[%s1 + $0x6e0] sm:$0xff]
  %v1032 = vld [vmem:[%s1 + $0x6e8] sm:$0xff]
  %v1033 = vld [vmem:[%s1 + $0x6f0] sm:$0xff]
  %v1034 = vld [vmem:[%s1 + $0x6f8] sm:$0xff]
  %v1035 = vld [vmem:[%s1 + $0x700] sm:$0xff]
  %v1036 = vld [vmem:[%s1 + $0x708] sm:$0xff]
  %v1037 = vld [vmem:[%s1 + $0x710] sm:$0xff]
  %v1038 = vld [vmem:[%s1 + $0x718] sm:$0xff]
  %v1039 = vld [vmem:[%s1 + $0x720] sm:$0xff]
  %v1040 = vld [vmem:[%s1 + $0x728] sm:$0xff]
  %v1041 = vld [vmem:[%s1 + $0x730] sm:$0xff]
  %v1042 = vld [vmem:[%s1 + $0x738] sm:$0xff]
  %v1043 = vld [vmem:[%s1 + $0x740] sm:$0xff]
  %v1044 = vld [vmem:[%s1 + $0x748] sm:$0xff]
  %v1045 = vld [vmem:[%s1 + $0x750] sm:$0xff]
  %v1046 = vld [vmem:[%s1 + $0x758] sm:$0xff]
  %v1047 = vld [vmem:[%s1 + $0x760] sm:$0xff]
  %v1048 = vld [vmem:[%s1 + $0x768] sm:$0xff]
  %v1049 = vld [vmem:[%s1 + $0x770] sm:$0xff]
  %v1050 = vld [vmem:[%s1 + $0x778] sm:$0xff]
  %v1051 = vld [vmem:[%s1 + $0x780] sm:$0xff]
  %v1052 = vld [vmem:[%s1 + $0x788] sm:$0xff]
  %v1053 = vld [vmem:[%s1 + $0x790] sm:$0xff]
  %v1054 = vld [vmem:[%s1 + $0x798] sm:$0xff]
  %v1055 = vld [vmem:[%s1 + $0x7a0] sm:$0xff]
  %v1056 = vld [vmem:[%s1 + $0x7a8] sm:$0xff]
  %v1057 = vld [vmem:[%s1 + $0x7b0] sm:$0xff]
  %v1058 = vld [vmem:[%s1 + $0x7b8] sm:$0xff]
  %v1059 = vld [vmem:[%s1 + $0x7c0] sm:$0xff]
  %v1060 = vld [vmem:[%s1 + $0x7c8] sm:$0xff]
  %v1061 = vld [vmem:[%s1 + $0x7d0] sm:$0xff]
  %v1062 = vld [vmem:[%s1 + $0x7d8] sm:$0xff]
  %v1063 = vld [vmem:[%s1 + $0x7e0] sm:$0xff]
  %v1064 = vld [vmem:[%s1 + $0x7e8] sm:$0xff]
  %v1065 = vld [vmem:[%s1 + $0x7f0] sm:$0xff]
  %v1066 = vld [vmem:[%s1 + $0x7f8] sm:$0xff]
  %v1323 = vunpack.c.l.b16 %v811
  %v1324 = vunpack.c.h.b16 %v811
  %v1325 = vunpack.c.l.b16 %v812
  %v1326 = vunpack.c.h.b16 %v812
  %v1327 = vunpack.c.l.b16 %v813
  %v1328 = vunpack.c.h.b16 %v813
  %v1329 = vunpack.c.l.b16 %v814
  %v1330 = vunpack.c.h.b16 %v814
  %v1331 = vunpack.c.l.b16 %v815
  %v1332 = vunpack.c.h.b16 %v815
  %v1333 = vunpack.c.l.b16 %v816
  %v1334 = vunpack.c.h.b16 %v816
  %v1335 = vunpack.c.l.b16 %v817
  %v1336 = vunpack.c.h.b16 %v817
  %v1337 = vunpack.c.l.b16 %v818
  %v1338 = vunpack.c.h.b16 %v818
  %v1339 = vunpack.c.l.b16 %v819
  %v1340 = vunpack.c.h.b16 %v819
  %v1341 = vunpack.c.l.b16 %v820
  %v1342 = vunpack.c.h.b16 %v820
  %v1343 = vunpack.c.l.b16 %v821
  %v1344 = vunpack.c.h.b16 %v821
  %v1345 = vunpack.c.l.b16 %v822
  %v1346 = vunpack.c.h.b16 %v822
  %v1347 = vunpack.c.l.b16 %v823
  %v1348 = vunpack.c.h.b16 %v823
  %v1349 = vunpack.c.l.b16 %v824
  %v1350 = vunpack.c.h.b16 %v824
  %v1351 = vunpack.c.l.b16 %v825
  %v1352 = vunpack.c.h.b16 %v825
  %v1353 = vunpack.c.l.b16 %v826
  %v1354 = vunpack.c.h.b16 %v826
  %v1355 = vunpack.c.l.b16 %v827
  %v1356 = vunpack.c.h.b16 %v827
  %v1357 = vunpack.c.l.b16 %v828
  %v1358 = vunpack.c.h.b16 %v828
  %v1359 = vunpack.c.l.b16 %v829
  %v1360 = vunpack.c.h.b16 %v829
  %v1361 = vunpack.c.l.b16 %v830
  %v1362 = vunpack.c.h.b16 %v830
  %v1363 = vunpack.c.l.b16 %v831
  %v1364 = vunpack.c.h.b16 %v831
  %v1365 = vunpack.c.l.b16 %v832
  %v1366 = vunpack.c.h.b16 %v832
  %v1367 = vunpack.c.l.b16 %v833
  %v1368 = vunpack.c.h.b16 %v833
  %v1369 = vunpack.c.l.b16 %v834
  %v1370 = vunpack.c.h.b16 %v834
  %v1371 = vunpack.c.l.b16 %v835
  %v1372 = vunpack.c.h.b16 %v835
  %v1373 = vunpack.c.l.b16 %v836
  %v1374 = vunpack.c.h.b16 %v836
  %v1375 = vunpack.c.l.b16 %v837
  %v1376 = vunpack.c.h.b16 %v837
  %v1377 = vunpack.c.l.b16 %v838
  %v1378 = vunpack.c.h.b16 %v838
  %v1379 = vunpack.c.l.b16 %v839
  %v1380 = vunpack.c.h.b16 %v839
  %v1381 = vunpack.c.l.b16 %v840
  %v1382 = vunpack.c.h.b16 %v840
  %v1383 = vunpack.c.l.b16 %v841
  %v1384 = vunpack.c.h.b16 %v841
  %v1385 = vunpack.c.l.b16 %v842
  %v1386 = vunpack.c.h.b16 %v842
  %v1387 = vunpack.c.l.b16 %v843
  %v1388 = vunpack.c.h.b16 %v843
  %v1389 = vunpack.c.l.b16 %v844
  %v1390 = vunpack.c.h.b16 %v844
  %v1391 = vunpack.c.l.b16 %v845
  %v1392 = vunpack.c.h.b16 %v845
  %v1393 = vunpack.c.l.b16 %v846
  %v1394 = vunpack.c.h.b16 %v846
  %v1395 = vunpack.c.l.b16 %v847
  %v1396 = vunpack.c.h.b16 %v847
  %v1397 = vunpack.c.l.b16 %v848
  %v1398 = vunpack.c.h.b16 %v848
  %v1399 = vunpack.c.l.b16 %v849
  %v1400 = vunpack.c.h.b16 %v849
  %v1401 = vunpack.c.l.b16 %v850
  %v1402 = vunpack.c.h.b16 %v850
  %v1403 = vunpack.c.l.b16 %v851
  %v1404 = vunpack.c.h.b16 %v851
  %v1405 = vunpack.c.l.b16 %v852
  %v1406 = vunpack.c.h.b16 %v852
  %v1407 = vunpack.c.l.b16 %v853
  %v1408 = vunpack.c.h.b16 %v853
  %v1409 = vunpack.c.l.b16 %v854
  %v1410 = vunpack.c.h.b16 %v854
  %v1411 = vunpack.c.l.b16 %v855
  %v1412 = vunpack.c.h.b16 %v855
  %v1413 = vunpack.c.l.b16 %v856
  %v1414 = vunpack.c.h.b16 %v856
  %v1415 = vunpack.c.l.b16 %v857
  %v1416 = vunpack.c.h.b16 %v857
  %v1417 = vunpack.c.l.b16 %v858
  %v1418 = vunpack.c.h.b16 %v858
  %v1419 = vunpack.c.l.b16 %v859
  %v1420 = vunpack.c.h.b16 %v859
  %v1421 = vunpack.c.l.b16 %v860
  %v1422 = vunpack.c.h.b16 %v860
  %v1423 = vunpack.c.l.b16 %v861
  %v1424 = vunpack.c.h.b16 %v861
  %v1425 = vunpack.c.l.b16 %v862
  %v1426 = vunpack.c.h.b16 %v862
  %v1427 = vunpack.c.l.b16 %v863
  %v1428 = vunpack.c.h.b16 %v863
  %v1429 = vunpack.c.l.b16 %v864
  %v1430 = vunpack.c.h.b16 %v864
  %v1431 = vunpack.c.l.b16 %v865
  %v1432 = vunpack.c.h.b16 %v865
  %v1433 = vunpack.c.l.b16 %v866
  %v1434 = vunpack.c.h.b16 %v866
  %v1435 = vunpack.c.l.b16 %v867
  %v1436 = vunpack.c.h.b16 %v867
  %v1437 = vunpack.c.l.b16 %v868
  %v1438 = vunpack.c.h.b16 %v868
  %v1439 = vunpack.c.l.b16 %v869
  %v1440 = vunpack.c.h.b16 %v869
  %v1441 = vunpack.c.l.b16 %v870
  %v1442 = vunpack.c.h.b16 %v870
  %v1443 = vunpack.c.l.b16 %v871
  %v1444 = vunpack.c.h.b16 %v871
  %v1445 = vunpack.c.l.b16 %v872
  %v1446 = vunpack.c.h.b16 %v872
  %v1447 = vunpack.c.l.b16 %v873
  %v1448 = vunpack.c.h.b16 %v873
  %v1449 = vunpack.c.l.b16 %v874
  %v1450 = vunpack.c.h.b16 %v874
  %v1451 = vunpack.c.l.b16 %v875
  %v1452 = vunpack.c.h.b16 %v875
  %v1453 = vunpack.c.l.b16 %v876
  %v1454 = vunpack.c.h.b16 %v876
  %v1455 = vunpack.c.l.b16 %v877
  %v1456 = vunpack.c.h.b16 %v877
  %v1457 = vunpack.c.l.b16 %v878
  %v1458 = vunpack.c.h.b16 %v878
  %v1459 = vunpack.c.l.b16 %v879
  %v1460 = vunpack.c.h.b16 %v879
  %v1461 = vunpack.c.l.b16 %v880
  %v1462 = vunpack.c.h.b16 %v880
  %v1463 = vunpack.c.l.b16 %v881
  %v1464 = vunpack.c.h.b16 %v881
  %v1465 = vunpack.c.l.b16 %v882
  %v1466 = vunpack.c.h.b16 %v882
  %v1467 = vunpack.c.l.b16 %v883
  %v1468 = vunpack.c.h.b16 %v883
  %v1469 = vunpack.c.l.b16 %v884
  %v1470 = vunpack.c.h.b16 %v884
  %v1471 = vunpack.c.l.b16 %v885
  %v1472 = vunpack.c.h.b16 %v885
  %v1473 = vunpack.c.l.b16 %v886
  %v1474 = vunpack.c.h.b16 %v886
  %v1475 = vunpack.c.l.b16 %v887
  %v1476 = vunpack.c.h.b16 %v887
  %v1477 = vunpack.c.l.b16 %v888
  %v1478 = vunpack.c.h.b16 %v888
  %v1479 = vunpack.c.l.b16 %v889
  %v1480 = vunpack.c.h.b16 %v889
  %v1481 = vunpack.c.l.b16 %v890
  %v1482 = vunpack.c.h.b16 %v890
  %v1483 = vunpack.c.l.b16 %v891
  %v1484 = vunpack.c.h.b16 %v891
  %v1485 = vunpack.c.l.b16 %v892
  %v1486 = vunpack.c.h.b16 %v892
  %v1487 = vunpack.c.l.b16 %v893
  %v1488 = vunpack.c.h.b16 %v893
  %v1489 = vunpack.c.l.b16 %v894
  %v1490 = vunpack.c.h.b16 %v894
  %v1491 = vunpack.c.l.b16 %v895
  %v1492 = vunpack.c.h.b16 %v895
  %v1493 = vunpack.c.l.b16 %v896
  %v1494 = vunpack.c.h.b16 %v896
  %v1495 = vunpack.c.l.b16 %v897
  %v1496 = vunpack.c.h.b16 %v897
  %v1497 = vunpack.c.l.b16 %v898
  %v1498 = vunpack.c.h.b16 %v898
  %v1499 = vunpack.c.l.b16 %v899
  %v1500 = vunpack.c.h.b16 %v899
  %v1501 = vunpack.c.l.b16 %v900
  %v1502 = vunpack.c.h.b16 %v900
  %v1503 = vunpack.c.l.b16 %v901
  %v1504 = vunpack.c.h.b16 %v901
  %v1505 = vunpack.c.l.b16 %v902
  %v1506 = vunpack.c.h.b16 %v902
  %v1507 = vunpack.c.l.b16 %v903
  %v1508 = vunpack.c.h.b16 %v903
  %v1509 = vunpack.c.l.b16 %v904
  %v1510 = vunpack.c.h.b16 %v904
  %v1511 = vunpack.c.l.b16 %v905
  %v1512 = vunpack.c.h.b16 %v905
  %v1513 = vunpack.c.l.b16 %v906
  %v1514 = vunpack.c.h.b16 %v906
  %v1515 = vunpack.c.l.b16 %v907
  %v1516 = vunpack.c.h.b16 %v907
  %v1517 = vunpack.c.l.b16 %v908
  %v1518 = vunpack.c.h.b16 %v908
  %v1519 = vunpack.c.l.b16 %v909
  %v1520 = vunpack.c.h.b16 %v909
  %v1521 = vunpack.c.l.b16 %v910
  %v1522 = vunpack.c.h.b16 %v910
  %v1523 = vunpack.c.l.b16 %v911
  %v1524 = vunpack.c.h.b16 %v911
  %v1525 = vunpack.c.l.b16 %v912
  %v1526 = vunpack.c.h.b16 %v912
  %v1527 = vunpack.c.l.b16 %v913
  %v1528 = vunpack.c.h.b16 %v913
  %v1529 = vunpack.c.l.b16 %v914
  %v1530 = vunpack.c.h.b16 %v914
  %v1531 = vunpack.c.l.b16 %v915
  %v1532 = vunpack.c.h.b16 %v915
  %v1533 = vunpack.c.l.b16 %v916
  %v1534 = vunpack.c.h.b16 %v916
  %v1535 = vunpack.c.l.b16 %v917
  %v1536 = vunpack.c.h.b16 %v917
  %v1537 = vunpack.c.l.b16 %v918
  %v1538 = vunpack.c.h.b16 %v918
  %v1539 = vunpack.c.l.b16 %v919
  %v1540 = vunpack.c.h.b16 %v919
  %v1541 = vunpack.c.l.b16 %v920
  %v1542 = vunpack.c.h.b16 %v920
  %v1543 = vunpack.c.l.b16 %v921
  %v1544 = vunpack.c.h.b16 %v921
  %v1545 = vunpack.c.l.b16 %v922
  %v1546 = vunpack.c.h.b16 %v922
  %v1547 = vunpack.c.l.b16 %v923
  %v1548 = vunpack.c.h.b16 %v923
  %v1549 = vunpack.c.l.b16 %v924
  %v1550 = vunpack.c.h.b16 %v924
  %v1551 = vunpack.c.l.b16 %v925
  %v1552 = vunpack.c.h.b16 %v925
  %v1553 = vunpack.c.l.b16 %v926
  %v1554 = vunpack.c.h.b16 %v926
  %v1555 = vunpack.c.l.b16 %v927
  %v1556 = vunpack.c.h.b16 %v927
  %v1557 = vunpack.c.l.b16 %v928
  %v1558 = vunpack.c.h.b16 %v928
  %v1559 = vunpack.c.l.b16 %v929
  %v1560 = vunpack.c.h.b16 %v929
  %v1561 = vunpack.c.l.b16 %v930
  %v1562 = vunpack.c.h.b16 %v930
  %v1563 = vunpack.c.l.b16 %v931
  %v1564 = vunpack.c.h.b16 %v931
  %v1565 = vunpack.c.l.b16 %v932
  %v1566 = vunpack.c.h.b16 %v932
  %v1567 = vunpack.c.l.b16 %v933
  %v1568 = vunpack.c.h.b16 %v933
  %v1569 = vunpack.c.l.b16 %v934
  %v1570 = vunpack.c.h.b16 %v934
  %v1571 = vunpack.c.l.b16 %v935
  %v1572 = vunpack.c.h.b16 %v935
  %v1573 = vunpack.c.l.b16 %v936
  %v1574 = vunpack.c.h.b16 %v936
  %v1575 = vunpack.c.l.b16 %v937
  %v1576 = vunpack.c.h.b16 %v937
  %v1577 = vunpack.c.l.b16 %v938
  %v1578 = vunpack.c.h.b16 %v938
  %v1579 = vunpack.c.l.b16 %v939
  %v1580 = vunpack.c.h.b16 %v939
  %v1581 = vunpack.c.l.b16 %v940
  %v1582 = vunpack.c.h.b16 %v940
  %v1583 = vunpack.c.l.b16 %v941
  %v1584 = vunpack.c.h.b16 %v941
  %v1585 = vunpack.c.l.b16 %v942
  %v1586 = vunpack.c.h.b16 %v942
  %v1587 = vunpack.c.l.b16 %v943
  %v1588 = vunpack.c.h.b16 %v943
  %v1589 = vunpack.c.l.b16 %v944
  %v1590 = vunpack.c.h.b16 %v944
  %v1591 = vunpack.c.l.b16 %v945
  %v1592 = vunpack.c.h.b16 %v945
  %v1593 = vunpack.c.l.b16 %v946
  %v1594 = vunpack.c.h.b16 %v946
  %v1595 = vunpack.c.l.b16 %v947
  %v1596 = vunpack.c.h.b16 %v947
  %v1597 = vunpack.c.l.b16 %v948
  %v1598 = vunpack.c.h.b16 %v948
  %v1599 = vunpack.c.l.b16 %v949
  %v1600 = vunpack.c.h.b16 %v949
  %v1601 = vunpack.c.l.b16 %v950
  %v1602 = vunpack.c.h.b16 %v950
  %v1603 = vunpack.c.l.b16 %v951
  %v1604 = vunpack.c.h.b16 %v951
  %v1605 = vunpack.c.l.b16 %v952
  %v1606 = vunpack.c.h.b16 %v952
  %v1607 = vunpack.c.l.b16 %v953
  %v1608 = vunpack.c.h.b16 %v953
  %v1609 = vunpack.c.l.b16 %v954
  %v1610 = vunpack.c.h.b16 %v954
  %v1611 = vunpack.c.l.b16 %v955
  %v1612 = vunpack.c.h.b16 %v955
  %v1613 = vunpack.c.l.b16 %v956
  %v1614 = vunpack.c.h.b16 %v956
  %v1615 = vunpack.c.l.b16 %v957
  %v1616 = vunpack.c.h.b16 %v957
  %v1617 = vunpack.c.l.b16 %v958
  %v1618 = vunpack.c.h.b16 %v958
  %v1619 = vunpack.c.l.b16 %v959
  %v1620 = vunpack.c.h.b16 %v959
  %v1621 = vunpack.c.l.b16 %v960
  %v1622 = vunpack.c.h.b16 %v960
  %v1623 = vunpack.c.l.b16 %v961
  %v1624 = vunpack.c.h.b16 %v961
  %v1625 = vunpack.c.l.b16 %v962
  %v1626 = vunpack.c.h.b16 %v962
  %v1627 = vunpack.c.l.b16 %v963
  %v1628 = vunpack.c.h.b16 %v963
  %v1629 = vunpack.c.l.b16 %v964
  %v1630 = vunpack.c.h.b16 %v964
  %v1631 = vunpack.c.l.b16 %v965
  %v1632 = vunpack.c.h.b16 %v965
  %v1633 = vunpack.c.l.b16 %v966
  %v1634 = vunpack.c.h.b16 %v966
  %v1635 = vunpack.c.l.b16 %v967
  %v1636 = vunpack.c.h.b16 %v967
  %v1637 = vunpack.c.l.b16 %v968
  %v1638 = vunpack.c.h.b16 %v968
  %v1639 = vunpack.c.l.b16 %v969
  %v1640 = vunpack.c.h.b16 %v969
  %v1641 = vunpack.c.l.b16 %v970
  %v1642 = vunpack.c.h.b16 %v970
  %v1643 = vunpack.c.l.b16 %v971
  %v1644 = vunpack.c.h.b16 %v971
  %v1645 = vunpack.c.l.b16 %v972
  %v1646 = vunpack.c.h.b16 %v972
  %v1647 = vunpack.c.l.b16 %v973
  %v1648 = vunpack.c.h.b16 %v973
  %v1649 = vunpack.c.l.b16 %v974
  %v1650 = vunpack.c.h.b16 %v974
  %v1651 = vunpack.c.l.b16 %v975
  %v1652 = vunpack.c.h.b16 %v975
  %v1653 = vunpack.c.l.b16 %v976
  %v1654 = vunpack.c.h.b16 %v976
  %v1655 = vunpack.c.l.b16 %v977
  %v1656 = vunpack.c.h.b16 %v977
  %v1657 = vunpack.c.l.b16 %v978
  %v1658 = vunpack.c.h.b16 %v978
  %v1659 = vunpack.c.l.b16 %v979
  %v1660 = vunpack.c.h.b16 %v979
  %v1661 = vunpack.c.l.b16 %v980
  %v1662 = vunpack.c.h.b16 %v980
  %v1663 = vunpack.c.l.b16 %v981
  %v1664 = vunpack.c.h.b16 %v981
  %v1665 = vunpack.c.l.b16 %v982
  %v1666 = vunpack.c.h.b16 %v982
  %v1667 = vunpack.c.l.b16 %v983
  %v1668 = vunpack.c.h.b16 %v983
  %v1669 = vunpack.c.l.b16 %v984
  %v1670 = vunpack.c.h.b16 %v984
  %v1671 = vunpack.c.l.b16 %v985
  %v1672 = vunpack.c.h.b16 %v985
  %v1673 = vunpack.c.l.b16 %v986
  %v1674 = vunpack.c.h.b16 %v986
  %v1675 = vunpack.c.l.b16 %v987
  %v1676 = vunpack.c.h.b16 %v987
  %v1677 = vunpack.c.l.b16 %v988
  %v1678 = vunpack.c.h.b16 %v988
  %v1679 = vunpack.c.l.b16 %v989
  %v1680 = vunpack.c.h.b16 %v989
  %v1681 = vunpack.c.l.b16 %v990
  %v1682 = vunpack.c.h.b16 %v990
  %v1683 = vunpack.c.l.b16 %v991
  %v1684 = vunpack.c.h.b16 %v991
  %v1685 = vunpack.c.l.b16 %v992
  %v1686 = vunpack.c.h.b16 %v992
  %v1687 = vunpack.c.l.b16 %v993
  %v1688 = vunpack.c.h.b16 %v993
  %v1689 = vunpack.c.l.b16 %v994
  %v1690 = vunpack.c.h.b16 %v994
  %v1691 = vunpack.c.l.b16 %v995
  %v1692 = vunpack.c.h.b16 %v995
  %v1693 = vunpack.c.l.b16 %v996
  %v1694 = vunpack.c.h.b16 %v996
  %v1695 = vunpack.c.l.b16 %v997
  %v1696 = vunpack.c.h.b16 %v997
  %v1697 = vunpack.c.l.b16 %v998
  %v1698 = vunpack.c.h.b16 %v998
  %v1699 = vunpack.c.l.b16 %v999
  %v1700 = vunpack.c.h.b16 %v999
  %v1701 = vunpack.c.l.b16 %v1000
  %v1702 = vunpack.c.h.b16 %v1000
  %v1703 = vunpack.c.l.b16 %v1001
  %v1704 = vunpack.c.h.b16 %v1001
  %v1705 = vunpack.c.l.b16 %v1002
  %v1706 = vunpack.c.h.b16 %v1002
  %v1707 = vunpack.c.l.b16 %v1003
  %v1708 = vunpack.c.h.b16 %v1003
  %v1709 = vunpack.c.l.b16 %v1004
  %v1710 = vunpack.c.h.b16 %v1004
  %v1711 = vunpack.c.l.b16 %v1005
  %v1712 = vunpack.c.h.b16 %v1005
  %v1713 = vunpack.c.l.b16 %v1006
  %v1714 = vunpack.c.h.b16 %v1006
  %v1715 = vunpack.c.l.b16 %v1007
  %v1716 = vunpack.c.h.b16 %v1007
  %v1717 = vunpack.c.l.b16 %v1008
  %v1718 = vunpack.c.h.b16 %v1008
  %v1719 = vunpack.c.l.b16 %v1009
  %v1720 = vunpack.c.h.b16 %v1009
  %v1721 = vunpack.c.l.b16 %v1010
  %v1722 = vunpack.c.h.b16 %v1010
  %v1723 = vunpack.c.l.b16 %v1011
  %v1724 = vunpack.c.h.b16 %v1011
  %v1725 = vunpack.c.l.b16 %v1012
  %v1726 = vunpack.c.h.b16 %v1012
  %v1727 = vunpack.c.l.b16 %v1013
  %v1728 = vunpack.c.h.b16 %v1013
  %v1729 = vunpack.c.l.b16 %v1014
  %v1730 = vunpack.c.h.b16 %v1014
  %v1731 = vunpack.c.l.b16 %v1015
  %v1732 = vunpack.c.h.b16 %v1015
  %v1733 = vunpack.c.l.b16 %v1016
  %v1734 = vunpack.c.h.b16 %v1016
  %v1735 = vunpack.c.l.b16 %v1017
  %v1736 = vunpack.c.h.b16 %v1017
  %v1737 = vunpack.c.l.b16 %v1018
  %v1738 = vunpack.c.h.b16 %v1018
  %v1739 = vunpack.c.l.b16 %v1019
  %v1740 = vunpack.c.h.b16 %v1019
  %v1741 = vunpack.c.l.b16 %v1020
  %v1742 = vunpack.c.h.b16 %v1020
  %v1743 = vunpack.c.l.b16 %v1021
  %v1744 = vunpack.c.h.b16 %v1021
  %v1745 = vunpack.c.l.b16 %v1022
  %v1746 = vunpack.c.h.b16 %v1022
  %v1747 = vunpack.c.l.b16 %v1023
  %v1748 = vunpack.c.h.b16 %v1023
  %v1749 = vunpack.c.l.b16 %v1024
  %v1750 = vunpack.c.h.b16 %v1024
  %v1751 = vunpack.c.l.b16 %v1025
  %v1752 = vunpack.c.h.b16 %v1025
  %v1753 = vunpack.c.l.b16 %v1026
  %v1754 = vunpack.c.h.b16 %v1026
  %v1755 = vunpack.c.l.b16 %v1027
  %v1756 = vunpack.c.h.b16 %v1027
  %v1757 = vunpack.c.l.b16 %v1028
  %v1758 = vunpack.c.h.b16 %v1028
  %v1759 = vunpack.c.l.b16 %v1029
  %v1760 = vunpack.c.h.b16 %v1029
  %v1761 = vunpack.c.l.b16 %v1030
  %v1762 = vunpack.c.h.b16 %v1030
  %v1763 = vunpack.c.l.b16 %v1031
  %v1764 = vunpack.c.h.b16 %v1031
  %v1765 = vunpack.c.l.b16 %v1032
  %v1766 = vunpack.c.h.b16 %v1032
  %v1767 = vunpack.c.l.b16 %v1033
  %v1768 = vunpack.c.h.b16 %v1033
  %v1769 = vunpack.c.l.b16 %v1034
  %v1770 = vunpack.c.h.b16 %v1034
  %v1771 = vunpack.c.l.b16 %v1035
  %v1772 = vunpack.c.h.b16 %v1035
  %v1773 = vunpack.c.l.b16 %v1036
  %v1774 = vunpack.c.h.b16 %v1036
  %v1775 = vunpack.c.l.b16 %v1037
  %v1776 = vunpack.c.h.b16 %v1037
  %v1777 = vunpack.c.l.b16 %v1038
  %v1778 = vunpack.c.h.b16 %v1038
  %v1779 = vunpack.c.l.b16 %v1039
  %v1780 = vunpack.c.h.b16 %v1039
  %v1781 = vunpack.c.l.b16 %v1040
  %v1782 = vunpack.c.h.b16 %v1040
  %v1783 = vunpack.c.l.b16 %v1041
  %v1784 = vunpack.c.h.b16 %v1041
  %v1785 = vunpack.c.l.b16 %v1042
  %v1786 = vunpack.c.h.b16 %v1042
  %v1787 = vunpack.c.l.b16 %v1043
  %v1788 = vunpack.c.h.b16 %v1043
  %v1789 = vunpack.c.l.b16 %v1044
  %v1790 = vunpack.c.h.b16 %v1044
  %v1791 = vunpack.c.l.b16 %v1045
  %v1792 = vunpack.c.h.b16 %v1045
  %v1793 = vunpack.c.l.b16 %v1046
  %v1794 = vunpack.c.h.b16 %v1046
  %v1795 = vunpack.c.l.b16 %v1047
  %v1796 = vunpack.c.h.b16 %v1047
  %v1797 = vunpack.c.l.b16 %v1048
  %v1798 = vunpack.c.h.b16 %v1048
  %v1799 = vunpack.c.l.b16 %v1049
  %v1800 = vunpack.c.h.b16 %v1049
  %v1801 = vunpack.c.l.b16 %v1050
  %v1802 = vunpack.c.h.b16 %v1050
  %v1803 = vunpack.c.l.b16 %v1051
  %v1804 = vunpack.c.h.b16 %v1051
  %v1805 = vunpack.c.l.b16 %v1052
  %v1806 = vunpack.c.h.b16 %v1052
  %v1807 = vunpack.c.l.b16 %v1053
  %v1808 = vunpack.c.h.b16 %v1053
  %v1809 = vunpack.c.l.b16 %v1054
  %v1810 = vunpack.c.h.b16 %v1054
  %v1811 = vunpack.c.l.b16 %v1055
  %v1812 = vunpack.c.h.b16 %v1055
  %v1813 = vunpack.c.l.b16 %v1056
  %v1814 = vunpack.c.h.b16 %v1056
  %v1815 = vunpack.c.l.b16 %v1057
  %v1816 = vunpack.c.h.b16 %v1057
  %v1817 = vunpack.c.l.b16 %v1058
  %v1818 = vunpack.c.h.b16 %v1058
  %v1819 = vunpack.c.l.b16 %v1059
  %v1820 = vunpack.c.h.b16 %v1059
  %v1821 = vunpack.c.l.b16 %v1060
  %v1822 = vunpack.c.h.b16 %v1060
  %v1823 = vunpack.c.l.b16 %v1061
  %v1824 = vunpack.c.h.b16 %v1061
  %v1825 = vunpack.c.l.b16 %v1062
  %v1826 = vunpack.c.h.b16 %v1062
  %v1827 = vunpack.c.l.b16 %v1063
  %v1828 = vunpack.c.h.b16 %v1063
  %v1829 = vunpack.c.l.b16 %v1064
  %v1830 = vunpack.c.h.b16 %v1064
  %v1831 = vunpack.c.l.b16 %v1065
  %v1832 = vunpack.c.h.b16 %v1065
  %v1833 = vunpack.c.l.b16 %v1066
  %v1834 = vunpack.c.h.b16 %v1066
  %v1835 = vpack.c.b16 %v1327, %v1323
  %v1836 = vpack.c.b16 %v1328, %v1324
  %v1837 = vpack.c.b16 %v1329, %v1325
  %v1838 = vpack.c.b16 %v1330, %v1326
  %v1839 = vpack.c.b16 %v1335, %v1331
  %v1840 = vpack.c.b16 %v1336, %v1332
  %v1841 = vpack.c.b16 %v1337, %v1333
  %v1842 = vpack.c.b16 %v1338, %v1334
  %v1843 = vpack.c.b16 %v1343, %v1339
  %v1844 = vpack.c.b16 %v1344, %v1340
  %v1845 = vpack.c.b16 %v1345, %v1341
  %v1846 = vpack.c.b16 %v1346, %v1342
  %v1847 = vpack.c.b16 %v1351, %v1347
  %v1848 = vpack.c.b16 %v1352, %v1348
  %v1849 = vpack.c.b16 %v1353, %v1349
  %v1850 = vpack.c.b16 %v1354, %v1350
  %v1851 = vpack.c.b16 %v1359, %v1355
  %v1852 = vpack.c.b16 %v1360, %v1356
  %v1853 = vpack.c.b16 %v1361, %v1357
  %v1854 = vpack.c.b16 %v1362, %v1358
  %v1855 = vpack.c.b16 %v1367, %v1363
  %v1856 = vpack.c.b16 %v1368, %v1364
  %v1857 = vpack.c.b16 %v1369, %v1365
  %v1858 = vpack.c.b16 %v1370, %v1366
  %v1859 = vpack.c.b16 %v1375, %v1371
  %v1860 = vpack.c.b16 %v1376, %v1372
  %v1861 = vpack.c.b16 %v1377, %v1373
  %v1862 = vpack.c.b16 %v1378, %v1374
  %v1863 = vpack.c.b16 %v1383, %v1379
  %v1864 = vpack.c.b16 %v1384, %v1380
  %v1865 = vpack.c.b16 %v1385, %v1381
  %v1866 = vpack.c.b16 %v1386, %v1382
  %v1867 = vpack.c.b16 %v1391, %v1387
  %v1868 = vpack.c.b16 %v1392, %v1388
  %v1869 = vpack.c.b16 %v1393, %v1389
  %v1870 = vpack.c.b16 %v1394, %v1390
  %v1871 = vpack.c.b16 %v1399, %v1395
  %v1872 = vpack.c.b16 %v1400, %v1396
  %v1873 = vpack.c.b16 %v1401, %v1397
  %v1874 = vpack.c.b16 %v1402, %v1398
  %v1875 = vpack.c.b16 %v1407, %v1403
  %v1876 = vpack.c.b16 %v1408, %v1404
  %v1877 = vpack.c.b16 %v1409, %v1405
  %v1878 = vpack.c.b16 %v1410, %v1406
  %v1879 = vpack.c.b16 %v1415, %v1411
  %v1880 = vpack.c.b16 %v1416, %v1412
  %v1881 = vpack.c.b16 %v1417, %v1413
  %v1882 = vpack.c.b16 %v1418, %v1414
  %v1883 = vpack.c.b16 %v1423, %v1419
  %v1884 = vpack.c.b16 %v1424, %v1420
  %v1885 = vpack.c.b16 %v1425, %v1421
  %v1886 = vpack.c.b16 %v1426, %v1422
  %v1887 = vpack.c.b16 %v1431, %v1427
  %v1888 = vpack.c.b16 %v1432, %v1428
  %v1889 = vpack.c.b16 %v1433, %v1429
  %v1890 = vpack.c.b16 %v1434, %v1430
  %v1891 = vpack.c.b16 %v1439, %v1435
  %v1892 = vpack.c.b16 %v1440, %v1436
  %v1893 = vpack.c.b16 %v1441, %v1437
  %v1894 = vpack.c.b16 %v1442, %v1438
  %v1895 = vpack.c.b16 %v1447, %v1443
  %v1896 = vpack.c.b16 %v1448, %v1444
  %v1897 = vpack.c.b16 %v1449, %v1445
  %v1898 = vpack.c.b16 %v1450, %v1446
  %v1899 = vpack.c.b16 %v1455, %v1451
  %v1900 = vpack.c.b16 %v1456, %v1452
  %v1901 = vpack.c.b16 %v1457, %v1453
  %v1902 = vpack.c.b16 %v1458, %v1454
  %v1903 = vpack.c.b16 %v1463, %v1459
  %v1904 = vpack.c.b16 %v1464, %v1460
  %v1905 = vpack.c.b16 %v1465, %v1461
  %v1906 = vpack.c.b16 %v1466, %v1462
  %v1907 = vpack.c.b16 %v1471, %v1467
  %v1908 = vpack.c.b16 %v1472, %v1468
  %v1909 = vpack.c.b16 %v1473, %v1469
  %v1910 = vpack.c.b16 %v1474, %v1470
  %v1911 = vpack.c.b16 %v1479, %v1475
  %v1912 = vpack.c.b16 %v1480, %v1476
  %v1913 = vpack.c.b16 %v1481, %v1477
  %v1914 = vpack.c.b16 %v1482, %v1478
  %v1915 = vpack.c.b16 %v1487, %v1483
  %v1916 = vpack.c.b16 %v1488, %v1484
  %v1917 = vpack.c.b16 %v1489, %v1485
  %v1918 = vpack.c.b16 %v1490, %v1486
  %v1919 = vpack.c.b16 %v1495, %v1491
  %v1920 = vpack.c.b16 %v1496, %v1492
  %v1921 = vpack.c.b16 %v1497, %v1493
  %v1922 = vpack.c.b16 %v1498, %v1494
  %v1923 = vpack.c.b16 %v1503, %v1499
  %v1924 = vpack.c.b16 %v1504, %v1500
  %v1925 = vpack.c.b16 %v1505, %v1501
  %v1926 = vpack.c.b16 %v1506, %v1502
  %v1927 = vpack.c.b16 %v1511, %v1507
  %v1928 = vpack.c.b16 %v1512, %v1508
  %v1929 = vpack.c.b16 %v1513, %v1509
  %v1930 = vpack.c.b16 %v1514, %v1510
  %v1931 = vpack.c.b16 %v1519, %v1515
  %v1932 = vpack.c.b16 %v1520, %v1516
  %v1933 = vpack.c.b16 %v1521, %v1517
  %v1934 = vpack.c.b16 %v1522, %v1518
  %v1935 = vpack.c.b16 %v1527, %v1523
  %v1936 = vpack.c.b16 %v1528, %v1524
  %v1937 = vpack.c.b16 %v1529, %v1525
  %v1938 = vpack.c.b16 %v1530, %v1526
  %v1939 = vpack.c.b16 %v1535, %v1531
  %v1940 = vpack.c.b16 %v1536, %v1532
  %v1941 = vpack.c.b16 %v1537, %v1533
  %v1942 = vpack.c.b16 %v1538, %v1534
  %v1943 = vpack.c.b16 %v1543, %v1539
  %v1944 = vpack.c.b16 %v1544, %v1540
  %v1945 = vpack.c.b16 %v1545, %v1541
  %v1946 = vpack.c.b16 %v1546, %v1542
  %v1947 = vpack.c.b16 %v1551, %v1547
  %v1948 = vpack.c.b16 %v1552, %v1548
  %v1949 = vpack.c.b16 %v1553, %v1549
  %v1950 = vpack.c.b16 %v1554, %v1550
  %v1951 = vpack.c.b16 %v1559, %v1555
  %v1952 = vpack.c.b16 %v1560, %v1556
  %v1953 = vpack.c.b16 %v1561, %v1557
  %v1954 = vpack.c.b16 %v1562, %v1558
  %v1955 = vpack.c.b16 %v1567, %v1563
  %v1956 = vpack.c.b16 %v1568, %v1564
  %v1957 = vpack.c.b16 %v1569, %v1565
  %v1958 = vpack.c.b16 %v1570, %v1566
  %v1959 = vpack.c.b16 %v1575, %v1571
  %v1960 = vpack.c.b16 %v1576, %v1572
  %v1961 = vpack.c.b16 %v1577, %v1573
  %v1962 = vpack.c.b16 %v1578, %v1574
  %v1963 = vpack.c.b16 %v1583, %v1579
  %v1964 = vpack.c.b16 %v1584, %v1580
  %v1965 = vpack.c.b16 %v1585, %v1581
  %v1966 = vpack.c.b16 %v1586, %v1582
  %v1967 = vpack.c.b16 %v1591, %v1587
  %v1968 = vpack.c.b16 %v1592, %v1588
  %v1969 = vpack.c.b16 %v1593, %v1589
  %v1970 = vpack.c.b16 %v1594, %v1590
  %v1971 = vpack.c.b16 %v1599, %v1595
  %v1972 = vpack.c.b16 %v1600, %v1596
  %v1973 = vpack.c.b16 %v1601, %v1597
  %v1974 = vpack.c.b16 %v1602, %v1598
  %v1975 = vpack.c.b16 %v1607, %v1603
  %v1976 = vpack.c.b16 %v1608, %v1604
  %v1977 = vpack.c.b16 %v1609, %v1605
  %v1978 = vpack.c.b16 %v1610, %v1606
  %v1979 = vpack.c.b16 %v1615, %v1611
  %v1980 = vpack.c.b16 %v1616, %v1612
  %v1981 = vpack.c.b16 %v1617, %v1613
  %v1982 = vpack.c.b16 %v1618, %v1614
  %v1983 = vpack.c.b16 %v1623, %v1619
  %v1984 = vpack.c.b16 %v1624, %v1620
  %v1985 = vpack.c.b16 %v1625, %v1621
  %v1986 = vpack.c.b16 %v1626, %v1622
  %v1987 = vpack.c.b16 %v1631, %v1627
  %v1988 = vpack.c.b16 %v1632, %v1628
  %v1989 = vpack.c.b16 %v1633, %v1629
  %v1990 = vpack.c.b16 %v1634, %v1630
  %v1991 = vpack.c.b16 %v1639, %v1635
  %v1992 = vpack.c.b16 %v1640, %v1636
  %v1993 = vpack.c.b16 %v1641, %v1637
  %v1994 = vpack.c.b16 %v1642, %v1638
  %v1995 = vpack.c.b16 %v1647, %v1643
  %v1996 = vpack.c.b16 %v1648, %v1644
  %v1997 = vpack.c.b16 %v1649, %v1645
  %v1998 = vpack.c.b16 %v1650, %v1646
  %v1999 = vpack.c.b16 %v1655, %v1651
  %v2000 = vpack.c.b16 %v1656, %v1652
  %v2001 = vpack.c.b16 %v1657, %v1653
  %v2002 = vpack.c.b16 %v1658, %v1654
  %v2003 = vpack.c.b16 %v1663, %v1659
  %v2004 = vpack.c.b16 %v1664, %v1660
  %v2005 = vpack.c.b16 %v1665, %v1661
  %v2006 = vpack.c.b16 %v1666, %v1662
  %v2007 = vpack.c.b16 %v1671, %v1667
  %v2008 = vpack.c.b16 %v1672, %v1668
  %v2009 = vpack.c.b16 %v1673, %v1669
  %v2010 = vpack.c.b16 %v1674, %v1670
  %v2011 = vpack.c.b16 %v1679, %v1675
  %v2012 = vpack.c.b16 %v1680, %v1676
  %v2013 = vpack.c.b16 %v1681, %v1677
  %v2014 = vpack.c.b16 %v1682, %v1678
  %v2015 = vpack.c.b16 %v1687, %v1683
  %v2016 = vpack.c.b16 %v1688, %v1684
  %v2017 = vpack.c.b16 %v1689, %v1685
  %v2018 = vpack.c.b16 %v1690, %v1686
  %v2019 = vpack.c.b16 %v1695, %v1691
  %v2020 = vpack.c.b16 %v1696, %v1692
  %v2021 = vpack.c.b16 %v1697, %v1693
  %v2022 = vpack.c.b16 %v1698, %v1694
  %v2023 = vpack.c.b16 %v1703, %v1699
  %v2024 = vpack.c.b16 %v1704, %v1700
  %v2025 = vpack.c.b16 %v1705, %v1701
  %v2026 = vpack.c.b16 %v1706, %v1702
  %v2027 = vpack.c.b16 %v1711, %v1707
  %v2028 = vpack.c.b16 %v1712, %v1708
  %v2029 = vpack.c.b16 %v1713, %v1709
  %v2030 = vpack.c.b16 %v1714, %v1710
  %v2031 = vpack.c.b16 %v1719, %v1715
  %v2032 = vpack.c.b16 %v1720, %v1716
  %v2033 = vpack.c.b16 %v1721, %v1717
  %v2034 = vpack.c.b16 %v1722, %v1718
  %v2035 = vpack.c.b16 %v1727, %v1723
  %v2036 = vpack.c.b16 %v1728, %v1724
  %v2037 = vpack.c.b16 %v1729, %v1725
  %v2038 = vpack.c.b16 %v1730, %v1726
  %v2039 = vpack.c.b16 %v1735, %v1731
  %v2040 = vpack.c.b16 %v1736, %v1732
  %v2041 = vpack.c.b16 %v1737, %v1733
  %v2042 = vpack.c.b16 %v1738, %v1734
  %v2043 = vpack.c.b16 %v1743, %v1739
  %v2044 = vpack.c.b16 %v1744, %v1740
  %v2045 = vpack.c.b16 %v1745, %v1741
  %v2046 = vpack.c.b16 %v1746, %v1742
  %v2047 = vpack.c.b16 %v1751, %v1747
  %v2048 = vpack.c.b16 %v1752, %v1748
  %v2049 = vpack.c.b16 %v1753, %v1749
  %v2050 = vpack.c.b16 %v1754, %v1750
  %v2051 = vpack.c.b16 %v1759, %v1755
  %v2052 = vpack.c.b16 %v1760, %v1756
  %v2053 = vpack.c.b16 %v1761, %v1757
  %v2054 = vpack.c.b16 %v1762, %v1758
  %v2055 = vpack.c.b16 %v1767, %v1763
  %v2056 = vpack.c.b16 %v1768, %v1764
  %v2057 = vpack.c.b16 %v1769, %v1765
  %v2058 = vpack.c.b16 %v1770, %v1766
  %v2059 = vpack.c.b16 %v1775, %v1771
  %v2060 = vpack.c.b16 %v1776, %v1772
  %v2061 = vpack.c.b16 %v1777, %v1773
  %v2062 = vpack.c.b16 %v1778, %v1774
  %v2063 = vpack.c.b16 %v1783, %v1779
  %v2064 = vpack.c.b16 %v1784, %v1780
  %v2065 = vpack.c.b16 %v1785, %v1781
  %v2066 = vpack.c.b16 %v1786, %v1782
  %v2067 = vpack.c.b16 %v1791, %v1787
  %v2068 = vpack.c.b16 %v1792, %v1788
  %v2069 = vpack.c.b16 %v1793, %v1789
  %v2070 = vpack.c.b16 %v1794, %v1790
  %v2071 = vpack.c.b16 %v1799, %v1795
  %v2072 = vpack.c.b16 %v1800, %v1796
  %v2073 = vpack.c.b16 %v1801, %v1797
  %v2074 = vpack.c.b16 %v1802, %v1798
  %v2075 = vpack.c.b16 %v1807, %v1803
  %v2076 = vpack.c.b16 %v1808, %v1804
  %v2077 = vpack.c.b16 %v1809, %v1805
  %v2078 = vpack.c.b16 %v1810, %v1806
  %v2079 = vpack.c.b16 %v1815, %v1811
  %v2080 = vpack.c.b16 %v1816, %v1812
  %v2081 = vpack.c.b16 %v1817, %v1813
  %v2082 = vpack.c.b16 %v1818, %v1814
  %v2083 = vpack.c.b16 %v1823, %v1819
  %v2084 = vpack.c.b16 %v1824, %v1820
  %v2085 = vpack.c.b16 %v1825, %v1821
  %v2086 = vpack.c.b16 %v1826, %v1822
  %v2087 = vpack.c.b16 %v1831, %v1827
  %v2088 = vpack.c.b16 %v1832, %v1828
  %v2089 = vpack.c.b16 %v1833, %v1829
  %v2090 = vpack.c.b16 %v1834, %v1830
  %2347 = vmatprep.subr.bf16.mxu0 %v1864
  %2348 = vmatpush1.bf16.msra.mxu0 %v1863
  %2349 = vmatprep.subr.bf16.mxu0 %v1860
  %2350 = vmatpush1.bf16.msra.mxu0 %v1859
  %2351 = vmatprep.subr.bf16.mxu0 %v1856
  %2352 = vmatpush1.bf16.msra.mxu0 %v1855
  %2353 = vmatprep.subr.bf16.mxu0 %v1852
  %2354 = vmatpush1.bf16.msra.mxu0 %v1851
  %2355 = vmatprep.subr.bf16.mxu0 %v1848
  %2356 = vmatpush1.bf16.msra.mxu0 %v1847
  %2357 = vmatprep.subr.bf16.mxu0 %v1844
  %2358 = vmatpush1.bf16.msra.mxu0 %v1843
  %2359 = vmatprep.subr.bf16.mxu0 %v1840
  %2360 = vmatpush1.bf16.msra.mxu0 %v1839
  %2361 = vmatprep.subr.bf16.mxu0 %v1836
  %2362 = vmatpush1.bf16.msra.mxu0 %v1835
  %2363 = vmatprep.subr.bf16.mxu0 %v1896
  %2364 = vmatpush2.bf16.msra.mxu0 %v1895
  %2365 = vmatprep.subr.bf16.mxu0 %v1892
  %2366 = vmatpush2.bf16.msra.mxu0 %v1891
  %2367 = vmatprep.subr.bf16.mxu0 %v1888
  %2368 = vmatpush2.bf16.msra.mxu0 %v1887
  %2369 = vmatprep.subr.bf16.mxu0 %v1884
  %2370 = vmatpush2.bf16.msra.mxu0 %v1883
  %2371 = vmatprep.subr.bf16.mxu0 %v1880
  %2372 = vmatpush2.bf16.msra.mxu0 %v1879
  %2373 = vmatprep.subr.bf16.mxu0 %v1876
  %2374 = vmatpush2.bf16.msra.mxu0 %v1875
  %2375 = vmatprep.subr.bf16.mxu0 %v1872
  %2376 = vmatpush2.bf16.msra.mxu0 %v1871
  %2377 = vmatprep.subr.bf16.mxu0 %v1868
  %2378 = vmatpush2.bf16.msra.mxu0 %v1867
  %2379 = vmatprep.mubr.bf16.mxu0 %v684
  %2380 = vmatmul.mubr.bf16.gmra.mxu0 %v683
  %v2381 = vpop.f32.mrf.mxu0
  %v2382 = vadd.f32 0.0, %v2381
  %v2383 = vpop.f32.mrf.mxu0
  %v2384 = vadd.f32 0.0, %v2383
  %v2385 = vpop.f32.mrf.mxu0
  %v2386 = vadd.f32 0.0, %v2385
  %v2387 = vpop.f32.mrf.mxu0
  %v2388 = vadd.f32 0.0, %v2387
  %2389 = vmatprep.mubr.bf16.mxu0 %v692
  %2390 = vmatmul.mubr.bf16.gmra.mxu0 %v691
  %v2391 = vpop.f32.mrf.mxu0
  %v2392 = vadd.f32 0.0, %v2391
  %v2393 = vpop.f32.mrf.mxu0
  %v2394 = vadd.f32 0.0, %v2393
  %v2395 = vpop.f32.mrf.mxu0
  %v2396 = vadd.f32 0.0, %v2395
  %v2397 = vpop.f32.mrf.mxu0
  %v2398 = vadd.f32 0.0, %v2397
  %2399 = vmatprep.mubr.bf16.mxu0 %v700
  %2400 = vmatmul.mubr.bf16.gmra.mxu0 %v699
  %v2401 = vpop.f32.mrf.mxu0
  %v2402 = vadd.f32 0.0, %v2401
  %v2403 = vpop.f32.mrf.mxu0
  %v2404 = vadd.f32 0.0, %v2403
  %v2405 = vpop.f32.mrf.mxu0
  %v2406 = vadd.f32 0.0, %v2405
  %v2407 = vpop.f32.mrf.mxu0
  %v2408 = vadd.f32 0.0, %v2407
  %2409 = vmatprep.mubr.bf16.mxu0 %v708
  %2410 = vmatmul.mubr.bf16.gmra.mxu0 %v707
  %v2411 = vpop.f32.mrf.mxu0
  %v2412 = vadd.f32 0.0, %v2411
  %v2413 = vpop.f32.mrf.mxu0
  %v2414 = vadd.f32 0.0, %v2413
  %v2415 = vpop.f32.mrf.mxu0
  %v2416 = vadd.f32 0.0, %v2415
  %v2417 = vpop.f32.mrf.mxu0
  %v2418 = vadd.f32 0.0, %v2417
  %2419 = vmatprep.mubr.bf16.mxu0 %v716
  %2420 = vmatmul.mubr.bf16.gmra.mxu0 %v715
  %v2421 = vpop.f32.mrf.mxu0
  %v2422 = vadd.f32 0.0, %v2421
  %v2423 = vpop.f32.mrf.mxu0
  %v2424 = vadd.f32 0.0, %v2423
  %v2425 = vpop.f32.mrf.mxu0
  %v2426 = vadd.f32 0.0, %v2425
  %v2427 = vpop.f32.mrf.mxu0
  %v2428 = vadd.f32 0.0, %v2427
  %2429 = vmatprep.mubr.bf16.mxu0 %v724
  %2430 = vmatmul.mubr.bf16.gmra.mxu0 %v723
  %v2431 = vpop.f32.mrf.mxu0
  %v2432 = vadd.f32 0.0, %v2431
  %v2433 = vpop.f32.mrf.mxu0
  %v2434 = vadd.f32 0.0, %v2433
  %v2435 = vpop.f32.mrf.mxu0
  %v2436 = vadd.f32 0.0, %v2435
  %v2437 = vpop.f32.mrf.mxu0
  %v2438 = vadd.f32 0.0, %v2437
  %2439 = vmatprep.mubr.bf16.mxu0 %v732
  %2440 = vmatmul.mubr.bf16.gmra.mxu0 %v731
  %v2441 = vpop.f32.mrf.mxu0
  %v2442 = vadd.f32 0.0, %v2441
  %v2443 = vpop.f32.mrf.mxu0
  %v2444 = vadd.f32 0.0, %v2443
  %v2445 = vpop.f32.mrf.mxu0
  %v2446 = vadd.f32 0.0, %v2445
  %v2447 = vpop.f32.mrf.mxu0
  %v2448 = vadd.f32 0.0, %v2447
  %2449 = vmatprep.mubr.bf16.mxu0 %v740
  %2450 = vmatmul.mubr.bf16.gmra.mxu0 %v739
  %v2451 = vpop.f32.mrf.mxu0
  %v2452 = vadd.f32 0.0, %v2451
  %v2453 = vpop.f32.mrf.mxu0
  %v2454 = vadd.f32 0.0, %v2453
  %v2455 = vpop.f32.mrf.mxu0
  %v2456 = vadd.f32 0.0, %v2455
  %v2457 = vpop.f32.mrf.mxu0
  %v2458 = vadd.f32 0.0, %v2457
  %2459 = vmatprep.mubr.bf16.mxu0 %v748
  %2460 = vmatmul.mubr.bf16.gmra.mxu0 %v747
  %v2461 = vpop.f32.mrf.mxu0
  %v2462 = vadd.f32 0.0, %v2461
  %v2463 = vpop.f32.mrf.mxu0
  %v2464 = vadd.f32 0.0, %v2463
  %v2465 = vpop.f32.mrf.mxu0
  %v2466 = vadd.f32 0.0, %v2465
  %v2467 = vpop.f32.mrf.mxu0
  %v2468 = vadd.f32 0.0, %v2467
  %2469 = vmatprep.mubr.bf16.mxu0 %v756
  %2470 = vmatmul.mubr.bf16.gmra.mxu0 %v755
  %v2471 = vpop.f32.mrf.mxu0
  %v2472 = vadd.f32 0.0, %v2471
  %v2473 = vpop.f32.mrf.mxu0
  %v2474 = vadd.f32 0.0, %v2473
  %v2475 = vpop.f32.mrf.mxu0
  %v2476 = vadd.f32 0.0, %v2475
  %v2477 = vpop.f32.mrf.mxu0
  %v2478 = vadd.f32 0.0, %v2477
  %2479 = vmatprep.mubr.bf16.mxu0 %v764
  %2480 = vmatmul.mubr.bf16.gmra.mxu0 %v763
  %v2481 = vpop.f32.mrf.mxu0
  %v2482 = vadd.f32 0.0, %v2481
  %v2483 = vpop.f32.mrf.mxu0
  %v2484 = vadd.f32 0.0, %v2483
  %v2485 = vpop.f32.mrf.mxu0
  %v2486 = vadd.f32 0.0, %v2485
  %v2487 = vpop.f32.mrf.mxu0
  %v2488 = vadd.f32 0.0, %v2487
  %2489 = vmatprep.mubr.bf16.mxu0 %v772
  %2490 = vmatmul.mubr.bf16.gmra.mxu0 %v771
  %v2491 = vpop.f32.mrf.mxu0
  %v2492 = vadd.f32 0.0, %v2491
  %v2493 = vpop.f32.mrf.mxu0
  %v2494 = vadd.f32 0.0, %v2493
  %v2495 = vpop.f32.mrf.mxu0
  %v2496 = vadd.f32 0.0, %v2495
  %v2497 = vpop.f32.mrf.mxu0
  %v2498 = vadd.f32 0.0, %v2497
  %2499 = vmatprep.mubr.bf16.mxu0 %v780
  %2500 = vmatmul.mubr.bf16.gmra.mxu0 %v779
  %v2501 = vpop.f32.mrf.mxu0
  %v2502 = vadd.f32 0.0, %v2501
  %v2503 = vpop.f32.mrf.mxu0
  %v2504 = vadd.f32 0.0, %v2503
  %v2505 = vpop.f32.mrf.mxu0
  %v2506 = vadd.f32 0.0, %v2505
  %v2507 = vpop.f32.mrf.mxu0
  %v2508 = vadd.f32 0.0, %v2507
  %2509 = vmatprep.mubr.bf16.mxu0 %v788
  %2510 = vmatmul.mubr.bf16.gmra.mxu0 %v787
  %v2511 = vpop.f32.mrf.mxu0
  %v2512 = vadd.f32 0.0, %v2511
  %v2513 = vpop.f32.mrf.mxu0
  %v2514 = vadd.f32 0.0, %v2513
  %v2515 = vpop.f32.mrf.mxu0
  %v2516 = vadd.f32 0.0, %v2515
  %v2517 = vpop.f32.mrf.mxu0
  %v2518 = vadd.f32 0.0, %v2517
  %2519 = vmatprep.mubr.bf16.mxu0 %v796
  %2520 = vmatmul.mubr.bf16.gmra.mxu0 %v795
  %v2521 = vpop.f32.mrf.mxu0
  %v2522 = vadd.f32 0.0, %v2521
  %v2523 = vpop.f32.mrf.mxu0
  %v2524 = vadd.f32 0.0, %v2523
  %v2525 = vpop.f32.mrf.mxu0
  %v2526 = vadd.f32 0.0, %v2525
  %v2527 = vpop.f32.mrf.mxu0
  %v2528 = vadd.f32 0.0, %v2527
  %2529 = vmatprep.mubr.bf16.mxu0 %v804
  %2530 = vmatmul.mubr.bf16.gmra.mxu0 %v803
  %v2531 = vpop.f32.mrf.mxu0
  %v2532 = vadd.f32 0.0, %v2531
  %v2533 = vpop.f32.mrf.mxu0
  %v2534 = vadd.f32 0.0, %v2533
  %v2535 = vpop.f32.mrf.mxu0
  %v2536 = vadd.f32 0.0, %v2535
  %v2537 = vpop.f32.mrf.mxu0
  %v2538 = vadd.f32 0.0, %v2537
  %2539 = vdwg.mxu0
  %2540 = vmatprep.subr.bf16.mxu0 %v1928
  %2541 = vmatpush1.bf16.msra.mxu0 %v1927
  %2542 = vmatprep.subr.bf16.mxu0 %v1924
  %2543 = vmatpush1.bf16.msra.mxu0 %v1923
  %2544 = vmatprep.subr.bf16.mxu0 %v1920
  %2545 = vmatpush1.bf16.msra.mxu0 %v1919
  %2546 = vmatprep.subr.bf16.mxu0 %v1916
  %2547 = vmatpush1.bf16.msra.mxu0 %v1915
  %2548 = vmatprep.subr.bf16.mxu0 %v1912
  %2549 = vmatpush1.bf16.msra.mxu0 %v1911
  %2550 = vmatprep.subr.bf16.mxu0 %v1908
  %2551 = vmatpush1.bf16.msra.mxu0 %v1907
  %2552 = vmatprep.subr.bf16.mxu0 %v1904
  %2553 = vmatpush1.bf16.msra.mxu0 %v1903
  %2554 = vmatprep.subr.bf16.mxu0 %v1900
  %2555 = vmatpush1.bf16.msra.mxu0 %v1899
  %2556 = vmatprep.subr.bf16.mxu0 %v1960
  %2557 = vmatpush2.bf16.msra.mxu0 %v1959
  %2558 = vmatprep.subr.bf16.mxu0 %v1956
  %2559 = vmatpush2.bf16.msra.mxu0 %v1955
  %2560 = vmatprep.subr.bf16.mxu0 %v1952
  %2561 = vmatpush2.bf16.msra.mxu0 %v1951
  %2562 = vmatprep.subr.bf16.mxu0 %v1948
  %2563 = vmatpush2.bf16.msra.mxu0 %v1947
  %2564 = vmatprep.subr.bf16.mxu0 %v1944
  %2565 = vmatpush2.bf16.msra.mxu0 %v1943
  %2566 = vmatprep.subr.bf16.mxu0 %v1940
  %2567 = vmatpush2.bf16.msra.mxu0 %v1939
  %2568 = vmatprep.subr.bf16.mxu0 %v1936
  %2569 = vmatpush2.bf16.msra.mxu0 %v1935
  %2570 = vmatprep.subr.bf16.mxu0 %v1932
  %2571 = vmatpush2.bf16.msra.mxu0 %v1931
  %2572 = vmatprep.mubr.bf16.mxu0 %v686
  %2573 = vmatmul.mubr.bf16.gmra.mxu0 %v685
  %v2574 = vpop.f32.mrf.mxu0
  %v2575 = vadd.f32 %v2382, %v2574
  %v2576 = vpop.f32.mrf.mxu0
  %v2577 = vadd.f32 %v2384, %v2576
  %v2578 = vpop.f32.mrf.mxu0
  %v2579 = vadd.f32 %v2386, %v2578
  %v2580 = vpop.f32.mrf.mxu0
  %v2581 = vadd.f32 %v2388, %v2580
  %2582 = vmatprep.mubr.bf16.mxu0 %v694
  %2583 = vmatmul.mubr.bf16.gmra.mxu0 %v693
  %v2584 = vpop.f32.mrf.mxu0
  %v2585 = vadd.f32 %v2392, %v2584
  %v2586 = vpop.f32.mrf.mxu0
  %v2587 = vadd.f32 %v2394, %v2586
  %v2588 = vpop.f32.mrf.mxu0
  %v2589 = vadd.f32 %v2396, %v2588
  %v2590 = vpop.f32.mrf.mxu0
  %v2591 = vadd.f32 %v2398, %v2590
  %2592 = vmatprep.mubr.bf16.mxu0 %v702
  %2593 = vmatmul.mubr.bf16.gmra.mxu0 %v701
  %v2594 = vpop.f32.mrf.mxu0
  %v2595 = vadd.f32 %v2402, %v2594
  %v2596 = vpop.f32.mrf.mxu0
  %v2597 = vadd.f32 %v2404, %v2596
  %v2598 = vpop.f32.mrf.mxu0
  %v2599 = vadd.f32 %v2406, %v2598
  %v2600 = vpop.f32.mrf.mxu0
  %v2601 = vadd.f32 %v2408, %v2600
  %2602 = vmatprep.mubr.bf16.mxu0 %v710
  %2603 = vmatmul.mubr.bf16.gmra.mxu0 %v709
  %v2604 = vpop.f32.mrf.mxu0
  %v2605 = vadd.f32 %v2412, %v2604
  %v2606 = vpop.f32.mrf.mxu0
  %v2607 = vadd.f32 %v2414, %v2606
  %v2608 = vpop.f32.mrf.mxu0
  %v2609 = vadd.f32 %v2416, %v2608
  %v2610 = vpop.f32.mrf.mxu0
  %v2611 = vadd.f32 %v2418, %v2610
  %2612 = vmatprep.mubr.bf16.mxu0 %v718
  %2613 = vmatmul.mubr.bf16.gmra.mxu0 %v717
  %v2614 = vpop.f32.mrf.mxu0
  %v2615 = vadd.f32 %v2422, %v2614
  %v2616 = vpop.f32.mrf.mxu0
  %v2617 = vadd.f32 %v2424, %v2616
  %v2618 = vpop.f32.mrf.mxu0
  %v2619 = vadd.f32 %v2426, %v2618
  %v2620 = vpop.f32.mrf.mxu0
  %v2621 = vadd.f32 %v2428, %v2620
  %2622 = vmatprep.mubr.bf16.mxu0 %v726
  %2623 = vmatmul.mubr.bf16.gmra.mxu0 %v725
  %v2624 = vpop.f32.mrf.mxu0
  %v2625 = vadd.f32 %v2432, %v2624
  %v2626 = vpop.f32.mrf.mxu0
  %v2627 = vadd.f32 %v2434, %v2626
  %v2628 = vpop.f32.mrf.mxu0
  %v2629 = vadd.f32 %v2436, %v2628
  %v2630 = vpop.f32.mrf.mxu0
  %v2631 = vadd.f32 %v2438, %v2630
  %2632 = vmatprep.mubr.bf16.mxu0 %v734
  %2633 = vmatmul.mubr.bf16.gmra.mxu0 %v733
  %v2634 = vpop.f32.mrf.mxu0
  %v2635 = vadd.f32 %v2442, %v2634
  %v2636 = vpop.f32.mrf.mxu0
  %v2637 = vadd.f32 %v2444, %v2636
  %v2638 = vpop.f32.mrf.mxu0
  %v2639 = vadd.f32 %v2446, %v2638
  %v2640 = vpop.f32.mrf.mxu0
  %v2641 = vadd.f32 %v2448, %v2640
  %2642 = vmatprep.mubr.bf16.mxu0 %v742
  %2643 = vmatmul.mubr.bf16.gmra.mxu0 %v741
  %v2644 = vpop.f32.mrf.mxu0
  %v2645 = vadd.f32 %v2452, %v2644
  %v2646 = vpop.f32.mrf.mxu0
  %v2647 = vadd.f32 %v2454, %v2646
  %v2648 = vpop.f32.mrf.mxu0
  %v2649 = vadd.f32 %v2456, %v2648
  %v2650 = vpop.f32.mrf.mxu0
  %v2651 = vadd.f32 %v2458, %v2650
  %2652 = vmatprep.mubr.bf16.mxu0 %v750
  %2653 = vmatmul.mubr.bf16.gmra.mxu0 %v749
  %v2654 = vpop.f32.mrf.mxu0
  %v2655 = vadd.f32 %v2462, %v2654
  %v2656 = vpop.f32.mrf.mxu0
  %v2657 = vadd.f32 %v2464, %v2656
  %v2658 = vpop.f32.mrf.mxu0
  %v2659 = vadd.f32 %v2466, %v2658
  %v2660 = vpop.f32.mrf.mxu0
  %v2661 = vadd.f32 %v2468, %v2660
  %2662 = vmatprep.mubr.bf16.mxu0 %v758
  %2663 = vmatmul.mubr.bf16.gmra.mxu0 %v757
  %v2664 = vpop.f32.mrf.mxu0
  %v2665 = vadd.f32 %v2472, %v2664
  %v2666 = vpop.f32.mrf.mxu0
  %v2667 = vadd.f32 %v2474, %v2666
  %v2668 = vpop.f32.mrf.mxu0
  %v2669 = vadd.f32 %v2476, %v2668
  %v2670 = vpop.f32.mrf.mxu0
  %v2671 = vadd.f32 %v2478, %v2670
  %2672 = vmatprep.mubr.bf16.mxu0 %v766
  %2673 = vmatmul.mubr.bf16.gmra.mxu0 %v765
  %v2674 = vpop.f32.mrf.mxu0
  %v2675 = vadd.f32 %v2482, %v2674
  %v2676 = vpop.f32.mrf.mxu0
  %v2677 = vadd.f32 %v2484, %v2676
  %v2678 = vpop.f32.mrf.mxu0
  %v2679 = vadd.f32 %v2486, %v2678
  %v2680 = vpop.f32.mrf.mxu0
  %v2681 = vadd.f32 %v2488, %v2680
  %2682 = vmatprep.mubr.bf16.mxu0 %v774
  %2683 = vmatmul.mubr.bf16.gmra.mxu0 %v773
  %v2684 = vpop.f32.mrf.mxu0
  %v2685 = vadd.f32 %v2492, %v2684
  %v2686 = vpop.f32.mrf.mxu0
  %v2687 = vadd.f32 %v2494, %v2686
  %v2688 = vpop.f32.mrf.mxu0
  %v2689 = vadd.f32 %v2496, %v2688
  %v2690 = vpop.f32.mrf.mxu0
  %v2691 = vadd.f32 %v2498, %v2690
  %2692 = vmatprep.mubr.bf16.mxu0 %v782
  %2693 = vmatmul.mubr.bf16.gmra.mxu0 %v781
  %v2694 = vpop.f32.mrf.mxu0
  %v2695 = vadd.f32 %v2502, %v2694
  %v2696 = vpop.f32.mrf.mxu0
  %v2697 = vadd.f32 %v2504, %v2696
  %v2698 = vpop.f32.mrf.mxu0
  %v2699 = vadd.f32 %v2506, %v2698
  %v2700 = vpop.f32.mrf.mxu0
  %v2701 = vadd.f32 %v2508, %v2700
  %2702 = vmatprep.mubr.bf16.mxu0 %v790
  %2703 = vmatmul.mubr.bf16.gmra.mxu0 %v789
  %v2704 = vpop.f32.mrf.mxu0
  %v2705 = vadd.f32 %v2512, %v2704
  %v2706 = vpop.f32.mrf.mxu0
  %v2707 = vadd.f32 %v2514, %v2706
  %v2708 = vpop.f32.mrf.mxu0
  %v2709 = vadd.f32 %v2516, %v2708
  %v2710 = vpop.f32.mrf.mxu0
  %v2711 = vadd.f32 %v2518, %v2710
  %2712 = vmatprep.mubr.bf16.mxu0 %v798
  %2713 = vmatmul.mubr.bf16.gmra.mxu0 %v797
  %v2714 = vpop.f32.mrf.mxu0
  %v2715 = vadd.f32 %v2522, %v2714
  %v2716 = vpop.f32.mrf.mxu0
  %v2717 = vadd.f32 %v2524, %v2716
  %v2718 = vpop.f32.mrf.mxu0
  %v2719 = vadd.f32 %v2526, %v2718
  %v2720 = vpop.f32.mrf.mxu0
  %v2721 = vadd.f32 %v2528, %v2720
  %2722 = vmatprep.mubr.bf16.mxu0 %v806
  %2723 = vmatmul.mubr.bf16.gmra.mxu0 %v805
  %v2724 = vpop.f32.mrf.mxu0
  %v2725 = vadd.f32 %v2532, %v2724
  %v2726 = vpop.f32.mrf.mxu0
  %v2727 = vadd.f32 %v2534, %v2726
  %v2728 = vpop.f32.mrf.mxu0
  %v2729 = vadd.f32 %v2536, %v2728
  %v2730 = vpop.f32.mrf.mxu0
  %v2731 = vadd.f32 %v2538, %v2730
  %2732 = vdwg.mxu0
  %2733 = vmatprep.subr.bf16.mxu0 %v1992
  %2734 = vmatpush1.bf16.msra.mxu0 %v1991
  %2735 = vmatprep.subr.bf16.mxu0 %v1988
  %2736 = vmatpush1.bf16.msra.mxu0 %v1987
  %2737 = vmatprep.subr.bf16.mxu0 %v1984
  %2738 = vmatpush1.bf16.msra.mxu0 %v1983
  %2739 = vmatprep.subr.bf16.mxu0 %v1980
  %2740 = vmatpush1.bf16.msra.mxu0 %v1979
  %2741 = vmatprep.subr.bf16.mxu0 %v1976
  %2742 = vmatpush1.bf16.msra.mxu0 %v1975
  %2743 = vmatprep.subr.bf16.mxu0 %v1972
  %2744 = vmatpush1.bf16.msra.mxu0 %v1971
  %2745 = vmatprep.subr.bf16.mxu0 %v1968
  %2746 = vmatpush1.bf16.msra.mxu0 %v1967
  %2747 = vmatprep.subr.bf16.mxu0 %v1964
  %2748 = vmatpush1.bf16.msra.mxu0 %v1963
  %2749 = vmatprep.subr.bf16.mxu0 %v2024
  %2750 = vmatpush2.bf16.msra.mxu0 %v2023
  %2751 = vmatprep.subr.bf16.mxu0 %v2020
  %2752 = vmatpush2.bf16.msra.mxu0 %v2019
  %2753 = vmatprep.subr.bf16.mxu0 %v2016
  %2754 = vmatpush2.bf16.msra.mxu0 %v2015
  %2755 = vmatprep.subr.bf16.mxu0 %v2012
  %2756 = vmatpush2.bf16.msra.mxu0 %v2011
  %2757 = vmatprep.subr.bf16.mxu0 %v2008
  %2758 = vmatpush2.bf16.msra.mxu0 %v2007
  %2759 = vmatprep.subr.bf16.mxu0 %v2004
  %2760 = vmatpush2.bf16.msra.mxu0 %v2003
  %2761 = vmatprep.subr.bf16.mxu0 %v2000
  %2762 = vmatpush2.bf16.msra.mxu0 %v1999
  %2763 = vmatprep.subr.bf16.mxu0 %v1996
  %2764 = vmatpush2.bf16.msra.mxu0 %v1995
  %2765 = vmatprep.mubr.bf16.mxu0 %v688
  %2766 = vmatmul.mubr.bf16.gmra.mxu0 %v687
  %v2767 = vpop.f32.mrf.mxu0
  %v2768 = vadd.f32 %v2575, %v2767
  %v2769 = vpop.f32.mrf.mxu0
  %v2770 = vadd.f32 %v2577, %v2769
  %v2771 = vpop.f32.mrf.mxu0
  %v2772 = vadd.f32 %v2579, %v2771
  %v2773 = vpop.f32.mrf.mxu0
  %v2774 = vadd.f32 %v2581, %v2773
  %2775 = vmatprep.mubr.bf16.mxu0 %v696
  %2776 = vmatmul.mubr.bf16.gmra.mxu0 %v695
  %v2777 = vpop.f32.mrf.mxu0
  %v2778 = vadd.f32 %v2585, %v2777
  %v2779 = vpop.f32.mrf.mxu0
  %v2780 = vadd.f32 %v2587, %v2779
  %v2781 = vpop.f32.mrf.mxu0
  %v2782 = vadd.f32 %v2589, %v2781
  %v2783 = vpop.f32.mrf.mxu0
  %v2784 = vadd.f32 %v2591, %v2783
  %2785 = vmatprep.mubr.bf16.mxu0 %v704
  %2786 = vmatmul.mubr.bf16.gmra.mxu0 %v703
  %v2787 = vpop.f32.mrf.mxu0
  %v2788 = vadd.f32 %v2595, %v2787
  %v2789 = vpop.f32.mrf.mxu0
  %v2790 = vadd.f32 %v2597, %v2789
  %v2791 = vpop.f32.mrf.mxu0
  %v2792 = vadd.f32 %v2599, %v2791
  %v2793 = vpop.f32.mrf.mxu0
  %v2794 = vadd.f32 %v2601, %v2793
  %2795 = vmatprep.mubr.bf16.mxu0 %v712
  %2796 = vmatmul.mubr.bf16.gmra.mxu0 %v711
  %v2797 = vpop.f32.mrf.mxu0
  %v2798 = vadd.f32 %v2605, %v2797
  %v2799 = vpop.f32.mrf.mxu0
  %v2800 = vadd.f32 %v2607, %v2799
  %v2801 = vpop.f32.mrf.mxu0
  %v2802 = vadd.f32 %v2609, %v2801
  %v2803 = vpop.f32.mrf.mxu0
  %v2804 = vadd.f32 %v2611, %v2803
  %2805 = vmatprep.mubr.bf16.mxu0 %v720
  %2806 = vmatmul.mubr.bf16.gmra.mxu0 %v719
  %v2807 = vpop.f32.mrf.mxu0
  %v2808 = vadd.f32 %v2615, %v2807
  %v2809 = vpop.f32.mrf.mxu0
  %v2810 = vadd.f32 %v2617, %v2809
  %v2811 = vpop.f32.mrf.mxu0
  %v2812 = vadd.f32 %v2619, %v2811
  %v2813 = vpop.f32.mrf.mxu0
  %v2814 = vadd.f32 %v2621, %v2813
  %2815 = vmatprep.mubr.bf16.mxu0 %v728
  %2816 = vmatmul.mubr.bf16.gmra.mxu0 %v727
  %v2817 = vpop.f32.mrf.mxu0
  %v2818 = vadd.f32 %v2625, %v2817
  %v2819 = vpop.f32.mrf.mxu0
  %v2820 = vadd.f32 %v2627, %v2819
  %v2821 = vpop.f32.mrf.mxu0
  %v2822 = vadd.f32 %v2629, %v2821
  %v2823 = vpop.f32.mrf.mxu0
  %v2824 = vadd.f32 %v2631, %v2823
  %2825 = vmatprep.mubr.bf16.mxu0 %v736
  %2826 = vmatmul.mubr.bf16.gmra.mxu0 %v735
  %v2827 = vpop.f32.mrf.mxu0
  %v2828 = vadd.f32 %v2635, %v2827
  %v2829 = vpop.f32.mrf.mxu0
  %v2830 = vadd.f32 %v2637, %v2829
  %v2831 = vpop.f32.mrf.mxu0
  %v2832 = vadd.f32 %v2639, %v2831
  %v2833 = vpop.f32.mrf.mxu0
  %v2834 = vadd.f32 %v2641, %v2833
  %2835 = vmatprep.mubr.bf16.mxu0 %v744
  %2836 = vmatmul.mubr.bf16.gmra.mxu0 %v743
  %v2837 = vpop.f32.mrf.mxu0
  %v2838 = vadd.f32 %v2645, %v2837
  %v2839 = vpop.f32.mrf.mxu0
  %v2840 = vadd.f32 %v2647, %v2839
  %v2841 = vpop.f32.mrf.mxu0
  %v2842 = vadd.f32 %v2649, %v2841
  %v2843 = vpop.f32.mrf.mxu0
  %v2844 = vadd.f32 %v2651, %v2843
  %2845 = vmatprep.mubr.bf16.mxu0 %v752
  %2846 = vmatmul.mubr.bf16.gmra.mxu0 %v751
  %v2847 = vpop.f32.mrf.mxu0
  %v2848 = vadd.f32 %v2655, %v2847
  %v2849 = vpop.f32.mrf.mxu0
  %v2850 = vadd.f32 %v2657, %v2849
  %v2851 = vpop.f32.mrf.mxu0
  %v2852 = vadd.f32 %v2659, %v2851
  %v2853 = vpop.f32.mrf.mxu0
  %v2854 = vadd.f32 %v2661, %v2853
  %2855 = vmatprep.mubr.bf16.mxu0 %v760
  %2856 = vmatmul.mubr.bf16.gmra.mxu0 %v759
  %v2857 = vpop.f32.mrf.mxu0
  %v2858 = vadd.f32 %v2665, %v2857
  %v2859 = vpop.f32.mrf.mxu0
  %v2860 = vadd.f32 %v2667, %v2859
  %v2861 = vpop.f32.mrf.mxu0
  %v2862 = vadd.f32 %v2669, %v2861
  %v2863 = vpop.f32.mrf.mxu0
  %v2864 = vadd.f32 %v2671, %v2863
  %2865 = vmatprep.mubr.bf16.mxu0 %v768
  %2866 = vmatmul.mubr.bf16.gmra.mxu0 %v767
  %v2867 = vpop.f32.mrf.mxu0
  %v2868 = vadd.f32 %v2675, %v2867
  %v2869 = vpop.f32.mrf.mxu0
  %v2870 = vadd.f32 %v2677, %v2869
  %v2871 = vpop.f32.mrf.mxu0
  %v2872 = vadd.f32 %v2679, %v2871
  %v2873 = vpop.f32.mrf.mxu0
  %v2874 = vadd.f32 %v2681, %v2873
  %2875 = vmatprep.mubr.bf16.mxu0 %v776
  %2876 = vmatmul.mubr.bf16.gmra.mxu0 %v775
  %v2877 = vpop.f32.mrf.mxu0
  %v2878 = vadd.f32 %v2685, %v2877
  %v2879 = vpop.f32.mrf.mxu0
  %v2880 = vadd.f32 %v2687, %v2879
  %v2881 = vpop.f32.mrf.mxu0
  %v2882 = vadd.f32 %v2689, %v2881
  %v2883 = vpop.f32.mrf.mxu0
  %v2884 = vadd.f32 %v2691, %v2883
  %2885 = vmatprep.mubr.bf16.mxu0 %v784
  %2886 = vmatmul.mubr.bf16.gmra.mxu0 %v783
  %v2887 = vpop.f32.mrf.mxu0
  %v2888 = vadd.f32 %v2695, %v2887
  %v2889 = vpop.f32.mrf.mxu0
  %v2890 = vadd.f32 %v2697, %v2889
  %v2891 = vpop.f32.mrf.mxu0
  %v2892 = vadd.f32 %v2699, %v2891
  %v2893 = vpop.f32.mrf.mxu0
  %v2894 = vadd.f32 %v2701, %v2893
  %2895 = vmatprep.mubr.bf16.mxu0 %v792
  %2896 = vmatmul.mubr.bf16.gmra.mxu0 %v791
  %v2897 = vpop.f32.mrf.mxu0
  %v2898 = vadd.f32 %v2705, %v2897
  %v2899 = vpop.f32.mrf.mxu0
  %v2900 = vadd.f32 %v2707, %v2899
  %v2901 = vpop.f32.mrf.mxu0
  %v2902 = vadd.f32 %v2709, %v2901
  %v2903 = vpop.f32.mrf.mxu0
  %v2904 = vadd.f32 %v2711, %v2903
  %2905 = vmatprep.mubr.bf16.mxu0 %v800
  %2906 = vmatmul.mubr.bf16.gmra.mxu0 %v799
  %v2907 = vpop.f32.mrf.mxu0
  %v2908 = vadd.f32 %v2715, %v2907
  %v2909 = vpop.f32.mrf.mxu0
  %v2910 = vadd.f32 %v2717, %v2909
  %v2911 = vpop.f32.mrf.mxu0
  %v2912 = vadd.f32 %v2719, %v2911
  %v2913 = vpop.f32.mrf.mxu0
  %v2914 = vadd.f32 %v2721, %v2913
  %2915 = vmatprep.mubr.bf16.mxu0 %v808
  %2916 = vmatmul.mubr.bf16.gmra.mxu0 %v807
  %v2917 = vpop.f32.mrf.mxu0
  %v2918 = vadd.f32 %v2725, %v2917
  %v2919 = vpop.f32.mrf.mxu0
  %v2920 = vadd.f32 %v2727, %v2919
  %v2921 = vpop.f32.mrf.mxu0
  %v2922 = vadd.f32 %v2729, %v2921
  %v2923 = vpop.f32.mrf.mxu0
  %v2924 = vadd.f32 %v2731, %v2923
  %2925 = vdwg.mxu0
  %2926 = vmatprep.subr.bf16.mxu0 %v2056
  %2927 = vmatpush1.bf16.msra.mxu0 %v2055
  %2928 = vmatprep.subr.bf16.mxu0 %v2052
  %2929 = vmatpush1.bf16.msra.mxu0 %v2051
  %2930 = vmatprep.subr.bf16.mxu0 %v2048
  %2931 = vmatpush1.bf16.msra.mxu0 %v2047
  %2932 = vmatprep.subr.bf16.mxu0 %v2044
  %2933 = vmatpush1.bf16.msra.mxu0 %v2043
  %2934 = vmatprep.subr.bf16.mxu0 %v2040
  %2935 = vmatpush1.bf16.msra.mxu0 %v2039
  %2936 = vmatprep.subr.bf16.mxu0 %v2036
  %2937 = vmatpush1.bf16.msra.mxu0 %v2035
  %2938 = vmatprep.subr.bf16.mxu0 %v2032
  %2939 = vmatpush1.bf16.msra.mxu0 %v2031
  %2940 = vmatprep.subr.bf16.mxu0 %v2028
  %2941 = vmatpush1.bf16.msra.mxu0 %v2027
  %2942 = vmatprep.subr.bf16.mxu0 %v2088
  %2943 = vmatpush2.bf16.msra.mxu0 %v2087
  %2944 = vmatprep.subr.bf16.mxu0 %v2084
  %2945 = vmatpush2.bf16.msra.mxu0 %v2083
  %2946 = vmatprep.subr.bf16.mxu0 %v2080
  %2947 = vmatpush2.bf16.msra.mxu0 %v2079
  %2948 = vmatprep.subr.bf16.mxu0 %v2076
  %2949 = vmatpush2.bf16.msra.mxu0 %v2075
  %2950 = vmatprep.subr.bf16.mxu0 %v2072
  %2951 = vmatpush2.bf16.msra.mxu0 %v2071
  %2952 = vmatprep.subr.bf16.mxu0 %v2068
  %2953 = vmatpush2.bf16.msra.mxu0 %v2067
  %2954 = vmatprep.subr.bf16.mxu0 %v2064
  %2955 = vmatpush2.bf16.msra.mxu0 %v2063
  %2956 = vmatprep.subr.bf16.mxu0 %v2060
  %2957 = vmatpush2.bf16.msra.mxu0 %v2059
  %2958 = vmatprep.mubr.bf16.mxu0 %v690
  %2959 = vmatmul.mubr.bf16.gmra.mxu0 %v689
  %v2960 = vpop.f32.mrf.mxu0
  %v2961 = vadd.f32 %v2768, %v2960
  %v2962 = vpop.f32.mrf.mxu0
  %v2963 = vadd.f32 %v2770, %v2962
  %v2964 = vpop.f32.mrf.mxu0
  %v2965 = vadd.f32 %v2772, %v2964
  %v2966 = vpop.f32.mrf.mxu0
  %v2967 = vadd.f32 %v2774, %v2966
  %2968 = vmatprep.mubr.bf16.mxu0 %v698
  %2969 = vmatmul.mubr.bf16.gmra.mxu0 %v697
  %v2970 = vpop.f32.mrf.mxu0
  %v2971 = vadd.f32 %v2778, %v2970
  %v2972 = vpop.f32.mrf.mxu0
  %v2973 = vadd.f32 %v2780, %v2972
  %v2974 = vpop.f32.mrf.mxu0
  %v2975 = vadd.f32 %v2782, %v2974
  %v2976 = vpop.f32.mrf.mxu0
  %v2977 = vadd.f32 %v2784, %v2976
  %2978 = vmatprep.mubr.bf16.mxu0 %v706
  %2979 = vmatmul.mubr.bf16.gmra.mxu0 %v705
  %v2980 = vpop.f32.mrf.mxu0
  %v2981 = vadd.f32 %v2788, %v2980
  %v2982 = vpop.f32.mrf.mxu0
  %v2983 = vadd.f32 %v2790, %v2982
  %v2984 = vpop.f32.mrf.mxu0
  %v2985 = vadd.f32 %v2792, %v2984
  %v2986 = vpop.f32.mrf.mxu0
  %v2987 = vadd.f32 %v2794, %v2986
  %2988 = vmatprep.mubr.bf16.mxu0 %v714
  %2989 = vmatmul.mubr.bf16.gmra.mxu0 %v713
  %v2990 = vpop.f32.mrf.mxu0
  %v2991 = vadd.f32 %v2798, %v2990
  %v2992 = vpop.f32.mrf.mxu0
  %v2993 = vadd.f32 %v2800, %v2992
  %v2994 = vpop.f32.mrf.mxu0
  %v2995 = vadd.f32 %v2802, %v2994
  %v2996 = vpop.f32.mrf.mxu0
  %v2997 = vadd.f32 %v2804, %v2996
  %2998 = vmatprep.mubr.bf16.mxu0 %v722
  %2999 = vmatmul.mubr.bf16.gmra.mxu0 %v721
  %v3000 = vpop.f32.mrf.mxu0
  %v3001 = vadd.f32 %v2808, %v3000
  %v3002 = vpop.f32.mrf.mxu0
  %v3003 = vadd.f32 %v2810, %v3002
  %v3004 = vpop.f32.mrf.mxu0
  %v3005 = vadd.f32 %v2812, %v3004
  %v3006 = vpop.f32.mrf.mxu0
  %v3007 = vadd.f32 %v2814, %v3006
  %3008 = vmatprep.mubr.bf16.mxu0 %v730
  %3009 = vmatmul.mubr.bf16.gmra.mxu0 %v729
  %v3010 = vpop.f32.mrf.mxu0
  %v3011 = vadd.f32 %v2818, %v3010
  %v3012 = vpop.f32.mrf.mxu0
  %v3013 = vadd.f32 %v2820, %v3012
  %v3014 = vpop.f32.mrf.mxu0
  %v3015 = vadd.f32 %v2822, %v3014
  %v3016 = vpop.f32.mrf.mxu0
  %v3017 = vadd.f32 %v2824, %v3016
  %3018 = vmatprep.mubr.bf16.mxu0 %v738
  %3019 = vmatmul.mubr.bf16.gmra.mxu0 %v737
  %v3020 = vpop.f32.mrf.mxu0
  %v3021 = vadd.f32 %v2828, %v3020
  %v3022 = vpop.f32.mrf.mxu0
  %v3023 = vadd.f32 %v2830, %v3022
  %v3024 = vpop.f32.mrf.mxu0
  %v3025 = vadd.f32 %v2832, %v3024
  %v3026 = vpop.f32.mrf.mxu0
  %v3027 = vadd.f32 %v2834, %v3026
  %3028 = vmatprep.mubr.bf16.mxu0 %v746
  %3029 = vmatmul.mubr.bf16.gmra.mxu0 %v745
  %v3030 = vpop.f32.mrf.mxu0
  %v3031 = vadd.f32 %v2838, %v3030
  %v3032 = vpop.f32.mrf.mxu0
  %v3033 = vadd.f32 %v2840, %v3032
  %v3034 = vpop.f32.mrf.mxu0
  %v3035 = vadd.f32 %v2842, %v3034
  %v3036 = vpop.f32.mrf.mxu0
  %v3037 = vadd.f32 %v2844, %v3036
  %3038 = vmatprep.mubr.bf16.mxu0 %v754
  %3039 = vmatmul.mubr.bf16.gmra.mxu0 %v753
  %v3040 = vpop.f32.mrf.mxu0
  %v3041 = vadd.f32 %v2848, %v3040
  %v3042 = vpop.f32.mrf.mxu0
  %v3043 = vadd.f32 %v2850, %v3042
  %v3044 = vpop.f32.mrf.mxu0
  %v3045 = vadd.f32 %v2852, %v3044
  %v3046 = vpop.f32.mrf.mxu0
  %v3047 = vadd.f32 %v2854, %v3046
  %3048 = vmatprep.mubr.bf16.mxu0 %v762
  %3049 = vmatmul.mubr.bf16.gmra.mxu0 %v761
  %v3050 = vpop.f32.mrf.mxu0
  %v3051 = vadd.f32 %v2858, %v3050
  %v3052 = vpop.f32.mrf.mxu0
  %v3053 = vadd.f32 %v2860, %v3052
  %v3054 = vpop.f32.mrf.mxu0
  %v3055 = vadd.f32 %v2862, %v3054
  %v3056 = vpop.f32.mrf.mxu0
  %v3057 = vadd.f32 %v2864, %v3056
  %3058 = vmatprep.mubr.bf16.mxu0 %v770
  %3059 = vmatmul.mubr.bf16.gmra.mxu0 %v769
  %v3060 = vpop.f32.mrf.mxu0
  %v3061 = vadd.f32 %v2868, %v3060
  %v3062 = vpop.f32.mrf.mxu0
  %v3063 = vadd.f32 %v2870, %v3062
  %v3064 = vpop.f32.mrf.mxu0
  %v3065 = vadd.f32 %v2872, %v3064
  %v3066 = vpop.f32.mrf.mxu0
  %v3067 = vadd.f32 %v2874, %v3066
  %3068 = vmatprep.mubr.bf16.mxu0 %v778
  %3069 = vmatmul.mubr.bf16.gmra.mxu0 %v777
  %v3070 = vpop.f32.mrf.mxu0
  %v3071 = vadd.f32 %v2878, %v3070
  %v3072 = vpop.f32.mrf.mxu0
  %v3073 = vadd.f32 %v2880, %v3072
  %v3074 = vpop.f32.mrf.mxu0
  %v3075 = vadd.f32 %v2882, %v3074
  %v3076 = vpop.f32.mrf.mxu0
  %v3077 = vadd.f32 %v2884, %v3076
  %3078 = vmatprep.mubr.bf16.mxu0 %v786
  %3079 = vmatmul.mubr.bf16.gmra.mxu0 %v785
  %v3080 = vpop.f32.mrf.mxu0
  %v3081 = vadd.f32 %v2888, %v3080
  %v3082 = vpop.f32.mrf.mxu0
  %v3083 = vadd.f32 %v2890, %v3082
  %v3084 = vpop.f32.mrf.mxu0
  %v3085 = vadd.f32 %v2892, %v3084
  %v3086 = vpop.f32.mrf.mxu0
  %v3087 = vadd.f32 %v2894, %v3086
  %3088 = vmatprep.mubr.bf16.mxu0 %v794
  %3089 = vmatmul.mubr.bf16.gmra.mxu0 %v793
  %v3090 = vpop.f32.mrf.mxu0
  %v3091 = vadd.f32 %v2898, %v3090
  %v3092 = vpop.f32.mrf.mxu0
  %v3093 = vadd.f32 %v2900, %v3092
  %v3094 = vpop.f32.mrf.mxu0
  %v3095 = vadd.f32 %v2902, %v3094
  %v3096 = vpop.f32.mrf.mxu0
  %v3097 = vadd.f32 %v2904, %v3096
  %3098 = vmatprep.mubr.bf16.mxu0 %v802
  %3099 = vmatmul.mubr.bf16.gmra.mxu0 %v801
  %v3100 = vpop.f32.mrf.mxu0
  %v3101 = vadd.f32 %v2908, %v3100
  %v3102 = vpop.f32.mrf.mxu0
  %v3103 = vadd.f32 %v2910, %v3102
  %v3104 = vpop.f32.mrf.mxu0
  %v3105 = vadd.f32 %v2912, %v3104
  %v3106 = vpop.f32.mrf.mxu0
  %v3107 = vadd.f32 %v2914, %v3106
  %3108 = vmatprep.mubr.bf16.mxu0 %v810
  %3109 = vmatmul.mubr.bf16.gmra.mxu0 %v809
  %v3110 = vpop.f32.mrf.mxu0
  %v3111 = vadd.f32 %v2918, %v3110
  %v3112 = vpop.f32.mrf.mxu0
  %v3113 = vadd.f32 %v2920, %v3112
  %v3114 = vpop.f32.mrf.mxu0
  %v3115 = vadd.f32 %v2922, %v3114
  %v3116 = vpop.f32.mrf.mxu0
  %v3117 = vadd.f32 %v2924, %v3116
  %3118 = vdwg.mxu0
  %3119 = vmatprep.subr.bf16.mxu0 %v1866
  %3120 = vmatpush1.bf16.msra.mxu0 %v1865
  %3121 = vmatprep.subr.bf16.mxu0 %v1862
  %3122 = vmatpush1.bf16.msra.mxu0 %v1861
  %3123 = vmatprep.subr.bf16.mxu0 %v1858
  %3124 = vmatpush1.bf16.msra.mxu0 %v1857
  %3125 = vmatprep.subr.bf16.mxu0 %v1854
  %3126 = vmatpush1.bf16.msra.mxu0 %v1853
  %3127 = vmatprep.subr.bf16.mxu0 %v1850
  %3128 = vmatpush1.bf16.msra.mxu0 %v1849
  %3129 = vmatprep.subr.bf16.mxu0 %v1846
  %3130 = vmatpush1.bf16.msra.mxu0 %v1845
  %3131 = vmatprep.subr.bf16.mxu0 %v1842
  %3132 = vmatpush1.bf16.msra.mxu0 %v1841
  %3133 = vmatprep.subr.bf16.mxu0 %v1838
  %3134 = vmatpush1.bf16.msra.mxu0 %v1837
  %3135 = vmatprep.subr.bf16.mxu0 %v1898
  %3136 = vmatpush2.bf16.msra.mxu0 %v1897
  %3137 = vmatprep.subr.bf16.mxu0 %v1894
  %3138 = vmatpush2.bf16.msra.mxu0 %v1893
  %3139 = vmatprep.subr.bf16.mxu0 %v1890
  %3140 = vmatpush2.bf16.msra.mxu0 %v1889
  %3141 = vmatprep.subr.bf16.mxu0 %v1886
  %3142 = vmatpush2.bf16.msra.mxu0 %v1885
  %3143 = vmatprep.subr.bf16.mxu0 %v1882
  %3144 = vmatpush2.bf16.msra.mxu0 %v1881
  %3145 = vmatprep.subr.bf16.mxu0 %v1878
  %3146 = vmatpush2.bf16.msra.mxu0 %v1877
  %3147 = vmatprep.subr.bf16.mxu0 %v1874
  %3148 = vmatpush2.bf16.msra.mxu0 %v1873
  %3149 = vmatprep.subr.bf16.mxu0 %v1870
  %3150 = vmatpush2.bf16.msra.mxu0 %v1869
  %3151 = vmatprep.mubr.bf16.mxu0 %v684
  %3152 = vmatmul.mubr.bf16.gmra.mxu0 %v683
  %v3153 = vpop.f32.mrf.mxu0
  %v3154 = vadd.f32 0.0, %v3153
  %v3155 = vpop.f32.mrf.mxu0
  %v3156 = vadd.f32 0.0, %v3155
  %v3157 = vpop.f32.mrf.mxu0
  %v3158 = vadd.f32 0.0, %v3157
  %v3159 = vpop.f32.mrf.mxu0
  %v3160 = vadd.f32 0.0, %v3159
  %3161 = vmatprep.mubr.bf16.mxu0 %v692
  %3162 = vmatmul.mubr.bf16.gmra.mxu0 %v691
  %v3163 = vpop.f32.mrf.mxu0
  %v3164 = vadd.f32 0.0, %v3163
  %v3165 = vpop.f32.mrf.mxu0
  %v3166 = vadd.f32 0.0, %v3165
  %v3167 = vpop.f32.mrf.mxu0
  %v3168 = vadd.f32 0.0, %v3167
  %v3169 = vpop.f32.mrf.mxu0
  %v3170 = vadd.f32 0.0, %v3169
  %3171 = vmatprep.mubr.bf16.mxu0 %v700
  %3172 = vmatmul.mubr.bf16.gmra.mxu0 %v699
  %v3173 = vpop.f32.mrf.mxu0
  %v3174 = vadd.f32 0.0, %v3173
  %v3175 = vpop.f32.mrf.mxu0
  %v3176 = vadd.f32 0.0, %v3175
  %v3177 = vpop.f32.mrf.mxu0
  %v3178 = vadd.f32 0.0, %v3177
  %v3179 = vpop.f32.mrf.mxu0
  %v3180 = vadd.f32 0.0, %v3179
  %3181 = vmatprep.mubr.bf16.mxu0 %v708
  %3182 = vmatmul.mubr.bf16.gmra.mxu0 %v707
  %v3183 = vpop.f32.mrf.mxu0
  %v3184 = vadd.f32 0.0, %v3183
  %v3185 = vpop.f32.mrf.mxu0
  %v3186 = vadd.f32 0.0, %v3185
  %v3187 = vpop.f32.mrf.mxu0
  %v3188 = vadd.f32 0.0, %v3187
  %v3189 = vpop.f32.mrf.mxu0
  %v3190 = vadd.f32 0.0, %v3189
  %3191 = vmatprep.mubr.bf16.mxu0 %v716
  %3192 = vmatmul.mubr.bf16.gmra.mxu0 %v715
  %v3193 = vpop.f32.mrf.mxu0
  %v3194 = vadd.f32 0.0, %v3193
  %v3195 = vpop.f32.mrf.mxu0
  %v3196 = vadd.f32 0.0, %v3195
  %v3197 = vpop.f32.mrf.mxu0
  %v3198 = vadd.f32 0.0, %v3197
  %v3199 = vpop.f32.mrf.mxu0
  %v3200 = vadd.f32 0.0, %v3199
  %3201 = vmatprep.mubr.bf16.mxu0 %v724
  %3202 = vmatmul.mubr.bf16.gmra.mxu0 %v723
  %v3203 = vpop.f32.mrf.mxu0
  %v3204 = vadd.f32 0.0, %v3203
  %v3205 = vpop.f32.mrf.mxu0
  %v3206 = vadd.f32 0.0, %v3205
  %v3207 = vpop.f32.mrf.mxu0
  %v3208 = vadd.f32 0.0, %v3207
  %v3209 = vpop.f32.mrf.mxu0
  %v3210 = vadd.f32 0.0, %v3209
  %3211 = vmatprep.mubr.bf16.mxu0 %v732
  %3212 = vmatmul.mubr.bf16.gmra.mxu0 %v731
  %v3213 = vpop.f32.mrf.mxu0
  %v3214 = vadd.f32 0.0, %v3213
  %v3215 = vpop.f32.mrf.mxu0
  %v3216 = vadd.f32 0.0, %v3215
  %v3217 = vpop.f32.mrf.mxu0
  %v3218 = vadd.f32 0.0, %v3217
  %v3219 = vpop.f32.mrf.mxu0
  %v3220 = vadd.f32 0.0, %v3219
  %3221 = vmatprep.mubr.bf16.mxu0 %v740
  %3222 = vmatmul.mubr.bf16.gmra.mxu0 %v739
  %v3223 = vpop.f32.mrf.mxu0
  %v3224 = vadd.f32 0.0, %v3223
  %v3225 = vpop.f32.mrf.mxu0
  %v3226 = vadd.f32 0.0, %v3225
  %v3227 = vpop.f32.mrf.mxu0
  %v3228 = vadd.f32 0.0, %v3227
  %v3229 = vpop.f32.mrf.mxu0
  %v3230 = vadd.f32 0.0, %v3229
  %3231 = vmatprep.mubr.bf16.mxu0 %v748
  %3232 = vmatmul.mubr.bf16.gmra.mxu0 %v747
  %v3233 = vpop.f32.mrf.mxu0
  %v3234 = vadd.f32 0.0, %v3233
  %v3235 = vpop.f32.mrf.mxu0
  %v3236 = vadd.f32 0.0, %v3235
  %v3237 = vpop.f32.mrf.mxu0
  %v3238 = vadd.f32 0.0, %v3237
  %v3239 = vpop.f32.mrf.mxu0
  %v3240 = vadd.f32 0.0, %v3239
  %3241 = vmatprep.mubr.bf16.mxu0 %v756
  %3242 = vmatmul.mubr.bf16.gmra.mxu0 %v755
  %v3243 = vpop.f32.mrf.mxu0
  %v3244 = vadd.f32 0.0, %v3243
  %v3245 = vpop.f32.mrf.mxu0
  %v3246 = vadd.f32 0.0, %v3245
  %v3247 = vpop.f32.mrf.mxu0
  %v3248 = vadd.f32 0.0, %v3247
  %v3249 = vpop.f32.mrf.mxu0
  %v3250 = vadd.f32 0.0, %v3249
  %3251 = vmatprep.mubr.bf16.mxu0 %v764
  %3252 = vmatmul.mubr.bf16.gmra.mxu0 %v763
  %v3253 = vpop.f32.mrf.mxu0
  %v3254 = vadd.f32 0.0, %v3253
  %v3255 = vpop.f32.mrf.mxu0
  %v3256 = vadd.f32 0.0, %v3255
  %v3257 = vpop.f32.mrf.mxu0
  %v3258 = vadd.f32 0.0, %v3257
  %v3259 = vpop.f32.mrf.mxu0
  %v3260 = vadd.f32 0.0, %v3259
  %3261 = vmatprep.mubr.bf16.mxu0 %v772
  %3262 = vmatmul.mubr.bf16.gmra.mxu0 %v771
  %v3263 = vpop.f32.mrf.mxu0
  %v3264 = vadd.f32 0.0, %v3263
  %v3265 = vpop.f32.mrf.mxu0
  %v3266 = vadd.f32 0.0, %v3265
  %v3267 = vpop.f32.mrf.mxu0
  %v3268 = vadd.f32 0.0, %v3267
  %v3269 = vpop.f32.mrf.mxu0
  %v3270 = vadd.f32 0.0, %v3269
  %3271 = vmatprep.mubr.bf16.mxu0 %v780
  %3272 = vmatmul.mubr.bf16.gmra.mxu0 %v779
  %v3273 = vpop.f32.mrf.mxu0
  %v3274 = vadd.f32 0.0, %v3273
  %v3275 = vpop.f32.mrf.mxu0
  %v3276 = vadd.f32 0.0, %v3275
  %v3277 = vpop.f32.mrf.mxu0
  %v3278 = vadd.f32 0.0, %v3277
  %v3279 = vpop.f32.mrf.mxu0
  %v3280 = vadd.f32 0.0, %v3279
  %3281 = vmatprep.mubr.bf16.mxu0 %v788
  %3282 = vmatmul.mubr.bf16.gmra.mxu0 %v787
  %v3283 = vpop.f32.mrf.mxu0
  %v3284 = vadd.f32 0.0, %v3283
  %v3285 = vpop.f32.mrf.mxu0
  %v3286 = vadd.f32 0.0, %v3285
  %v3287 = vpop.f32.mrf.mxu0
  %v3288 = vadd.f32 0.0, %v3287
  %v3289 = vpop.f32.mrf.mxu0
  %v3290 = vadd.f32 0.0, %v3289
  %3291 = vmatprep.mubr.bf16.mxu0 %v796
  %3292 = vmatmul.mubr.bf16.gmra.mxu0 %v795
  %v3293 = vpop.f32.mrf.mxu0
  %v3294 = vadd.f32 0.0, %v3293
  %v3295 = vpop.f32.mrf.mxu0
  %v3296 = vadd.f32 0.0, %v3295
  %v3297 = vpop.f32.mrf.mxu0
  %v3298 = vadd.f32 0.0, %v3297
  %v3299 = vpop.f32.mrf.mxu0
  %v3300 = vadd.f32 0.0, %v3299
  %3301 = vmatprep.mubr.bf16.mxu0 %v804
  %3302 = vmatmul.mubr.bf16.gmra.mxu0 %v803
  %v3303 = vpop.f32.mrf.mxu0
  %v3304 = vadd.f32 0.0, %v3303
  %v3305 = vpop.f32.mrf.mxu0
  %v3306 = vadd.f32 0.0, %v3305
  %v3307 = vpop.f32.mrf.mxu0
  %v3308 = vadd.f32 0.0, %v3307
  %v3309 = vpop.f32.mrf.mxu0
  %v3310 = vadd.f32 0.0, %v3309
  %3311 = vdwg.mxu0
  %3312 = vmatprep.subr.bf16.mxu0 %v1930
  %3313 = vmatpush1.bf16.msra.mxu0 %v1929
  %3314 = vmatprep.subr.bf16.mxu0 %v1926
  %3315 = vmatpush1.bf16.msra.mxu0 %v1925
  %3316 = vmatprep.subr.bf16.mxu0 %v1922
  %3317 = vmatpush1.bf16.msra.mxu0 %v1921
  %3318 = vmatprep.subr.bf16.mxu0 %v1918
  %3319 = vmatpush1.bf16.msra.mxu0 %v1917
  %3320 = vmatprep.subr.bf16.mxu0 %v1914
  %3321 = vmatpush1.bf16.msra.mxu0 %v1913
  %3322 = vmatprep.subr.bf16.mxu0 %v1910
  %3323 = vmatpush1.bf16.msra.mxu0 %v1909
  %3324 = vmatprep.subr.bf16.mxu0 %v1906
  %3325 = vmatpush1.bf16.msra.mxu0 %v1905
  %3326 = vmatprep.subr.bf16.mxu0 %v1902
  %3327 = vmatpush1.bf16.msra.mxu0 %v1901
  %3328 = vmatprep.subr.bf16.mxu0 %v1962
  %3329 = vmatpush2.bf16.msra.mxu0 %v1961
  %3330 = vmatprep.subr.bf16.mxu0 %v1958
  %3331 = vmatpush2.bf16.msra.mxu0 %v1957
  %3332 = vmatprep.subr.bf16.mxu0 %v1954
  %3333 = vmatpush2.bf16.msra.mxu0 %v1953
  %3334 = vmatprep.subr.bf16.mxu0 %v1950
  %3335 = vmatpush2.bf16.msra.mxu0 %v1949
  %3336 = vmatprep.subr.bf16.mxu0 %v1946
  %3337 = vmatpush2.bf16.msra.mxu0 %v1945
  %3338 = vmatprep.subr.bf16.mxu0 %v1942
  %3339 = vmatpush2.bf16.msra.mxu0 %v1941
  %3340 = vmatprep.subr.bf16.mxu0 %v1938
  %3341 = vmatpush2.bf16.msra.mxu0 %v1937
  %3342 = vmatprep.subr.bf16.mxu0 %v1934
  %3343 = vmatpush2.bf16.msra.mxu0 %v1933
  %3344 = vmatprep.mubr.bf16.mxu0 %v686
  %3345 = vmatmul.mubr.bf16.gmra.mxu0 %v685
  %v3346 = vpop.f32.mrf.mxu0
  %v3347 = vadd.f32 %v3154, %v3346
  %v3348 = vpop.f32.mrf.mxu0
  %v3349 = vadd.f32 %v3156, %v3348
  %v3350 = vpop.f32.mrf.mxu0
  %v3351 = vadd.f32 %v3158, %v3350
  %v3352 = vpop.f32.mrf.mxu0
  %v3353 = vadd.f32 %v3160, %v3352
  %3354 = vmatprep.mubr.bf16.mxu0 %v694
  %3355 = vmatmul.mubr.bf16.gmra.mxu0 %v693
  %v3356 = vpop.f32.mrf.mxu0
  %v3357 = vadd.f32 %v3164, %v3356
  %v3358 = vpop.f32.mrf.mxu0
  %v3359 = vadd.f32 %v3166, %v3358
  %v3360 = vpop.f32.mrf.mxu0
  %v3361 = vadd.f32 %v3168, %v3360
  %v3362 = vpop.f32.mrf.mxu0
  %v3363 = vadd.f32 %v3170, %v3362
  %3364 = vmatprep.mubr.bf16.mxu0 %v702
  %3365 = vmatmul.mubr.bf16.gmra.mxu0 %v701
  %v3366 = vpop.f32.mrf.mxu0
  %v3367 = vadd.f32 %v3174, %v3366
  %v3368 = vpop.f32.mrf.mxu0
  %v3369 = vadd.f32 %v3176, %v3368
  %v3370 = vpop.f32.mrf.mxu0
  %v3371 = vadd.f32 %v3178, %v3370
  %v3372 = vpop.f32.mrf.mxu0
  %v3373 = vadd.f32 %v3180, %v3372
  %3374 = vmatprep.mubr.bf16.mxu0 %v710
  %3375 = vmatmul.mubr.bf16.gmra.mxu0 %v709
  %v3376 = vpop.f32.mrf.mxu0
  %v3377 = vadd.f32 %v3184, %v3376
  %v3378 = vpop.f32.mrf.mxu0
  %v3379 = vadd.f32 %v3186, %v3378
  %v3380 = vpop.f32.mrf.mxu0
  %v3381 = vadd.f32 %v3188, %v3380
  %v3382 = vpop.f32.mrf.mxu0
  %v3383 = vadd.f32 %v3190, %v3382
  %3384 = vmatprep.mubr.bf16.mxu0 %v718
  %3385 = vmatmul.mubr.bf16.gmra.mxu0 %v717
  %v3386 = vpop.f32.mrf.mxu0
  %v3387 = vadd.f32 %v3194, %v3386
  %v3388 = vpop.f32.mrf.mxu0
  %v3389 = vadd.f32 %v3196, %v3388
  %v3390 = vpop.f32.mrf.mxu0
  %v3391 = vadd.f32 %v3198, %v3390
  %v3392 = vpop.f32.mrf.mxu0
  %v3393 = vadd.f32 %v3200, %v3392
  %3394 = vmatprep.mubr.bf16.mxu0 %v726
  %3395 = vmatmul.mubr.bf16.gmra.mxu0 %v725
  %v3396 = vpop.f32.mrf.mxu0
  %v3397 = vadd.f32 %v3204, %v3396
  %v3398 = vpop.f32.mrf.mxu0
  %v3399 = vadd.f32 %v3206, %v3398
  %v3400 = vpop.f32.mrf.mxu0
  %v3401 = vadd.f32 %v3208, %v3400
  %v3402 = vpop.f32.mrf.mxu0
  %v3403 = vadd.f32 %v3210, %v3402
  %3404 = vmatprep.mubr.bf16.mxu0 %v734
  %3405 = vmatmul.mubr.bf16.gmra.mxu0 %v733
  %v3406 = vpop.f32.mrf.mxu0
  %v3407 = vadd.f32 %v3214, %v3406
  %v3408 = vpop.f32.mrf.mxu0
  %v3409 = vadd.f32 %v3216, %v3408
  %v3410 = vpop.f32.mrf.mxu0
  %v3411 = vadd.f32 %v3218, %v3410
  %v3412 = vpop.f32.mrf.mxu0
  %v3413 = vadd.f32 %v3220, %v3412
  %3414 = vmatprep.mubr.bf16.mxu0 %v742
  %3415 = vmatmul.mubr.bf16.gmra.mxu0 %v741
  %v3416 = vpop.f32.mrf.mxu0
  %v3417 = vadd.f32 %v3224, %v3416
  %v3418 = vpop.f32.mrf.mxu0
  %v3419 = vadd.f32 %v3226, %v3418
  %v3420 = vpop.f32.mrf.mxu0
  %v3421 = vadd.f32 %v3228, %v3420
  %v3422 = vpop.f32.mrf.mxu0
  %v3423 = vadd.f32 %v3230, %v3422
  %3424 = vmatprep.mubr.bf16.mxu0 %v750
  %3425 = vmatmul.mubr.bf16.gmra.mxu0 %v749
  %v3426 = vpop.f32.mrf.mxu0
  %v3427 = vadd.f32 %v3234, %v3426
  %v3428 = vpop.f32.mrf.mxu0
  %v3429 = vadd.f32 %v3236, %v3428
  %v3430 = vpop.f32.mrf.mxu0
  %v3431 = vadd.f32 %v3238, %v3430
  %v3432 = vpop.f32.mrf.mxu0
  %v3433 = vadd.f32 %v3240, %v3432
  %3434 = vmatprep.mubr.bf16.mxu0 %v758
  %3435 = vmatmul.mubr.bf16.gmra.mxu0 %v757
  %v3436 = vpop.f32.mrf.mxu0
  %v3437 = vadd.f32 %v3244, %v3436
  %v3438 = vpop.f32.mrf.mxu0
  %v3439 = vadd.f32 %v3246, %v3438
  %v3440 = vpop.f32.mrf.mxu0
  %v3441 = vadd.f32 %v3248, %v3440
  %v3442 = vpop.f32.mrf.mxu0
  %v3443 = vadd.f32 %v3250, %v3442
  %3444 = vmatprep.mubr.bf16.mxu0 %v766
  %3445 = vmatmul.mubr.bf16.gmra.mxu0 %v765
  %v3446 = vpop.f32.mrf.mxu0
  %v3447 = vadd.f32 %v3254, %v3446
  %v3448 = vpop.f32.mrf.mxu0
  %v3449 = vadd.f32 %v3256, %v3448
  %v3450 = vpop.f32.mrf.mxu0
  %v3451 = vadd.f32 %v3258, %v3450
  %v3452 = vpop.f32.mrf.mxu0
  %v3453 = vadd.f32 %v3260, %v3452
  %3454 = vmatprep.mubr.bf16.mxu0 %v774
  %3455 = vmatmul.mubr.bf16.gmra.mxu0 %v773
  %v3456 = vpop.f32.mrf.mxu0
  %v3457 = vadd.f32 %v3264, %v3456
  %v3458 = vpop.f32.mrf.mxu0
  %v3459 = vadd.f32 %v3266, %v3458
  %v3460 = vpop.f32.mrf.mxu0
  %v3461 = vadd.f32 %v3268, %v3460
  %v3462 = vpop.f32.mrf.mxu0
  %v3463 = vadd.f32 %v3270, %v3462
  %3464 = vmatprep.mubr.bf16.mxu0 %v782
  %3465 = vmatmul.mubr.bf16.gmra.mxu0 %v781
  %v3466 = vpop.f32.mrf.mxu0
  %v3467 = vadd.f32 %v3274, %v3466
  %v3468 = vpop.f32.mrf.mxu0
  %v3469 = vadd.f32 %v3276, %v3468
  %v3470 = vpop.f32.mrf.mxu0
  %v3471 = vadd.f32 %v3278, %v3470
  %v3472 = vpop.f32.mrf.mxu0
  %v3473 = vadd.f32 %v3280, %v3472
  %3474 = vmatprep.mubr.bf16.mxu0 %v790
  %3475 = vmatmul.mubr.bf16.gmra.mxu0 %v789
  %v3476 = vpop.f32.mrf.mxu0
  %v3477 = vadd.f32 %v3284, %v3476
  %v3478 = vpop.f32.mrf.mxu0
  %v3479 = vadd.f32 %v3286, %v3478
  %v3480 = vpop.f32.mrf.mxu0
  %v3481 = vadd.f32 %v3288, %v3480
  %v3482 = vpop.f32.mrf.mxu0
  %v3483 = vadd.f32 %v3290, %v3482
  %3484 = vmatprep.mubr.bf16.mxu0 %v798
  %3485 = vmatmul.mubr.bf16.gmra.mxu0 %v797
  %v3486 = vpop.f32.mrf.mxu0
  %v3487 = vadd.f32 %v3294, %v3486
  %v3488 = vpop.f32.mrf.mxu0
  %v3489 = vadd.f32 %v3296, %v3488
  %v3490 = vpop.f32.mrf.mxu0
  %v3491 = vadd.f32 %v3298, %v3490
  %v3492 = vpop.f32.mrf.mxu0
  %v3493 = vadd.f32 %v3300, %v3492
  %3494 = vmatprep.mubr.bf16.mxu0 %v806
  %3495 = vmatmul.mubr.bf16.gmra.mxu0 %v805
  %v3496 = vpop.f32.mrf.mxu0
  %v3497 = vadd.f32 %v3304, %v3496
  %v3498 = vpop.f32.mrf.mxu0
  %v3499 = vadd.f32 %v3306, %v3498
  %v3500 = vpop.f32.mrf.mxu0
  %v3501 = vadd.f32 %v3308, %v3500
  %v3502 = vpop.f32.mrf.mxu0
  %v3503 = vadd.f32 %v3310, %v3502
  %3504 = vdwg.mxu0
  %3505 = vmatprep.subr.bf16.mxu0 %v1994
  %3506 = vmatpush1.bf16.msra.mxu0 %v1993
  %3507 = vmatprep.subr.bf16.mxu0 %v1990
  %3508 = vmatpush1.bf16.msra.mxu0 %v1989
  %3509 = vmatprep.subr.bf16.mxu0 %v1986
  %3510 = vmatpush1.bf16.msra.mxu0 %v1985
  %3511 = vmatprep.subr.bf16.mxu0 %v1982
  %3512 = vmatpush1.bf16.msra.mxu0 %v1981
  %3513 = vmatprep.subr.bf16.mxu0 %v1978
  %3514 = vmatpush1.bf16.msra.mxu0 %v1977
  %3515 = vmatprep.subr.bf16.mxu0 %v1974
  %3516 = vmatpush1.bf16.msra.mxu0 %v1973
  %3517 = vmatprep.subr.bf16.mxu0 %v1970
  %3518 = vmatpush1.bf16.msra.mxu0 %v1969
  %3519 = vmatprep.subr.bf16.mxu0 %v1966
  %3520 = vmatpush1.bf16.msra.mxu0 %v1965
  %3521 = vmatprep.subr.bf16.mxu0 %v2026
  %3522 = vmatpush2.bf16.msra.mxu0 %v2025
  %3523 = vmatprep.subr.bf16.mxu0 %v2022
  %3524 = vmatpush2.bf16.msra.mxu0 %v2021
  %3525 = vmatprep.subr.bf16.mxu0 %v2018
  %3526 = vmatpush2.bf16.msra.mxu0 %v2017
  %3527 = vmatprep.subr.bf16.mxu0 %v2014
  %3528 = vmatpush2.bf16.msra.mxu0 %v2013
  %3529 = vmatprep.subr.bf16.mxu0 %v2010
  %3530 = vmatpush2.bf16.msra.mxu0 %v2009
  %3531 = vmatprep.subr.bf16.mxu0 %v2006
  %3532 = vmatpush2.bf16.msra.mxu0 %v2005
  %3533 = vmatprep.subr.bf16.mxu0 %v2002
  %3534 = vmatpush2.bf16.msra.mxu0 %v2001
  %3535 = vmatprep.subr.bf16.mxu0 %v1998
  %3536 = vmatpush2.bf16.msra.mxu0 %v1997
  %3537 = vmatprep.mubr.bf16.mxu0 %v688
  %3538 = vmatmul.mubr.bf16.gmra.mxu0 %v687
  %v3539 = vpop.f32.mrf.mxu0
  %v3540 = vadd.f32 %v3347, %v3539
  %v3541 = vpop.f32.mrf.mxu0
  %v3542 = vadd.f32 %v3349, %v3541
  %v3543 = vpop.f32.mrf.mxu0
  %v3544 = vadd.f32 %v3351, %v3543
  %v3545 = vpop.f32.mrf.mxu0
  %v3546 = vadd.f32 %v3353, %v3545
  %3547 = vmatprep.mubr.bf16.mxu0 %v696
  %3548 = vmatmul.mubr.bf16.gmra.mxu0 %v695
  %v3549 = vpop.f32.mrf.mxu0
  %v3550 = vadd.f32 %v3357, %v3549
  %v3551 = vpop.f32.mrf.mxu0
  %v3552 = vadd.f32 %v3359, %v3551
  %v3553 = vpop.f32.mrf.mxu0
  %v3554 = vadd.f32 %v3361, %v3553
  %v3555 = vpop.f32.mrf.mxu0
  %v3556 = vadd.f32 %v3363, %v3555
  %3557 = vmatprep.mubr.bf16.mxu0 %v704
  %3558 = vmatmul.mubr.bf16.gmra.mxu0 %v703
  %v3559 = vpop.f32.mrf.mxu0
  %v3560 = vadd.f32 %v3367, %v3559
  %v3561 = vpop.f32.mrf.mxu0
  %v3562 = vadd.f32 %v3369, %v3561
  %v3563 = vpop.f32.mrf.mxu0
  %v3564 = vadd.f32 %v3371, %v3563
  %v3565 = vpop.f32.mrf.mxu0
  %v3566 = vadd.f32 %v3373, %v3565
  %3567 = vmatprep.mubr.bf16.mxu0 %v712
  %3568 = vmatmul.mubr.bf16.gmra.mxu0 %v711
  %v3569 = vpop.f32.mrf.mxu0
  %v3570 = vadd.f32 %v3377, %v3569
  %v3571 = vpop.f32.mrf.mxu0
  %v3572 = vadd.f32 %v3379, %v3571
  %v3573 = vpop.f32.mrf.mxu0
  %v3574 = vadd.f32 %v3381, %v3573
  %v3575 = vpop.f32.mrf.mxu0
  %v3576 = vadd.f32 %v3383, %v3575
  %3577 = vmatprep.mubr.bf16.mxu0 %v720
  %3578 = vmatmul.mubr.bf16.gmra.mxu0 %v719
  %v3579 = vpop.f32.mrf.mxu0
  %v3580 = vadd.f32 %v3387, %v3579
  %v3581 = vpop.f32.mrf.mxu0
  %v3582 = vadd.f32 %v3389, %v3581
  %v3583 = vpop.f32.mrf.mxu0
  %v3584 = vadd.f32 %v3391, %v3583
  %v3585 = vpop.f32.mrf.mxu0
  %v3586 = vadd.f32 %v3393, %v3585
  %3587 = vmatprep.mubr.bf16.mxu0 %v728
  %3588 = vmatmul.mubr.bf16.gmra.mxu0 %v727
  %v3589 = vpop.f32.mrf.mxu0
  %v3590 = vadd.f32 %v3397, %v3589
  %v3591 = vpop.f32.mrf.mxu0
  %v3592 = vadd.f32 %v3399, %v3591
  %v3593 = vpop.f32.mrf.mxu0
  %v3594 = vadd.f32 %v3401, %v3593
  %v3595 = vpop.f32.mrf.mxu0
  %v3596 = vadd.f32 %v3403, %v3595
  %3597 = vmatprep.mubr.bf16.mxu0 %v736
  %3598 = vmatmul.mubr.bf16.gmra.mxu0 %v735
  %v3599 = vpop.f32.mrf.mxu0
  %v3600 = vadd.f32 %v3407, %v3599
  %v3601 = vpop.f32.mrf.mxu0
  %v3602 = vadd.f32 %v3409, %v3601
  %v3603 = vpop.f32.mrf.mxu0
  %v3604 = vadd.f32 %v3411, %v3603
  %v3605 = vpop.f32.mrf.mxu0
  %v3606 = vadd.f32 %v3413, %v3605
  %3607 = vmatprep.mubr.bf16.mxu0 %v744
  %3608 = vmatmul.mubr.bf16.gmra.mxu0 %v743
  %v3609 = vpop.f32.mrf.mxu0
  %v3610 = vadd.f32 %v3417, %v3609
  %v3611 = vpop.f32.mrf.mxu0
  %v3612 = vadd.f32 %v3419, %v3611
  %v3613 = vpop.f32.mrf.mxu0
  %v3614 = vadd.f32 %v3421, %v3613
  %v3615 = vpop.f32.mrf.mxu0
  %v3616 = vadd.f32 %v3423, %v3615
  %3617 = vmatprep.mubr.bf16.mxu0 %v752
  %3618 = vmatmul.mubr.bf16.gmra.mxu0 %v751
  %v3619 = vpop.f32.mrf.mxu0
  %v3620 = vadd.f32 %v3427, %v3619
  %v3621 = vpop.f32.mrf.mxu0
  %v3622 = vadd.f32 %v3429, %v3621
  %v3623 = vpop.f32.mrf.mxu0
  %v3624 = vadd.f32 %v3431, %v3623
  %v3625 = vpop.f32.mrf.mxu0
  %v3626 = vadd.f32 %v3433, %v3625
  %3627 = vmatprep.mubr.bf16.mxu0 %v760
  %3628 = vmatmul.mubr.bf16.gmra.mxu0 %v759
  %v3629 = vpop.f32.mrf.mxu0
  %v3630 = vadd.f32 %v3437, %v3629
  %v3631 = vpop.f32.mrf.mxu0
  %v3632 = vadd.f32 %v3439, %v3631
  %v3633 = vpop.f32.mrf.mxu0
  %v3634 = vadd.f32 %v3441, %v3633
  %v3635 = vpop.f32.mrf.mxu0
  %v3636 = vadd.f32 %v3443, %v3635
  %3637 = vmatprep.mubr.bf16.mxu0 %v768
  %3638 = vmatmul.mubr.bf16.gmra.mxu0 %v767
  %v3639 = vpop.f32.mrf.mxu0
  %v3640 = vadd.f32 %v3447, %v3639
  %v3641 = vpop.f32.mrf.mxu0
  %v3642 = vadd.f32 %v3449, %v3641
  %v3643 = vpop.f32.mrf.mxu0
  %v3644 = vadd.f32 %v3451, %v3643
  %v3645 = vpop.f32.mrf.mxu0
  %v3646 = vadd.f32 %v3453, %v3645
  %3647 = vmatprep.mubr.bf16.mxu0 %v776
  %3648 = vmatmul.mubr.bf16.gmra.mxu0 %v775
  %v3649 = vpop.f32.mrf.mxu0
  %v3650 = vadd.f32 %v3457, %v3649
  %v3651 = vpop.f32.mrf.mxu0
  %v3652 = vadd.f32 %v3459, %v3651
  %v3653 = vpop.f32.mrf.mxu0
  %v3654 = vadd.f32 %v3461, %v3653
  %v3655 = vpop.f32.mrf.mxu0
  %v3656 = vadd.f32 %v3463, %v3655
  %3657 = vmatprep.mubr.bf16.mxu0 %v784
  %3658 = vmatmul.mubr.bf16.gmra.mxu0 %v783
  %v3659 = vpop.f32.mrf.mxu0
  %v3660 = vadd.f32 %v3467, %v3659
  %v3661 = vpop.f32.mrf.mxu0
  %v3662 = vadd.f32 %v3469, %v3661
  %v3663 = vpop.f32.mrf.mxu0
  %v3664 = vadd.f32 %v3471, %v3663
  %v3665 = vpop.f32.mrf.mxu0
  %v3666 = vadd.f32 %v3473, %v3665
  %3667 = vmatprep.mubr.bf16.mxu0 %v792
  %3668 = vmatmul.mubr.bf16.gmra.mxu0 %v791
  %v3669 = vpop.f32.mrf.mxu0
  %v3670 = vadd.f32 %v3477, %v3669
  %v3671 = vpop.f32.mrf.mxu0
  %v3672 = vadd.f32 %v3479, %v3671
  %v3673 = vpop.f32.mrf.mxu0
  %v3674 = vadd.f32 %v3481, %v3673
  %v3675 = vpop.f32.mrf.mxu0
  %v3676 = vadd.f32 %v3483, %v3675
  %3677 = vmatprep.mubr.bf16.mxu0 %v800
  %3678 = vmatmul.mubr.bf16.gmra.mxu0 %v799
  %v3679 = vpop.f32.mrf.mxu0
  %v3680 = vadd.f32 %v3487, %v3679
  %v3681 = vpop.f32.mrf.mxu0
  %v3682 = vadd.f32 %v3489, %v3681
  %v3683 = vpop.f32.mrf.mxu0
  %v3684 = vadd.f32 %v3491, %v3683
  %v3685 = vpop.f32.mrf.mxu0
  %v3686 = vadd.f32 %v3493, %v3685
  %3687 = vmatprep.mubr.bf16.mxu0 %v808
  %3688 = vmatmul.mubr.bf16.gmra.mxu0 %v807
  %v3689 = vpop.f32.mrf.mxu0
  %v3690 = vadd.f32 %v3497, %v3689
  %v3691 = vpop.f32.mrf.mxu0
  %v3692 = vadd.f32 %v3499, %v3691
  %v3693 = vpop.f32.mrf.mxu0
  %v3694 = vadd.f32 %v3501, %v3693
  %v3695 = vpop.f32.mrf.mxu0
  %v3696 = vadd.f32 %v3503, %v3695
  %3697 = vdwg.mxu0
  %3698 = vmatprep.subr.bf16.mxu0 %v2058
  %3699 = vmatpush1.bf16.msra.mxu0 %v2057
  %3700 = vmatprep.subr.bf16.mxu0 %v2054
  %3701 = vmatpush1.bf16.msra.mxu0 %v2053
  %3702 = vmatprep.subr.bf16.mxu0 %v2050
  %3703 = vmatpush1.bf16.msra.mxu0 %v2049
  %3704 = vmatprep.subr.bf16.mxu0 %v2046
  %3705 = vmatpush1.bf16.msra.mxu0 %v2045
  %3706 = vmatprep.subr.bf16.mxu0 %v2042
  %3707 = vmatpush1.bf16.msra.mxu0 %v2041
  %3708 = vmatprep.subr.bf16.mxu0 %v2038
  %3709 = vmatpush1.bf16.msra.mxu0 %v2037
  %3710 = vmatprep.subr.bf16.mxu0 %v2034
  %3711 = vmatpush1.bf16.msra.mxu0 %v2033
  %3712 = vmatprep.subr.bf16.mxu0 %v2030
  %3713 = vmatpush1.bf16.msra.mxu0 %v2029
  %3714 = vmatprep.subr.bf16.mxu0 %v2090
  %3715 = vmatpush2.bf16.msra.mxu0 %v2089
  %3716 = vmatprep.subr.bf16.mxu0 %v2086
  %3717 = vmatpush2.bf16.msra.mxu0 %v2085
  %3718 = vmatprep.subr.bf16.mxu0 %v2082
  %3719 = vmatpush2.bf16.msra.mxu0 %v2081
  %3720 = vmatprep.subr.bf16.mxu0 %v2078
  %3721 = vmatpush2.bf16.msra.mxu0 %v2077
  %3722 = vmatprep.subr.bf16.mxu0 %v2074
  %3723 = vmatpush2.bf16.msra.mxu0 %v2073
  %3724 = vmatprep.subr.bf16.mxu0 %v2070
  %3725 = vmatpush2.bf16.msra.mxu0 %v2069
  %3726 = vmatprep.subr.bf16.mxu0 %v2066
  %3727 = vmatpush2.bf16.msra.mxu0 %v2065
  %3728 = vmatprep.subr.bf16.mxu0 %v2062
  %3729 = vmatpush2.bf16.msra.mxu0 %v2061
  %3730 = vmatprep.mubr.bf16.mxu0 %v690
  %3731 = vmatmul.mubr.bf16.gmra.mxu0 %v689
  %v3732 = vpop.f32.mrf.mxu0
  %v3733 = vadd.f32 %v3540, %v3732
  %v3734 = vpop.f32.mrf.mxu0
  %v3735 = vadd.f32 %v3542, %v3734
  %v3736 = vpop.f32.mrf.mxu0
  %v3737 = vadd.f32 %v3544, %v3736
  %v3738 = vpop.f32.mrf.mxu0
  %v3739 = vadd.f32 %v3546, %v3738
  %3740 = vmatprep.mubr.bf16.mxu0 %v698
  %3741 = vmatmul.mubr.bf16.gmra.mxu0 %v697
  %v3742 = vpop.f32.mrf.mxu0
  %v3743 = vadd.f32 %v3550, %v3742
  %v3744 = vpop.f32.mrf.mxu0
  %v3745 = vadd.f32 %v3552, %v3744
  %v3746 = vpop.f32.mrf.mxu0
  %v3747 = vadd.f32 %v3554, %v3746
  %v3748 = vpop.f32.mrf.mxu0
  %v3749 = vadd.f32 %v3556, %v3748
  %3750 = vmatprep.mubr.bf16.mxu0 %v706
  %3751 = vmatmul.mubr.bf16.gmra.mxu0 %v705
  %v3752 = vpop.f32.mrf.mxu0
  %v3753 = vadd.f32 %v3560, %v3752
  %v3754 = vpop.f32.mrf.mxu0
  %v3755 = vadd.f32 %v3562, %v3754
  %v3756 = vpop.f32.mrf.mxu0
  %v3757 = vadd.f32 %v3564, %v3756
  %v3758 = vpop.f32.mrf.mxu0
  %v3759 = vadd.f32 %v3566, %v3758
  %3760 = vmatprep.mubr.bf16.mxu0 %v714
  %3761 = vmatmul.mubr.bf16.gmra.mxu0 %v713
  %v3762 = vpop.f32.mrf.mxu0
  %v3763 = vadd.f32 %v3570, %v3762
  %v3764 = vpop.f32.mrf.mxu0
  %v3765 = vadd.f32 %v3572, %v3764
  %v3766 = vpop.f32.mrf.mxu0
  %v3767 = vadd.f32 %v3574, %v3766
  %v3768 = vpop.f32.mrf.mxu0
  %v3769 = vadd.f32 %v3576, %v3768
  %3770 = vmatprep.mubr.bf16.mxu0 %v722
  %3771 = vmatmul.mubr.bf16.gmra.mxu0 %v721
  %v3772 = vpop.f32.mrf.mxu0
  %v3773 = vadd.f32 %v3580, %v3772
  %v3774 = vpop.f32.mrf.mxu0
  %v3775 = vadd.f32 %v3582, %v3774
  %v3776 = vpop.f32.mrf.mxu0
  %v3777 = vadd.f32 %v3584, %v3776
  %v3778 = vpop.f32.mrf.mxu0
  %v3779 = vadd.f32 %v3586, %v3778
  %3780 = vmatprep.mubr.bf16.mxu0 %v730
  %3781 = vmatmul.mubr.bf16.gmra.mxu0 %v729
  %v3782 = vpop.f32.mrf.mxu0
  %v3783 = vadd.f32 %v3590, %v3782
  %v3784 = vpop.f32.mrf.mxu0
  %v3785 = vadd.f32 %v3592, %v3784
  %v3786 = vpop.f32.mrf.mxu0
  %v3787 = vadd.f32 %v3594, %v3786
  %v3788 = vpop.f32.mrf.mxu0
  %v3789 = vadd.f32 %v3596, %v3788
  %3790 = vmatprep.mubr.bf16.mxu0 %v738
  %3791 = vmatmul.mubr.bf16.gmra.mxu0 %v737
  %v3792 = vpop.f32.mrf.mxu0
  %v3793 = vadd.f32 %v3600, %v3792
  %v3794 = vpop.f32.mrf.mxu0
  %v3795 = vadd.f32 %v3602, %v3794
  %v3796 = vpop.f32.mrf.mxu0
  %v3797 = vadd.f32 %v3604, %v3796
  %v3798 = vpop.f32.mrf.mxu0
  %v3799 = vadd.f32 %v3606, %v3798
  %3800 = vmatprep.mubr.bf16.mxu0 %v746
  %3801 = vmatmul.mubr.bf16.gmra.mxu0 %v745
  %v3802 = vpop.f32.mrf.mxu0
  %v3803 = vadd.f32 %v3610, %v3802
  %v3804 = vpop.f32.mrf.mxu0
  %v3805 = vadd.f32 %v3612, %v3804
  %v3806 = vpop.f32.mrf.mxu0
  %v3807 = vadd.f32 %v3614, %v3806
  %v3808 = vpop.f32.mrf.mxu0
  %v3809 = vadd.f32 %v3616, %v3808
  %3810 = vmatprep.mubr.bf16.mxu0 %v754
  %3811 = vmatmul.mubr.bf16.gmra.mxu0 %v753
  %v3812 = vpop.f32.mrf.mxu0
  %v3813 = vadd.f32 %v3620, %v3812
  %v3814 = vpop.f32.mrf.mxu0
  %v3815 = vadd.f32 %v3622, %v3814
  %v3816 = vpop.f32.mrf.mxu0
  %v3817 = vadd.f32 %v3624, %v3816
  %v3818 = vpop.f32.mrf.mxu0
  %v3819 = vadd.f32 %v3626, %v3818
  %3820 = vmatprep.mubr.bf16.mxu0 %v762
  %3821 = vmatmul.mubr.bf16.gmra.mxu0 %v761
  %v3822 = vpop.f32.mrf.mxu0
  %v3823 = vadd.f32 %v3630, %v3822
  %v3824 = vpop.f32.mrf.mxu0
  %v3825 = vadd.f32 %v3632, %v3824
  %v3826 = vpop.f32.mrf.mxu0
  %v3827 = vadd.f32 %v3634, %v3826
  %v3828 = vpop.f32.mrf.mxu0
  %v3829 = vadd.f32 %v3636, %v3828
  %3830 = vmatprep.mubr.bf16.mxu0 %v770
  %3831 = vmatmul.mubr.bf16.gmra.mxu0 %v769
  %v3832 = vpop.f32.mrf.mxu0
  %v3833 = vadd.f32 %v3640, %v3832
  %v3834 = vpop.f32.mrf.mxu0
  %v3835 = vadd.f32 %v3642, %v3834
  %v3836 = vpop.f32.mrf.mxu0
  %v3837 = vadd.f32 %v3644, %v3836
  %v3838 = vpop.f32.mrf.mxu0
  %v3839 = vadd.f32 %v3646, %v3838
  %3840 = vmatprep.mubr.bf16.mxu0 %v778
  %3841 = vmatmul.mubr.bf16.gmra.mxu0 %v777
  %v3842 = vpop.f32.mrf.mxu0
  %v3843 = vadd.f32 %v3650, %v3842
  %v3844 = vpop.f32.mrf.mxu0
  %v3845 = vadd.f32 %v3652, %v3844
  %v3846 = vpop.f32.mrf.mxu0
  %v3847 = vadd.f32 %v3654, %v3846
  %v3848 = vpop.f32.mrf.mxu0
  %v3849 = vadd.f32 %v3656, %v3848
  %3850 = vmatprep.mubr.bf16.mxu0 %v786
  %3851 = vmatmul.mubr.bf16.gmra.mxu0 %v785
  %v3852 = vpop.f32.mrf.mxu0
  %v3853 = vadd.f32 %v3660, %v3852
  %v3854 = vpop.f32.mrf.mxu0
  %v3855 = vadd.f32 %v3662, %v3854
  %v3856 = vpop.f32.mrf.mxu0
  %v3857 = vadd.f32 %v3664, %v3856
  %v3858 = vpop.f32.mrf.mxu0
  %v3859 = vadd.f32 %v3666, %v3858
  %3860 = vmatprep.mubr.bf16.mxu0 %v794
  %3861 = vmatmul.mubr.bf16.gmra.mxu0 %v793
  %v3862 = vpop.f32.mrf.mxu0
  %v3863 = vadd.f32 %v3670, %v3862
  %v3864 = vpop.f32.mrf.mxu0
  %v3865 = vadd.f32 %v3672, %v3864
  %v3866 = vpop.f32.mrf.mxu0
  %v3867 = vadd.f32 %v3674, %v3866
  %v3868 = vpop.f32.mrf.mxu0
  %v3869 = vadd.f32 %v3676, %v3868
  %3870 = vmatprep.mubr.bf16.mxu0 %v802
  %3871 = vmatmul.mubr.bf16.gmra.mxu0 %v801
  %v3872 = vpop.f32.mrf.mxu0
  %v3873 = vadd.f32 %v3680, %v3872
  %v3874 = vpop.f32.mrf.mxu0
  %v3875 = vadd.f32 %v3682, %v3874
  %v3876 = vpop.f32.mrf.mxu0
  %v3877 = vadd.f32 %v3684, %v3876
  %v3878 = vpop.f32.mrf.mxu0
  %v3879 = vadd.f32 %v3686, %v3878
  %3880 = vmatprep.mubr.bf16.mxu0 %v810
  %3881 = vmatmul.mubr.bf16.gmra.mxu0 %v809
  %v3882 = vpop.f32.mrf.mxu0
  %v3883 = vadd.f32 %v3690, %v3882
  %v3884 = vpop.f32.mrf.mxu0
  %v3885 = vadd.f32 %v3692, %v3884
  %v3886 = vpop.f32.mrf.mxu0
  %v3887 = vadd.f32 %v3694, %v3886
  %v3888 = vpop.f32.mrf.mxu0
  %v3889 = vadd.f32 %v3696, %v3888
  %3890 = vdwg.mxu0
  %v3891 = vpack.c.bf16 %v2965, %v2961
  %v3892 = vpack.c.bf16 %v2967, %v2963
  %v3893 = vpack.c.bf16 %v3737, %v3733
  %v3894 = vpack.c.bf16 %v3739, %v3735
  %v3895 = vpack.c.bf16 %v2975, %v2971
  %v3896 = vpack.c.bf16 %v2977, %v2973
  %v3897 = vpack.c.bf16 %v3747, %v3743
  %v3898 = vpack.c.bf16 %v3749, %v3745
  %v3899 = vpack.c.bf16 %v2985, %v2981
  %v3900 = vpack.c.bf16 %v2987, %v2983
  %v3901 = vpack.c.bf16 %v3757, %v3753
  %v3902 = vpack.c.bf16 %v3759, %v3755
  %v3903 = vpack.c.bf16 %v2995, %v2991
  %v3904 = vpack.c.bf16 %v2997, %v2993
  %v3905 = vpack.c.bf16 %v3767, %v3763
  %v3906 = vpack.c.bf16 %v3769, %v3765
  %v3907 = vpack.c.bf16 %v3005, %v3001
  %v3908 = vpack.c.bf16 %v3007, %v3003
  %v3909 = vpack.c.bf16 %v3777, %v3773
  %v3910 = vpack.c.bf16 %v3779, %v3775
  %v3911 = vpack.c.bf16 %v3015, %v3011
  %v3912 = vpack.c.bf16 %v3017, %v3013
  %v3913 = vpack.c.bf16 %v3787, %v3783
  %v3914 = vpack.c.bf16 %v3789, %v3785
  %v3915 = vpack.c.bf16 %v3025, %v3021
  %v3916 = vpack.c.bf16 %v3027, %v3023
  %v3917 = vpack.c.bf16 %v3797, %v3793
  %v3918 = vpack.c.bf16 %v3799, %v3795
  %v3919 = vpack.c.bf16 %v3035, %v3031
  %v3920 = vpack.c.bf16 %v3037, %v3033
  %v3921 = vpack.c.bf16 %v3807, %v3803
  %v3922 = vpack.c.bf16 %v3809, %v3805
  %v3923 = vpack.c.bf16 %v3045, %v3041
  %v3924 = vpack.c.bf16 %v3047, %v3043
  %v3925 = vpack.c.bf16 %v3817, %v3813
  %v3926 = vpack.c.bf16 %v3819, %v3815
  %v3927 = vpack.c.bf16 %v3055, %v3051
  %v3928 = vpack.c.bf16 %v3057, %v3053
  %v3929 = vpack.c.bf16 %v3827, %v3823
  %v3930 = vpack.c.bf16 %v3829, %v3825
  %v3931 = vpack.c.bf16 %v3065, %v3061
  %v3932 = vpack.c.bf16 %v3067, %v3063
  %v3933 = vpack.c.bf16 %v3837, %v3833
  %v3934 = vpack.c.bf16 %v3839, %v3835
  %v3935 = vpack.c.bf16 %v3075, %v3071
  %v3936 = vpack.c.bf16 %v3077, %v3073
  %v3937 = vpack.c.bf16 %v3847, %v3843
  %v3938 = vpack.c.bf16 %v3849, %v3845
  %v3939 = vpack.c.bf16 %v3085, %v3081
  %v3940 = vpack.c.bf16 %v3087, %v3083
  %v3941 = vpack.c.bf16 %v3857, %v3853
  %v3942 = vpack.c.bf16 %v3859, %v3855
  %v3943 = vpack.c.bf16 %v3095, %v3091
  %v3944 = vpack.c.bf16 %v3097, %v3093
  %v3945 = vpack.c.bf16 %v3867, %v3863
  %v3946 = vpack.c.bf16 %v3869, %v3865
  %v3947 = vpack.c.bf16 %v3105, %v3101
  %v3948 = vpack.c.bf16 %v3107, %v3103
  %v3949 = vpack.c.bf16 %v3877, %v3873
  %v3950 = vpack.c.bf16 %v3879, %v3875
  %v3951 = vpack.c.bf16 %v3115, %v3111
  %v3952 = vpack.c.bf16 %v3117, %v3113
  %v3953 = vpack.c.bf16 %v3887, %v3883
  %v3954 = vpack.c.bf16 %v3889, %v3885
  %v3955 = vld [vmem:[%s2] sm:$0xff]
  %v3956 = vld [vmem:[%s2 + $0x8] sm:$0xff]
  %v3957 = vld [vmem:[%s2 + $0x10] sm:$0xff]
  %v3958 = vld [vmem:[%s2 + $0x18] sm:$0xff]
  %v3959 = vld [vmem:[%s2 + $0x20] sm:$0xff]
  %v3960 = vld [vmem:[%s2 + $0x28] sm:$0xff]
  %v3961 = vld [vmem:[%s2 + $0x30] sm:$0xff]
  %v3962 = vld [vmem:[%s2 + $0x38] sm:$0xff]
  %v3963 = vld [vmem:[%s2 + $0x40] sm:$0xff]
  %v3964 = vld [vmem:[%s2 + $0x48] sm:$0xff]
  %v3965 = vld [vmem:[%s2 + $0x50] sm:$0xff]
  %v3966 = vld [vmem:[%s2 + $0x58] sm:$0xff]
  %v3967 = vld [vmem:[%s2 + $0x60] sm:$0xff]
  %v3968 = vld [vmem:[%s2 + $0x68] sm:$0xff]
  %v3969 = vld [vmem:[%s2 + $0x70] sm:$0xff]
  %v3970 = vld [vmem:[%s2 + $0x78] sm:$0xff]
  %v3971 = vld [vmem:[%s2 + $0x80] sm:$0xff]
  %v3972 = vld [vmem:[%s2 + $0x88] sm:$0xff]
  %v3973 = vld [vmem:[%s2 + $0x90] sm:$0xff]
  %v3974 = vld [vmem:[%s2 + $0x98] sm:$0xff]
  %v3975 = vld [vmem:[%s2 + $0xa0] sm:$0xff]
  %v3976 = vld [vmem:[%s2 + $0xa8] sm:$0xff]
  %v3977 = vld [vmem:[%s2 + $0xb0] sm:$0xff]
  %v3978 = vld [vmem:[%s2 + $0xb8] sm:$0xff]
  %v3979 = vld [vmem:[%s2 + $0xc0] sm:$0xff]
  %v3980 = vld [vmem:[%s2 + $0xc8] sm:$0xff]
  %v3981 = vld [vmem:[%s2 + $0xd0] sm:$0xff]
  %v3982 = vld [vmem:[%s2 + $0xd8] sm:$0xff]
  %v3983 = vld [vmem:[%s2 + $0xe0] sm:$0xff]
  %v3984 = vld [vmem:[%s2 + $0xe8] sm:$0xff]
  %v3985 = vld [vmem:[%s2 + $0xf0] sm:$0xff]
  %v3986 = vld [vmem:[%s2 + $0xf8] sm:$0xff]
  %v3987 = vld [vmem:[%s2 + $0x100] sm:$0xff]
  %v3988 = vld [vmem:[%s2 + $0x108] sm:$0xff]
  %v3989 = vld [vmem:[%s2 + $0x110] sm:$0xff]
  %v3990 = vld [vmem:[%s2 + $0x118] sm:$0xff]
  %v3991 = vld [vmem:[%s2 + $0x120] sm:$0xff]
  %v3992 = vld [vmem:[%s2 + $0x128] sm:$0xff]
  %v3993 = vld [vmem:[%s2 + $0x130] sm:$0xff]
  %v3994 = vld [vmem:[%s2 + $0x138] sm:$0xff]
  %v3995 = vld [vmem:[%s2 + $0x140] sm:$0xff]
  %v3996 = vld [vmem:[%s2 + $0x148] sm:$0xff]
  %v3997 = vld [vmem:[%s2 + $0x150] sm:$0xff]
  %v3998 = vld [vmem:[%s2 + $0x158] sm:$0xff]
  %v3999 = vld [vmem:[%s2 + $0x160] sm:$0xff]
  %v4000 = vld [vmem:[%s2 + $0x168] sm:$0xff]
  %v4001 = vld [vmem:[%s2 + $0x170] sm:$0xff]
  %v4002 = vld [vmem:[%s2 + $0x178] sm:$0xff]
  %v4003 = vld [vmem:[%s2 + $0x180] sm:$0xff]
  %v4004 = vld [vmem:[%s2 + $0x188] sm:$0xff]
  %v4005 = vld [vmem:[%s2 + $0x190] sm:$0xff]
  %v4006 = vld [vmem:[%s2 + $0x198] sm:$0xff]
  %v4007 = vld [vmem:[%s2 + $0x1a0] sm:$0xff]
  %v4008 = vld [vmem:[%s2 + $0x1a8] sm:$0xff]
  %v4009 = vld [vmem:[%s2 + $0x1b0] sm:$0xff]
  %v4010 = vld [vmem:[%s2 + $0x1b8] sm:$0xff]
  %v4011 = vld [vmem:[%s2 + $0x1c0] sm:$0xff]
  %v4012 = vld [vmem:[%s2 + $0x1c8] sm:$0xff]
  %v4013 = vld [vmem:[%s2 + $0x1d0] sm:$0xff]
  %v4014 = vld [vmem:[%s2 + $0x1d8] sm:$0xff]
  %v4015 = vld [vmem:[%s2 + $0x1e0] sm:$0xff]
  %v4016 = vld [vmem:[%s2 + $0x1e8] sm:$0xff]
  %v4017 = vld [vmem:[%s2 + $0x1f0] sm:$0xff]
  %v4018 = vld [vmem:[%s2 + $0x1f8] sm:$0xff]
  %v4019 = vld [vmem:[%s2 + $0x200] sm:$0xff]
  %v4020 = vld [vmem:[%s2 + $0x208] sm:$0xff]
  %v4021 = vld [vmem:[%s2 + $0x210] sm:$0xff]
  %v4022 = vld [vmem:[%s2 + $0x218] sm:$0xff]
  %v4023 = vld [vmem:[%s2 + $0x220] sm:$0xff]
  %v4024 = vld [vmem:[%s2 + $0x228] sm:$0xff]
  %v4025 = vld [vmem:[%s2 + $0x230] sm:$0xff]
  %v4026 = vld [vmem:[%s2 + $0x238] sm:$0xff]
  %v4027 = vld [vmem:[%s2 + $0x240] sm:$0xff]
  %v4028 = vld [vmem:[%s2 + $0x248] sm:$0xff]
  %v4029 = vld [vmem:[%s2 + $0x250] sm:$0xff]
  %v4030 = vld [vmem:[%s2 + $0x258] sm:$0xff]
  %v4031 = vld [vmem:[%s2 + $0x260] sm:$0xff]
  %v4032 = vld [vmem:[%s2 + $0x268] sm:$0xff]
  %v4033 = vld [vmem:[%s2 + $0x270] sm:$0xff]
  %v4034 = vld [vmem:[%s2 + $0x278] sm:$0xff]
  %v4035 = vld [vmem:[%s2 + $0x280] sm:$0xff]
  %v4036 = vld [vmem:[%s2 + $0x288] sm:$0xff]
  %v4037 = vld [vmem:[%s2 + $0x290] sm:$0xff]
  %v4038 = vld [vmem:[%s2 + $0x298] sm:$0xff]
  %v4039 = vld [vmem:[%s2 + $0x2a0] sm:$0xff]
  %v4040 = vld [vmem:[%s2 + $0x2a8] sm:$0xff]
  %v4041 = vld [vmem:[%s2 + $0x2b0] sm:$0xff]
  %v4042 = vld [vmem:[%s2 + $0x2b8] sm:$0xff]
  %v4043 = vld [vmem:[%s2 + $0x2c0] sm:$0xff]
  %v4044 = vld [vmem:[%s2 + $0x2c8] sm:$0xff]
  %v4045 = vld [vmem:[%s2 + $0x2d0] sm:$0xff]
  %v4046 = vld [vmem:[%s2 + $0x2d8] sm:$0xff]
  %v4047 = vld [vmem:[%s2 + $0x2e0] sm:$0xff]
  %v4048 = vld [vmem:[%s2 + $0x2e8] sm:$0xff]
  %v4049 = vld [vmem:[%s2 + $0x2f0] sm:$0xff]
  %v4050 = vld [vmem:[%s2 + $0x2f8] sm:$0xff]
  %v4051 = vld [vmem:[%s3] sm:$0x7]
  %v4052 = vld [vmem:[%s4] sm:$0xf]
  %v4053 = vld [vmem:[%s5] sm:$0xff]
  %v4054 = vld [vmem:[%s5 + $0x8] sm:$0xf]
  %v4055 = vld [vmem:[%s5 + $0xc] sm:$0xff]
  %v4056 = vld [vmem:[%s5 + $0x14] sm:$0xf]
  %v4057 = vld [vmem:[%s5 + $0x18] sm:$0xff]
  %v4058 = vld [vmem:[%s5 + $0x20] sm:$0xf]
  %v4059 = vld [vmem:[%s5 + $0x24] sm:$0xff]
  %v4060 = vld [vmem:[%s5 + $0x2c] sm:$0xf]
  %v4061 = vld [vmem:[%s5 + $0x30] sm:$0xff]
  %v4062 = vld [vmem:[%s5 + $0x38] sm:$0xf]
  %v4063 = vld [vmem:[%s5 + $0x3c] sm:$0xff]
  %v4064 = vld [vmem:[%s5 + $0x44] sm:$0xf]
  %v4065 = vld [vmem:[%s5 + $0x48] sm:$0xff]
  %v4066 = vld [vmem:[%s5 + $0x50] sm:$0xf]
  %v4067 = vld [vmem:[%s5 + $0x54] sm:$0xff]
  %v4068 = vld [vmem:[%s5 + $0x5c] sm:$0xf]
  %v4069 = vld [vmem:[%s5 + $0x60] sm:$0xff]
  %v4070 = vld [vmem:[%s5 + $0x68] sm:$0xf]
  %v4071 = vld [vmem:[%s5 + $0x6c] sm:$0xff]
  %v4072 = vld [vmem:[%s5 + $0x74] sm:$0xf]
  %v4073 = vld [vmem:[%s5 + $0x78] sm:$0xff]
  %v4074 = vld [vmem:[%s5 + $0x80] sm:$0xf]
  %v4075 = vld [vmem:[%s5 + $0x84] sm:$0xff]
  %v4076 = vld [vmem:[%s5 + $0x8c] sm:$0xf]
  %v4077 = vld [vmem:[%s5 + $0x90] sm:$0xff]
  %v4078 = vld [vmem:[%s5 + $0x98] sm:$0xf]
  %v4079 = vld [vmem:[%s5 + $0x9c] sm:$0xff]
  %v4080 = vld [vmem:[%s5 + $0xa4] sm:$0xf]
  %v4081 = vld [vmem:[%s5 + $0xa8] sm:$0xff]
  %v4082 = vld [vmem:[%s5 + $0xb0] sm:$0xf]
  %v4083 = vld [vmem:[%s5 + $0xb4] sm:$0xff]
  %v4084 = vld [vmem:[%s5 + $0xbc] sm:$0xf]
  %v4085 = vld [vmem:[%s5 + $0xc0] sm:$0xff]
  %v4086 = vld [vmem:[%s5 + $0xc8] sm:$0xf]
  %v4087 = vld [vmem:[%s5 + $0xcc] sm:$0xff]
  %v4088 = vld [vmem:[%s5 + $0xd4] sm:$0xf]
  %v4089 = vld [vmem:[%s5 + $0xd8] sm:$0xff]
  %v4090 = vld [vmem:[%s5 + $0xe0] sm:$0xf]
  %v4091 = vld [vmem:[%s5 + $0xe4] sm:$0xff]
  %v4092 = vld [vmem:[%s5 + $0xec] sm:$0xf]
  %v4093 = vld [vmem:[%s5 + $0xf0] sm:$0xff]
  %v4094 = vld [vmem:[%s5 + $0xf8] sm:$0xf]
  %v4095 = vld [vmem:[%s5 + $0xfc] sm:$0xff]
  %v4096 = vld [vmem:[%s5 + $0x104] sm:$0xf]
  %v4097 = vld [vmem:[%s5 + $0x108] sm:$0xff]
  %v4098 = vld [vmem:[%s5 + $0x110] sm:$0xf]
  %v4099 = vld [vmem:[%s5 + $0x114] sm:$0xff]
  %v4100 = vld [vmem:[%s5 + $0x11c] sm:$0xf]
  %v4101 = vld [vmem:[%s5 + $0x120] sm:$0xff]
  %v4102 = vld [vmem:[%s5 + $0x128] sm:$0xf]
  %v4103 = vld [vmem:[%s5 + $0x12c] sm:$0xff]
  %v4104 = vld [vmem:[%s5 + $0x134] sm:$0xf]
  %v4105 = vld [vmem:[%s5 + $0x138] sm:$0xff]
  %v4106 = vld [vmem:[%s5 + $0x140] sm:$0xf]
  %v4107 = vld [vmem:[%s5 + $0x144] sm:$0xff]
  %v4108 = vld [vmem:[%s5 + $0x14c] sm:$0xf]
  %v4109 = vld [vmem:[%s5 + $0x150] sm:$0xff]
  %v4110 = vld [vmem:[%s5 + $0x158] sm:$0xf]
  %v4111 = vld [vmem:[%s5 + $0x15c] sm:$0xff]
  %v4112 = vld [vmem:[%s5 + $0x164] sm:$0xf]
  %v4113 = vld [vmem:[%s5 + $0x168] sm:$0xff]
  %v4114 = vld [vmem:[%s5 + $0x170] sm:$0xf]
  %v4115 = vld [vmem:[%s5 + $0x174] sm:$0xff]
  %v4116 = vld [vmem:[%s5 + $0x17c] sm:$0xf]
  %v4117 = vld [vmem:[%s5 + $0x180] sm:$0xff]
  %v4118 = vld [vmem:[%s5 + $0x188] sm:$0xf]
  %v4119 = vld [vmem:[%s5 + $0x18c] sm:$0xff]
  %v4120 = vld [vmem:[%s5 + $0x194] sm:$0xf]
  %v4121 = vld [vmem:[%s5 + $0x198] sm:$0xff]
  %v4122 = vld [vmem:[%s5 + $0x1a0] sm:$0xf]
  %v4123 = vld [vmem:[%s5 + $0x1a4] sm:$0xff]
  %v4124 = vld [vmem:[%s5 + $0x1ac] sm:$0xf]
  %v4125 = vld [vmem:[%s5 + $0x1b0] sm:$0xff]
  %v4126 = vld [vmem:[%s5 + $0x1b8] sm:$0xf]
  %v4127 = vld [vmem:[%s5 + $0x1bc] sm:$0xff]
  %v4128 = vld [vmem:[%s5 + $0x1c4] sm:$0xf]
  %v4129 = vld [vmem:[%s5 + $0x1c8] sm:$0xff]
  %v4130 = vld [vmem:[%s5 + $0x1d0] sm:$0xf]
  %v4131 = vld [vmem:[%s5 + $0x1d4] sm:$0xff]
  %v4132 = vld [vmem:[%s5 + $0x1dc] sm:$0xf]
  %v4133 = vld [vmem:[%s5 + $0x1e0] sm:$0xff]
  %v4134 = vld [vmem:[%s5 + $0x1e8] sm:$0xf]
  %v4135 = vld [vmem:[%s5 + $0x1ec] sm:$0xff]
  %v4136 = vld [vmem:[%s5 + $0x1f4] sm:$0xf]
  %v4137 = vld [vmem:[%s5 + $0x1f8] sm:$0xff]
  %v4138 = vld [vmem:[%s5 + $0x200] sm:$0xf]
  %v4139 = vld [vmem:[%s5 + $0x204] sm:$0xff]
  %v4140 = vld [vmem:[%s5 + $0x20c] sm:$0xf]
  %v4141 = vld [vmem:[%s5 + $0x210] sm:$0xff]
  %v4142 = vld [vmem:[%s5 + $0x218] sm:$0xf]
  %v4143 = vld [vmem:[%s5 + $0x21c] sm:$0xff]
  %v4144 = vld [vmem:[%s5 + $0x224] sm:$0xf]
  %v4145 = vld [vmem:[%s5 + $0x228] sm:$0xff]
  %v4146 = vld [vmem:[%s5 + $0x230] sm:$0xf]
  %v4147 = vld [vmem:[%s5 + $0x234] sm:$0xff]
  %v4148 = vld [vmem:[%s5 + $0x23c] sm:$0xf]
  %v4149 = vld [vmem:[%s6] sm:$0x7]
  %v4150 = vld [vmem:[%s7] sm:$0x7]
  %s4151 = sld [smem:[#allocation2]]
  %v4152 = vunpack.c.l.bf16 %v3891
  %v4153 = vunpack.c.l.bf16 %v3892
  %v4154 = vunpack.c.l.bf16 %v3893
  %v4155 = vunpack.c.l.bf16 %v3894
  %v4156 = vunpack.c.h.bf16 %v3891
  %v4157 = vunpack.c.h.bf16 %v3892
  %v4158 = vunpack.c.h.bf16 %v3893
  %v4159 = vunpack.c.h.bf16 %v3894
  %v4160 = vunpack.c.l.bf16 %v3895
  %v4161 = vunpack.c.l.bf16 %v3896
  %v4162 = vunpack.c.l.bf16 %v3897
  %v4163 = vunpack.c.l.bf16 %v3898
  %v4164 = vunpack.c.h.bf16 %v3895
  %v4165 = vunpack.c.h.bf16 %v3896
  %v4166 = vunpack.c.h.bf16 %v3897
  %v4167 = vunpack.c.h.bf16 %v3898
  %v4168 = vunpack.c.l.bf16 %v3899
  %v4169 = vunpack.c.l.bf16 %v3900
  %v4170 = vunpack.c.l.bf16 %v3901
  %v4171 = vunpack.c.l.bf16 %v3902
  %v4172 = vunpack.c.h.bf16 %v3899
  %v4173 = vunpack.c.h.bf16 %v3900
  %v4174 = vunpack.c.h.bf16 %v3901
  %v4175 = vunpack.c.h.bf16 %v3902
  %v4176 = vunpack.c.l.bf16 %v3903
  %v4177 = vunpack.c.l.bf16 %v3904
  %v4178 = vunpack.c.l.bf16 %v3905
  %v4179 = vunpack.c.l.bf16 %v3906
  %v4180 = vunpack.c.h.bf16 %v3903
  %v4181 = vunpack.c.h.bf16 %v3904
  %v4182 = vunpack.c.h.bf16 %v3905
  %v4183 = vunpack.c.h.bf16 %v3906
  %v4184 = vunpack.c.l.bf16 %v3907
  %v4185 = vunpack.c.l.bf16 %v3908
  %v4186 = vunpack.c.l.bf16 %v3909
  %v4187 = vunpack.c.l.bf16 %v3910
  %v4188 = vunpack.c.h.bf16 %v3907
  %v4189 = vunpack.c.h.bf16 %v3908
  %v4190 = vunpack.c.h.bf16 %v3909
  %v4191 = vunpack.c.h.bf16 %v3910
  %v4192 = vunpack.c.l.bf16 %v3911
  %v4193 = vunpack.c.l.bf16 %v3912
  %v4194 = vunpack.c.l.bf16 %v3913
  %v4195 = vunpack.c.l.bf16 %v3914
  %v4196 = vunpack.c.h.bf16 %v3911
  %v4197 = vunpack.c.h.bf16 %v3912
  %v4198 = vunpack.c.h.bf16 %v3913
  %v4199 = vunpack.c.h.bf16 %v3914
  %v4200 = vunpack.c.l.bf16 %v3915
  %v4201 = vunpack.c.l.bf16 %v3916
  %v4202 = vunpack.c.l.bf16 %v3917
  %v4203 = vunpack.c.l.bf16 %v3918
  %v4204 = vunpack.c.h.bf16 %v3915
  %v4205 = vunpack.c.h.bf16 %v3916
  %v4206 = vunpack.c.h.bf16 %v3917
  %v4207 = vunpack.c.h.bf16 %v3918
  %v4208 = vunpack.c.l.bf16 %v3919
  %v4209 = vunpack.c.l.bf16 %v3920
  %v4210 = vunpack.c.l.bf16 %v3921
  %v4211 = vunpack.c.l.bf16 %v3922
  %v4212 = vunpack.c.h.bf16 %v3919
  %v4213 = vunpack.c.h.bf16 %v3920
  %v4214 = vunpack.c.h.bf16 %v3921
  %v4215 = vunpack.c.h.bf16 %v3922
  %v4216 = vunpack.c.l.bf16 %v3923
  %v4217 = vunpack.c.l.bf16 %v3924
  %v4218 = vunpack.c.l.bf16 %v3925
  %v4219 = vunpack.c.l.bf16 %v3926
  %v4220 = vunpack.c.h.bf16 %v3923
  %v4221 = vunpack.c.h.bf16 %v3924
  %v4222 = vunpack.c.h.bf16 %v3925
  %v4223 = vunpack.c.h.bf16 %v3926
  %v4224 = vunpack.c.l.bf16 %v3927
  %v4225 = vunpack.c.l.bf16 %v3928
  %v4226 = vunpack.c.l.bf16 %v3929
  %v4227 = vunpack.c.l.bf16 %v3930
  %v4228 = vunpack.c.h.bf16 %v3927
  %v4229 = vunpack.c.h.bf16 %v3928
  %v4230 = vunpack.c.h.bf16 %v3929
  %v4231 = vunpack.c.h.bf16 %v3930
  %v4232 = vunpack.c.l.bf16 %v3931
  %v4233 = vunpack.c.l.bf16 %v3932
  %v4234 = vunpack.c.l.bf16 %v3933
  %v4235 = vunpack.c.l.bf16 %v3934
  %v4236 = vunpack.c.h.bf16 %v3931
  %v4237 = vunpack.c.h.bf16 %v3932
  %v4238 = vunpack.c.h.bf16 %v3933
  %v4239 = vunpack.c.h.bf16 %v3934
  %v4240 = vunpack.c.l.bf16 %v3935
  %v4241 = vunpack.c.l.bf16 %v3936
  %v4242 = vunpack.c.l.bf16 %v3937
  %v4243 = vunpack.c.l.bf16 %v3938
  %v4244 = vunpack.c.h.bf16 %v3935
  %v4245 = vunpack.c.h.bf16 %v3936
  %v4246 = vunpack.c.h.bf16 %v3937
  %v4247 = vunpack.c.h.bf16 %v3938
  %v4248 = vunpack.c.l.bf16 %v3939
  %v4249 = vunpack.c.l.bf16 %v3940
  %v4250 = vunpack.c.l.bf16 %v3941
  %v4251 = vunpack.c.l.bf16 %v3942
  %v4252 = vunpack.c.h.bf16 %v3939
  %v4253 = vunpack.c.h.bf16 %v3940
  %v4254 = vunpack.c.h.bf16 %v3941
  %v4255 = vunpack.c.h.bf16 %v3942
  %v4256 = vunpack.c.l.bf16 %v3943
  %v4257 = vunpack.c.l.bf16 %v3944
  %v4258 = vunpack.c.l.bf16 %v3945
  %v4259 = vunpack.c.l.bf16 %v3946
  %v4260 = vunpack.c.h.bf16 %v3943
  %v4261 = vunpack.c.h.bf16 %v3944
  %v4262 = vunpack.c.h.bf16 %v3945
  %v4263 = vunpack.c.h.bf16 %v3946
  %v4264 = vunpack.c.l.bf16 %v3947
  %v4265 = vunpack.c.l.bf16 %v3948
  %v4266 = vunpack.c.l.bf16 %v3949
  %v4267 = vunpack.c.l.bf16 %v3950
  %v4268 = vunpack.c.h.bf16 %v3947
  %v4269 = vunpack.c.h.bf16 %v3948
  %v4270 = vunpack.c.h.bf16 %v3949
  %v4271 = vunpack.c.h.bf16 %v3950
  %v4272 = vunpack.c.l.bf16 %v3951
  %v4273 = vunpack.c.l.bf16 %v3952
  %v4274 = vunpack.c.l.bf16 %v3953
  %v4275 = vunpack.c.l.bf16 %v3954
  %v4276 = vunpack.c.h.bf16 %v3951
  %v4277 = vunpack.c.h.bf16 %v3952
  %v4278 = vunpack.c.h.bf16 %v3953
  %v4279 = vunpack.c.h.bf16 %v3954
  %v4281 = vlaneseq
  %v4282 = vshrl.u32 %v4281, 7
  %v4283 = vsub.s32 0, %v4282
  %v4284 = vrot.slane %v4051, %v4283
  %v4285 = vlaneseq
  %v4286 = vshrl.u32 %v4285, 7
  %v4287 = vsub.s32 1, %v4286
  %v4288 = vrot.slane %v4051, %v4287
  %v4289 = vlaneseq
  %v4290 = vshrl.u32 %v4289, 7
  %v4291 = vsub.s32 2, %v4290
  %v4292 = vrot.slane %v4051, %v4291
  %v4392 = vunpack.c.l.b16 %v3955
  %v4393 = vunpack.c.h.b16 %v3955
  %v4394 = vunpack.c.l.b16 %v3956
  %v4395 = vunpack.c.h.b16 %v3956
  %v4396 = vunpack.c.l.b16 %v3957
  %v4397 = vunpack.c.h.b16 %v3957
  %v4398 = vunpack.c.l.b16 %v3958
  %v4399 = vunpack.c.h.b16 %v3958
  %v4400 = vunpack.c.l.b16 %v3959
  %v4401 = vunpack.c.h.b16 %v3959
  %v4402 = vunpack.c.l.b16 %v3960
  %v4403 = vunpack.c.h.b16 %v3960
  %v4404 = vunpack.c.l.b16 %v3961
  %v4405 = vunpack.c.h.b16 %v3961
  %v4406 = vunpack.c.l.b16 %v3962
  %v4407 = vunpack.c.h.b16 %v3962
  %v4408 = vunpack.c.l.b16 %v3963
  %v4409 = vunpack.c.h.b16 %v3963
  %v4410 = vunpack.c.l.b16 %v3964
  %v4411 = vunpack.c.h.b16 %v3964
  %v4412 = vunpack.c.l.b16 %v3965
  %v4413 = vunpack.c.h.b16 %v3965
  %v4414 = vunpack.c.l.b16 %v3966
  %v4415 = vunpack.c.h.b16 %v3966
  %v4416 = vunpack.c.l.b16 %v3967
  %v4417 = vunpack.c.h.b16 %v3967
  %v4418 = vunpack.c.l.b16 %v3968
  %v4419 = vunpack.c.h.b16 %v3968
  %v4420 = vunpack.c.l.b16 %v3969
  %v4421 = vunpack.c.h.b16 %v3969
  %v4422 = vunpack.c.l.b16 %v3970
  %v4423 = vunpack.c.h.b16 %v3970
  %v4424 = vunpack.c.l.b16 %v3971
  %v4425 = vunpack.c.h.b16 %v3971
  %v4426 = vunpack.c.l.b16 %v3972
  %v4427 = vunpack.c.h.b16 %v3972
  %v4428 = vunpack.c.l.b16 %v3973
  %v4429 = vunpack.c.h.b16 %v3973
  %v4430 = vunpack.c.l.b16 %v3974
  %v4431 = vunpack.c.h.b16 %v3974
  %v4432 = vunpack.c.l.b16 %v3975
  %v4433 = vunpack.c.h.b16 %v3975
  %v4434 = vunpack.c.l.b16 %v3976
  %v4435 = vunpack.c.h.b16 %v3976
  %v4436 = vunpack.c.l.b16 %v3977
  %v4437 = vunpack.c.h.b16 %v3977
  %v4438 = vunpack.c.l.b16 %v3978
  %v4439 = vunpack.c.h.b16 %v3978
  %v4440 = vunpack.c.l.b16 %v3979
  %v4441 = vunpack.c.h.b16 %v3979
  %v4442 = vunpack.c.l.b16 %v3980
  %v4443 = vunpack.c.h.b16 %v3980
  %v4444 = vunpack.c.l.b16 %v3981
  %v4445 = vunpack.c.h.b16 %v3981
  %v4446 = vunpack.c.l.b16 %v3982
  %v4447 = vunpack.c.h.b16 %v3982
  %v4448 = vunpack.c.l.b16 %v3983
  %v4449 = vunpack.c.h.b16 %v3983
  %v4450 = vunpack.c.l.b16 %v3984
  %v4451 = vunpack.c.h.b16 %v3984
  %v4452 = vunpack.c.l.b16 %v3985
  %v4453 = vunpack.c.h.b16 %v3985
  %v4454 = vunpack.c.l.b16 %v3986
  %v4455 = vunpack.c.h.b16 %v3986
  %v4456 = vunpack.c.l.b16 %v3987
  %v4457 = vunpack.c.h.b16 %v3987
  %v4458 = vunpack.c.l.b16 %v3988
  %v4459 = vunpack.c.h.b16 %v3988
  %v4460 = vunpack.c.l.b16 %v3989
  %v4461 = vunpack.c.h.b16 %v3989
  %v4462 = vunpack.c.l.b16 %v3990
  %v4463 = vunpack.c.h.b16 %v3990
  %v4464 = vunpack.c.l.b16 %v3991
  %v4465 = vunpack.c.h.b16 %v3991
  %v4466 = vunpack.c.l.b16 %v3992
  %v4467 = vunpack.c.h.b16 %v3992
  %v4468 = vunpack.c.l.b16 %v3993
  %v4469 = vunpack.c.h.b16 %v3993
  %v4470 = vunpack.c.l.b16 %v3994
  %v4471 = vunpack.c.h.b16 %v3994
  %v4472 = vunpack.c.l.b16 %v3995
  %v4473 = vunpack.c.h.b16 %v3995
  %v4474 = vunpack.c.l.b16 %v3996
  %v4475 = vunpack.c.h.b16 %v3996
  %v4476 = vunpack.c.l.b16 %v3997
  %v4477 = vunpack.c.h.b16 %v3997
  %v4478 = vunpack.c.l.b16 %v3998
  %v4479 = vunpack.c.h.b16 %v3998
  %v4480 = vunpack.c.l.b16 %v3999
  %v4481 = vunpack.c.h.b16 %v3999
  %v4482 = vunpack.c.l.b16 %v4000
  %v4483 = vunpack.c.h.b16 %v4000
  %v4484 = vunpack.c.l.b16 %v4001
  %v4485 = vunpack.c.h.b16 %v4001
  %v4486 = vunpack.c.l.b16 %v4002
  %v4487 = vunpack.c.h.b16 %v4002
  %v4488 = vunpack.c.l.b16 %v4003
  %v4489 = vunpack.c.h.b16 %v4003
  %v4490 = vunpack.c.l.b16 %v4004
  %v4491 = vunpack.c.h.b16 %v4004
  %v4492 = vunpack.c.l.b16 %v4005
  %v4493 = vunpack.c.h.b16 %v4005
  %v4494 = vunpack.c.l.b16 %v4006
  %v4495 = vunpack.c.h.b16 %v4006
  %v4496 = vunpack.c.l.b16 %v4007
  %v4497 = vunpack.c.h.b16 %v4007
  %v4498 = vunpack.c.l.b16 %v4008
  %v4499 = vunpack.c.h.b16 %v4008
  %v4500 = vunpack.c.l.b16 %v4009
  %v4501 = vunpack.c.h.b16 %v4009
  %v4502 = vunpack.c.l.b16 %v4010
  %v4503 = vunpack.c.h.b16 %v4010
  %v4504 = vunpack.c.l.b16 %v4011
  %v4505 = vunpack.c.h.b16 %v4011
  %v4506 = vunpack.c.l.b16 %v4012
  %v4507 = vunpack.c.h.b16 %v4012
  %v4508 = vunpack.c.l.b16 %v4013
  %v4509 = vunpack.c.h.b16 %v4013
  %v4510 = vunpack.c.l.b16 %v4014
  %v4511 = vunpack.c.h.b16 %v4014
  %v4512 = vunpack.c.l.b16 %v4015
  %v4513 = vunpack.c.h.b16 %v4015
  %v4514 = vunpack.c.l.b16 %v4016
  %v4515 = vunpack.c.h.b16 %v4016
  %v4516 = vunpack.c.l.b16 %v4017
  %v4517 = vunpack.c.h.b16 %v4017
  %v4518 = vunpack.c.l.b16 %v4018
  %v4519 = vunpack.c.h.b16 %v4018
  %v4520 = vunpack.c.l.b16 %v4019
  %v4521 = vunpack.c.h.b16 %v4019
  %v4522 = vunpack.c.l.b16 %v4020
  %v4523 = vunpack.c.h.b16 %v4020
  %v4524 = vunpack.c.l.b16 %v4021
  %v4525 = vunpack.c.h.b16 %v4021
  %v4526 = vunpack.c.l.b16 %v4022
  %v4527 = vunpack.c.h.b16 %v4022
  %v4528 = vunpack.c.l.b16 %v4023
  %v4529 = vunpack.c.h.b16 %v4023
  %v4530 = vunpack.c.l.b16 %v4024
  %v4531 = vunpack.c.h.b16 %v4024
  %v4532 = vunpack.c.l.b16 %v4025
  %v4533 = vunpack.c.h.b16 %v4025
  %v4534 = vunpack.c.l.b16 %v4026
  %v4535 = vunpack.c.h.b16 %v4026
  %v4536 = vunpack.c.l.b16 %v4027
  %v4537 = vunpack.c.h.b16 %v4027
  %v4538 = vunpack.c.l.b16 %v4028
  %v4539 = vunpack.c.h.b16 %v4028
  %v4540 = vunpack.c.l.b16 %v4029
  %v4541 = vunpack.c.h.b16 %v4029
  %v4542 = vunpack.c.l.b16 %v4030
  %v4543 = vunpack.c.h.b16 %v4030
  %v4544 = vunpack.c.l.b16 %v4031
  %v4545 = vunpack.c.h.b16 %v4031
  %v4546 = vunpack.c.l.b16 %v4032
  %v4547 = vunpack.c.h.b16 %v4032
  %v4548 = vunpack.c.l.b16 %v4033
  %v4549 = vunpack.c.h.b16 %v4033
  %v4550 = vunpack.c.l.b16 %v4034
  %v4551 = vunpack.c.h.b16 %v4034
  %v4552 = vunpack.c.l.b16 %v4035
  %v4553 = vunpack.c.h.b16 %v4035
  %v4554 = vunpack.c.l.b16 %v4036
  %v4555 = vunpack.c.h.b16 %v4036
  %v4556 = vunpack.c.l.b16 %v4037
  %v4557 = vunpack.c.h.b16 %v4037
  %v4558 = vunpack.c.l.b16 %v4038
  %v4559 = vunpack.c.h.b16 %v4038
  %v4560 = vunpack.c.l.b16 %v4039
  %v4561 = vunpack.c.h.b16 %v4039
  %v4562 = vunpack.c.l.b16 %v4040
  %v4563 = vunpack.c.h.b16 %v4040
  %v4564 = vunpack.c.l.b16 %v4041
  %v4565 = vunpack.c.h.b16 %v4041
  %v4566 = vunpack.c.l.b16 %v4042
  %v4567 = vunpack.c.h.b16 %v4042
  %v4568 = vunpack.c.l.b16 %v4043
  %v4569 = vunpack.c.h.b16 %v4043
  %v4570 = vunpack.c.l.b16 %v4044
  %v4571 = vunpack.c.h.b16 %v4044
  %v4572 = vunpack.c.l.b16 %v4045
  %v4573 = vunpack.c.h.b16 %v4045
  %v4574 = vunpack.c.l.b16 %v4046
  %v4575 = vunpack.c.h.b16 %v4046
  %v4576 = vunpack.c.l.b16 %v4047
  %v4577 = vunpack.c.h.b16 %v4047
  %v4578 = vunpack.c.l.b16 %v4048
  %v4579 = vunpack.c.h.b16 %v4048
  %v4580 = vunpack.c.l.b16 %v4049
  %v4581 = vunpack.c.h.b16 %v4049
  %v4582 = vunpack.c.l.b16 %v4050
  %v4583 = vunpack.c.h.b16 %v4050
  %v4584 = vpack.c.b16 %v4396, %v4392
  %v4585 = vpack.c.b16 %v4397, %v4393
  %v4586 = vpack.c.b16 %v4398, %v4394
  %v4587 = vpack.c.b16 %v4399, %v4395
  %v4588 = vpack.c.b16 %v4404, %v4400
  %v4589 = vpack.c.b16 %v4405, %v4401
  %v4590 = vpack.c.b16 %v4406, %v4402
  %v4591 = vpack.c.b16 %v4407, %v4403
  %v4592 = vpack.c.b16 %v4412, %v4408
  %v4593 = vpack.c.b16 %v4413, %v4409
  %v4594 = vpack.c.b16 %v4414, %v4410
  %v4595 = vpack.c.b16 %v4415, %v4411
  %v4596 = vpack.c.b16 %v4420, %v4416
  %v4597 = vpack.c.b16 %v4421, %v4417
  %v4598 = vpack.c.b16 %v4422, %v4418
  %v4599 = vpack.c.b16 %v4423, %v4419
  %v4600 = vpack.c.b16 %v4428, %v4424
  %v4601 = vpack.c.b16 %v4429, %v4425
  %v4602 = vpack.c.b16 %v4430, %v4426
  %v4603 = vpack.c.b16 %v4431, %v4427
  %v4604 = vpack.c.b16 %v4436, %v4432
  %v4605 = vpack.c.b16 %v4437, %v4433
  %v4606 = vpack.c.b16 %v4438, %v4434
  %v4607 = vpack.c.b16 %v4439, %v4435
  %v4608 = vpack.c.b16 %v4444, %v4440
  %v4609 = vpack.c.b16 %v4445, %v4441
  %v4610 = vpack.c.b16 %v4446, %v4442
  %v4611 = vpack.c.b16 %v4447, %v4443
  %v4612 = vpack.c.b16 %v4452, %v4448
  %v4613 = vpack.c.b16 %v4453, %v4449
  %v4614 = vpack.c.b16 %v4454, %v4450
  %v4615 = vpack.c.b16 %v4455, %v4451
  %v4616 = vpack.c.b16 %v4460, %v4456
  %v4617 = vpack.c.b16 %v4461, %v4457
  %v4618 = vpack.c.b16 %v4462, %v4458
  %v4619 = vpack.c.b16 %v4463, %v4459
  %v4620 = vpack.c.b16 %v4468, %v4464
  %v4621 = vpack.c.b16 %v4469, %v4465
  %v4622 = vpack.c.b16 %v4470, %v4466
  %v4623 = vpack.c.b16 %v4471, %v4467
  %v4624 = vpack.c.b16 %v4476, %v4472
  %v4625 = vpack.c.b16 %v4477, %v4473
  %v4626 = vpack.c.b16 %v4478, %v4474
  %v4627 = vpack.c.b16 %v4479, %v4475
  %v4628 = vpack.c.b16 %v4484, %v4480
  %v4629 = vpack.c.b16 %v4485, %v4481
  %v4630 = vpack.c.b16 %v4486, %v4482
  %v4631 = vpack.c.b16 %v4487, %v4483
  %v4632 = vpack.c.b16 %v4492, %v4488
  %v4633 = vpack.c.b16 %v4493, %v4489
  %v4634 = vpack.c.b16 %v4494, %v4490
  %v4635 = vpack.c.b16 %v4495, %v4491
  %v4636 = vpack.c.b16 %v4500, %v4496
  %v4637 = vpack.c.b16 %v4501, %v4497
  %v4638 = vpack.c.b16 %v4502, %v4498
  %v4639 = vpack.c.b16 %v4503, %v4499
  %v4640 = vpack.c.b16 %v4508, %v4504
  %v4641 = vpack.c.b16 %v4509, %v4505
  %v4642 = vpack.c.b16 %v4510, %v4506
  %v4643 = vpack.c.b16 %v4511, %v4507
  %v4644 = vpack.c.b16 %v4516, %v4512
  %v4645 = vpack.c.b16 %v4517, %v4513
  %v4646 = vpack.c.b16 %v4518, %v4514
  %v4647 = vpack.c.b16 %v4519, %v4515
  %v4648 = vpack.c.b16 %v4524, %v4520
  %v4649 = vpack.c.b16 %v4525, %v4521
  %v4650 = vpack.c.b16 %v4526, %v4522
  %v4651 = vpack.c.b16 %v4527, %v4523
  %v4652 = vpack.c.b16 %v4532, %v4528
  %v4653 = vpack.c.b16 %v4533, %v4529
  %v4654 = vpack.c.b16 %v4534, %v4530
  %v4655 = vpack.c.b16 %v4535, %v4531
  %v4656 = vpack.c.b16 %v4540, %v4536
  %v4657 = vpack.c.b16 %v4541, %v4537
  %v4658 = vpack.c.b16 %v4542, %v4538
  %v4659 = vpack.c.b16 %v4543, %v4539
  %v4660 = vpack.c.b16 %v4548, %v4544
  %v4661 = vpack.c.b16 %v4549, %v4545
  %v4662 = vpack.c.b16 %v4550, %v4546
  %v4663 = vpack.c.b16 %v4551, %v4547
  %v4664 = vpack.c.b16 %v4556, %v4552
  %v4665 = vpack.c.b16 %v4557, %v4553
  %v4666 = vpack.c.b16 %v4558, %v4554
  %v4667 = vpack.c.b16 %v4559, %v4555
  %v4668 = vpack.c.b16 %v4564, %v4560
  %v4669 = vpack.c.b16 %v4565, %v4561
  %v4670 = vpack.c.b16 %v4566, %v4562
  %v4671 = vpack.c.b16 %v4567, %v4563
  %v4672 = vpack.c.b16 %v4572, %v4568
  %v4673 = vpack.c.b16 %v4573, %v4569
  %v4674 = vpack.c.b16 %v4574, %v4570
  %v4675 = vpack.c.b16 %v4575, %v4571
  %v4676 = vpack.c.b16 %v4580, %v4576
  %v4677 = vpack.c.b16 %v4581, %v4577
  %v4678 = vpack.c.b16 %v4582, %v4578
  %v4679 = vpack.c.b16 %v4583, %v4579
  %4776 = vmatprep.subr.bf16.mxu0 %v4613
  %4777 = vmatpush1.bf16.xpose.msra.mxu0 %v4612
  %4778 = vmatprep.subr.bf16.mxu0 %v4609
  %4779 = vmatpush1.bf16.xpose.msra.mxu0 %v4608
  %4780 = vmatprep.subr.bf16.mxu0 %v4605
  %4781 = vmatpush1.bf16.xpose.msra.mxu0 %v4604
  %4782 = vmatprep.subr.bf16.mxu0 %v4601
  %4783 = vmatpush1.bf16.xpose.msra.mxu0 %v4600
  %4784 = vmatprep.subr.bf16.mxu0 %v4597
  %4785 = vmatpush1.bf16.xpose.msra.mxu0 %v4596
  %4786 = vmatprep.subr.bf16.mxu0 %v4593
  %4787 = vmatpush1.bf16.xpose.msra.mxu0 %v4592
  %4788 = vmatprep.subr.bf16.mxu0 %v4589
  %4789 = vmatpush1.bf16.xpose.msra.mxu0 %v4588
  %4790 = vmatprep.subr.bf16.mxu0 %v4585
  %4791 = vmatpush1.bf16.xpose.msra.mxu0 %v4584
  %4792 = vmatprep.subr.bf16.mxu0 %v4645
  %4793 = vmatpush2.bf16.xpose.msra.mxu0 %v4644
  %4794 = vmatprep.subr.bf16.mxu0 %v4641
  %4795 = vmatpush2.bf16.xpose.msra.mxu0 %v4640
  %4796 = vmatprep.subr.bf16.mxu0 %v4637
  %4797 = vmatpush2.bf16.xpose.msra.mxu0 %v4636
  %4798 = vmatprep.subr.bf16.mxu0 %v4633
  %4799 = vmatpush2.bf16.xpose.msra.mxu0 %v4632
  %4800 = vmatprep.subr.bf16.mxu0 %v4629
  %4801 = vmatpush2.bf16.xpose.msra.mxu0 %v4628
  %4802 = vmatprep.subr.bf16.mxu0 %v4625
  %4803 = vmatpush2.bf16.xpose.msra.mxu0 %v4624
  %4804 = vmatprep.subr.bf16.mxu0 %v4621
  %4805 = vmatpush2.bf16.xpose.msra.mxu0 %v4620
  %4806 = vmatprep.subr.bf16.mxu0 %v4617
  %4807 = vmatpush2.bf16.xpose.msra.mxu0 %v4616
  %4808 = vmatprep.mubr.bf16.mxu0 %v3892
  %4809 = vmatmul.mubr.bf16.gmra.mxu0 %v3891
  %v4810 = vpop.f32.mrf.mxu0
  %v4811 = vadd.f32 %v4284, %v4810
  %v4812 = vpop.f32.mrf.mxu0
  %v4813 = vadd.f32 %v4288, %v4812
  %v4814 = vpop.f32.mrf.mxu0
  %v4815 = vadd.f32 %v4284, %v4814
  %v4816 = vpop.f32.mrf.mxu0
  %v4817 = vadd.f32 %v4288, %v4816
  %4818 = vmatprep.mubr.bf16.mxu0 %v3896
  %4819 = vmatmul.mubr.bf16.gmra.mxu0 %v3895
  %v4820 = vpop.f32.mrf.mxu0
  %v4821 = vadd.f32 %v4284, %v4820
  %v4822 = vpop.f32.mrf.mxu0
  %v4823 = vadd.f32 %v4288, %v4822
  %v4824 = vpop.f32.mrf.mxu0
  %v4825 = vadd.f32 %v4284, %v4824
  %v4826 = vpop.f32.mrf.mxu0
  %v4827 = vadd.f32 %v4288, %v4826
  %4828 = vmatprep.mubr.bf16.mxu0 %v3900
  %4829 = vmatmul.mubr.bf16.gmra.mxu0 %v3899
  %v4830 = vpop.f32.mrf.mxu0
  %v4831 = vadd.f32 %v4284, %v4830
  %v4832 = vpop.f32.mrf.mxu0
  %v4833 = vadd.f32 %v4288, %v4832
  %v4834 = vpop.f32.mrf.mxu0
  %v4835 = vadd.f32 %v4284, %v4834
  %v4836 = vpop.f32.mrf.mxu0
  %v4837 = vadd.f32 %v4288, %v4836
  %4838 = vmatprep.mubr.bf16.mxu0 %v3904
  %4839 = vmatmul.mubr.bf16.gmra.mxu0 %v3903
  %v4840 = vpop.f32.mrf.mxu0
  %v4841 = vadd.f32 %v4284, %v4840
  %v4842 = vpop.f32.mrf.mxu0
  %v4843 = vadd.f32 %v4288, %v4842
  %v4844 = vpop.f32.mrf.mxu0
  %v4845 = vadd.f32 %v4284, %v4844
  %v4846 = vpop.f32.mrf.mxu0
  %v4847 = vadd.f32 %v4288, %v4846
  %4848 = vmatprep.mubr.bf16.mxu0 %v3908
  %4849 = vmatmul.mubr.bf16.gmra.mxu0 %v3907
  %v4850 = vpop.f32.mrf.mxu0
  %v4851 = vadd.f32 %v4284, %v4850
  %v4852 = vpop.f32.mrf.mxu0
  %v4853 = vadd.f32 %v4288, %v4852
  %v4854 = vpop.f32.mrf.mxu0
  %v4855 = vadd.f32 %v4284, %v4854
  %v4856 = vpop.f32.mrf.mxu0
  %v4857 = vadd.f32 %v4288, %v4856
  %4858 = vmatprep.mubr.bf16.mxu0 %v3912
  %4859 = vmatmul.mubr.bf16.gmra.mxu0 %v3911
  %v4860 = vpop.f32.mrf.mxu0
  %v4861 = vadd.f32 %v4284, %v4860
  %v4862 = vpop.f32.mrf.mxu0
  %v4863 = vadd.f32 %v4288, %v4862
  %v4864 = vpop.f32.mrf.mxu0
  %v4865 = vadd.f32 %v4284, %v4864
  %v4866 = vpop.f32.mrf.mxu0
  %v4867 = vadd.f32 %v4288, %v4866
  %4868 = vmatprep.mubr.bf16.mxu0 %v3916
  %4869 = vmatmul.mubr.bf16.gmra.mxu0 %v3915
  %v4870 = vpop.f32.mrf.mxu0
  %v4871 = vadd.f32 %v4284, %v4870
  %v4872 = vpop.f32.mrf.mxu0
  %v4873 = vadd.f32 %v4288, %v4872
  %v4874 = vpop.f32.mrf.mxu0
  %v4875 = vadd.f32 %v4284, %v4874
  %v4876 = vpop.f32.mrf.mxu0
  %v4877 = vadd.f32 %v4288, %v4876
  %4878 = vmatprep.mubr.bf16.mxu0 %v3920
  %4879 = vmatmul.mubr.bf16.gmra.mxu0 %v3919
  %v4880 = vpop.f32.mrf.mxu0
  %v4881 = vadd.f32 %v4284, %v4880
  %v4882 = vpop.f32.mrf.mxu0
  %v4883 = vadd.f32 %v4288, %v4882
  %v4884 = vpop.f32.mrf.mxu0
  %v4885 = vadd.f32 %v4284, %v4884
  %v4886 = vpop.f32.mrf.mxu0
  %v4887 = vadd.f32 %v4288, %v4886
  %4888 = vmatprep.mubr.bf16.mxu0 %v3924
  %4889 = vmatmul.mubr.bf16.gmra.mxu0 %v3923
  %v4890 = vpop.f32.mrf.mxu0
  %v4891 = vadd.f32 %v4284, %v4890
  %v4892 = vpop.f32.mrf.mxu0
  %v4893 = vadd.f32 %v4288, %v4892
  %v4894 = vpop.f32.mrf.mxu0
  %v4895 = vadd.f32 %v4284, %v4894
  %v4896 = vpop.f32.mrf.mxu0
  %v4897 = vadd.f32 %v4288, %v4896
  %4898 = vmatprep.mubr.bf16.mxu0 %v3928
  %4899 = vmatmul.mubr.bf16.gmra.mxu0 %v3927
  %v4900 = vpop.f32.mrf.mxu0
  %v4901 = vadd.f32 %v4284, %v4900
  %v4902 = vpop.f32.mrf.mxu0
  %v4903 = vadd.f32 %v4288, %v4902
  %v4904 = vpop.f32.mrf.mxu0
  %v4905 = vadd.f32 %v4284, %v4904
  %v4906 = vpop.f32.mrf.mxu0
  %v4907 = vadd.f32 %v4288, %v4906
  %4908 = vmatprep.mubr.bf16.mxu0 %v3932
  %4909 = vmatmul.mubr.bf16.gmra.mxu0 %v3931
  %v4910 = vpop.f32.mrf.mxu0
  %v4911 = vadd.f32 %v4284, %v4910
  %v4912 = vpop.f32.mrf.mxu0
  %v4913 = vadd.f32 %v4288, %v4912
  %v4914 = vpop.f32.mrf.mxu0
  %v4915 = vadd.f32 %v4284, %v4914
  %v4916 = vpop.f32.mrf.mxu0
  %v4917 = vadd.f32 %v4288, %v4916
  %4918 = vmatprep.mubr.bf16.mxu0 %v3936
  %4919 = vmatmul.mubr.bf16.gmra.mxu0 %v3935
  %v4920 = vpop.f32.mrf.mxu0
  %v4921 = vadd.f32 %v4284, %v4920
  %v4922 = vpop.f32.mrf.mxu0
  %v4923 = vadd.f32 %v4288, %v4922
  %v4924 = vpop.f32.mrf.mxu0
  %v4925 = vadd.f32 %v4284, %v4924
  %v4926 = vpop.f32.mrf.mxu0
  %v4927 = vadd.f32 %v4288, %v4926
  %4928 = vmatprep.mubr.bf16.mxu0 %v3940
  %4929 = vmatmul.mubr.bf16.gmra.mxu0 %v3939
  %v4930 = vpop.f32.mrf.mxu0
  %v4931 = vadd.f32 %v4284, %v4930
  %v4932 = vpop.f32.mrf.mxu0
  %v4933 = vadd.f32 %v4288, %v4932
  %v4934 = vpop.f32.mrf.mxu0
  %v4935 = vadd.f32 %v4284, %v4934
  %v4936 = vpop.f32.mrf.mxu0
  %v4937 = vadd.f32 %v4288, %v4936
  %4938 = vmatprep.mubr.bf16.mxu0 %v3944
  %4939 = vmatmul.mubr.bf16.gmra.mxu0 %v3943
  %v4940 = vpop.f32.mrf.mxu0
  %v4941 = vadd.f32 %v4284, %v4940
  %v4942 = vpop.f32.mrf.mxu0
  %v4943 = vadd.f32 %v4288, %v4942
  %v4944 = vpop.f32.mrf.mxu0
  %v4945 = vadd.f32 %v4284, %v4944
  %v4946 = vpop.f32.mrf.mxu0
  %v4947 = vadd.f32 %v4288, %v4946
  %4948 = vmatprep.mubr.bf16.mxu0 %v3948
  %4949 = vmatmul.mubr.bf16.gmra.mxu0 %v3947
  %v4950 = vpop.f32.mrf.mxu0
  %v4951 = vadd.f32 %v4284, %v4950
  %v4952 = vpop.f32.mrf.mxu0
  %v4953 = vadd.f32 %v4288, %v4952
  %v4954 = vpop.f32.mrf.mxu0
  %v4955 = vadd.f32 %v4284, %v4954
  %v4956 = vpop.f32.mrf.mxu0
  %v4957 = vadd.f32 %v4288, %v4956
  %4958 = vmatprep.mubr.bf16.mxu0 %v3952
  %4959 = vmatmul.mubr.bf16.gmra.mxu0 %v3951
  %v4960 = vpop.f32.mrf.mxu0
  %v4961 = vadd.f32 %v4284, %v4960
  %v4962 = vpop.f32.mrf.mxu0
  %v4963 = vadd.f32 %v4288, %v4962
  %v4964 = vpop.f32.mrf.mxu0
  %v4965 = vadd.f32 %v4284, %v4964
  %v4966 = vpop.f32.mrf.mxu0
  %v4967 = vadd.f32 %v4288, %v4966
  %4968 = vdwg.mxu0
  %4969 = vmatprep.subr.bf16.mxu0 %v4615
  %4970 = vmatpush1.bf16.xpose.msra.mxu0 %v4614
  %4971 = vmatprep.subr.bf16.mxu0 %v4611
  %4972 = vmatpush1.bf16.xpose.msra.mxu0 %v4610
  %4973 = vmatprep.subr.bf16.mxu0 %v4607
  %4974 = vmatpush1.bf16.xpose.msra.mxu0 %v4606
  %4975 = vmatprep.subr.bf16.mxu0 %v4603
  %4976 = vmatpush1.bf16.xpose.msra.mxu0 %v4602
  %4977 = vmatprep.subr.bf16.mxu0 %v4599
  %4978 = vmatpush1.bf16.xpose.msra.mxu0 %v4598
  %4979 = vmatprep.subr.bf16.mxu0 %v4595
  %4980 = vmatpush1.bf16.xpose.msra.mxu0 %v4594
  %4981 = vmatprep.subr.bf16.mxu0 %v4591
  %4982 = vmatpush1.bf16.xpose.msra.mxu0 %v4590
  %4983 = vmatprep.subr.bf16.mxu0 %v4587
  %4984 = vmatpush1.bf16.xpose.msra.mxu0 %v4586
  %4985 = vmatprep.subr.bf16.mxu0 %v4647
  %4986 = vmatpush2.bf16.xpose.msra.mxu0 %v4646
  %4987 = vmatprep.subr.bf16.mxu0 %v4643
  %4988 = vmatpush2.bf16.xpose.msra.mxu0 %v4642
  %4989 = vmatprep.subr.bf16.mxu0 %v4639
  %4990 = vmatpush2.bf16.xpose.msra.mxu0 %v4638
  %4991 = vmatprep.subr.bf16.mxu0 %v4635
  %4992 = vmatpush2.bf16.xpose.msra.mxu0 %v4634
  %4993 = vmatprep.subr.bf16.mxu0 %v4631
  %4994 = vmatpush2.bf16.xpose.msra.mxu0 %v4630
  %4995 = vmatprep.subr.bf16.mxu0 %v4627
  %4996 = vmatpush2.bf16.xpose.msra.mxu0 %v4626
  %4997 = vmatprep.subr.bf16.mxu0 %v4623
  %4998 = vmatpush2.bf16.xpose.msra.mxu0 %v4622
  %4999 = vmatprep.subr.bf16.mxu0 %v4619
  %5000 = vmatpush2.bf16.xpose.msra.mxu0 %v4618
  %5001 = vmatprep.mubr.bf16.mxu0 %v3894
  %5002 = vmatmul.mubr.bf16.gmra.mxu0 %v3893
  %v5003 = vpop.f32.mrf.mxu0
  %v5004 = vadd.f32 %v4811, %v5003
  %v5005 = vpop.f32.mrf.mxu0
  %v5006 = vadd.f32 %v4813, %v5005
  %v5007 = vpop.f32.mrf.mxu0
  %v5008 = vadd.f32 %v4815, %v5007
  %v5009 = vpop.f32.mrf.mxu0
  %v5010 = vadd.f32 %v4817, %v5009
  %5011 = vmatprep.mubr.bf16.mxu0 %v3898
  %5012 = vmatmul.mubr.bf16.gmra.mxu0 %v3897
  %v5013 = vpop.f32.mrf.mxu0
  %v5014 = vadd.f32 %v4821, %v5013
  %v5015 = vpop.f32.mrf.mxu0
  %v5016 = vadd.f32 %v4823, %v5015
  %v5017 = vpop.f32.mrf.mxu0
  %v5018 = vadd.f32 %v4825, %v5017
  %v5019 = vpop.f32.mrf.mxu0
  %v5020 = vadd.f32 %v4827, %v5019
  %5021 = vmatprep.mubr.bf16.mxu0 %v3902
  %5022 = vmatmul.mubr.bf16.gmra.mxu0 %v3901
  %v5023 = vpop.f32.mrf.mxu0
  %v5024 = vadd.f32 %v4831, %v5023
  %v5025 = vpop.f32.mrf.mxu0
  %v5026 = vadd.f32 %v4833, %v5025
  %v5027 = vpop.f32.mrf.mxu0
  %v5028 = vadd.f32 %v4835, %v5027
  %v5029 = vpop.f32.mrf.mxu0
  %v5030 = vadd.f32 %v4837, %v5029
  %5031 = vmatprep.mubr.bf16.mxu0 %v3906
  %5032 = vmatmul.mubr.bf16.gmra.mxu0 %v3905
  %v5033 = vpop.f32.mrf.mxu0
  %v5034 = vadd.f32 %v4841, %v5033
  %v5035 = vpop.f32.mrf.mxu0
  %v5036 = vadd.f32 %v4843, %v5035
  %v5037 = vpop.f32.mrf.mxu0
  %v5038 = vadd.f32 %v4845, %v5037
  %v5039 = vpop.f32.mrf.mxu0
  %v5040 = vadd.f32 %v4847, %v5039
  %5041 = vmatprep.mubr.bf16.mxu0 %v3910
  %5042 = vmatmul.mubr.bf16.gmra.mxu0 %v3909
  %v5043 = vpop.f32.mrf.mxu0
  %v5044 = vadd.f32 %v4851, %v5043
  %v5045 = vpop.f32.mrf.mxu0
  %v5046 = vadd.f32 %v4853, %v5045
  %v5047 = vpop.f32.mrf.mxu0
  %v5048 = vadd.f32 %v4855, %v5047
  %v5049 = vpop.f32.mrf.mxu0
  %v5050 = vadd.f32 %v4857, %v5049
  %5051 = vmatprep.mubr.bf16.mxu0 %v3914
  %5052 = vmatmul.mubr.bf16.gmra.mxu0 %v3913
  %v5053 = vpop.f32.mrf.mxu0
  %v5054 = vadd.f32 %v4861, %v5053
  %v5055 = vpop.f32.mrf.mxu0
  %v5056 = vadd.f32 %v4863, %v5055
  %v5057 = vpop.f32.mrf.mxu0
  %v5058 = vadd.f32 %v4865, %v5057
  %v5059 = vpop.f32.mrf.mxu0
  %v5060 = vadd.f32 %v4867, %v5059
  %5061 = vmatprep.mubr.bf16.mxu0 %v3918
  %5062 = vmatmul.mubr.bf16.gmra.mxu0 %v3917
  %v5063 = vpop.f32.mrf.mxu0
  %v5064 = vadd.f32 %v4871, %v5063
  %v5065 = vpop.f32.mrf.mxu0
  %v5066 = vadd.f32 %v4873, %v5065
  %v5067 = vpop.f32.mrf.mxu0
  %v5068 = vadd.f32 %v4875, %v5067
  %v5069 = vpop.f32.mrf.mxu0
  %v5070 = vadd.f32 %v4877, %v5069
  %5071 = vmatprep.mubr.bf16.mxu0 %v3922
  %5072 = vmatmul.mubr.bf16.gmra.mxu0 %v3921
  %v5073 = vpop.f32.mrf.mxu0
  %v5074 = vadd.f32 %v4881, %v5073
  %v5075 = vpop.f32.mrf.mxu0
  %v5076 = vadd.f32 %v4883, %v5075
  %v5077 = vpop.f32.mrf.mxu0
  %v5078 = vadd.f32 %v4885, %v5077
  %v5079 = vpop.f32.mrf.mxu0
  %v5080 = vadd.f32 %v4887, %v5079
  %5081 = vmatprep.mubr.bf16.mxu0 %v3926
  %5082 = vmatmul.mubr.bf16.gmra.mxu0 %v3925
  %v5083 = vpop.f32.mrf.mxu0
  %v5084 = vadd.f32 %v4891, %v5083
  %v5085 = vpop.f32.mrf.mxu0
  %v5086 = vadd.f32 %v4893, %v5085
  %v5087 = vpop.f32.mrf.mxu0
  %v5088 = vadd.f32 %v4895, %v5087
  %v5089 = vpop.f32.mrf.mxu0
  %v5090 = vadd.f32 %v4897, %v5089
  %5091 = vmatprep.mubr.bf16.mxu0 %v3930
  %5092 = vmatmul.mubr.bf16.gmra.mxu0 %v3929
  %v5093 = vpop.f32.mrf.mxu0
  %v5094 = vadd.f32 %v4901, %v5093
  %v5095 = vpop.f32.mrf.mxu0
  %v5096 = vadd.f32 %v4903, %v5095
  %v5097 = vpop.f32.mrf.mxu0
  %v5098 = vadd.f32 %v4905, %v5097
  %v5099 = vpop.f32.mrf.mxu0
  %v5100 = vadd.f32 %v4907, %v5099
  %5101 = vmatprep.mubr.bf16.mxu0 %v3934
  %5102 = vmatmul.mubr.bf16.gmra.mxu0 %v3933
  %v5103 = vpop.f32.mrf.mxu0
  %v5104 = vadd.f32 %v4911, %v5103
  %v5105 = vpop.f32.mrf.mxu0
  %v5106 = vadd.f32 %v4913, %v5105
  %v5107 = vpop.f32.mrf.mxu0
  %v5108 = vadd.f32 %v4915, %v5107
  %v5109 = vpop.f32.mrf.mxu0
  %v5110 = vadd.f32 %v4917, %v5109
  %5111 = vmatprep.mubr.bf16.mxu0 %v3938
  %5112 = vmatmul.mubr.bf16.gmra.mxu0 %v3937
  %v5113 = vpop.f32.mrf.mxu0
  %v5114 = vadd.f32 %v4921, %v5113
  %v5115 = vpop.f32.mrf.mxu0
  %v5116 = vadd.f32 %v4923, %v5115
  %v5117 = vpop.f32.mrf.mxu0
  %v5118 = vadd.f32 %v4925, %v5117
  %v5119 = vpop.f32.mrf.mxu0
  %v5120 = vadd.f32 %v4927, %v5119
  %5121 = vmatprep.mubr.bf16.mxu0 %v3942
  %5122 = vmatmul.mubr.bf16.gmra.mxu0 %v3941
  %v5123 = vpop.f32.mrf.mxu0
  %v5124 = vadd.f32 %v4931, %v5123
  %v5125 = vpop.f32.mrf.mxu0
  %v5126 = vadd.f32 %v4933, %v5125
  %v5127 = vpop.f32.mrf.mxu0
  %v5128 = vadd.f32 %v4935, %v5127
  %v5129 = vpop.f32.mrf.mxu0
  %v5130 = vadd.f32 %v4937, %v5129
  %5131 = vmatprep.mubr.bf16.mxu0 %v3946
  %5132 = vmatmul.mubr.bf16.gmra.mxu0 %v3945
  %v5133 = vpop.f32.mrf.mxu0
  %v5134 = vadd.f32 %v4941, %v5133
  %v5135 = vpop.f32.mrf.mxu0
  %v5136 = vadd.f32 %v4943, %v5135
  %v5137 = vpop.f32.mrf.mxu0
  %v5138 = vadd.f32 %v4945, %v5137
  %v5139 = vpop.f32.mrf.mxu0
  %v5140 = vadd.f32 %v4947, %v5139
  %5141 = vmatprep.mubr.bf16.mxu0 %v3950
  %5142 = vmatmul.mubr.bf16.gmra.mxu0 %v3949
  %v5143 = vpop.f32.mrf.mxu0
  %v5144 = vadd.f32 %v4951, %v5143
  %v5145 = vpop.f32.mrf.mxu0
  %v5146 = vadd.f32 %v4953, %v5145
  %v5147 = vpop.f32.mrf.mxu0
  %v5148 = vadd.f32 %v4955, %v5147
  %v5149 = vpop.f32.mrf.mxu0
  %v5150 = vadd.f32 %v4957, %v5149
  %5151 = vmatprep.mubr.bf16.mxu0 %v3954
  %5152 = vmatmul.mubr.bf16.gmra.mxu0 %v3953
  %v5153 = vpop.f32.mrf.mxu0
  %v5154 = vadd.f32 %v4961, %v5153
  %v5155 = vpop.f32.mrf.mxu0
  %v5156 = vadd.f32 %v4963, %v5155
  %v5157 = vpop.f32.mrf.mxu0
  %v5158 = vadd.f32 %v4965, %v5157
  %v5159 = vpop.f32.mrf.mxu0
  %v5160 = vadd.f32 %v4967, %v5159
  %5161 = vdwg.mxu0
  %5162 = vmatprep.subr.bf16.mxu0 %v4677
  %5163 = vmatpush1.bf16.xpose.msra.mxu0 %v4676
  %5164 = vmatprep.subr.bf16.mxu0 %v4673
  %5165 = vmatpush1.bf16.xpose.msra.mxu0 %v4672
  %5166 = vmatprep.subr.bf16.mxu0 %v4669
  %5167 = vmatpush1.bf16.xpose.msra.mxu0 %v4668
  %5168 = vmatprep.subr.bf16.mxu0 %v4665
  %5169 = vmatpush1.bf16.xpose.msra.mxu0 %v4664
  %5170 = vmatprep.subr.bf16.mxu0 %v4661
  %5171 = vmatpush1.bf16.xpose.msra.mxu0 %v4660
  %5172 = vmatprep.subr.bf16.mxu0 %v4657
  %5173 = vmatpush1.bf16.xpose.msra.mxu0 %v4656
  %5174 = vmatprep.subr.bf16.mxu0 %v4653
  %5175 = vmatpush1.bf16.xpose.msra.mxu0 %v4652
  %5176 = vmatprep.subr.bf16.mxu0 %v4649
  %5177 = vmatpush1.bf16.xpose.msra.mxu0 %v4648
  %5178 = vmatprep.subr.bf16.mxu0 0
  %5179 = vmatpush2.bf16.xpose.msra.mxu0 0
  %5180 = vmatprep.subr.bf16.mxu0 0
  %5181 = vmatpush2.bf16.xpose.msra.mxu0 0
  %5182 = vmatprep.subr.bf16.mxu0 0
  %5183 = vmatpush2.bf16.xpose.msra.mxu0 0
  %5184 = vmatprep.subr.bf16.mxu0 0
  %5185 = vmatpush2.bf16.xpose.msra.mxu0 0
  %5186 = vmatprep.subr.bf16.mxu0 0
  %5187 = vmatpush2.bf16.xpose.msra.mxu0 0
  %5188 = vmatprep.subr.bf16.mxu0 0
  %5189 = vmatpush2.bf16.xpose.msra.mxu0 0
  %5190 = vmatprep.subr.bf16.mxu0 0
  %5191 = vmatpush2.bf16.xpose.msra.mxu0 0
  %5192 = vmatprep.subr.bf16.mxu0 0
  %5193 = vmatpush2.bf16.xpose.msra.mxu0 0
  %5194 = vmatprep.mubr.bf16.mxu0 %v3892
  %5195 = vmatmul.mubr.bf16.gmra.mxu0 %v3891
  %v5196 = vpop.f32.mrf.mxu0
  %v5197 = vadd.f32 %v4292, %v5196
  %v5198 = vpop.f32.mrf.mxu0
  %v5199 = vpop.f32.mrf.mxu0
  %v5200 = vadd.f32 %v4292, %v5199
  %v5201 = vpop.f32.mrf.mxu0
  %5202 = vmatprep.mubr.bf16.mxu0 %v3896
  %5203 = vmatmul.mubr.bf16.gmra.mxu0 %v3895
  %v5204 = vpop.f32.mrf.mxu0
  %v5205 = vadd.f32 %v4292, %v5204
  %v5206 = vpop.f32.mrf.mxu0
  %v5207 = vpop.f32.mrf.mxu0
  %v5208 = vadd.f32 %v4292, %v5207
  %v5209 = vpop.f32.mrf.mxu0
  %5210 = vmatprep.mubr.bf16.mxu0 %v3900
  %5211 = vmatmul.mubr.bf16.gmra.mxu0 %v3899
  %v5212 = vpop.f32.mrf.mxu0
  %v5213 = vadd.f32 %v4292, %v5212
  %v5214 = vpop.f32.mrf.mxu0
  %v5215 = vpop.f32.mrf.mxu0
  %v5216 = vadd.f32 %v4292, %v5215
  %v5217 = vpop.f32.mrf.mxu0
  %5218 = vmatprep.mubr.bf16.mxu0 %v3904
  %5219 = vmatmul.mubr.bf16.gmra.mxu0 %v3903
  %v5220 = vpop.f32.mrf.mxu0
  %v5221 = vadd.f32 %v4292, %v5220
  %v5222 = vpop.f32.mrf.mxu0
  %v5223 = vpop.f32.mrf.mxu0
  %v5224 = vadd.f32 %v4292, %v5223
  %v5225 = vpop.f32.mrf.mxu0
  %5226 = vmatprep.mubr.bf16.mxu0 %v3908
  %5227 = vmatmul.mubr.bf16.gmra.mxu0 %v3907
  %v5228 = vpop.f32.mrf.mxu0
  %v5229 = vadd.f32 %v4292, %v5228
  %v5230 = vpop.f32.mrf.mxu0
  %v5231 = vpop.f32.mrf.mxu0
  %v5232 = vadd.f32 %v4292, %v5231
  %v5233 = vpop.f32.mrf.mxu0
  %5234 = vmatprep.mubr.bf16.mxu0 %v3912
  %5235 = vmatmul.mubr.bf16.gmra.mxu0 %v3911
  %v5236 = vpop.f32.mrf.mxu0
  %v5237 = vadd.f32 %v4292, %v5236
  %v5238 = vpop.f32.mrf.mxu0
  %v5239 = vpop.f32.mrf.mxu0
  %v5240 = vadd.f32 %v4292, %v5239
  %v5241 = vpop.f32.mrf.mxu0
  %5242 = vmatprep.mubr.bf16.mxu0 %v3916
  %5243 = vmatmul.mubr.bf16.gmra.mxu0 %v3915
  %v5244 = vpop.f32.mrf.mxu0
  %v5245 = vadd.f32 %v4292, %v5244
  %v5246 = vpop.f32.mrf.mxu0
  %v5247 = vpop.f32.mrf.mxu0
  %v5248 = vadd.f32 %v4292, %v5247
  %v5249 = vpop.f32.mrf.mxu0
  %5250 = vmatprep.mubr.bf16.mxu0 %v3920
  %5251 = vmatmul.mubr.bf16.gmra.mxu0 %v3919
  %v5252 = vpop.f32.mrf.mxu0
  %v5253 = vadd.f32 %v4292, %v5252
  %v5254 = vpop.f32.mrf.mxu0
  %v5255 = vpop.f32.mrf.mxu0
  %v5256 = vadd.f32 %v4292, %v5255
  %v5257 = vpop.f32.mrf.mxu0
  %5258 = vmatprep.mubr.bf16.mxu0 %v3924
  %5259 = vmatmul.mubr.bf16.gmra.mxu0 %v3923
  %v5260 = vpop.f32.mrf.mxu0
  %v5261 = vadd.f32 %v4292, %v5260
  %v5262 = vpop.f32.mrf.mxu0
  %v5263 = vpop.f32.mrf.mxu0
  %v5264 = vadd.f32 %v4292, %v5263
  %v5265 = vpop.f32.mrf.mxu0
  %5266 = vmatprep.mubr.bf16.mxu0 %v3928
  %5267 = vmatmul.mubr.bf16.gmra.mxu0 %v3927
  %v5268 = vpop.f32.mrf.mxu0
  %v5269 = vadd.f32 %v4292, %v5268
  %v5270 = vpop.f32.mrf.mxu0
  %v5271 = vpop.f32.mrf.mxu0
  %v5272 = vadd.f32 %v4292, %v5271
  %v5273 = vpop.f32.mrf.mxu0
  %5274 = vmatprep.mubr.bf16.mxu0 %v3932
  %5275 = vmatmul.mubr.bf16.gmra.mxu0 %v3931
  %v5276 = vpop.f32.mrf.mxu0
  %v5277 = vadd.f32 %v4292, %v5276
  %v5278 = vpop.f32.mrf.mxu0
  %v5279 = vpop.f32.mrf.mxu0
  %v5280 = vadd.f32 %v4292, %v5279
  %v5281 = vpop.f32.mrf.mxu0
  %5282 = vmatprep.mubr.bf16.mxu0 %v3936
  %5283 = vmatmul.mubr.bf16.gmra.mxu0 %v3935
  %v5284 = vpop.f32.mrf.mxu0
  %v5285 = vadd.f32 %v4292, %v5284
  %v5286 = vpop.f32.mrf.mxu0
  %v5287 = vpop.f32.mrf.mxu0
  %v5288 = vadd.f32 %v4292, %v5287
  %v5289 = vpop.f32.mrf.mxu0
  %5290 = vmatprep.mubr.bf16.mxu0 %v3940
  %5291 = vmatmul.mubr.bf16.gmra.mxu0 %v3939
  %v5292 = vpop.f32.mrf.mxu0
  %v5293 = vadd.f32 %v4292, %v5292
  %v5294 = vpop.f32.mrf.mxu0
  %v5295 = vpop.f32.mrf.mxu0
  %v5296 = vadd.f32 %v4292, %v5295
  %v5297 = vpop.f32.mrf.mxu0
  %5298 = vmatprep.mubr.bf16.mxu0 %v3944
  %5299 = vmatmul.mubr.bf16.gmra.mxu0 %v3943
  %v5300 = vpop.f32.mrf.mxu0
  %v5301 = vadd.f32 %v4292, %v5300
  %v5302 = vpop.f32.mrf.mxu0
  %v5303 = vpop.f32.mrf.mxu0
  %v5304 = vadd.f32 %v4292, %v5303
  %v5305 = vpop.f32.mrf.mxu0
  %5306 = vmatprep.mubr.bf16.mxu0 %v3948
  %5307 = vmatmul.mubr.bf16.gmra.mxu0 %v3947
  %v5308 = vpop.f32.mrf.mxu0
  %v5309 = vadd.f32 %v4292, %v5308
  %v5310 = vpop.f32.mrf.mxu0
  %v5311 = vpop.f32.mrf.mxu0
  %v5312 = vadd.f32 %v4292, %v5311
  %v5313 = vpop.f32.mrf.mxu0
  %5314 = vmatprep.mubr.bf16.mxu0 %v3952
  %5315 = vmatmul.mubr.bf16.gmra.mxu0 %v3951
  %v5316 = vpop.f32.mrf.mxu0
  %v5317 = vadd.f32 %v4292, %v5316
  %v5318 = vpop.f32.mrf.mxu0
  %v5319 = vpop.f32.mrf.mxu0
  %v5320 = vadd.f32 %v4292, %v5319
  %v5321 = vpop.f32.mrf.mxu0
  %5322 = vdwg.mxu0
  %5323 = vmatprep.subr.bf16.mxu0 %v4679
  %5324 = vmatpush1.bf16.xpose.msra.mxu0 %v4678
  %5325 = vmatprep.subr.bf16.mxu0 %v4675
  %5326 = vmatpush1.bf16.xpose.msra.mxu0 %v4674
  %5327 = vmatprep.subr.bf16.mxu0 %v4671
  %5328 = vmatpush1.bf16.xpose.msra.mxu0 %v4670
  %5329 = vmatprep.subr.bf16.mxu0 %v4667
  %5330 = vmatpush1.bf16.xpose.msra.mxu0 %v4666
  %5331 = vmatprep.subr.bf16.mxu0 %v4663
  %5332 = vmatpush1.bf16.xpose.msra.mxu0 %v4662
  %5333 = vmatprep.subr.bf16.mxu0 %v4659
  %5334 = vmatpush1.bf16.xpose.msra.mxu0 %v4658
  %5335 = vmatprep.subr.bf16.mxu0 %v4655
  %5336 = vmatpush1.bf16.xpose.msra.mxu0 %v4654
  %5337 = vmatprep.subr.bf16.mxu0 %v4651
  %5338 = vmatpush1.bf16.xpose.msra.mxu0 %v4650
  %5339 = vmatprep.subr.bf16.mxu0 0
  %5340 = vmatpush2.bf16.xpose.msra.mxu0 0
  %5341 = vmatprep.subr.bf16.mxu0 0
  %5342 = vmatpush2.bf16.xpose.msra.mxu0 0
  %5343 = vmatprep.subr.bf16.mxu0 0
  %5344 = vmatpush2.bf16.xpose.msra.mxu0 0
  %5345 = vmatprep.subr.bf16.mxu0 0
  %5346 = vmatpush2.bf16.xpose.msra.mxu0 0
  %5347 = vmatprep.subr.bf16.mxu0 0
  %5348 = vmatpush2.bf16.xpose.msra.mxu0 0
  %5349 = vmatprep.subr.bf16.mxu0 0
  %5350 = vmatpush2.bf16.xpose.msra.mxu0 0
  %5351 = vmatprep.subr.bf16.mxu0 0
  %5352 = vmatpush2.bf16.xpose.msra.mxu0 0
  %5353 = vmatprep.subr.bf16.mxu0 0
  %5354 = vmatpush2.bf16.xpose.msra.mxu0 0
  %5355 = vmatprep.mubr.bf16.mxu0 %v3894
  %5356 = vmatmul.mubr.bf16.gmra.mxu0 %v3893
  %v5357 = vpop.f32.mrf.mxu0
  %v5358 = vadd.f32 %v5197, %v5357
  %v5359 = vpop.f32.mrf.mxu0
  %v5360 = vpop.f32.mrf.mxu0
  %v5361 = vadd.f32 %v5200, %v5360
  %v5362 = vpop.f32.mrf.mxu0
  %5363 = vmatprep.mubr.bf16.mxu0 %v3898
  %5364 = vmatmul.mubr.bf16.gmra.mxu0 %v3897
  %v5365 = vpop.f32.mrf.mxu0
  %v5366 = vadd.f32 %v5205, %v5365
  %v5367 = vpop.f32.mrf.mxu0
  %v5368 = vpop.f32.mrf.mxu0
  %v5369 = vadd.f32 %v5208, %v5368
  %v5370 = vpop.f32.mrf.mxu0
  %5371 = vmatprep.mubr.bf16.mxu0 %v3902
  %5372 = vmatmul.mubr.bf16.gmra.mxu0 %v3901
  %v5373 = vpop.f32.mrf.mxu0
  %v5374 = vadd.f32 %v5213, %v5373
  %v5375 = vpop.f32.mrf.mxu0
  %v5376 = vpop.f32.mrf.mxu0
  %v5377 = vadd.f32 %v5216, %v5376
  %v5378 = vpop.f32.mrf.mxu0
  %5379 = vmatprep.mubr.bf16.mxu0 %v3906
  %5380 = vmatmul.mubr.bf16.gmra.mxu0 %v3905
  %v5381 = vpop.f32.mrf.mxu0
  %v5382 = vadd.f32 %v5221, %v5381
  %v5383 = vpop.f32.mrf.mxu0
  %v5384 = vpop.f32.mrf.mxu0
  %v5385 = vadd.f32 %v5224, %v5384
  %v5386 = vpop.f32.mrf.mxu0
  %5387 = vmatprep.mubr.bf16.mxu0 %v3910
  %5388 = vmatmul.mubr.bf16.gmra.mxu0 %v3909
  %v5389 = vpop.f32.mrf.mxu0
  %v5390 = vadd.f32 %v5229, %v5389
  %v5391 = vpop.f32.mrf.mxu0
  %v5392 = vpop.f32.mrf.mxu0
  %v5393 = vadd.f32 %v5232, %v5392
  %v5394 = vpop.f32.mrf.mxu0
  %5395 = vmatprep.mubr.bf16.mxu0 %v3914
  %5396 = vmatmul.mubr.bf16.gmra.mxu0 %v3913
  %v5397 = vpop.f32.mrf.mxu0
  %v5398 = vadd.f32 %v5237, %v5397
  %v5399 = vpop.f32.mrf.mxu0
  %v5400 = vpop.f32.mrf.mxu0
  %v5401 = vadd.f32 %v5240, %v5400
  %v5402 = vpop.f32.mrf.mxu0
  %5403 = vmatprep.mubr.bf16.mxu0 %v3918
  %5404 = vmatmul.mubr.bf16.gmra.mxu0 %v3917
  %v5405 = vpop.f32.mrf.mxu0
  %v5406 = vadd.f32 %v5245, %v5405
  %v5407 = vpop.f32.mrf.mxu0
  %v5408 = vpop.f32.mrf.mxu0
  %v5409 = vadd.f32 %v5248, %v5408
  %v5410 = vpop.f32.mrf.mxu0
  %5411 = vmatprep.mubr.bf16.mxu0 %v3922
  %5412 = vmatmul.mubr.bf16.gmra.mxu0 %v3921
  %v5413 = vpop.f32.mrf.mxu0
  %v5414 = vadd.f32 %v5253, %v5413
  %v5415 = vpop.f32.mrf.mxu0
  %v5416 = vpop.f32.mrf.mxu0
  %v5417 = vadd.f32 %v5256, %v5416
  %v5418 = vpop.f32.mrf.mxu0
  %5419 = vmatprep.mubr.bf16.mxu0 %v3926
  %5420 = vmatmul.mubr.bf16.gmra.mxu0 %v3925
  %v5421 = vpop.f32.mrf.mxu0
  %v5422 = vadd.f32 %v5261, %v5421
  %v5423 = vpop.f32.mrf.mxu0
  %v5424 = vpop.f32.mrf.mxu0
  %v5425 = vadd.f32 %v5264, %v5424
  %v5426 = vpop.f32.mrf.mxu0
  %5427 = vmatprep.mubr.bf16.mxu0 %v3930
  %5428 = vmatmul.mubr.bf16.gmra.mxu0 %v3929
  %v5429 = vpop.f32.mrf.mxu0
  %v5430 = vadd.f32 %v5269, %v5429
  %v5431 = vpop.f32.mrf.mxu0
  %v5432 = vpop.f32.mrf.mxu0
  %v5433 = vadd.f32 %v5272, %v5432
  %v5434 = vpop.f32.mrf.mxu0
  %5435 = vmatprep.mubr.bf16.mxu0 %v3934
  %5436 = vmatmul.mubr.bf16.gmra.mxu0 %v3933
  %v5437 = vpop.f32.mrf.mxu0
  %v5438 = vadd.f32 %v5277, %v5437
  %v5439 = vpop.f32.mrf.mxu0
  %v5440 = vpop.f32.mrf.mxu0
  %v5441 = vadd.f32 %v5280, %v5440
  %v5442 = vpop.f32.mrf.mxu0
  %5443 = vmatprep.mubr.bf16.mxu0 %v3938
  %5444 = vmatmul.mubr.bf16.gmra.mxu0 %v3937
  %v5445 = vpop.f32.mrf.mxu0
  %v5446 = vadd.f32 %v5285, %v5445
  %v5447 = vpop.f32.mrf.mxu0
  %v5448 = vpop.f32.mrf.mxu0
  %v5449 = vadd.f32 %v5288, %v5448
  %v5450 = vpop.f32.mrf.mxu0
  %5451 = vmatprep.mubr.bf16.mxu0 %v3942
  %5452 = vmatmul.mubr.bf16.gmra.mxu0 %v3941
  %v5453 = vpop.f32.mrf.mxu0
  %v5454 = vadd.f32 %v5293, %v5453
  %v5455 = vpop.f32.mrf.mxu0
  %v5456 = vpop.f32.mrf.mxu0
  %v5457 = vadd.f32 %v5296, %v5456
  %v5458 = vpop.f32.mrf.mxu0
  %5459 = vmatprep.mubr.bf16.mxu0 %v3946
  %5460 = vmatmul.mubr.bf16.gmra.mxu0 %v3945
  %v5461 = vpop.f32.mrf.mxu0
  %v5462 = vadd.f32 %v5301, %v5461
  %v5463 = vpop.f32.mrf.mxu0
  %v5464 = vpop.f32.mrf.mxu0
  %v5465 = vadd.f32 %v5304, %v5464
  %v5466 = vpop.f32.mrf.mxu0
  %5467 = vmatprep.mubr.bf16.mxu0 %v3950
  %5468 = vmatmul.mubr.bf16.gmra.mxu0 %v3949
  %v5469 = vpop.f32.mrf.mxu0
  %v5470 = vadd.f32 %v5309, %v5469
  %v5471 = vpop.f32.mrf.mxu0
  %v5472 = vpop.f32.mrf.mxu0
  %v5473 = vadd.f32 %v5312, %v5472
  %v5474 = vpop.f32.mrf.mxu0
  %5475 = vmatprep.mubr.bf16.mxu0 %v3954
  %5476 = vmatmul.mubr.bf16.gmra.mxu0 %v3953
  %v5477 = vpop.f32.mrf.mxu0
  %v5478 = vadd.f32 %v5317, %v5477
  %v5479 = vpop.f32.mrf.mxu0
  %v5480 = vpop.f32.mrf.mxu0
  %v5481 = vadd.f32 %v5320, %v5480
  %v5482 = vpop.f32.mrf.mxu0
  %5483 = vdwg.mxu0
  %v5484 = vtanh.pop %v5004
  %v5485 = vtanh.pop %v5006
  %v5486 = vtanh.pop %v5358
  %v5487 = vtanh.pop %v5008
  %v5488 = vtanh.pop %v5010
  %v5489 = vtanh.pop %v5361
  %v5490 = vtanh.pop %v5014
  %v5491 = vtanh.pop %v5016
  %v5492 = vtanh.pop %v5366
  %v5493 = vtanh.pop %v5018
  %v5494 = vtanh.pop %v5020
  %v5495 = vtanh.pop %v5369
  %v5496 = vtanh.pop %v5024
  %v5497 = vtanh.pop %v5026
  %v5498 = vtanh.pop %v5374
  %v5499 = vtanh.pop %v5028
  %v5500 = vtanh.pop %v5030
  %v5501 = vtanh.pop %v5377
  %v5502 = vtanh.pop %v5034
  %v5503 = vtanh.pop %v5036
  %v5504 = vtanh.pop %v5382
  %v5505 = vtanh.pop %v5038
  %v5506 = vtanh.pop %v5040
  %v5507 = vtanh.pop %v5385
  %v5508 = vtanh.pop %v5044
  %v5509 = vtanh.pop %v5046
  %v5510 = vtanh.pop %v5390
  %v5511 = vtanh.pop %v5048
  %v5512 = vtanh.pop %v5050
  %v5513 = vtanh.pop %v5393
  %v5514 = vtanh.pop %v5054
  %v5515 = vtanh.pop %v5056
  %v5516 = vtanh.pop %v5398
  %v5517 = vtanh.pop %v5058
  %v5518 = vtanh.pop %v5060
  %v5519 = vtanh.pop %v5401
  %v5520 = vtanh.pop %v5064
  %v5521 = vtanh.pop %v5066
  %v5522 = vtanh.pop %v5406
  %v5523 = vtanh.pop %v5068
  %v5524 = vtanh.pop %v5070
  %v5525 = vtanh.pop %v5409
  %v5526 = vtanh.pop %v5074
  %v5527 = vtanh.pop %v5076
  %v5528 = vtanh.pop %v5414
  %v5529 = vtanh.pop %v5078
  %v5530 = vtanh.pop %v5080
  %v5531 = vtanh.pop %v5417
  %v5532 = vtanh.pop %v5084
  %v5533 = vtanh.pop %v5086
  %v5534 = vtanh.pop %v5422
  %v5535 = vtanh.pop %v5088
  %v5536 = vtanh.pop %v5090
  %v5537 = vtanh.pop %v5425
  %v5538 = vtanh.pop %v5094
  %v5539 = vtanh.pop %v5096
  %v5540 = vtanh.pop %v5430
  %v5541 = vtanh.pop %v5098
  %v5542 = vtanh.pop %v5100
  %v5543 = vtanh.pop %v5433
  %v5544 = vtanh.pop %v5104
  %v5545 = vtanh.pop %v5106
  %v5546 = vtanh.pop %v5438
  %v5547 = vtanh.pop %v5108
  %v5548 = vtanh.pop %v5110
  %v5549 = vtanh.pop %v5441
  %v5550 = vtanh.pop %v5114
  %v5551 = vtanh.pop %v5116
  %v5552 = vtanh.pop %v5446
  %v5553 = vtanh.pop %v5118
  %v5554 = vtanh.pop %v5120
  %v5555 = vtanh.pop %v5449
  %v5556 = vtanh.pop %v5124
  %v5557 = vtanh.pop %v5126
  %v5558 = vtanh.pop %v5454
  %v5559 = vtanh.pop %v5128
  %v5560 = vtanh.pop %v5130
  %v5561 = vtanh.pop %v5457
  %v5562 = vtanh.pop %v5134
  %v5563 = vtanh.pop %v5136
  %v5564 = vtanh.pop %v5462
  %v5565 = vtanh.pop %v5138
  %v5566 = vtanh.pop %v5140
  %v5567 = vtanh.pop %v5465
  %v5568 = vtanh.pop %v5144
  %v5569 = vtanh.pop %v5146
  %v5570 = vtanh.pop %v5470
  %v5571 = vtanh.pop %v5148
  %v5572 = vtanh.pop %v5150
  %v5573 = vtanh.pop %v5473
  %v5574 = vtanh.pop %v5154
  %v5575 = vtanh.pop %v5156
  %v5576 = vtanh.pop %v5478
  %v5577 = vtanh.pop %v5158
  %v5578 = vtanh.pop %v5160
  %v5579 = vtanh.pop %v5481
  %v5580 = vpack.c.bf16 %v5487, %v5484
  %v5581 = vpack.c.bf16 %v5488, %v5485
  %v5582 = vpack.c.bf16 %v5489, %v5486
  %v5583 = vpack.c.bf16 %v5493, %v5490
  %v5584 = vpack.c.bf16 %v5494, %v5491
  %v5585 = vpack.c.bf16 %v5495, %v5492
  %v5586 = vpack.c.bf16 %v5499, %v5496
  %v5587 = vpack.c.bf16 %v5500, %v5497
  %v5588 = vpack.c.bf16 %v5501, %v5498
  %v5589 = vpack.c.bf16 %v5505, %v5502
  %v5590 = vpack.c.bf16 %v5506, %v5503
  %v5591 = vpack.c.bf16 %v5507, %v5504
  %v5592 = vpack.c.bf16 %v5511, %v5508
  %v5593 = vpack.c.bf16 %v5512, %v5509
  %v5594 = vpack.c.bf16 %v5513, %v5510
  %v5595 = vpack.c.bf16 %v5517, %v5514
  %v5596 = vpack.c.bf16 %v5518, %v5515
  %v5597 = vpack.c.bf16 %v5519, %v5516
  %v5598 = vpack.c.bf16 %v5523, %v5520
  %v5599 = vpack.c.bf16 %v5524, %v5521
  %v5600 = vpack.c.bf16 %v5525, %v5522
  %v5601 = vpack.c.bf16 %v5529, %v5526
  %v5602 = vpack.c.bf16 %v5530, %v5527
  %v5603 = vpack.c.bf16 %v5531, %v5528
  %v5604 = vpack.c.bf16 %v5535, %v5532
  %v5605 = vpack.c.bf16 %v5536, %v5533
  %v5606 = vpack.c.bf16 %v5537, %v5534
  %v5607 = vpack.c.bf16 %v5541, %v5538
  %v5608 = vpack.c.bf16 %v5542, %v5539
  %v5609 = vpack.c.bf16 %v5543, %v5540
  %v5610 = vpack.c.bf16 %v5547, %v5544
  %v5611 = vpack.c.bf16 %v5548, %v5545
  %v5612 = vpack.c.bf16 %v5549, %v5546
  %v5613 = vpack.c.bf16 %v5553, %v5550
  %v5614 = vpack.c.bf16 %v5554, %v5551
  %v5615 = vpack.c.bf16 %v5555, %v5552
  %v5616 = vpack.c.bf16 %v5559, %v5556
  %v5617 = vpack.c.bf16 %v5560, %v5557
  %v5618 = vpack.c.bf16 %v5561, %v5558
  %v5619 = vpack.c.bf16 %v5565, %v5562
  %v5620 = vpack.c.bf16 %v5566, %v5563
  %v5621 = vpack.c.bf16 %v5567, %v5564
  %v5622 = vpack.c.bf16 %v5571, %v5568
  %v5623 = vpack.c.bf16 %v5572, %v5569
  %v5624 = vpack.c.bf16 %v5573, %v5570
  %v5625 = vpack.c.bf16 %v5577, %v5574
  %v5626 = vpack.c.bf16 %v5578, %v5575
  %v5627 = vpack.c.bf16 %v5579, %v5576
  %v5629 = vlaneseq
  %v5630 = vshrl.u32 %v5629, 7
  %v5631 = vsub.s32 0, %v5630
  %v5632 = vrot.slane %v4052, %v5631
  %v5633 = vlaneseq
  %v5634 = vshrl.u32 %v5633, 7
  %v5635 = vsub.s32 1, %v5634
  %v5636 = vrot.slane %v4052, %v5635
  %v5637 = vlaneseq
  %v5638 = vshrl.u32 %v5637, 7
  %v5639 = vsub.s32 2, %v5638
  %v5640 = vrot.slane %v4052, %v5639
  %v5641 = vlaneseq
  %v5642 = vshrl.u32 %v5641, 7
  %v5643 = vsub.s32 3, %v5642
  %v5644 = vrot.slane %v4052, %v5643
  %5649 = vmatprep.subr.bf16.mxu0 %v4613
  %5650 = vmatpush1.bf16.msra.mxu0 %v4612
  %5651 = vmatprep.subr.bf16.mxu0 %v4609
  %5652 = vmatpush1.bf16.msra.mxu0 %v4608
  %5653 = vmatprep.subr.bf16.mxu0 %v4605
  %5654 = vmatpush1.bf16.msra.mxu0 %v4604
  %5655 = vmatprep.subr.bf16.mxu0 %v4601
  %5656 = vmatpush1.bf16.msra.mxu0 %v4600
  %5657 = vmatprep.subr.bf16.mxu0 %v4597
  %5658 = vmatpush1.bf16.msra.mxu0 %v4596
  %5659 = vmatprep.subr.bf16.mxu0 %v4593
  %5660 = vmatpush1.bf16.msra.mxu0 %v4592
  %5661 = vmatprep.subr.bf16.mxu0 %v4589
  %5662 = vmatpush1.bf16.msra.mxu0 %v4588
  %5663 = vmatprep.subr.bf16.mxu0 %v4585
  %5664 = vmatpush1.bf16.msra.mxu0 %v4584
  %5665 = vmatprep.subr.bf16.mxu0 %v4645
  %5666 = vmatpush2.bf16.msra.mxu0 %v4644
  %5667 = vmatprep.subr.bf16.mxu0 %v4641
  %5668 = vmatpush2.bf16.msra.mxu0 %v4640
  %5669 = vmatprep.subr.bf16.mxu0 %v4637
  %5670 = vmatpush2.bf16.msra.mxu0 %v4636
  %5671 = vmatprep.subr.bf16.mxu0 %v4633
  %5672 = vmatpush2.bf16.msra.mxu0 %v4632
  %5673 = vmatprep.subr.bf16.mxu0 %v4629
  %5674 = vmatpush2.bf16.msra.mxu0 %v4628
  %5675 = vmatprep.subr.bf16.mxu0 %v4625
  %5676 = vmatpush2.bf16.msra.mxu0 %v4624
  %5677 = vmatprep.subr.bf16.mxu0 %v4621
  %5678 = vmatpush2.bf16.msra.mxu0 %v4620
  %5679 = vmatprep.subr.bf16.mxu0 %v4617
  %5680 = vmatpush2.bf16.msra.mxu0 %v4616
  %5681 = vmatprep.mubr.bf16.mxu0 %v5581
  %5682 = vmatmul.mubr.bf16.gmra.mxu0 %v5580
  %v5683 = vpop.f32.mrf.mxu0
  %v5684 = vadd.f32 %v5632, %v5683
  %v5685 = vpop.f32.mrf.mxu0
  %v5686 = vadd.f32 %v5636, %v5685
  %v5687 = vpop.f32.mrf.mxu0
  %v5688 = vadd.f32 %v5632, %v5687
  %v5689 = vpop.f32.mrf.mxu0
  %v5690 = vadd.f32 %v5636, %v5689
  %5691 = vmatprep.mubr.bf16.mxu0 %v5584
  %5692 = vmatmul.mubr.bf16.gmra.mxu0 %v5583
  %v5693 = vpop.f32.mrf.mxu0
  %v5694 = vadd.f32 %v5632, %v5693
  %v5695 = vpop.f32.mrf.mxu0
  %v5696 = vadd.f32 %v5636, %v5695
  %v5697 = vpop.f32.mrf.mxu0
  %v5698 = vadd.f32 %v5632, %v5697
  %v5699 = vpop.f32.mrf.mxu0
  %v5700 = vadd.f32 %v5636, %v5699
  %5701 = vmatprep.mubr.bf16.mxu0 %v5587
  %5702 = vmatmul.mubr.bf16.gmra.mxu0 %v5586
  %v5703 = vpop.f32.mrf.mxu0
  %v5704 = vadd.f32 %v5632, %v5703
  %v5705 = vpop.f32.mrf.mxu0
  %v5706 = vadd.f32 %v5636, %v5705
  %v5707 = vpop.f32.mrf.mxu0
  %v5708 = vadd.f32 %v5632, %v5707
  %v5709 = vpop.f32.mrf.mxu0
  %v5710 = vadd.f32 %v5636, %v5709
  %5711 = vmatprep.mubr.bf16.mxu0 %v5590
  %5712 = vmatmul.mubr.bf16.gmra.mxu0 %v5589
  %v5713 = vpop.f32.mrf.mxu0
  %v5714 = vadd.f32 %v5632, %v5713
  %v5715 = vpop.f32.mrf.mxu0
  %v5716 = vadd.f32 %v5636, %v5715
  %v5717 = vpop.f32.mrf.mxu0
  %v5718 = vadd.f32 %v5632, %v5717
  %v5719 = vpop.f32.mrf.mxu0
  %v5720 = vadd.f32 %v5636, %v5719
  %5721 = vmatprep.mubr.bf16.mxu0 %v5593
  %5722 = vmatmul.mubr.bf16.gmra.mxu0 %v5592
  %v5723 = vpop.f32.mrf.mxu0
  %v5724 = vadd.f32 %v5632, %v5723
  %v5725 = vpop.f32.mrf.mxu0
  %v5726 = vadd.f32 %v5636, %v5725
  %v5727 = vpop.f32.mrf.mxu0
  %v5728 = vadd.f32 %v5632, %v5727
  %v5729 = vpop.f32.mrf.mxu0
  %v5730 = vadd.f32 %v5636, %v5729
  %5731 = vmatprep.mubr.bf16.mxu0 %v5596
  %5732 = vmatmul.mubr.bf16.gmra.mxu0 %v5595
  %v5733 = vpop.f32.mrf.mxu0
  %v5734 = vadd.f32 %v5632, %v5733
  %v5735 = vpop.f32.mrf.mxu0
  %v5736 = vadd.f32 %v5636, %v5735
  %v5737 = vpop.f32.mrf.mxu0
  %v5738 = vadd.f32 %v5632, %v5737
  %v5739 = vpop.f32.mrf.mxu0
  %v5740 = vadd.f32 %v5636, %v5739
  %5741 = vmatprep.mubr.bf16.mxu0 %v5599
  %5742 = vmatmul.mubr.bf16.gmra.mxu0 %v5598
  %v5743 = vpop.f32.mrf.mxu0
  %v5744 = vadd.f32 %v5632, %v5743
  %v5745 = vpop.f32.mrf.mxu0
  %v5746 = vadd.f32 %v5636, %v5745
  %v5747 = vpop.f32.mrf.mxu0
  %v5748 = vadd.f32 %v5632, %v5747
  %v5749 = vpop.f32.mrf.mxu0
  %v5750 = vadd.f32 %v5636, %v5749
  %5751 = vmatprep.mubr.bf16.mxu0 %v5602
  %5752 = vmatmul.mubr.bf16.gmra.mxu0 %v5601
  %v5753 = vpop.f32.mrf.mxu0
  %v5754 = vadd.f32 %v5632, %v5753
  %v5755 = vpop.f32.mrf.mxu0
  %v5756 = vadd.f32 %v5636, %v5755
  %v5757 = vpop.f32.mrf.mxu0
  %v5758 = vadd.f32 %v5632, %v5757
  %v5759 = vpop.f32.mrf.mxu0
  %v5760 = vadd.f32 %v5636, %v5759
  %5761 = vmatprep.mubr.bf16.mxu0 %v5605
  %5762 = vmatmul.mubr.bf16.gmra.mxu0 %v5604
  %v5763 = vpop.f32.mrf.mxu0
  %v5764 = vadd.f32 %v5632, %v5763
  %v5765 = vpop.f32.mrf.mxu0
  %v5766 = vadd.f32 %v5636, %v5765
  %v5767 = vpop.f32.mrf.mxu0
  %v5768 = vadd.f32 %v5632, %v5767
  %v5769 = vpop.f32.mrf.mxu0
  %v5770 = vadd.f32 %v5636, %v5769
  %5771 = vmatprep.mubr.bf16.mxu0 %v5608
  %5772 = vmatmul.mubr.bf16.gmra.mxu0 %v5607
  %v5773 = vpop.f32.mrf.mxu0
  %v5774 = vadd.f32 %v5632, %v5773
  %v5775 = vpop.f32.mrf.mxu0
  %v5776 = vadd.f32 %v5636, %v5775
  %v5777 = vpop.f32.mrf.mxu0
  %v5778 = vadd.f32 %v5632, %v5777
  %v5779 = vpop.f32.mrf.mxu0
  %v5780 = vadd.f32 %v5636, %v5779
  %5781 = vmatprep.mubr.bf16.mxu0 %v5611
  %5782 = vmatmul.mubr.bf16.gmra.mxu0 %v5610
  %v5783 = vpop.f32.mrf.mxu0
  %v5784 = vadd.f32 %v5632, %v5783
  %v5785 = vpop.f32.mrf.mxu0
  %v5786 = vadd.f32 %v5636, %v5785
  %v5787 = vpop.f32.mrf.mxu0
  %v5788 = vadd.f32 %v5632, %v5787
  %v5789 = vpop.f32.mrf.mxu0
  %v5790 = vadd.f32 %v5636, %v5789
  %5791 = vmatprep.mubr.bf16.mxu0 %v5614
  %5792 = vmatmul.mubr.bf16.gmra.mxu0 %v5613
  %v5793 = vpop.f32.mrf.mxu0
  %v5794 = vadd.f32 %v5632, %v5793
  %v5795 = vpop.f32.mrf.mxu0
  %v5796 = vadd.f32 %v5636, %v5795
  %v5797 = vpop.f32.mrf.mxu0
  %v5798 = vadd.f32 %v5632, %v5797
  %v5799 = vpop.f32.mrf.mxu0
  %v5800 = vadd.f32 %v5636, %v5799
  %5801 = vmatprep.mubr.bf16.mxu0 %v5617
  %5802 = vmatmul.mubr.bf16.gmra.mxu0 %v5616
  %v5803 = vpop.f32.mrf.mxu0
  %v5804 = vadd.f32 %v5632, %v5803
  %v5805 = vpop.f32.mrf.mxu0
  %v5806 = vadd.f32 %v5636, %v5805
  %v5807 = vpop.f32.mrf.mxu0
  %v5808 = vadd.f32 %v5632, %v5807
  %v5809 = vpop.f32.mrf.mxu0
  %v5810 = vadd.f32 %v5636, %v5809
  %5811 = vmatprep.mubr.bf16.mxu0 %v5620
  %5812 = vmatmul.mubr.bf16.gmra.mxu0 %v5619
  %v5813 = vpop.f32.mrf.mxu0
  %v5814 = vadd.f32 %v5632, %v5813
  %v5815 = vpop.f32.mrf.mxu0
  %v5816 = vadd.f32 %v5636, %v5815
  %v5817 = vpop.f32.mrf.mxu0
  %v5818 = vadd.f32 %v5632, %v5817
  %v5819 = vpop.f32.mrf.mxu0
  %v5820 = vadd.f32 %v5636, %v5819
  %5821 = vmatprep.mubr.bf16.mxu0 %v5623
  %5822 = vmatmul.mubr.bf16.gmra.mxu0 %v5622
  %v5823 = vpop.f32.mrf.mxu0
  %v5824 = vadd.f32 %v5632, %v5823
  %v5825 = vpop.f32.mrf.mxu0
  %v5826 = vadd.f32 %v5636, %v5825
  %v5827 = vpop.f32.mrf.mxu0
  %v5828 = vadd.f32 %v5632, %v5827
  %v5829 = vpop.f32.mrf.mxu0
  %v5830 = vadd.f32 %v5636, %v5829
  %5831 = vmatprep.mubr.bf16.mxu0 %v5626
  %5832 = vmatmul.mubr.bf16.gmra.mxu0 %v5625
  %v5833 = vpop.f32.mrf.mxu0
  %v5834 = vadd.f32 %v5632, %v5833
  %v5835 = vpop.f32.mrf.mxu0
  %v5836 = vadd.f32 %v5636, %v5835
  %v5837 = vpop.f32.mrf.mxu0
  %v5838 = vadd.f32 %v5632, %v5837
  %v5839 = vpop.f32.mrf.mxu0
  %v5840 = vadd.f32 %v5636, %v5839
  %5841 = vdwg.mxu0
  %5842 = vmatprep.subr.bf16.mxu0 %v4677
  %5843 = vmatpush1.bf16.msra.mxu0 %v4676
  %5844 = vmatprep.subr.bf16.mxu0 %v4673
  %5845 = vmatpush1.bf16.msra.mxu0 %v4672
  %5846 = vmatprep.subr.bf16.mxu0 %v4669
  %5847 = vmatpush1.bf16.msra.mxu0 %v4668
  %5848 = vmatprep.subr.bf16.mxu0 %v4665
  %5849 = vmatpush1.bf16.msra.mxu0 %v4664
  %5850 = vmatprep.subr.bf16.mxu0 %v4661
  %5851 = vmatpush1.bf16.msra.mxu0 %v4660
  %5852 = vmatprep.subr.bf16.mxu0 %v4657
  %5853 = vmatpush1.bf16.msra.mxu0 %v4656
  %5854 = vmatprep.subr.bf16.mxu0 %v4653
  %5855 = vmatpush1.bf16.msra.mxu0 %v4652
  %5856 = vmatprep.subr.bf16.mxu0 %v4649
  %5857 = vmatpush1.bf16.msra.mxu0 %v4648
  %5858 = vmatprep.subr.bf16.mxu0 0
  %5859 = vmatpush2.bf16.msra.mxu0 0
  %5860 = vmatprep.subr.bf16.mxu0 0
  %5861 = vmatpush2.bf16.msra.mxu0 0
  %5862 = vmatprep.subr.bf16.mxu0 0
  %5863 = vmatpush2.bf16.msra.mxu0 0
  %5864 = vmatprep.subr.bf16.mxu0 0
  %5865 = vmatpush2.bf16.msra.mxu0 0
  %5866 = vmatprep.subr.bf16.mxu0 0
  %5867 = vmatpush2.bf16.msra.mxu0 0
  %5868 = vmatprep.subr.bf16.mxu0 0
  %5869 = vmatpush2.bf16.msra.mxu0 0
  %5870 = vmatprep.subr.bf16.mxu0 0
  %5871 = vmatpush2.bf16.msra.mxu0 0
  %5872 = vmatprep.subr.bf16.mxu0 0
  %5873 = vmatpush2.bf16.msra.mxu0 0
  %5874 = vmatprep.mubr.bf16.mxu0 0
  %5875 = vmatmul.mubr.bf16.gmra.mxu0 %v5582
  %v5876 = vpop.f32.mrf.mxu0
  %v5877 = vadd.f32 %v5684, %v5876
  %v5878 = vpop.f32.mrf.mxu0
  %v5879 = vadd.f32 %v5686, %v5878
  %v5880 = vpop.f32.mrf.mxu0
  %v5881 = vadd.f32 %v5688, %v5880
  %v5882 = vpop.f32.mrf.mxu0
  %v5883 = vadd.f32 %v5690, %v5882
  %5884 = vmatprep.mubr.bf16.mxu0 0
  %5885 = vmatmul.mubr.bf16.gmra.mxu0 %v5585
  %v5886 = vpop.f32.mrf.mxu0
  %v5887 = vadd.f32 %v5694, %v5886
  %v5888 = vpop.f32.mrf.mxu0
  %v5889 = vadd.f32 %v5696, %v5888
  %v5890 = vpop.f32.mrf.mxu0
  %v5891 = vadd.f32 %v5698, %v5890
  %v5892 = vpop.f32.mrf.mxu0
  %v5893 = vadd.f32 %v5700, %v5892
  %5894 = vmatprep.mubr.bf16.mxu0 0
  %5895 = vmatmul.mubr.bf16.gmra.mxu0 %v5588
  %v5896 = vpop.f32.mrf.mxu0
  %v5897 = vadd.f32 %v5704, %v5896
  %v5898 = vpop.f32.mrf.mxu0
  %v5899 = vadd.f32 %v5706, %v5898
  %v5900 = vpop.f32.mrf.mxu0
  %v5901 = vadd.f32 %v5708, %v5900
  %v5902 = vpop.f32.mrf.mxu0
  %v5903 = vadd.f32 %v5710, %v5902
  %5904 = vmatprep.mubr.bf16.mxu0 0
  %5905 = vmatmul.mubr.bf16.gmra.mxu0 %v5591
  %v5906 = vpop.f32.mrf.mxu0
  %v5907 = vadd.f32 %v5714, %v5906
  %v5908 = vpop.f32.mrf.mxu0
  %v5909 = vadd.f32 %v5716, %v5908
  %v5910 = vpop.f32.mrf.mxu0
  %v5911 = vadd.f32 %v5718, %v5910
  %v5912 = vpop.f32.mrf.mxu0
  %v5913 = vadd.f32 %v5720, %v5912
  %5914 = vmatprep.mubr.bf16.mxu0 0
  %5915 = vmatmul.mubr.bf16.gmra.mxu0 %v5594
  %v5916 = vpop.f32.mrf.mxu0
  %v5917 = vadd.f32 %v5724, %v5916
  %v5918 = vpop.f32.mrf.mxu0
  %v5919 = vadd.f32 %v5726, %v5918
  %v5920 = vpop.f32.mrf.mxu0
  %v5921 = vadd.f32 %v5728, %v5920
  %v5922 = vpop.f32.mrf.mxu0
  %v5923 = vadd.f32 %v5730, %v5922
  %5924 = vmatprep.mubr.bf16.mxu0 0
  %5925 = vmatmul.mubr.bf16.gmra.mxu0 %v5597
  %v5926 = vpop.f32.mrf.mxu0
  %v5927 = vadd.f32 %v5734, %v5926
  %v5928 = vpop.f32.mrf.mxu0
  %v5929 = vadd.f32 %v5736, %v5928
  %v5930 = vpop.f32.mrf.mxu0
  %v5931 = vadd.f32 %v5738, %v5930
  %v5932 = vpop.f32.mrf.mxu0
  %v5933 = vadd.f32 %v5740, %v5932
  %5934 = vmatprep.mubr.bf16.mxu0 0
  %5935 = vmatmul.mubr.bf16.gmra.mxu0 %v5600
  %v5936 = vpop.f32.mrf.mxu0
  %v5937 = vadd.f32 %v5744, %v5936
  %v5938 = vpop.f32.mrf.mxu0
  %v5939 = vadd.f32 %v5746, %v5938
  %v5940 = vpop.f32.mrf.mxu0
  %v5941 = vadd.f32 %v5748, %v5940
  %v5942 = vpop.f32.mrf.mxu0
  %v5943 = vadd.f32 %v5750, %v5942
  %5944 = vmatprep.mubr.bf16.mxu0 0
  %5945 = vmatmul.mubr.bf16.gmra.mxu0 %v5603
  %v5946 = vpop.f32.mrf.mxu0
  %v5947 = vadd.f32 %v5754, %v5946
  %v5948 = vpop.f32.mrf.mxu0
  %v5949 = vadd.f32 %v5756, %v5948
  %v5950 = vpop.f32.mrf.mxu0
  %v5951 = vadd.f32 %v5758, %v5950
  %v5952 = vpop.f32.mrf.mxu0
  %v5953 = vadd.f32 %v5760, %v5952
  %5954 = vmatprep.mubr.bf16.mxu0 0
  %5955 = vmatmul.mubr.bf16.gmra.mxu0 %v5606
  %v5956 = vpop.f32.mrf.mxu0
  %v5957 = vadd.f32 %v5764, %v5956
  %v5958 = vpop.f32.mrf.mxu0
  %v5959 = vadd.f32 %v5766, %v5958
  %v5960 = vpop.f32.mrf.mxu0
  %v5961 = vadd.f32 %v5768, %v5960
  %v5962 = vpop.f32.mrf.mxu0
  %v5963 = vadd.f32 %v5770, %v5962
  %5964 = vmatprep.mubr.bf16.mxu0 0
  %5965 = vmatmul.mubr.bf16.gmra.mxu0 %v5609
  %v5966 = vpop.f32.mrf.mxu0
  %v5967 = vadd.f32 %v5774, %v5966
  %v5968 = vpop.f32.mrf.mxu0
  %v5969 = vadd.f32 %v5776, %v5968
  %v5970 = vpop.f32.mrf.mxu0
  %v5971 = vadd.f32 %v5778, %v5970
  %v5972 = vpop.f32.mrf.mxu0
  %v5973 = vadd.f32 %v5780, %v5972
  %5974 = vmatprep.mubr.bf16.mxu0 0
  %5975 = vmatmul.mubr.bf16.gmra.mxu0 %v5612
  %v5976 = vpop.f32.mrf.mxu0
  %v5977 = vadd.f32 %v5784, %v5976
  %v5978 = vpop.f32.mrf.mxu0
  %v5979 = vadd.f32 %v5786, %v5978
  %v5980 = vpop.f32.mrf.mxu0
  %v5981 = vadd.f32 %v5788, %v5980
  %v5982 = vpop.f32.mrf.mxu0
  %v5983 = vadd.f32 %v5790, %v5982
  %5984 = vmatprep.mubr.bf16.mxu0 0
  %5985 = vmatmul.mubr.bf16.gmra.mxu0 %v5615
  %v5986 = vpop.f32.mrf.mxu0
  %v5987 = vadd.f32 %v5794, %v5986
  %v5988 = vpop.f32.mrf.mxu0
  %v5989 = vadd.f32 %v5796, %v5988
  %v5990 = vpop.f32.mrf.mxu0
  %v5991 = vadd.f32 %v5798, %v5990
  %v5992 = vpop.f32.mrf.mxu0
  %v5993 = vadd.f32 %v5800, %v5992
  %5994 = vmatprep.mubr.bf16.mxu0 0
  %5995 = vmatmul.mubr.bf16.gmra.mxu0 %v5618
  %v5996 = vpop.f32.mrf.mxu0
  %v5997 = vadd.f32 %v5804, %v5996
  %v5998 = vpop.f32.mrf.mxu0
  %v5999 = vadd.f32 %v5806, %v5998
  %v6000 = vpop.f32.mrf.mxu0
  %v6001 = vadd.f32 %v5808, %v6000
  %v6002 = vpop.f32.mrf.mxu0
  %v6003 = vadd.f32 %v5810, %v6002
  %6004 = vmatprep.mubr.bf16.mxu0 0
  %6005 = vmatmul.mubr.bf16.gmra.mxu0 %v5621
  %v6006 = vpop.f32.mrf.mxu0
  %v6007 = vadd.f32 %v5814, %v6006
  %v6008 = vpop.f32.mrf.mxu0
  %v6009 = vadd.f32 %v5816, %v6008
  %v6010 = vpop.f32.mrf.mxu0
  %v6011 = vadd.f32 %v5818, %v6010
  %v6012 = vpop.f32.mrf.mxu0
  %v6013 = vadd.f32 %v5820, %v6012
  %6014 = vmatprep.mubr.bf16.mxu0 0
  %6015 = vmatmul.mubr.bf16.gmra.mxu0 %v5624
  %v6016 = vpop.f32.mrf.mxu0
  %v6017 = vadd.f32 %v5824, %v6016
  %v6018 = vpop.f32.mrf.mxu0
  %v6019 = vadd.f32 %v5826, %v6018
  %v6020 = vpop.f32.mrf.mxu0
  %v6021 = vadd.f32 %v5828, %v6020
  %v6022 = vpop.f32.mrf.mxu0
  %v6023 = vadd.f32 %v5830, %v6022
  %6024 = vmatprep.mubr.bf16.mxu0 0
  %6025 = vmatmul.mubr.bf16.gmra.mxu0 %v5627
  %v6026 = vpop.f32.mrf.mxu0
  %v6027 = vadd.f32 %v5834, %v6026
  %v6028 = vpop.f32.mrf.mxu0
  %v6029 = vadd.f32 %v5836, %v6028
  %v6030 = vpop.f32.mrf.mxu0
  %v6031 = vadd.f32 %v5838, %v6030
  %v6032 = vpop.f32.mrf.mxu0
  %v6033 = vadd.f32 %v5840, %v6032
  %6034 = vdwg.mxu0
  %6035 = vmatprep.subr.bf16.mxu0 %v4615
  %6036 = vmatpush1.bf16.msra.mxu0 %v4614
  %6037 = vmatprep.subr.bf16.mxu0 %v4611
  %6038 = vmatpush1.bf16.msra.mxu0 %v4610
  %6039 = vmatprep.subr.bf16.mxu0 %v4607
  %6040 = vmatpush1.bf16.msra.mxu0 %v4606
  %6041 = vmatprep.subr.bf16.mxu0 %v4603
  %6042 = vmatpush1.bf16.msra.mxu0 %v4602
  %6043 = vmatprep.subr.bf16.mxu0 %v4599
  %6044 = vmatpush1.bf16.msra.mxu0 %v4598
  %6045 = vmatprep.subr.bf16.mxu0 %v4595
  %6046 = vmatpush1.bf16.msra.mxu0 %v4594
  %6047 = vmatprep.subr.bf16.mxu0 %v4591
  %6048 = vmatpush1.bf16.msra.mxu0 %v4590
  %6049 = vmatprep.subr.bf16.mxu0 %v4587
  %6050 = vmatpush1.bf16.msra.mxu0 %v4586
  %6051 = vmatprep.subr.bf16.mxu0 %v4647
  %6052 = vmatpush2.bf16.msra.mxu0 %v4646
  %6053 = vmatprep.subr.bf16.mxu0 %v4643
  %6054 = vmatpush2.bf16.msra.mxu0 %v4642
  %6055 = vmatprep.subr.bf16.mxu0 %v4639
  %6056 = vmatpush2.bf16.msra.mxu0 %v4638
  %6057 = vmatprep.subr.bf16.mxu0 %v4635
  %6058 = vmatpush2.bf16.msra.mxu0 %v4634
  %6059 = vmatprep.subr.bf16.mxu0 %v4631
  %6060 = vmatpush2.bf16.msra.mxu0 %v4630
  %6061 = vmatprep.subr.bf16.mxu0 %v4627
  %6062 = vmatpush2.bf16.msra.mxu0 %v4626
  %6063 = vmatprep.subr.bf16.mxu0 %v4623
  %6064 = vmatpush2.bf16.msra.mxu0 %v4622
  %6065 = vmatprep.subr.bf16.mxu0 %v4619
  %6066 = vmatpush2.bf16.msra.mxu0 %v4618
  %6067 = vmatprep.mubr.bf16.mxu0 %v5581
  %6068 = vmatmul.mubr.bf16.gmra.mxu0 %v5580
  %v6069 = vpop.f32.mrf.mxu0
  %v6070 = vadd.f32 %v5640, %v6069
  %v6071 = vpop.f32.mrf.mxu0
  %v6072 = vadd.f32 %v5644, %v6071
  %v6073 = vpop.f32.mrf.mxu0
  %v6074 = vadd.f32 %v5640, %v6073
  %v6075 = vpop.f32.mrf.mxu0
  %v6076 = vadd.f32 %v5644, %v6075
  %6077 = vmatprep.mubr.bf16.mxu0 %v5584
  %6078 = vmatmul.mubr.bf16.gmra.mxu0 %v5583
  %v6079 = vpop.f32.mrf.mxu0
  %v6080 = vadd.f32 %v5640, %v6079
  %v6081 = vpop.f32.mrf.mxu0
  %v6082 = vadd.f32 %v5644, %v6081
  %v6083 = vpop.f32.mrf.mxu0
  %v6084 = vadd.f32 %v5640, %v6083
  %v6085 = vpop.f32.mrf.mxu0
  %v6086 = vadd.f32 %v5644, %v6085
  %6087 = vmatprep.mubr.bf16.mxu0 %v5587
  %6088 = vmatmul.mubr.bf16.gmra.mxu0 %v5586
  %v6089 = vpop.f32.mrf.mxu0
  %v6090 = vadd.f32 %v5640, %v6089
  %v6091 = vpop.f32.mrf.mxu0
  %v6092 = vadd.f32 %v5644, %v6091
  %v6093 = vpop.f32.mrf.mxu0
  %v6094 = vadd.f32 %v5640, %v6093
  %v6095 = vpop.f32.mrf.mxu0
  %v6096 = vadd.f32 %v5644, %v6095
  %6097 = vmatprep.mubr.bf16.mxu0 %v5590
  %6098 = vmatmul.mubr.bf16.gmra.mxu0 %v5589
  %v6099 = vpop.f32.mrf.mxu0
  %v6100 = vadd.f32 %v5640, %v6099
  %v6101 = vpop.f32.mrf.mxu0
  %v6102 = vadd.f32 %v5644, %v6101
  %v6103 = vpop.f32.mrf.mxu0
  %v6104 = vadd.f32 %v5640, %v6103
  %v6105 = vpop.f32.mrf.mxu0
  %v6106 = vadd.f32 %v5644, %v6105
  %6107 = vmatprep.mubr.bf16.mxu0 %v5593
  %6108 = vmatmul.mubr.bf16.gmra.mxu0 %v5592
  %v6109 = vpop.f32.mrf.mxu0
  %v6110 = vadd.f32 %v5640, %v6109
  %v6111 = vpop.f32.mrf.mxu0
  %v6112 = vadd.f32 %v5644, %v6111
  %v6113 = vpop.f32.mrf.mxu0
  %v6114 = vadd.f32 %v5640, %v6113
  %v6115 = vpop.f32.mrf.mxu0
  %v6116 = vadd.f32 %v5644, %v6115
  %6117 = vmatprep.mubr.bf16.mxu0 %v5596
  %6118 = vmatmul.mubr.bf16.gmra.mxu0 %v5595
  %v6119 = vpop.f32.mrf.mxu0
  %v6120 = vadd.f32 %v5640, %v6119
  %v6121 = vpop.f32.mrf.mxu0
  %v6122 = vadd.f32 %v5644, %v6121
  %v6123 = vpop.f32.mrf.mxu0
  %v6124 = vadd.f32 %v5640, %v6123
  %v6125 = vpop.f32.mrf.mxu0
  %v6126 = vadd.f32 %v5644, %v6125
  %6127 = vmatprep.mubr.bf16.mxu0 %v5599
  %6128 = vmatmul.mubr.bf16.gmra.mxu0 %v5598
  %v6129 = vpop.f32.mrf.mxu0
  %v6130 = vadd.f32 %v5640, %v6129
  %v6131 = vpop.f32.mrf.mxu0
  %v6132 = vadd.f32 %v5644, %v6131
  %v6133 = vpop.f32.mrf.mxu0
  %v6134 = vadd.f32 %v5640, %v6133
  %v6135 = vpop.f32.mrf.mxu0
  %v6136 = vadd.f32 %v5644, %v6135
  %6137 = vmatprep.mubr.bf16.mxu0 %v5602
  %6138 = vmatmul.mubr.bf16.gmra.mxu0 %v5601
  %v6139 = vpop.f32.mrf.mxu0
  %v6140 = vadd.f32 %v5640, %v6139
  %v6141 = vpop.f32.mrf.mxu0
  %v6142 = vadd.f32 %v5644, %v6141
  %v6143 = vpop.f32.mrf.mxu0
  %v6144 = vadd.f32 %v5640, %v6143
  %v6145 = vpop.f32.mrf.mxu0
  %v6146 = vadd.f32 %v5644, %v6145
  %6147 = vmatprep.mubr.bf16.mxu0 %v5605
  %6148 = vmatmul.mubr.bf16.gmra.mxu0 %v5604
  %v6149 = vpop.f32.mrf.mxu0
  %v6150 = vadd.f32 %v5640, %v6149
  %v6151 = vpop.f32.mrf.mxu0
  %v6152 = vadd.f32 %v5644, %v6151
  %v6153 = vpop.f32.mrf.mxu0
  %v6154 = vadd.f32 %v5640, %v6153
  %v6155 = vpop.f32.mrf.mxu0
  %v6156 = vadd.f32 %v5644, %v6155
  %6157 = vmatprep.mubr.bf16.mxu0 %v5608
  %6158 = vmatmul.mubr.bf16.gmra.mxu0 %v5607
  %v6159 = vpop.f32.mrf.mxu0
  %v6160 = vadd.f32 %v5640, %v6159
  %v6161 = vpop.f32.mrf.mxu0
  %v6162 = vadd.f32 %v5644, %v6161
  %v6163 = vpop.f32.mrf.mxu0
  %v6164 = vadd.f32 %v5640, %v6163
  %v6165 = vpop.f32.mrf.mxu0
  %v6166 = vadd.f32 %v5644, %v6165
  %6167 = vmatprep.mubr.bf16.mxu0 %v5611
  %6168 = vmatmul.mubr.bf16.gmra.mxu0 %v5610
  %v6169 = vpop.f32.mrf.mxu0
  %v6170 = vadd.f32 %v5640, %v6169
  %v6171 = vpop.f32.mrf.mxu0
  %v6172 = vadd.f32 %v5644, %v6171
  %v6173 = vpop.f32.mrf.mxu0
  %v6174 = vadd.f32 %v5640, %v6173
  %v6175 = vpop.f32.mrf.mxu0
  %v6176 = vadd.f32 %v5644, %v6175
  %6177 = vmatprep.mubr.bf16.mxu0 %v5614
  %6178 = vmatmul.mubr.bf16.gmra.mxu0 %v5613
  %v6179 = vpop.f32.mrf.mxu0
  %v6180 = vadd.f32 %v5640, %v6179
  %v6181 = vpop.f32.mrf.mxu0
  %v6182 = vadd.f32 %v5644, %v6181
  %v6183 = vpop.f32.mrf.mxu0
  %v6184 = vadd.f32 %v5640, %v6183
  %v6185 = vpop.f32.mrf.mxu0
  %v6186 = vadd.f32 %v5644, %v6185
  %6187 = vmatprep.mubr.bf16.mxu0 %v5617
  %6188 = vmatmul.mubr.bf16.gmra.mxu0 %v5616
  %v6189 = vpop.f32.mrf.mxu0
  %v6190 = vadd.f32 %v5640, %v6189
  %v6191 = vpop.f32.mrf.mxu0
  %v6192 = vadd.f32 %v5644, %v6191
  %v6193 = vpop.f32.mrf.mxu0
  %v6194 = vadd.f32 %v5640, %v6193
  %v6195 = vpop.f32.mrf.mxu0
  %v6196 = vadd.f32 %v5644, %v6195
  %6197 = vmatprep.mubr.bf16.mxu0 %v5620
  %6198 = vmatmul.mubr.bf16.gmra.mxu0 %v5619
  %v6199 = vpop.f32.mrf.mxu0
  %v6200 = vadd.f32 %v5640, %v6199
  %v6201 = vpop.f32.mrf.mxu0
  %v6202 = vadd.f32 %v5644, %v6201
  %v6203 = vpop.f32.mrf.mxu0
  %v6204 = vadd.f32 %v5640, %v6203
  %v6205 = vpop.f32.mrf.mxu0
  %v6206 = vadd.f32 %v5644, %v6205
  %6207 = vmatprep.mubr.bf16.mxu0 %v5623
  %6208 = vmatmul.mubr.bf16.gmra.mxu0 %v5622
  %v6209 = vpop.f32.mrf.mxu0
  %v6210 = vadd.f32 %v5640, %v6209
  %v6211 = vpop.f32.mrf.mxu0
  %v6212 = vadd.f32 %v5644, %v6211
  %v6213 = vpop.f32.mrf.mxu0
  %v6214 = vadd.f32 %v5640, %v6213
  %v6215 = vpop.f32.mrf.mxu0
  %v6216 = vadd.f32 %v5644, %v6215
  %6217 = vmatprep.mubr.bf16.mxu0 %v5626
  %6218 = vmatmul.mubr.bf16.gmra.mxu0 %v5625
  %v6219 = vpop.f32.mrf.mxu0
  %v6220 = vadd.f32 %v5640, %v6219
  %v6221 = vpop.f32.mrf.mxu0
  %v6222 = vadd.f32 %v5644, %v6221
  %v6223 = vpop.f32.mrf.mxu0
  %v6224 = vadd.f32 %v5640, %v6223
  %v6225 = vpop.f32.mrf.mxu0
  %v6226 = vadd.f32 %v5644, %v6225
  %6227 = vdwg.mxu0
  %6228 = vmatprep.subr.bf16.mxu0 %v4679
  %6229 = vmatpush1.bf16.msra.mxu0 %v4678
  %6230 = vmatprep.subr.bf16.mxu0 %v4675
  %6231 = vmatpush1.bf16.msra.mxu0 %v4674
  %6232 = vmatprep.subr.bf16.mxu0 %v4671
  %6233 = vmatpush1.bf16.msra.mxu0 %v4670
  %6234 = vmatprep.subr.bf16.mxu0 %v4667
  %6235 = vmatpush1.bf16.msra.mxu0 %v4666
  %6236 = vmatprep.subr.bf16.mxu0 %v4663
  %6237 = vmatpush1.bf16.msra.mxu0 %v4662
  %6238 = vmatprep.subr.bf16.mxu0 %v4659
  %6239 = vmatpush1.bf16.msra.mxu0 %v4658
  %6240 = vmatprep.subr.bf16.mxu0 %v4655
  %6241 = vmatpush1.bf16.msra.mxu0 %v4654
  %6242 = vmatprep.subr.bf16.mxu0 %v4651
  %6243 = vmatpush1.bf16.msra.mxu0 %v4650
  %6244 = vmatprep.subr.bf16.mxu0 0
  %6245 = vmatpush2.bf16.msra.mxu0 0
  %6246 = vmatprep.subr.bf16.mxu0 0
  %6247 = vmatpush2.bf16.msra.mxu0 0
  %6248 = vmatprep.subr.bf16.mxu0 0
  %6249 = vmatpush2.bf16.msra.mxu0 0
  %6250 = vmatprep.subr.bf16.mxu0 0
  %6251 = vmatpush2.bf16.msra.mxu0 0
  %6252 = vmatprep.subr.bf16.mxu0 0
  %6253 = vmatpush2.bf16.msra.mxu0 0
  %6254 = vmatprep.subr.bf16.mxu0 0
  %6255 = vmatpush2.bf16.msra.mxu0 0
  %6256 = vmatprep.subr.bf16.mxu0 0
  %6257 = vmatpush2.bf16.msra.mxu0 0
  %6258 = vmatprep.subr.bf16.mxu0 0
  %6259 = vmatpush2.bf16.msra.mxu0 0
  %6260 = vmatprep.mubr.bf16.mxu0 0
  %6261 = vmatmul.mubr.bf16.gmra.mxu0 %v5582
  %v6262 = vpop.f32.mrf.mxu0
  %v6263 = vadd.f32 %v6070, %v6262
  %v6264 = vpop.f32.mrf.mxu0
  %v6265 = vadd.f32 %v6072, %v6264
  %v6266 = vpop.f32.mrf.mxu0
  %v6267 = vadd.f32 %v6074, %v6266
  %v6268 = vpop.f32.mrf.mxu0
  %v6269 = vadd.f32 %v6076, %v6268
  %6270 = vmatprep.mubr.bf16.mxu0 0
  %6271 = vmatmul.mubr.bf16.gmra.mxu0 %v5585
  %v6272 = vpop.f32.mrf.mxu0
  %v6273 = vadd.f32 %v6080, %v6272
  %v6274 = vpop.f32.mrf.mxu0
  %v6275 = vadd.f32 %v6082, %v6274
  %v6276 = vpop.f32.mrf.mxu0
  %v6277 = vadd.f32 %v6084, %v6276
  %v6278 = vpop.f32.mrf.mxu0
  %v6279 = vadd.f32 %v6086, %v6278
  %6280 = vmatprep.mubr.bf16.mxu0 0
  %6281 = vmatmul.mubr.bf16.gmra.mxu0 %v5588
  %v6282 = vpop.f32.mrf.mxu0
  %v6283 = vadd.f32 %v6090, %v6282
  %v6284 = vpop.f32.mrf.mxu0
  %v6285 = vadd.f32 %v6092, %v6284
  %v6286 = vpop.f32.mrf.mxu0
  %v6287 = vadd.f32 %v6094, %v6286
  %v6288 = vpop.f32.mrf.mxu0
  %v6289 = vadd.f32 %v6096, %v6288
  %6290 = vmatprep.mubr.bf16.mxu0 0
  %6291 = vmatmul.mubr.bf16.gmra.mxu0 %v5591
  %v6292 = vpop.f32.mrf.mxu0
  %v6293 = vadd.f32 %v6100, %v6292
  %v6294 = vpop.f32.mrf.mxu0
  %v6295 = vadd.f32 %v6102, %v6294
  %v6296 = vpop.f32.mrf.mxu0
  %v6297 = vadd.f32 %v6104, %v6296
  %v6298 = vpop.f32.mrf.mxu0
  %v6299 = vadd.f32 %v6106, %v6298
  %6300 = vmatprep.mubr.bf16.mxu0 0
  %6301 = vmatmul.mubr.bf16.gmra.mxu0 %v5594
  %v6302 = vpop.f32.mrf.mxu0
  %v6303 = vadd.f32 %v6110, %v6302
  %v6304 = vpop.f32.mrf.mxu0
  %v6305 = vadd.f32 %v6112, %v6304
  %v6306 = vpop.f32.mrf.mxu0
  %v6307 = vadd.f32 %v6114, %v6306
  %v6308 = vpop.f32.mrf.mxu0
  %v6309 = vadd.f32 %v6116, %v6308
  %6310 = vmatprep.mubr.bf16.mxu0 0
  %6311 = vmatmul.mubr.bf16.gmra.mxu0 %v5597
  %v6312 = vpop.f32.mrf.mxu0
  %v6313 = vadd.f32 %v6120, %v6312
  %v6314 = vpop.f32.mrf.mxu0
  %v6315 = vadd.f32 %v6122, %v6314
  %v6316 = vpop.f32.mrf.mxu0
  %v6317 = vadd.f32 %v6124, %v6316
  %v6318 = vpop.f32.mrf.mxu0
  %v6319 = vadd.f32 %v6126, %v6318
  %6320 = vmatprep.mubr.bf16.mxu0 0
  %6321 = vmatmul.mubr.bf16.gmra.mxu0 %v5600
  %v6322 = vpop.f32.mrf.mxu0
  %v6323 = vadd.f32 %v6130, %v6322
  %v6324 = vpop.f32.mrf.mxu0
  %v6325 = vadd.f32 %v6132, %v6324
  %v6326 = vpop.f32.mrf.mxu0
  %v6327 = vadd.f32 %v6134, %v6326
  %v6328 = vpop.f32.mrf.mxu0
  %v6329 = vadd.f32 %v6136, %v6328
  %6330 = vmatprep.mubr.bf16.mxu0 0
  %6331 = vmatmul.mubr.bf16.gmra.mxu0 %v5603
  %v6332 = vpop.f32.mrf.mxu0
  %v6333 = vadd.f32 %v6140, %v6332
  %v6334 = vpop.f32.mrf.mxu0
  %v6335 = vadd.f32 %v6142, %v6334
  %v6336 = vpop.f32.mrf.mxu0
  %v6337 = vadd.f32 %v6144, %v6336
  %v6338 = vpop.f32.mrf.mxu0
  %v6339 = vadd.f32 %v6146, %v6338
  %6340 = vmatprep.mubr.bf16.mxu0 0
  %6341 = vmatmul.mubr.bf16.gmra.mxu0 %v5606
  %v6342 = vpop.f32.mrf.mxu0
  %v6343 = vadd.f32 %v6150, %v6342
  %v6344 = vpop.f32.mrf.mxu0
  %v6345 = vadd.f32 %v6152, %v6344
  %v6346 = vpop.f32.mrf.mxu0
  %v6347 = vadd.f32 %v6154, %v6346
  %v6348 = vpop.f32.mrf.mxu0
  %v6349 = vadd.f32 %v6156, %v6348
  %6350 = vmatprep.mubr.bf16.mxu0 0
  %6351 = vmatmul.mubr.bf16.gmra.mxu0 %v5609
  %v6352 = vpop.f32.mrf.mxu0
  %v6353 = vadd.f32 %v6160, %v6352
  %v6354 = vpop.f32.mrf.mxu0
  %v6355 = vadd.f32 %v6162, %v6354
  %v6356 = vpop.f32.mrf.mxu0
  %v6357 = vadd.f32 %v6164, %v6356
  %v6358 = vpop.f32.mrf.mxu0
  %v6359 = vadd.f32 %v6166, %v6358
  %6360 = vmatprep.mubr.bf16.mxu0 0
  %6361 = vmatmul.mubr.bf16.gmra.mxu0 %v5612
  %v6362 = vpop.f32.mrf.mxu0
  %v6363 = vadd.f32 %v6170, %v6362
  %v6364 = vpop.f32.mrf.mxu0
  %v6365 = vadd.f32 %v6172, %v6364
  %v6366 = vpop.f32.mrf.mxu0
  %v6367 = vadd.f32 %v6174, %v6366
  %v6368 = vpop.f32.mrf.mxu0
  %v6369 = vadd.f32 %v6176, %v6368
  %6370 = vmatprep.mubr.bf16.mxu0 0
  %6371 = vmatmul.mubr.bf16.gmra.mxu0 %v5615
  %v6372 = vpop.f32.mrf.mxu0
  %v6373 = vadd.f32 %v6180, %v6372
  %v6374 = vpop.f32.mrf.mxu0
  %v6375 = vadd.f32 %v6182, %v6374
  %v6376 = vpop.f32.mrf.mxu0
  %v6377 = vadd.f32 %v6184, %v6376
  %v6378 = vpop.f32.mrf.mxu0
  %v6379 = vadd.f32 %v6186, %v6378
  %6380 = vmatprep.mubr.bf16.mxu0 0
  %6381 = vmatmul.mubr.bf16.gmra.mxu0 %v5618
  %v6382 = vpop.f32.mrf.mxu0
  %v6383 = vadd.f32 %v6190, %v6382
  %v6384 = vpop.f32.mrf.mxu0
  %v6385 = vadd.f32 %v6192, %v6384
  %v6386 = vpop.f32.mrf.mxu0
  %v6387 = vadd.f32 %v6194, %v6386
  %v6388 = vpop.f32.mrf.mxu0
  %v6389 = vadd.f32 %v6196, %v6388
  %6390 = vmatprep.mubr.bf16.mxu0 0
  %6391 = vmatmul.mubr.bf16.gmra.mxu0 %v5621
  %v6392 = vpop.f32.mrf.mxu0
  %v6393 = vadd.f32 %v6200, %v6392
  %v6394 = vpop.f32.mrf.mxu0
  %v6395 = vadd.f32 %v6202, %v6394
  %v6396 = vpop.f32.mrf.mxu0
  %v6397 = vadd.f32 %v6204, %v6396
  %v6398 = vpop.f32.mrf.mxu0
  %v6399 = vadd.f32 %v6206, %v6398
  %6400 = vmatprep.mubr.bf16.mxu0 0
  %6401 = vmatmul.mubr.bf16.gmra.mxu0 %v5624
  %v6402 = vpop.f32.mrf.mxu0
  %v6403 = vadd.f32 %v6210, %v6402
  %v6404 = vpop.f32.mrf.mxu0
  %v6405 = vadd.f32 %v6212, %v6404
  %v6406 = vpop.f32.mrf.mxu0
  %v6407 = vadd.f32 %v6214, %v6406
  %v6408 = vpop.f32.mrf.mxu0
  %v6409 = vadd.f32 %v6216, %v6408
  %6410 = vmatprep.mubr.bf16.mxu0 0
  %6411 = vmatmul.mubr.bf16.gmra.mxu0 %v5627
  %v6412 = vpop.f32.mrf.mxu0
  %v6413 = vadd.f32 %v6220, %v6412
  %v6414 = vpop.f32.mrf.mxu0
  %v6415 = vadd.f32 %v6222, %v6414
  %v6416 = vpop.f32.mrf.mxu0
  %v6417 = vadd.f32 %v6224, %v6416
  %v6418 = vpop.f32.mrf.mxu0
  %v6419 = vadd.f32 %v6226, %v6418
  %6420 = vdwg.mxu0
  %v6421 = vsub.f32 %v5877, %v4152
  %v6422 = vsub.f32 %v5879, %v4153
  %v6423 = vsub.f32 %v6263, %v4154
  %v6424 = vsub.f32 %v6265, %v4155
  %v6425 = vsub.f32 %v5881, %v4156
  %v6426 = vsub.f32 %v5883, %v4157
  %v6427 = vsub.f32 %v6267, %v4158
  %v6428 = vsub.f32 %v6269, %v4159
  %v6429 = vsub.f32 %v5887, %v4160
  %v6430 = vsub.f32 %v5889, %v4161
  %v6431 = vsub.f32 %v6273, %v4162
  %v6432 = vsub.f32 %v6275, %v4163
  %v6433 = vsub.f32 %v5891, %v4164
  %v6434 = vsub.f32 %v5893, %v4165
  %v6435 = vsub.f32 %v6277, %v4166
  %v6436 = vsub.f32 %v6279, %v4167
  %v6437 = vsub.f32 %v5897, %v4168
  %v6438 = vsub.f32 %v5899, %v4169
  %v6439 = vsub.f32 %v6283, %v4170
  %v6440 = vsub.f32 %v6285, %v4171
  %v6441 = vsub.f32 %v5901, %v4172
  %v6442 = vsub.f32 %v5903, %v4173
  %v6443 = vsub.f32 %v6287, %v4174
  %v6444 = vsub.f32 %v6289, %v4175
  %v6445 = vsub.f32 %v5907, %v4176
  %v6446 = vsub.f32 %v5909, %v4177
  %v6447 = vsub.f32 %v6293, %v4178
  %v6448 = vsub.f32 %v6295, %v4179
  %v6449 = vsub.f32 %v5911, %v4180
  %v6450 = vsub.f32 %v5913, %v4181
  %v6451 = vsub.f32 %v6297, %v4182
  %v6452 = vsub.f32 %v6299, %v4183
  %v6453 = vsub.f32 %v5917, %v4184
  %v6454 = vsub.f32 %v5919, %v4185
  %v6455 = vsub.f32 %v6303, %v4186
  %v6456 = vsub.f32 %v6305, %v4187
  %v6457 = vsub.f32 %v5921, %v4188
  %v6458 = vsub.f32 %v5923, %v4189
  %v6459 = vsub.f32 %v6307, %v4190
  %v6460 = vsub.f32 %v6309, %v4191
  %v6461 = vsub.f32 %v5927, %v4192
  %v6462 = vsub.f32 %v5929, %v4193
  %v6463 = vsub.f32 %v6313, %v4194
  %v6464 = vsub.f32 %v6315, %v4195
  %v6465 = vsub.f32 %v5931, %v4196
  %v6466 = vsub.f32 %v5933, %v4197
  %v6467 = vsub.f32 %v6317, %v4198
  %v6468 = vsub.f32 %v6319, %v4199
  %v6469 = vsub.f32 %v5937, %v4200
  %v6470 = vsub.f32 %v5939, %v4201
  %v6471 = vsub.f32 %v6323, %v4202
  %v6472 = vsub.f32 %v6325, %v4203
  %v6473 = vsub.f32 %v5941, %v4204
  %v6474 = vsub.f32 %v5943, %v4205
  %v6475 = vsub.f32 %v6327, %v4206
  %v6476 = vsub.f32 %v6329, %v4207
  %v6477 = vsub.f32 %v5947, %v4208
  %v6478 = vsub.f32 %v5949, %v4209
  %v6479 = vsub.f32 %v6333, %v4210
  %v6480 = vsub.f32 %v6335, %v4211
  %v6481 = vsub.f32 %v5951, %v4212
  %v6482 = vsub.f32 %v5953, %v4213
  %v6483 = vsub.f32 %v6337, %v4214
  %v6484 = vsub.f32 %v6339, %v4215
  %v6485 = vsub.f32 %v5957, %v4216
  %v6486 = vsub.f32 %v5959, %v4217
  %v6487 = vsub.f32 %v6343, %v4218
  %v6488 = vsub.f32 %v6345, %v4219
  %v6489 = vsub.f32 %v5961, %v4220
  %v6490 = vsub.f32 %v5963, %v4221
  %v6491 = vsub.f32 %v6347, %v4222
  %v6492 = vsub.f32 %v6349, %v4223
  %v6493 = vsub.f32 %v5967, %v4224
  %v6494 = vsub.f32 %v5969, %v4225
  %v6495 = vsub.f32 %v6353, %v4226
  %v6496 = vsub.f32 %v6355, %v4227
  %v6497 = vsub.f32 %v5971, %v4228
  %v6498 = vsub.f32 %v5973, %v4229
  %v6499 = vsub.f32 %v6357, %v4230
  %v6500 = vsub.f32 %v6359, %v4231
  %v6501 = vsub.f32 %v5977, %v4232
  %v6502 = vsub.f32 %v5979, %v4233
  %v6503 = vsub.f32 %v6363, %v4234
  %v6504 = vsub.f32 %v6365, %v4235
  %v6505 = vsub.f32 %v5981, %v4236
  %v6506 = vsub.f32 %v5983, %v4237
  %v6507 = vsub.f32 %v6367, %v4238
  %v6508 = vsub.f32 %v6369, %v4239
  %v6509 = vsub.f32 %v5987, %v4240
  %v6510 = vsub.f32 %v5989, %v4241
  %v6511 = vsub.f32 %v6373, %v4242
  %v6512 = vsub.f32 %v6375, %v4243
  %v6513 = vsub.f32 %v5991, %v4244
  %v6514 = vsub.f32 %v5993, %v4245
  %v6515 = vsub.f32 %v6377, %v4246
  %v6516 = vsub.f32 %v6379, %v4247
  %v6517 = vsub.f32 %v5997, %v4248
  %v6518 = vsub.f32 %v5999, %v4249
  %v6519 = vsub.f32 %v6383, %v4250
  %v6520 = vsub.f32 %v6385, %v4251
  %v6521 = vsub.f32 %v6001, %v4252
  %v6522 = vsub.f32 %v6003, %v4253
  %v6523 = vsub.f32 %v6387, %v4254
  %v6524 = vsub.f32 %v6389, %v4255
  %v6525 = vsub.f32 %v6007, %v4256
  %v6526 = vsub.f32 %v6009, %v4257
  %v6527 = vsub.f32 %v6393, %v4258
  %v6528 = vsub.f32 %v6395, %v4259
  %v6529 = vsub.f32 %v6011, %v4260
  %v6530 = vsub.f32 %v6013, %v4261
  %v6531 = vsub.f32 %v6397, %v4262
  %v6532 = vsub.f32 %v6399, %v4263
  %v6533 = vsub.f32 %v6017, %v4264
  %v6534 = vsub.f32 %v6019, %v4265
  %v6535 = vsub.f32 %v6403, %v4266
  %v6536 = vsub.f32 %v6405, %v4267
  %v6537 = vsub.f32 %v6021, %v4268
  %v6538 = vsub.f32 %v6023, %v4269
  %v6539 = vsub.f32 %v6407, %v4270
  %v6540 = vsub.f32 %v6409, %v4271
  %v6541 = vsub.f32 %v6027, %v4272
  %v6542 = vsub.f32 %v6029, %v4273
  %v6543 = vsub.f32 %v6413, %v4274
  %v6544 = vsub.f32 %v6415, %v4275
  %v6545 = vsub.f32 %v6031, %v4276
  %v6546 = vsub.f32 %v6033, %v4277
  %v6547 = vsub.f32 %v6417, %v4278
  %v6548 = vsub.f32 %v6419, %v4279
  %v6549 = vmul.f32 %v6421, %v6421
  %v6550 = vmul.f32 %v6422, %v6422
  %v6551 = vmul.f32 %v6423, %v6423
  %v6552 = vmul.f32 %v6424, %v6424
  %v6553 = vmul.f32 %v6425, %v6425
  %v6554 = vmul.f32 %v6426, %v6426
  %v6555 = vmul.f32 %v6427, %v6427
  %v6556 = vmul.f32 %v6428, %v6428
  %v6557 = vmul.f32 %v6429, %v6429
  %v6558 = vmul.f32 %v6430, %v6430
  %v6559 = vmul.f32 %v6431, %v6431
  %v6560 = vmul.f32 %v6432, %v6432
  %v6561 = vmul.f32 %v6433, %v6433
  %v6562 = vmul.f32 %v6434, %v6434
  %v6563 = vmul.f32 %v6435, %v6435
  %v6564 = vmul.f32 %v6436, %v6436
  %v6565 = vmul.f32 %v6437, %v6437
  %v6566 = vmul.f32 %v6438, %v6438
  %v6567 = vmul.f32 %v6439, %v6439
  %v6568 = vmul.f32 %v6440, %v6440
  %v6569 = vmul.f32 %v6441, %v6441
  %v6570 = vmul.f32 %v6442, %v6442
  %v6571 = vmul.f32 %v6443, %v6443
  %v6572 = vmul.f32 %v6444, %v6444
  %v6573 = vmul.f32 %v6445, %v6445
  %v6574 = vmul.f32 %v6446, %v6446
  %v6575 = vmul.f32 %v6447, %v6447
  %v6576 = vmul.f32 %v6448, %v6448
  %v6577 = vmul.f32 %v6449, %v6449
  %v6578 = vmul.f32 %v6450, %v6450
  %v6579 = vmul.f32 %v6451, %v6451
  %v6580 = vmul.f32 %v6452, %v6452
  %v6581 = vmul.f32 %v6453, %v6453
  %v6582 = vmul.f32 %v6454, %v6454
  %v6583 = vmul.f32 %v6455, %v6455
  %v6584 = vmul.f32 %v6456, %v6456
  %v6585 = vmul.f32 %v6457, %v6457
  %v6586 = vmul.f32 %v6458, %v6458
  %v6587 = vmul.f32 %v6459, %v6459
  %v6588 = vmul.f32 %v6460, %v6460
  %v6589 = vmul.f32 %v6461, %v6461
  %v6590 = vmul.f32 %v6462, %v6462
  %v6591 = vmul.f32 %v6463, %v6463
  %v6592 = vmul.f32 %v6464, %v6464
  %v6593 = vmul.f32 %v6465, %v6465
  %v6594 = vmul.f32 %v6466, %v6466
  %v6595 = vmul.f32 %v6467, %v6467
  %v6596 = vmul.f32 %v6468, %v6468
  %v6597 = vmul.f32 %v6469, %v6469
  %v6598 = vmul.f32 %v6470, %v6470
  %v6599 = vmul.f32 %v6471, %v6471
  %v6600 = vmul.f32 %v6472, %v6472
  %v6601 = vmul.f32 %v6473, %v6473
  %v6602 = vmul.f32 %v6474, %v6474
  %v6603 = vmul.f32 %v6475, %v6475
  %v6604 = vmul.f32 %v6476, %v6476
  %v6605 = vmul.f32 %v6477, %v6477
  %v6606 = vmul.f32 %v6478, %v6478
  %v6607 = vmul.f32 %v6479, %v6479
  %v6608 = vmul.f32 %v6480, %v6480
  %v6609 = vmul.f32 %v6481, %v6481
  %v6610 = vmul.f32 %v6482, %v6482
  %v6611 = vmul.f32 %v6483, %v6483
  %v6612 = vmul.f32 %v6484, %v6484
  %v6613 = vmul.f32 %v6485, %v6485
  %v6614 = vmul.f32 %v6486, %v6486
  %v6615 = vmul.f32 %v6487, %v6487
  %v6616 = vmul.f32 %v6488, %v6488
  %v6617 = vmul.f32 %v6489, %v6489
  %v6618 = vmul.f32 %v6490, %v6490
  %v6619 = vmul.f32 %v6491, %v6491
  %v6620 = vmul.f32 %v6492, %v6492
  %v6621 = vmul.f32 %v6493, %v6493
  %v6622 = vmul.f32 %v6494, %v6494
  %v6623 = vmul.f32 %v6495, %v6495
  %v6624 = vmul.f32 %v6496, %v6496
  %v6625 = vmul.f32 %v6497, %v6497
  %v6626 = vmul.f32 %v6498, %v6498
  %v6627 = vmul.f32 %v6499, %v6499
  %v6628 = vmul.f32 %v6500, %v6500
  %v6629 = vmul.f32 %v6501, %v6501
  %v6630 = vmul.f32 %v6502, %v6502
  %v6631 = vmul.f32 %v6503, %v6503
  %v6632 = vmul.f32 %v6504, %v6504
  %v6633 = vmul.f32 %v6505, %v6505
  %v6634 = vmul.f32 %v6506, %v6506
  %v6635 = vmul.f32 %v6507, %v6507
  %v6636 = vmul.f32 %v6508, %v6508
  %v6637 = vmul.f32 %v6509, %v6509
  %v6638 = vmul.f32 %v6510, %v6510
  %v6639 = vmul.f32 %v6511, %v6511
  %v6640 = vmul.f32 %v6512, %v6512
  %v6641 = vmul.f32 %v6513, %v6513
  %v6642 = vmul.f32 %v6514, %v6514
  %v6643 = vmul.f32 %v6515, %v6515
  %v6644 = vmul.f32 %v6516, %v6516
  %v6645 = vmul.f32 %v6517, %v6517
  %v6646 = vmul.f32 %v6518, %v6518
  %v6647 = vmul.f32 %v6519, %v6519
  %v6648 = vmul.f32 %v6520, %v6520
  %v6649 = vmul.f32 %v6521, %v6521
  %v6650 = vmul.f32 %v6522, %v6522
  %v6651 = vmul.f32 %v6523, %v6523
  %v6652 = vmul.f32 %v6524, %v6524
  %v6653 = vmul.f32 %v6525, %v6525
  %v6654 = vmul.f32 %v6526, %v6526
  %v6655 = vmul.f32 %v6527, %v6527
  %v6656 = vmul.f32 %v6528, %v6528
  %v6657 = vmul.f32 %v6529, %v6529
  %v6658 = vmul.f32 %v6530, %v6530
  %v6659 = vmul.f32 %v6531, %v6531
  %v6660 = vmul.f32 %v6532, %v6532
  %v6661 = vmul.f32 %v6533, %v6533
  %v6662 = vmul.f32 %v6534, %v6534
  %v6663 = vmul.f32 %v6535, %v6535
  %v6664 = vmul.f32 %v6536, %v6536
  %v6665 = vmul.f32 %v6537, %v6537
  %v6666 = vmul.f32 %v6538, %v6538
  %v6667 = vmul.f32 %v6539, %v6539
  %v6668 = vmul.f32 %v6540, %v6540
  %v6669 = vmul.f32 %v6541, %v6541
  %v6670 = vmul.f32 %v6542, %v6542
  %v6671 = vmul.f32 %v6543, %v6543
  %v6672 = vmul.f32 %v6544, %v6544
  %v6673 = vmul.f32 %v6545, %v6545
  %v6674 = vmul.f32 %v6546, %v6546
  %v6675 = vmul.f32 %v6547, %v6547
  %v6676 = vmul.f32 %v6548, %v6548
  %v6677 = vadd.f32 %v6549, %v6550
  %v6678 = vadd.f32 %v6677, %v6551
  %v6679 = vadd.f32 %v6678, %v6552
  %6680 = vadd.xlane.f32.xlu0 %v6679
  %v6681 = vpop.xlane.xlu0 %6680
  %v6682 = vadd.f32 %v6553, %v6554
  %v6683 = vadd.f32 %v6682, %v6555
  %v6684 = vadd.f32 %v6683, %v6556
  %6685 = vadd.xlane.f32.xlu0 %v6684
  %v6686 = vpop.xlane.xlu0 %6685
  %v6687 = vadd.f32 %v6557, %v6558
  %v6688 = vadd.f32 %v6687, %v6559
  %v6689 = vadd.f32 %v6688, %v6560
  %6690 = vadd.xlane.f32.xlu0 %v6689
  %v6691 = vpop.xlane.xlu0 %6690
  %v6692 = vadd.f32 %v6561, %v6562
  %v6693 = vadd.f32 %v6692, %v6563
  %v6694 = vadd.f32 %v6693, %v6564
  %6695 = vadd.xlane.f32.xlu0 %v6694
  %v6696 = vpop.xlane.xlu0 %6695
  %v6697 = vadd.f32 %v6565, %v6566
  %v6698 = vadd.f32 %v6697, %v6567
  %v6699 = vadd.f32 %v6698, %v6568
  %6700 = vadd.xlane.f32.xlu0 %v6699
  %v6701 = vpop.xlane.xlu0 %6700
  %v6702 = vadd.f32 %v6569, %v6570
  %v6703 = vadd.f32 %v6702, %v6571
  %v6704 = vadd.f32 %v6703, %v6572
  %6705 = vadd.xlane.f32.xlu0 %v6704
  %v6706 = vpop.xlane.xlu0 %6705
  %v6707 = vadd.f32 %v6573, %v6574
  %v6708 = vadd.f32 %v6707, %v6575
  %v6709 = vadd.f32 %v6708, %v6576
  %6710 = vadd.xlane.f32.xlu0 %v6709
  %v6711 = vpop.xlane.xlu0 %6710
  %v6712 = vadd.f32 %v6577, %v6578
  %v6713 = vadd.f32 %v6712, %v6579
  %v6714 = vadd.f32 %v6713, %v6580
  %6715 = vadd.xlane.f32.xlu0 %v6714
  %v6716 = vpop.xlane.xlu0 %6715
  %v6717 = vadd.f32 %v6581, %v6582
  %v6718 = vadd.f32 %v6717, %v6583
  %v6719 = vadd.f32 %v6718, %v6584
  %6720 = vadd.xlane.f32.xlu0 %v6719
  %v6721 = vpop.xlane.xlu0 %6720
  %v6722 = vadd.f32 %v6585, %v6586
  %v6723 = vadd.f32 %v6722, %v6587
  %v6724 = vadd.f32 %v6723, %v6588
  %6725 = vadd.xlane.f32.xlu0 %v6724
  %v6726 = vpop.xlane.xlu0 %6725
  %v6727 = vadd.f32 %v6589, %v6590
  %v6728 = vadd.f32 %v6727, %v6591
  %v6729 = vadd.f32 %v6728, %v6592
  %6730 = vadd.xlane.f32.xlu0 %v6729
  %v6731 = vpop.xlane.xlu0 %6730
  %v6732 = vadd.f32 %v6593, %v6594
  %v6733 = vadd.f32 %v6732, %v6595
  %v6734 = vadd.f32 %v6733, %v6596
  %6735 = vadd.xlane.f32.xlu0 %v6734
  %v6736 = vpop.xlane.xlu0 %6735
  %v6737 = vadd.f32 %v6597, %v6598
  %v6738 = vadd.f32 %v6737, %v6599
  %v6739 = vadd.f32 %v6738, %v6600
  %6740 = vadd.xlane.f32.xlu0 %v6739
  %v6741 = vpop.xlane.xlu0 %6740
  %v6742 = vadd.f32 %v6601, %v6602
  %v6743 = vadd.f32 %v6742, %v6603
  %v6744 = vadd.f32 %v6743, %v6604
  %6745 = vadd.xlane.f32.xlu0 %v6744
  %v6746 = vpop.xlane.xlu0 %6745
  %v6747 = vadd.f32 %v6605, %v6606
  %v6748 = vadd.f32 %v6747, %v6607
  %v6749 = vadd.f32 %v6748, %v6608
  %6750 = vadd.xlane.f32.xlu0 %v6749
  %v6751 = vpop.xlane.xlu0 %6750
  %v6752 = vadd.f32 %v6609, %v6610
  %v6753 = vadd.f32 %v6752, %v6611
  %v6754 = vadd.f32 %v6753, %v6612
  %6755 = vadd.xlane.f32.xlu0 %v6754
  %v6756 = vpop.xlane.xlu0 %6755
  %v6757 = vadd.f32 %v6613, %v6614
  %v6758 = vadd.f32 %v6757, %v6615
  %v6759 = vadd.f32 %v6758, %v6616
  %6760 = vadd.xlane.f32.xlu0 %v6759
  %v6761 = vpop.xlane.xlu0 %6760
  %v6762 = vadd.f32 %v6617, %v6618
  %v6763 = vadd.f32 %v6762, %v6619
  %v6764 = vadd.f32 %v6763, %v6620
  %6765 = vadd.xlane.f32.xlu0 %v6764
  %v6766 = vpop.xlane.xlu0 %6765
  %v6767 = vadd.f32 %v6621, %v6622
  %v6768 = vadd.f32 %v6767, %v6623
  %v6769 = vadd.f32 %v6768, %v6624
  %6770 = vadd.xlane.f32.xlu0 %v6769
  %v6771 = vpop.xlane.xlu0 %6770
  %v6772 = vadd.f32 %v6625, %v6626
  %v6773 = vadd.f32 %v6772, %v6627
  %v6774 = vadd.f32 %v6773, %v6628
  %6775 = vadd.xlane.f32.xlu0 %v6774
  %v6776 = vpop.xlane.xlu0 %6775
  %v6777 = vadd.f32 %v6629, %v6630
  %v6778 = vadd.f32 %v6777, %v6631
  %v6779 = vadd.f32 %v6778, %v6632
  %6780 = vadd.xlane.f32.xlu0 %v6779
  %v6781 = vpop.xlane.xlu0 %6780
  %v6782 = vadd.f32 %v6633, %v6634
  %v6783 = vadd.f32 %v6782, %v6635
  %v6784 = vadd.f32 %v6783, %v6636
  %6785 = vadd.xlane.f32.xlu0 %v6784
  %v6786 = vpop.xlane.xlu0 %6785
  %v6787 = vadd.f32 %v6637, %v6638
  %v6788 = vadd.f32 %v6787, %v6639
  %v6789 = vadd.f32 %v6788, %v6640
  %6790 = vadd.xlane.f32.xlu0 %v6789
  %v6791 = vpop.xlane.xlu0 %6790
  %v6792 = vadd.f32 %v6641, %v6642
  %v6793 = vadd.f32 %v6792, %v6643
  %v6794 = vadd.f32 %v6793, %v6644
  %6795 = vadd.xlane.f32.xlu0 %v6794
  %v6796 = vpop.xlane.xlu0 %6795
  %v6797 = vadd.f32 %v6645, %v6646
  %v6798 = vadd.f32 %v6797, %v6647
  %v6799 = vadd.f32 %v6798, %v6648
  %6800 = vadd.xlane.f32.xlu0 %v6799
  %v6801 = vpop.xlane.xlu0 %6800
  %v6802 = vadd.f32 %v6649, %v6650
  %v6803 = vadd.f32 %v6802, %v6651
  %v6804 = vadd.f32 %v6803, %v6652
  %6805 = vadd.xlane.f32.xlu0 %v6804
  %v6806 = vpop.xlane.xlu0 %6805
  %v6807 = vadd.f32 %v6653, %v6654
  %v6808 = vadd.f32 %v6807, %v6655
  %v6809 = vadd.f32 %v6808, %v6656
  %6810 = vadd.xlane.f32.xlu0 %v6809
  %v6811 = vpop.xlane.xlu0 %6810
  %v6812 = vadd.f32 %v6657, %v6658
  %v6813 = vadd.f32 %v6812, %v6659
  %v6814 = vadd.f32 %v6813, %v6660
  %6815 = vadd.xlane.f32.xlu0 %v6814
  %v6816 = vpop.xlane.xlu0 %6815
  %v6817 = vadd.f32 %v6661, %v6662
  %v6818 = vadd.f32 %v6817, %v6663
  %v6819 = vadd.f32 %v6818, %v6664
  %6820 = vadd.xlane.f32.xlu0 %v6819
  %v6821 = vpop.xlane.xlu0 %6820
  %v6822 = vadd.f32 %v6665, %v6666
  %v6823 = vadd.f32 %v6822, %v6667
  %v6824 = vadd.f32 %v6823, %v6668
  %6825 = vadd.xlane.f32.xlu0 %v6824
  %v6826 = vpop.xlane.xlu0 %6825
  %v6827 = vadd.f32 %v6669, %v6670
  %v6828 = vadd.f32 %v6827, %v6671
  %v6829 = vadd.f32 %v6828, %v6672
  %6830 = vadd.xlane.f32.xlu0 %v6829
  %v6831 = vpop.xlane.xlu0 %6830
  %v6832 = vadd.f32 %v6673, %v6674
  %v6833 = vadd.f32 %v6832, %v6675
  %v6834 = vadd.f32 %v6833, %v6676
  %6835 = vadd.xlane.f32.xlu0 %v6834
  %v6836 = vpop.xlane.xlu0 %6835
  %v6869 = vlaneseq
  %v6870 = vshrl.u32 %v6869, 7
  %v6871 = vsub.s32 %v67, %v6870
  %v6872 = vrot.slane %v6681, %v6871
  %v6873 = vlaneseq
  %v6874 = vshrl.u32 %v6873, 7
  %v6875 = vsub.s32 %v67, %v6874
  %v6876 = vrot.slane %v6686, %v6875
  %v6877 = vlaneseq
  %v6878 = vshrl.u32 %v6877, 7
  %v6879 = vsub.s32 %v67, %v6878
  %v6880 = vrot.slane %v6691, %v6879
  %v6881 = vlaneseq
  %v6882 = vshrl.u32 %v6881, 7
  %v6883 = vsub.s32 %v67, %v6882
  %v6884 = vrot.slane %v6696, %v6883
  %v6885 = vlaneseq
  %v6886 = vshrl.u32 %v6885, 7
  %v6887 = vsub.s32 %v67, %v6886
  %v6888 = vrot.slane %v6701, %v6887
  %v6889 = vlaneseq
  %v6890 = vshrl.u32 %v6889, 7
  %v6891 = vsub.s32 %v67, %v6890
  %v6892 = vrot.slane %v6706, %v6891
  %v6893 = vlaneseq
  %v6894 = vshrl.u32 %v6893, 7
  %v6895 = vsub.s32 %v67, %v6894
  %v6896 = vrot.slane %v6711, %v6895
  %v6897 = vlaneseq
  %v6898 = vshrl.u32 %v6897, 7
  %v6899 = vsub.s32 %v67, %v6898
  %v6900 = vrot.slane %v6716, %v6899
  %v6901 = vlaneseq
  %v6902 = vshrl.u32 %v6901, 7
  %v6903 = vsub.s32 %v67, %v6902
  %v6904 = vrot.slane %v6721, %v6903
  %v6905 = vlaneseq
  %v6906 = vshrl.u32 %v6905, 7
  %v6907 = vsub.s32 %v67, %v6906
  %v6908 = vrot.slane %v6726, %v6907
  %v6909 = vlaneseq
  %v6910 = vshrl.u32 %v6909, 7
  %v6911 = vsub.s32 %v67, %v6910
  %v6912 = vrot.slane %v6731, %v6911
  %v6913 = vlaneseq
  %v6914 = vshrl.u32 %v6913, 7
  %v6915 = vsub.s32 %v67, %v6914
  %v6916 = vrot.slane %v6736, %v6915
  %v6917 = vlaneseq
  %v6918 = vshrl.u32 %v6917, 7
  %v6919 = vsub.s32 %v67, %v6918
  %v6920 = vrot.slane %v6741, %v6919
  %v6921 = vlaneseq
  %v6922 = vshrl.u32 %v6921, 7
  %v6923 = vsub.s32 %v67, %v6922
  %v6924 = vrot.slane %v6746, %v6923
  %v6925 = vlaneseq
  %v6926 = vshrl.u32 %v6925, 7
  %v6927 = vsub.s32 %v67, %v6926
  %v6928 = vrot.slane %v6751, %v6927
  %v6929 = vlaneseq
  %v6930 = vshrl.u32 %v6929, 7
  %v6931 = vsub.s32 %v67, %v6930
  %v6932 = vrot.slane %v6756, %v6931
  %v6933 = vlaneseq
  %v6934 = vshrl.u32 %v6933, 7
  %v6935 = vsub.s32 %v67, %v6934
  %v6936 = vrot.slane %v6761, %v6935
  %v6937 = vlaneseq
  %v6938 = vshrl.u32 %v6937, 7
  %v6939 = vsub.s32 %v67, %v6938
  %v6940 = vrot.slane %v6766, %v6939
  %v6941 = vlaneseq
  %v6942 = vshrl.u32 %v6941, 7
  %v6943 = vsub.s32 %v67, %v6942
  %v6944 = vrot.slane %v6771, %v6943
  %v6945 = vlaneseq
  %v6946 = vshrl.u32 %v6945, 7
  %v6947 = vsub.s32 %v67, %v6946
  %v6948 = vrot.slane %v6776, %v6947
  %v6949 = vlaneseq
  %v6950 = vshrl.u32 %v6949, 7
  %v6951 = vsub.s32 %v67, %v6950
  %v6952 = vrot.slane %v6781, %v6951
  %v6953 = vlaneseq
  %v6954 = vshrl.u32 %v6953, 7
  %v6955 = vsub.s32 %v67, %v6954
  %v6956 = vrot.slane %v6786, %v6955
  %v6957 = vlaneseq
  %v6958 = vshrl.u32 %v6957, 7
  %v6959 = vsub.s32 %v67, %v6958
  %v6960 = vrot.slane %v6791, %v6959
  %v6961 = vlaneseq
  %v6962 = vshrl.u32 %v6961, 7
  %v6963 = vsub.s32 %v67, %v6962
  %v6964 = vrot.slane %v6796, %v6963
  %v6965 = vlaneseq
  %v6966 = vshrl.u32 %v6965, 7
  %v6967 = vsub.s32 %v67, %v6966
  %v6968 = vrot.slane %v6801, %v6967
  %v6969 = vlaneseq
  %v6970 = vshrl.u32 %v6969, 7
  %v6971 = vsub.s32 %v67, %v6970
  %v6972 = vrot.slane %v6806, %v6971
  %v6973 = vlaneseq
  %v6974 = vshrl.u32 %v6973, 7
  %v6975 = vsub.s32 %v67, %v6974
  %v6976 = vrot.slane %v6811, %v6975
  %v6977 = vlaneseq
  %v6978 = vshrl.u32 %v6977, 7
  %v6979 = vsub.s32 %v67, %v6978
  %v6980 = vrot.slane %v6816, %v6979
  %v6981 = vlaneseq
  %v6982 = vshrl.u32 %v6981, 7
  %v6983 = vsub.s32 %v67, %v6982
  %v6984 = vrot.slane %v6821, %v6983
  %v6985 = vlaneseq
  %v6986 = vshrl.u32 %v6985, 7
  %v6987 = vsub.s32 %v67, %v6986
  %v6988 = vrot.slane %v6826, %v6987
  %v6989 = vlaneseq
  %v6990 = vshrl.u32 %v6989, 7
  %v6991 = vsub.s32 %v67, %v6990
  %v6992 = vrot.slane %v6831, %v6991
  %v6993 = vlaneseq
  %v6994 = vshrl.u32 %v6993, 7
  %v6995 = vsub.s32 %v67, %v6994
  %v6996 = vrot.slane %v6836, %v6995
  %vm6997 = vcmask 1041409
  %v6998 = vsel %vm6997, %v6876, %v6872
  %vm6999 = vcmask 1042434
  %v7000 = vsel %vm6999, %v6880, %v6998
  %vm7001 = vcmask 1043459
  %v7002 = vsel %vm7001, %v6884, %v7000
  %vm7003 = vcmask 1044484
  %v7004 = vsel %vm7003, %v6888, %v7002
  %vm7005 = vcmask 1045509
  %v7006 = vsel %vm7005, %v6892, %v7004
  %vm7007 = vcmask 1046534
  %v7008 = vsel %vm7007, %v6896, %v7006
  %vm7009 = vcmask 1047559
  %v7010 = vsel %vm7009, %v6900, %v7008
  %v7011 = vsel %vm6997, %v6908, %v6904
  %v7012 = vsel %vm6999, %v6912, %v7011
  %v7013 = vsel %vm7001, %v6916, %v7012
  %v7014 = vsel %vm7003, %v6920, %v7013
  %v7015 = vsel %vm7005, %v6924, %v7014
  %v7016 = vsel %vm7007, %v6928, %v7015
  %v7017 = vsel %vm7009, %v6932, %v7016
  %v7018 = vsel %vm6997, %v6940, %v6936
  %v7019 = vsel %vm6999, %v6944, %v7018
  %v7020 = vsel %vm7001, %v6948, %v7019
  %v7021 = vsel %vm7003, %v6952, %v7020
  %v7022 = vsel %vm7005, %v6956, %v7021
  %v7023 = vsel %vm7007, %v6960, %v7022
  %v7024 = vsel %vm7009, %v6964, %v7023
  %v7025 = vsel %vm6997, %v6972, %v6968
  %v7026 = vsel %vm6999, %v6976, %v7025
  %v7027 = vsel %vm7001, %v6980, %v7026
  %v7028 = vsel %vm7003, %v6984, %v7027
  %v7029 = vsel %vm7005, %v6988, %v7028
  %v7030 = vsel %vm7007, %v6992, %v7029
  %v7031 = vsel %vm7009, %v6996, %v7030
  %vm7036 = vcmask 64512
  %v7037 = vsel %vm7036, %v7010, 0.0
  %7038 = vadd.xlane.f32.xlu0 %v7037
  %v7039 = vpop.xlane.xlu0 %7038
  %v7040 = vsel %vm7036, %v7017, 0.0
  %7041 = vadd.xlane.f32.xlu0 %v7040
  %v7042 = vpop.xlane.xlu0 %7041
  %v7043 = vsel %vm7036, %v7024, 0.0
  %7044 = vadd.xlane.f32.xlu0 %v7043
  %v7045 = vpop.xlane.xlu0 %7044
  %v7046 = vsel %vm7036, %v7031, 0.0
  %7047 = vadd.xlane.f32.xlu0 %v7046
  %v7048 = vpop.xlane.xlu0 %7047
  %v7049 = vrot.slane %v5484, 4
  %v7050 = vadd.f32 %v5484, %v7049
  %v7051 = vrot.slane %v7050, 2
  %v7052 = vadd.f32 %v7050, %v7051
  %v7053 = vrot.slane %v7052, 1
  %v7054 = vadd.f32 %v7052, %v7053
  %v7055 = vrot.slane %v5485, 4
  %v7056 = vadd.f32 %v5485, %v7055
  %v7057 = vrot.slane %v7056, 2
  %v7058 = vadd.f32 %v7056, %v7057
  %v7059 = vrot.slane %v7058, 1
  %v7060 = vadd.f32 %v7058, %v7059
  %v7061 = vrot.slane %v5486, 4
  %v7062 = vadd.f32 %v5486, %v7061
  %v7063 = vrot.slane %v7062, 2
  %v7064 = vadd.f32 %v7062, %v7063
  %v7065 = vrot.slane %v7064, 1
  %v7066 = vadd.f32 %v7064, %v7065
  %v7067 = vrot.slane %v5487, 4
  %v7068 = vadd.f32 %v5487, %v7067
  %v7069 = vrot.slane %v7068, 2
  %v7070 = vadd.f32 %v7068, %v7069
  %v7071 = vrot.slane %v7070, 1
  %v7072 = vadd.f32 %v7070, %v7071
  %v7073 = vrot.slane %v5488, 4
  %v7074 = vadd.f32 %v5488, %v7073
  %v7075 = vrot.slane %v7074, 2
  %v7076 = vadd.f32 %v7074, %v7075
  %v7077 = vrot.slane %v7076, 1
  %v7078 = vadd.f32 %v7076, %v7077
  %v7079 = vrot.slane %v5489, 4
  %v7080 = vadd.f32 %v5489, %v7079
  %v7081 = vrot.slane %v7080, 2
  %v7082 = vadd.f32 %v7080, %v7081
  %v7083 = vrot.slane %v7082, 1
  %v7084 = vadd.f32 %v7082, %v7083
  %v7085 = vrot.slane %v5490, 4
  %v7086 = vadd.f32 %v5490, %v7085
  %v7087 = vrot.slane %v7086, 2
  %v7088 = vadd.f32 %v7086, %v7087
  %v7089 = vrot.slane %v7088, 1
  %v7090 = vadd.f32 %v7088, %v7089
  %v7091 = vrot.slane %v5491, 4
  %v7092 = vadd.f32 %v5491, %v7091
  %v7093 = vrot.slane %v7092, 2
  %v7094 = vadd.f32 %v7092, %v7093
  %v7095 = vrot.slane %v7094, 1
  %v7096 = vadd.f32 %v7094, %v7095
  %v7097 = vrot.slane %v5492, 4
  %v7098 = vadd.f32 %v5492, %v7097
  %v7099 = vrot.slane %v7098, 2
  %v7100 = vadd.f32 %v7098, %v7099
  %v7101 = vrot.slane %v7100, 1
  %v7102 = vadd.f32 %v7100, %v7101
  %v7103 = vrot.slane %v5493, 4
  %v7104 = vadd.f32 %v5493, %v7103
  %v7105 = vrot.slane %v7104, 2
  %v7106 = vadd.f32 %v7104, %v7105
  %v7107 = vrot.slane %v7106, 1
  %v7108 = vadd.f32 %v7106, %v7107
  %v7109 = vrot.slane %v5494, 4
  %v7110 = vadd.f32 %v5494, %v7109
  %v7111 = vrot.slane %v7110, 2
  %v7112 = vadd.f32 %v7110, %v7111
  %v7113 = vrot.slane %v7112, 1
  %v7114 = vadd.f32 %v7112, %v7113
  %v7115 = vrot.slane %v5495, 4
  %v7116 = vadd.f32 %v5495, %v7115
  %v7117 = vrot.slane %v7116, 2
  %v7118 = vadd.f32 %v7116, %v7117
  %v7119 = vrot.slane %v7118, 1
  %v7120 = vadd.f32 %v7118, %v7119
  %v7121 = vrot.slane %v5496, 4
  %v7122 = vadd.f32 %v5496, %v7121
  %v7123 = vrot.slane %v7122, 2
  %v7124 = vadd.f32 %v7122, %v7123
  %v7125 = vrot.slane %v7124, 1
  %v7126 = vadd.f32 %v7124, %v7125
  %v7127 = vrot.slane %v5497, 4
  %v7128 = vadd.f32 %v5497, %v7127
  %v7129 = vrot.slane %v7128, 2
  %v7130 = vadd.f32 %v7128, %v7129
  %v7131 = vrot.slane %v7130, 1
  %v7132 = vadd.f32 %v7130, %v7131
  %v7133 = vrot.slane %v5498, 4
  %v7134 = vadd.f32 %v5498, %v7133
  %v7135 = vrot.slane %v7134, 2
  %v7136 = vadd.f32 %v7134, %v7135
  %v7137 = vrot.slane %v7136, 1
  %v7138 = vadd.f32 %v7136, %v7137
  %v7139 = vrot.slane %v5499, 4
  %v7140 = vadd.f32 %v5499, %v7139
  %v7141 = vrot.slane %v7140, 2
  %v7142 = vadd.f32 %v7140, %v7141
  %v7143 = vrot.slane %v7142, 1
  %v7144 = vadd.f32 %v7142, %v7143
  %v7145 = vrot.slane %v5500, 4
  %v7146 = vadd.f32 %v5500, %v7145
  %v7147 = vrot.slane %v7146, 2
  %v7148 = vadd.f32 %v7146, %v7147
  %v7149 = vrot.slane %v7148, 1
  %v7150 = vadd.f32 %v7148, %v7149
  %v7151 = vrot.slane %v5501, 4
  %v7152 = vadd.f32 %v5501, %v7151
  %v7153 = vrot.slane %v7152, 2
  %v7154 = vadd.f32 %v7152, %v7153
  %v7155 = vrot.slane %v7154, 1
  %v7156 = vadd.f32 %v7154, %v7155
  %v7157 = vrot.slane %v5502, 4
  %v7158 = vadd.f32 %v5502, %v7157
  %v7159 = vrot.slane %v7158, 2
  %v7160 = vadd.f32 %v7158, %v7159
  %v7161 = vrot.slane %v7160, 1
  %v7162 = vadd.f32 %v7160, %v7161
  %v7163 = vrot.slane %v5503, 4
  %v7164 = vadd.f32 %v5503, %v7163
  %v7165 = vrot.slane %v7164, 2
  %v7166 = vadd.f32 %v7164, %v7165
  %v7167 = vrot.slane %v7166, 1
  %v7168 = vadd.f32 %v7166, %v7167
  %v7169 = vrot.slane %v5504, 4
  %v7170 = vadd.f32 %v5504, %v7169
  %v7171 = vrot.slane %v7170, 2
  %v7172 = vadd.f32 %v7170, %v7171
  %v7173 = vrot.slane %v7172, 1
  %v7174 = vadd.f32 %v7172, %v7173
  %v7175 = vrot.slane %v5505, 4
  %v7176 = vadd.f32 %v5505, %v7175
  %v7177 = vrot.slane %v7176, 2
  %v7178 = vadd.f32 %v7176, %v7177
  %v7179 = vrot.slane %v7178, 1
  %v7180 = vadd.f32 %v7178, %v7179
  %v7181 = vrot.slane %v5506, 4
  %v7182 = vadd.f32 %v5506, %v7181
  %v7183 = vrot.slane %v7182, 2
  %v7184 = vadd.f32 %v7182, %v7183
  %v7185 = vrot.slane %v7184, 1
  %v7186 = vadd.f32 %v7184, %v7185
  %v7187 = vrot.slane %v5507, 4
  %v7188 = vadd.f32 %v5507, %v7187
  %v7189 = vrot.slane %v7188, 2
  %v7190 = vadd.f32 %v7188, %v7189
  %v7191 = vrot.slane %v7190, 1
  %v7192 = vadd.f32 %v7190, %v7191
  %v7193 = vrot.slane %v5508, 4
  %v7194 = vadd.f32 %v5508, %v7193
  %v7195 = vrot.slane %v7194, 2
  %v7196 = vadd.f32 %v7194, %v7195
  %v7197 = vrot.slane %v7196, 1
  %v7198 = vadd.f32 %v7196, %v7197
  %v7199 = vrot.slane %v5509, 4
  %v7200 = vadd.f32 %v5509, %v7199
  %v7201 = vrot.slane %v7200, 2
  %v7202 = vadd.f32 %v7200, %v7201
  %v7203 = vrot.slane %v7202, 1
  %v7204 = vadd.f32 %v7202, %v7203
  %v7205 = vrot.slane %v5510, 4
  %v7206 = vadd.f32 %v5510, %v7205
  %v7207 = vrot.slane %v7206, 2
  %v7208 = vadd.f32 %v7206, %v7207
  %v7209 = vrot.slane %v7208, 1
  %v7210 = vadd.f32 %v7208, %v7209
  %v7211 = vrot.slane %v5511, 4
  %v7212 = vadd.f32 %v5511, %v7211
  %v7213 = vrot.slane %v7212, 2
  %v7214 = vadd.f32 %v7212, %v7213
  %v7215 = vrot.slane %v7214, 1
  %v7216 = vadd.f32 %v7214, %v7215
  %v7217 = vrot.slane %v5512, 4
  %v7218 = vadd.f32 %v5512, %v7217
  %v7219 = vrot.slane %v7218, 2
  %v7220 = vadd.f32 %v7218, %v7219
  %v7221 = vrot.slane %v7220, 1
  %v7222 = vadd.f32 %v7220, %v7221
  %v7223 = vrot.slane %v5513, 4
  %v7224 = vadd.f32 %v5513, %v7223
  %v7225 = vrot.slane %v7224, 2
  %v7226 = vadd.f32 %v7224, %v7225
  %v7227 = vrot.slane %v7226, 1
  %v7228 = vadd.f32 %v7226, %v7227
  %v7229 = vrot.slane %v5514, 4
  %v7230 = vadd.f32 %v5514, %v7229
  %v7231 = vrot.slane %v7230, 2
  %v7232 = vadd.f32 %v7230, %v7231
  %v7233 = vrot.slane %v7232, 1
  %v7234 = vadd.f32 %v7232, %v7233
  %v7235 = vrot.slane %v5515, 4
  %v7236 = vadd.f32 %v5515, %v7235
  %v7237 = vrot.slane %v7236, 2
  %v7238 = vadd.f32 %v7236, %v7237
  %v7239 = vrot.slane %v7238, 1
  %v7240 = vadd.f32 %v7238, %v7239
  %v7241 = vrot.slane %v5516, 4
  %v7242 = vadd.f32 %v5516, %v7241
  %v7243 = vrot.slane %v7242, 2
  %v7244 = vadd.f32 %v7242, %v7243
  %v7245 = vrot.slane %v7244, 1
  %v7246 = vadd.f32 %v7244, %v7245
  %v7247 = vrot.slane %v5517, 4
  %v7248 = vadd.f32 %v5517, %v7247
  %v7249 = vrot.slane %v7248, 2
  %v7250 = vadd.f32 %v7248, %v7249
  %v7251 = vrot.slane %v7250, 1
  %v7252 = vadd.f32 %v7250, %v7251
  %v7253 = vrot.slane %v5518, 4
  %v7254 = vadd.f32 %v5518, %v7253
  %v7255 = vrot.slane %v7254, 2
  %v7256 = vadd.f32 %v7254, %v7255
  %v7257 = vrot.slane %v7256, 1
  %v7258 = vadd.f32 %v7256, %v7257
  %v7259 = vrot.slane %v5519, 4
  %v7260 = vadd.f32 %v5519, %v7259
  %v7261 = vrot.slane %v7260, 2
  %v7262 = vadd.f32 %v7260, %v7261
  %v7263 = vrot.slane %v7262, 1
  %v7264 = vadd.f32 %v7262, %v7263
  %v7265 = vrot.slane %v5520, 4
  %v7266 = vadd.f32 %v5520, %v7265
  %v7267 = vrot.slane %v7266, 2
  %v7268 = vadd.f32 %v7266, %v7267
  %v7269 = vrot.slane %v7268, 1
  %v7270 = vadd.f32 %v7268, %v7269
  %v7271 = vrot.slane %v5521, 4
  %v7272 = vadd.f32 %v5521, %v7271
  %v7273 = vrot.slane %v7272, 2
  %v7274 = vadd.f32 %v7272, %v7273
  %v7275 = vrot.slane %v7274, 1
  %v7276 = vadd.f32 %v7274, %v7275
  %v7277 = vrot.slane %v5522, 4
  %v7278 = vadd.f32 %v5522, %v7277
  %v7279 = vrot.slane %v7278, 2
  %v7280 = vadd.f32 %v7278, %v7279
  %v7281 = vrot.slane %v7280, 1
  %v7282 = vadd.f32 %v7280, %v7281
  %v7283 = vrot.slane %v5523, 4
  %v7284 = vadd.f32 %v5523, %v7283
  %v7285 = vrot.slane %v7284, 2
  %v7286 = vadd.f32 %v7284, %v7285
  %v7287 = vrot.slane %v7286, 1
  %v7288 = vadd.f32 %v7286, %v7287
  %v7289 = vrot.slane %v5524, 4
  %v7290 = vadd.f32 %v5524, %v7289
  %v7291 = vrot.slane %v7290, 2
  %v7292 = vadd.f32 %v7290, %v7291
  %v7293 = vrot.slane %v7292, 1
  %v7294 = vadd.f32 %v7292, %v7293
  %v7295 = vrot.slane %v5525, 4
  %v7296 = vadd.f32 %v5525, %v7295
  %v7297 = vrot.slane %v7296, 2
  %v7298 = vadd.f32 %v7296, %v7297
  %v7299 = vrot.slane %v7298, 1
  %v7300 = vadd.f32 %v7298, %v7299
  %v7301 = vrot.slane %v5526, 4
  %v7302 = vadd.f32 %v5526, %v7301
  %v7303 = vrot.slane %v7302, 2
  %v7304 = vadd.f32 %v7302, %v7303
  %v7305 = vrot.slane %v7304, 1
  %v7306 = vadd.f32 %v7304, %v7305
  %v7307 = vrot.slane %v5527, 4
  %v7308 = vadd.f32 %v5527, %v7307
  %v7309 = vrot.slane %v7308, 2
  %v7310 = vadd.f32 %v7308, %v7309
  %v7311 = vrot.slane %v7310, 1
  %v7312 = vadd.f32 %v7310, %v7311
  %v7313 = vrot.slane %v5528, 4
  %v7314 = vadd.f32 %v5528, %v7313
  %v7315 = vrot.slane %v7314, 2
  %v7316 = vadd.f32 %v7314, %v7315
  %v7317 = vrot.slane %v7316, 1
  %v7318 = vadd.f32 %v7316, %v7317
  %v7319 = vrot.slane %v5529, 4
  %v7320 = vadd.f32 %v5529, %v7319
  %v7321 = vrot.slane %v7320, 2
  %v7322 = vadd.f32 %v7320, %v7321
  %v7323 = vrot.slane %v7322, 1
  %v7324 = vadd.f32 %v7322, %v7323
  %v7325 = vrot.slane %v5530, 4
  %v7326 = vadd.f32 %v5530, %v7325
  %v7327 = vrot.slane %v7326, 2
  %v7328 = vadd.f32 %v7326, %v7327
  %v7329 = vrot.slane %v7328, 1
  %v7330 = vadd.f32 %v7328, %v7329
  %v7331 = vrot.slane %v5531, 4
  %v7332 = vadd.f32 %v5531, %v7331
  %v7333 = vrot.slane %v7332, 2
  %v7334 = vadd.f32 %v7332, %v7333
  %v7335 = vrot.slane %v7334, 1
  %v7336 = vadd.f32 %v7334, %v7335
  %v7337 = vrot.slane %v5532, 4
  %v7338 = vadd.f32 %v5532, %v7337
  %v7339 = vrot.slane %v7338, 2
  %v7340 = vadd.f32 %v7338, %v7339
  %v7341 = vrot.slane %v7340, 1
  %v7342 = vadd.f32 %v7340, %v7341
  %v7343 = vrot.slane %v5533, 4
  %v7344 = vadd.f32 %v5533, %v7343
  %v7345 = vrot.slane %v7344, 2
  %v7346 = vadd.f32 %v7344, %v7345
  %v7347 = vrot.slane %v7346, 1
  %v7348 = vadd.f32 %v7346, %v7347
  %v7349 = vrot.slane %v5534, 4
  %v7350 = vadd.f32 %v5534, %v7349
  %v7351 = vrot.slane %v7350, 2
  %v7352 = vadd.f32 %v7350, %v7351
  %v7353 = vrot.slane %v7352, 1
  %v7354 = vadd.f32 %v7352, %v7353
  %v7355 = vrot.slane %v5535, 4
  %v7356 = vadd.f32 %v5535, %v7355
  %v7357 = vrot.slane %v7356, 2
  %v7358 = vadd.f32 %v7356, %v7357
  %v7359 = vrot.slane %v7358, 1
  %v7360 = vadd.f32 %v7358, %v7359
  %v7361 = vrot.slane %v5536, 4
  %v7362 = vadd.f32 %v5536, %v7361
  %v7363 = vrot.slane %v7362, 2
  %v7364 = vadd.f32 %v7362, %v7363
  %v7365 = vrot.slane %v7364, 1
  %v7366 = vadd.f32 %v7364, %v7365
  %v7367 = vrot.slane %v5537, 4
  %v7368 = vadd.f32 %v5537, %v7367
  %v7369 = vrot.slane %v7368, 2
  %v7370 = vadd.f32 %v7368, %v7369
  %v7371 = vrot.slane %v7370, 1
  %v7372 = vadd.f32 %v7370, %v7371
  %v7373 = vrot.slane %v5538, 4
  %v7374 = vadd.f32 %v5538, %v7373
  %v7375 = vrot.slane %v7374, 2
  %v7376 = vadd.f32 %v7374, %v7375
  %v7377 = vrot.slane %v7376, 1
  %v7378 = vadd.f32 %v7376, %v7377
  %v7379 = vrot.slane %v5539, 4
  %v7380 = vadd.f32 %v5539, %v7379
  %v7381 = vrot.slane %v7380, 2
  %v7382 = vadd.f32 %v7380, %v7381
  %v7383 = vrot.slane %v7382, 1
  %v7384 = vadd.f32 %v7382, %v7383
  %v7385 = vrot.slane %v5540, 4
  %v7386 = vadd.f32 %v5540, %v7385
  %v7387 = vrot.slane %v7386, 2
  %v7388 = vadd.f32 %v7386, %v7387
  %v7389 = vrot.slane %v7388, 1
  %v7390 = vadd.f32 %v7388, %v7389
  %v7391 = vrot.slane %v5541, 4
  %v7392 = vadd.f32 %v5541, %v7391
  %v7393 = vrot.slane %v7392, 2
  %v7394 = vadd.f32 %v7392, %v7393
  %v7395 = vrot.slane %v7394, 1
  %v7396 = vadd.f32 %v7394, %v7395
  %v7397 = vrot.slane %v5542, 4
  %v7398 = vadd.f32 %v5542, %v7397
  %v7399 = vrot.slane %v7398, 2
  %v7400 = vadd.f32 %v7398, %v7399
  %v7401 = vrot.slane %v7400, 1
  %v7402 = vadd.f32 %v7400, %v7401
  %v7403 = vrot.slane %v5543, 4
  %v7404 = vadd.f32 %v5543, %v7403
  %v7405 = vrot.slane %v7404, 2
  %v7406 = vadd.f32 %v7404, %v7405
  %v7407 = vrot.slane %v7406, 1
  %v7408 = vadd.f32 %v7406, %v7407
  %v7409 = vrot.slane %v5544, 4
  %v7410 = vadd.f32 %v5544, %v7409
  %v7411 = vrot.slane %v7410, 2
  %v7412 = vadd.f32 %v7410, %v7411
  %v7413 = vrot.slane %v7412, 1
  %v7414 = vadd.f32 %v7412, %v7413
  %v7415 = vrot.slane %v5545, 4
  %v7416 = vadd.f32 %v5545, %v7415
  %v7417 = vrot.slane %v7416, 2
  %v7418 = vadd.f32 %v7416, %v7417
  %v7419 = vrot.slane %v7418, 1
  %v7420 = vadd.f32 %v7418, %v7419
  %v7421 = vrot.slane %v5546, 4
  %v7422 = vadd.f32 %v5546, %v7421
  %v7423 = vrot.slane %v7422, 2
  %v7424 = vadd.f32 %v7422, %v7423
  %v7425 = vrot.slane %v7424, 1
  %v7426 = vadd.f32 %v7424, %v7425
  %v7427 = vrot.slane %v5547, 4
  %v7428 = vadd.f32 %v5547, %v7427
  %v7429 = vrot.slane %v7428, 2
  %v7430 = vadd.f32 %v7428, %v7429
  %v7431 = vrot.slane %v7430, 1
  %v7432 = vadd.f32 %v7430, %v7431
  %v7433 = vrot.slane %v5548, 4
  %v7434 = vadd.f32 %v5548, %v7433
  %v7435 = vrot.slane %v7434, 2
  %v7436 = vadd.f32 %v7434, %v7435
  %v7437 = vrot.slane %v7436, 1
  %v7438 = vadd.f32 %v7436, %v7437
  %v7439 = vrot.slane %v5549, 4
  %v7440 = vadd.f32 %v5549, %v7439
  %v7441 = vrot.slane %v7440, 2
  %v7442 = vadd.f32 %v7440, %v7441
  %v7443 = vrot.slane %v7442, 1
  %v7444 = vadd.f32 %v7442, %v7443
  %v7445 = vrot.slane %v5550, 4
  %v7446 = vadd.f32 %v5550, %v7445
  %v7447 = vrot.slane %v7446, 2
  %v7448 = vadd.f32 %v7446, %v7447
  %v7449 = vrot.slane %v7448, 1
  %v7450 = vadd.f32 %v7448, %v7449
  %v7451 = vrot.slane %v5551, 4
  %v7452 = vadd.f32 %v5551, %v7451
  %v7453 = vrot.slane %v7452, 2
  %v7454 = vadd.f32 %v7452, %v7453
  %v7455 = vrot.slane %v7454, 1
  %v7456 = vadd.f32 %v7454, %v7455
  %v7457 = vrot.slane %v5552, 4
  %v7458 = vadd.f32 %v5552, %v7457
  %v7459 = vrot.slane %v7458, 2
  %v7460 = vadd.f32 %v7458, %v7459
  %v7461 = vrot.slane %v7460, 1
  %v7462 = vadd.f32 %v7460, %v7461
  %v7463 = vrot.slane %v5553, 4
  %v7464 = vadd.f32 %v5553, %v7463
  %v7465 = vrot.slane %v7464, 2
  %v7466 = vadd.f32 %v7464, %v7465
  %v7467 = vrot.slane %v7466, 1
  %v7468 = vadd.f32 %v7466, %v7467
  %v7469 = vrot.slane %v5554, 4
  %v7470 = vadd.f32 %v5554, %v7469
  %v7471 = vrot.slane %v7470, 2
  %v7472 = vadd.f32 %v7470, %v7471
  %v7473 = vrot.slane %v7472, 1
  %v7474 = vadd.f32 %v7472, %v7473
  %v7475 = vrot.slane %v5555, 4
  %v7476 = vadd.f32 %v5555, %v7475
  %v7477 = vrot.slane %v7476, 2
  %v7478 = vadd.f32 %v7476, %v7477
  %v7479 = vrot.slane %v7478, 1
  %v7480 = vadd.f32 %v7478, %v7479
  %v7481 = vrot.slane %v5556, 4
  %v7482 = vadd.f32 %v5556, %v7481
  %v7483 = vrot.slane %v7482, 2
  %v7484 = vadd.f32 %v7482, %v7483
  %v7485 = vrot.slane %v7484, 1
  %v7486 = vadd.f32 %v7484, %v7485
  %v7487 = vrot.slane %v5557, 4
  %v7488 = vadd.f32 %v5557, %v7487
  %v7489 = vrot.slane %v7488, 2
  %v7490 = vadd.f32 %v7488, %v7489
  %v7491 = vrot.slane %v7490, 1
  %v7492 = vadd.f32 %v7490, %v7491
  %v7493 = vrot.slane %v5558, 4
  %v7494 = vadd.f32 %v5558, %v7493
  %v7495 = vrot.slane %v7494, 2
  %v7496 = vadd.f32 %v7494, %v7495
  %v7497 = vrot.slane %v7496, 1
  %v7498 = vadd.f32 %v7496, %v7497
  %v7499 = vrot.slane %v5559, 4
  %v7500 = vadd.f32 %v5559, %v7499
  %v7501 = vrot.slane %v7500, 2
  %v7502 = vadd.f32 %v7500, %v7501
  %v7503 = vrot.slane %v7502, 1
  %v7504 = vadd.f32 %v7502, %v7503
  %v7505 = vrot.slane %v5560, 4
  %v7506 = vadd.f32 %v5560, %v7505
  %v7507 = vrot.slane %v7506, 2
  %v7508 = vadd.f32 %v7506, %v7507
  %v7509 = vrot.slane %v7508, 1
  %v7510 = vadd.f32 %v7508, %v7509
  %v7511 = vrot.slane %v5561, 4
  %v7512 = vadd.f32 %v5561, %v7511
  %v7513 = vrot.slane %v7512, 2
  %v7514 = vadd.f32 %v7512, %v7513
  %v7515 = vrot.slane %v7514, 1
  %v7516 = vadd.f32 %v7514, %v7515
  %v7517 = vrot.slane %v5562, 4
  %v7518 = vadd.f32 %v5562, %v7517
  %v7519 = vrot.slane %v7518, 2
  %v7520 = vadd.f32 %v7518, %v7519
  %v7521 = vrot.slane %v7520, 1
  %v7522 = vadd.f32 %v7520, %v7521
  %v7523 = vrot.slane %v5563, 4
  %v7524 = vadd.f32 %v5563, %v7523
  %v7525 = vrot.slane %v7524, 2
  %v7526 = vadd.f32 %v7524, %v7525
  %v7527 = vrot.slane %v7526, 1
  %v7528 = vadd.f32 %v7526, %v7527
  %v7529 = vrot.slane %v5564, 4
  %v7530 = vadd.f32 %v5564, %v7529
  %v7531 = vrot.slane %v7530, 2
  %v7532 = vadd.f32 %v7530, %v7531
  %v7533 = vrot.slane %v7532, 1
  %v7534 = vadd.f32 %v7532, %v7533
  %v7535 = vrot.slane %v5565, 4
  %v7536 = vadd.f32 %v5565, %v7535
  %v7537 = vrot.slane %v7536, 2
  %v7538 = vadd.f32 %v7536, %v7537
  %v7539 = vrot.slane %v7538, 1
  %v7540 = vadd.f32 %v7538, %v7539
  %v7541 = vrot.slane %v5566, 4
  %v7542 = vadd.f32 %v5566, %v7541
  %v7543 = vrot.slane %v7542, 2
  %v7544 = vadd.f32 %v7542, %v7543
  %v7545 = vrot.slane %v7544, 1
  %v7546 = vadd.f32 %v7544, %v7545
  %v7547 = vrot.slane %v5567, 4
  %v7548 = vadd.f32 %v5567, %v7547
  %v7549 = vrot.slane %v7548, 2
  %v7550 = vadd.f32 %v7548, %v7549
  %v7551 = vrot.slane %v7550, 1
  %v7552 = vadd.f32 %v7550, %v7551
  %v7553 = vrot.slane %v5568, 4
  %v7554 = vadd.f32 %v5568, %v7553
  %v7555 = vrot.slane %v7554, 2
  %v7556 = vadd.f32 %v7554, %v7555
  %v7557 = vrot.slane %v7556, 1
  %v7558 = vadd.f32 %v7556, %v7557
  %v7559 = vrot.slane %v5569, 4
  %v7560 = vadd.f32 %v5569, %v7559
  %v7561 = vrot.slane %v7560, 2
  %v7562 = vadd.f32 %v7560, %v7561
  %v7563 = vrot.slane %v7562, 1
  %v7564 = vadd.f32 %v7562, %v7563
  %v7565 = vrot.slane %v5570, 4
  %v7566 = vadd.f32 %v5570, %v7565
  %v7567 = vrot.slane %v7566, 2
  %v7568 = vadd.f32 %v7566, %v7567
  %v7569 = vrot.slane %v7568, 1
  %v7570 = vadd.f32 %v7568, %v7569
  %v7571 = vrot.slane %v5571, 4
  %v7572 = vadd.f32 %v5571, %v7571
  %v7573 = vrot.slane %v7572, 2
  %v7574 = vadd.f32 %v7572, %v7573
  %v7575 = vrot.slane %v7574, 1
  %v7576 = vadd.f32 %v7574, %v7575
  %v7577 = vrot.slane %v5572, 4
  %v7578 = vadd.f32 %v5572, %v7577
  %v7579 = vrot.slane %v7578, 2
  %v7580 = vadd.f32 %v7578, %v7579
  %v7581 = vrot.slane %v7580, 1
  %v7582 = vadd.f32 %v7580, %v7581
  %v7583 = vrot.slane %v5573, 4
  %v7584 = vadd.f32 %v5573, %v7583
  %v7585 = vrot.slane %v7584, 2
  %v7586 = vadd.f32 %v7584, %v7585
  %v7587 = vrot.slane %v7586, 1
  %v7588 = vadd.f32 %v7586, %v7587
  %v7589 = vrot.slane %v5574, 4
  %v7590 = vadd.f32 %v5574, %v7589
  %v7591 = vrot.slane %v7590, 2
  %v7592 = vadd.f32 %v7590, %v7591
  %v7593 = vrot.slane %v7592, 1
  %v7594 = vadd.f32 %v7592, %v7593
  %v7595 = vrot.slane %v5575, 4
  %v7596 = vadd.f32 %v5575, %v7595
  %v7597 = vrot.slane %v7596, 2
  %v7598 = vadd.f32 %v7596, %v7597
  %v7599 = vrot.slane %v7598, 1
  %v7600 = vadd.f32 %v7598, %v7599
  %v7601 = vrot.slane %v5576, 4
  %v7602 = vadd.f32 %v5576, %v7601
  %v7603 = vrot.slane %v7602, 2
  %v7604 = vadd.f32 %v7602, %v7603
  %v7605 = vrot.slane %v7604, 1
  %v7606 = vadd.f32 %v7604, %v7605
  %v7607 = vrot.slane %v5577, 4
  %v7608 = vadd.f32 %v5577, %v7607
  %v7609 = vrot.slane %v7608, 2
  %v7610 = vadd.f32 %v7608, %v7609
  %v7611 = vrot.slane %v7610, 1
  %v7612 = vadd.f32 %v7610, %v7611
  %v7613 = vrot.slane %v5578, 4
  %v7614 = vadd.f32 %v5578, %v7613
  %v7615 = vrot.slane %v7614, 2
  %v7616 = vadd.f32 %v7614, %v7615
  %v7617 = vrot.slane %v7616, 1
  %v7618 = vadd.f32 %v7616, %v7617
  %v7619 = vrot.slane %v5579, 4
  %v7620 = vadd.f32 %v5579, %v7619
  %v7621 = vrot.slane %v7620, 2
  %v7622 = vadd.f32 %v7620, %v7621
  %v7623 = vrot.slane %v7622, 1
  %v7624 = vadd.f32 %v7622, %v7623
  %v7625 = vrcp.pop 8.0
  %v7626 = vmul.f32 %v7054, %v7625
  %v7627 = vmul.f32 %v7060, %v7625
  %v7628 = vmul.f32 %v7066, %v7625
  %v7629 = vmul.f32 %v7072, %v7625
  %v7630 = vmul.f32 %v7078, %v7625
  %v7631 = vmul.f32 %v7084, %v7625
  %v7632 = vmul.f32 %v7090, %v7625
  %v7633 = vmul.f32 %v7096, %v7625
  %v7634 = vmul.f32 %v7102, %v7625
  %v7635 = vmul.f32 %v7108, %v7625
  %v7636 = vmul.f32 %v7114, %v7625
  %v7637 = vmul.f32 %v7120, %v7625
  %v7638 = vmul.f32 %v7126, %v7625
  %v7639 = vmul.f32 %v7132, %v7625
  %v7640 = vmul.f32 %v7138, %v7625
  %v7641 = vmul.f32 %v7144, %v7625
  %v7642 = vmul.f32 %v7150, %v7625
  %v7643 = vmul.f32 %v7156, %v7625
  %v7644 = vmul.f32 %v7162, %v7625
  %v7645 = vmul.f32 %v7168, %v7625
  %v7646 = vmul.f32 %v7174, %v7625
  %v7647 = vmul.f32 %v7180, %v7625
  %v7648 = vmul.f32 %v7186, %v7625
  %v7649 = vmul.f32 %v7192, %v7625
  %v7650 = vmul.f32 %v7198, %v7625
  %v7651 = vmul.f32 %v7204, %v7625
  %v7652 = vmul.f32 %v7210, %v7625
  %v7653 = vmul.f32 %v7216, %v7625
  %v7654 = vmul.f32 %v7222, %v7625
  %v7655 = vmul.f32 %v7228, %v7625
  %v7656 = vmul.f32 %v7234, %v7625
  %v7657 = vmul.f32 %v7240, %v7625
  %v7658 = vmul.f32 %v7246, %v7625
  %v7659 = vmul.f32 %v7252, %v7625
  %v7660 = vmul.f32 %v7258, %v7625
  %v7661 = vmul.f32 %v7264, %v7625
  %v7662 = vmul.f32 %v7270, %v7625
  %v7663 = vmul.f32 %v7276, %v7625
  %v7664 = vmul.f32 %v7282, %v7625
  %v7665 = vmul.f32 %v7288, %v7625
  %v7666 = vmul.f32 %v7294, %v7625
  %v7667 = vmul.f32 %v7300, %v7625
  %v7668 = vmul.f32 %v7306, %v7625
  %v7669 = vmul.f32 %v7312, %v7625
  %v7670 = vmul.f32 %v7318, %v7625
  %v7671 = vmul.f32 %v7324, %v7625
  %v7672 = vmul.f32 %v7330, %v7625
  %v7673 = vmul.f32 %v7336, %v7625
  %v7674 = vmul.f32 %v7342, %v7625
  %v7675 = vmul.f32 %v7348, %v7625
  %v7676 = vmul.f32 %v7354, %v7625
  %v7677 = vmul.f32 %v7360, %v7625
  %v7678 = vmul.f32 %v7366, %v7625
  %v7679 = vmul.f32 %v7372, %v7625
  %v7680 = vmul.f32 %v7378, %v7625
  %v7681 = vmul.f32 %v7384, %v7625
  %v7682 = vmul.f32 %v7390, %v7625
  %v7683 = vmul.f32 %v7396, %v7625
  %v7684 = vmul.f32 %v7402, %v7625
  %v7685 = vmul.f32 %v7408, %v7625
  %v7686 = vmul.f32 %v7414, %v7625
  %v7687 = vmul.f32 %v7420, %v7625
  %v7688 = vmul.f32 %v7426, %v7625
  %v7689 = vmul.f32 %v7432, %v7625
  %v7690 = vmul.f32 %v7438, %v7625
  %v7691 = vmul.f32 %v7444, %v7625
  %v7692 = vmul.f32 %v7450, %v7625
  %v7693 = vmul.f32 %v7456, %v7625
  %v7694 = vmul.f32 %v7462, %v7625
  %v7695 = vmul.f32 %v7468, %v7625
  %v7696 = vmul.f32 %v7474, %v7625
  %v7697 = vmul.f32 %v7480, %v7625
  %v7698 = vmul.f32 %v7486, %v7625
  %v7699 = vmul.f32 %v7492, %v7625
  %v7700 = vmul.f32 %v7498, %v7625
  %v7701 = vmul.f32 %v7504, %v7625
  %v7702 = vmul.f32 %v7510, %v7625
  %v7703 = vmul.f32 %v7516, %v7625
  %v7704 = vmul.f32 %v7522, %v7625
  %v7705 = vmul.f32 %v7528, %v7625
  %v7706 = vmul.f32 %v7534, %v7625
  %v7707 = vmul.f32 %v7540, %v7625
  %v7708 = vmul.f32 %v7546, %v7625
  %v7709 = vmul.f32 %v7552, %v7625
  %v7710 = vmul.f32 %v7558, %v7625
  %v7711 = vmul.f32 %v7564, %v7625
  %v7712 = vmul.f32 %v7570, %v7625
  %v7713 = vmul.f32 %v7576, %v7625
  %v7714 = vmul.f32 %v7582, %v7625
  %v7715 = vmul.f32 %v7588, %v7625
  %v7716 = vmul.f32 %v7594, %v7625
  %v7717 = vmul.f32 %v7600, %v7625
  %v7718 = vmul.f32 %v7606, %v7625
  %v7719 = vmul.f32 %v7612, %v7625
  %v7720 = vmul.f32 %v7618, %v7625
  %v7721 = vmul.f32 %v7624, %v7625
  %v7722 = vpack.c.bf16 %v7626, %v7626
  %v7723 = vpack.c.bf16 %v7627, %v7627
  %v7724 = vpack.c.bf16 %v7628, %v7628
  %v7725 = vpack.c.bf16 %v7629, %v7629
  %v7726 = vpack.c.bf16 %v7630, %v7630
  %v7727 = vpack.c.bf16 %v7631, %v7631
  %v7728 = vpack.c.bf16 %v7632, %v7632
  %v7729 = vpack.c.bf16 %v7633, %v7633
  %v7730 = vpack.c.bf16 %v7634, %v7634
  %v7731 = vpack.c.bf16 %v7635, %v7635
  %v7732 = vpack.c.bf16 %v7636, %v7636
  %v7733 = vpack.c.bf16 %v7637, %v7637
  %v7734 = vpack.c.bf16 %v7638, %v7638
  %v7735 = vpack.c.bf16 %v7639, %v7639
  %v7736 = vpack.c.bf16 %v7640, %v7640
  %v7737 = vpack.c.bf16 %v7641, %v7641
  %v7738 = vpack.c.bf16 %v7642, %v7642
  %v7739 = vpack.c.bf16 %v7643, %v7643
  %v7740 = vpack.c.bf16 %v7644, %v7644
  %v7741 = vpack.c.bf16 %v7645, %v7645
  %v7742 = vpack.c.bf16 %v7646, %v7646
  %v7743 = vpack.c.bf16 %v7647, %v7647
  %v7744 = vpack.c.bf16 %v7648, %v7648
  %v7745 = vpack.c.bf16 %v7649, %v7649
  %v7746 = vpack.c.bf16 %v7650, %v7650
  %v7747 = vpack.c.bf16 %v7651, %v7651
  %v7748 = vpack.c.bf16 %v7652, %v7652
  %v7749 = vpack.c.bf16 %v7653, %v7653
  %v7750 = vpack.c.bf16 %v7654, %v7654
  %v7751 = vpack.c.bf16 %v7655, %v7655
  %v7752 = vpack.c.bf16 %v7656, %v7656
  %v7753 = vpack.c.bf16 %v7657, %v7657
  %v7754 = vpack.c.bf16 %v7658, %v7658
  %v7755 = vpack.c.bf16 %v7659, %v7659
  %v7756 = vpack.c.bf16 %v7660, %v7660
  %v7757 = vpack.c.bf16 %v7661, %v7661
  %v7758 = vpack.c.bf16 %v7662, %v7662
  %v7759 = vpack.c.bf16 %v7663, %v7663
  %v7760 = vpack.c.bf16 %v7664, %v7664
  %v7761 = vpack.c.bf16 %v7665, %v7665
  %v7762 = vpack.c.bf16 %v7666, %v7666
  %v7763 = vpack.c.bf16 %v7667, %v7667
  %v7764 = vpack.c.bf16 %v7668, %v7668
  %v7765 = vpack.c.bf16 %v7669, %v7669
  %v7766 = vpack.c.bf16 %v7670, %v7670
  %v7767 = vpack.c.bf16 %v7671, %v7671
  %v7768 = vpack.c.bf16 %v7672, %v7672
  %v7769 = vpack.c.bf16 %v7673, %v7673
  %v7770 = vpack.c.bf16 %v7674, %v7674
  %v7771 = vpack.c.bf16 %v7675, %v7675
  %v7772 = vpack.c.bf16 %v7676, %v7676
  %v7773 = vpack.c.bf16 %v7677, %v7677
  %v7774 = vpack.c.bf16 %v7678, %v7678
  %v7775 = vpack.c.bf16 %v7679, %v7679
  %v7776 = vpack.c.bf16 %v7680, %v7680
  %v7777 = vpack.c.bf16 %v7681, %v7681
  %v7778 = vpack.c.bf16 %v7682, %v7682
  %v7779 = vpack.c.bf16 %v7683, %v7683
  %v7780 = vpack.c.bf16 %v7684, %v7684
  %v7781 = vpack.c.bf16 %v7685, %v7685
  %v7782 = vpack.c.bf16 %v7686, %v7686
  %v7783 = vpack.c.bf16 %v7687, %v7687
  %v7784 = vpack.c.bf16 %v7688, %v7688
  %v7785 = vpack.c.bf16 %v7689, %v7689
  %v7786 = vpack.c.bf16 %v7690, %v7690
  %v7787 = vpack.c.bf16 %v7691, %v7691
  %v7788 = vpack.c.bf16 %v7692, %v7692
  %v7789 = vpack.c.bf16 %v7693, %v7693
  %v7790 = vpack.c.bf16 %v7694, %v7694
  %v7791 = vpack.c.bf16 %v7695, %v7695
  %v7792 = vpack.c.bf16 %v7696, %v7696
  %v7793 = vpack.c.bf16 %v7697, %v7697
  %v7794 = vpack.c.bf16 %v7698, %v7698
  %v7795 = vpack.c.bf16 %v7699, %v7699
  %v7796 = vpack.c.bf16 %v7700, %v7700
  %v7797 = vpack.c.bf16 %v7701, %v7701
  %v7798 = vpack.c.bf16 %v7702, %v7702
  %v7799 = vpack.c.bf16 %v7703, %v7703
  %v7800 = vpack.c.bf16 %v7704, %v7704
  %v7801 = vpack.c.bf16 %v7705, %v7705
  %v7802 = vpack.c.bf16 %v7706, %v7706
  %v7803 = vpack.c.bf16 %v7707, %v7707
  %v7804 = vpack.c.bf16 %v7708, %v7708
  %v7805 = vpack.c.bf16 %v7709, %v7709
  %v7806 = vpack.c.bf16 %v7710, %v7710
  %v7807 = vpack.c.bf16 %v7711, %v7711
  %v7808 = vpack.c.bf16 %v7712, %v7712
  %v7809 = vpack.c.bf16 %v7713, %v7713
  %v7810 = vpack.c.bf16 %v7714, %v7714
  %v7811 = vpack.c.bf16 %v7715, %v7715
  %v7812 = vpack.c.bf16 %v7716, %v7716
  %v7813 = vpack.c.bf16 %v7717, %v7717
  %v7814 = vpack.c.bf16 %v7718, %v7718
  %v7815 = vpack.c.bf16 %v7719, %v7719
  %v7816 = vpack.c.bf16 %v7720, %v7720
  %v7817 = vpack.c.bf16 %v7721, %v7721
  %v7819 = vlaneseq
  %v7820 = vshrl.u32 %v7819, 7
  %v7821 = vsub.s32 0, %v7820
  %v7822 = vrot.slane %v4149, %v7821
  %v7823 = vlaneseq
  %v7824 = vshrl.u32 %v7823, 7
  %v7825 = vsub.s32 1, %v7824
  %v7826 = vrot.slane %v4149, %v7825
  %v7827 = vlaneseq
  %v7828 = vshrl.u32 %v7827, 7
  %v7829 = vsub.s32 2, %v7828
  %v7830 = vrot.slane %v4149, %v7829
  %v7930 = vunpack.c.l.b16 %v7722
  %v7931 = vunpack.c.l.b16 %v7723
  %v7932 = vunpack.c.l.b16 %v7724
  %v7933 = vunpack.c.l.b16 %v7725
  %v7934 = vunpack.c.l.b16 %v7726
  %v7935 = vunpack.c.l.b16 %v7727
  %v7936 = vunpack.c.l.b16 %v7728
  %v7937 = vunpack.c.l.b16 %v7729
  %v7938 = vunpack.c.l.b16 %v7730
  %v7939 = vunpack.c.l.b16 %v7731
  %v7940 = vunpack.c.l.b16 %v7732
  %v7941 = vunpack.c.l.b16 %v7733
  %v7942 = vunpack.c.l.b16 %v7734
  %v7943 = vunpack.c.l.b16 %v7735
  %v7944 = vunpack.c.l.b16 %v7736
  %v7945 = vunpack.c.l.b16 %v7737
  %v7946 = vunpack.c.l.b16 %v7738
  %v7947 = vunpack.c.l.b16 %v7739
  %v7948 = vunpack.c.l.b16 %v7740
  %v7949 = vunpack.c.l.b16 %v7741
  %v7950 = vunpack.c.l.b16 %v7742
  %v7951 = vunpack.c.l.b16 %v7743
  %v7952 = vunpack.c.l.b16 %v7744
  %v7953 = vunpack.c.l.b16 %v7745
  %v7954 = vunpack.c.l.b16 %v7746
  %v7955 = vunpack.c.l.b16 %v7747
  %v7956 = vunpack.c.l.b16 %v7748
  %v7957 = vunpack.c.l.b16 %v7749
  %v7958 = vunpack.c.l.b16 %v7750
  %v7959 = vunpack.c.l.b16 %v7751
  %v7960 = vunpack.c.l.b16 %v7752
  %v7961 = vunpack.c.l.b16 %v7753
  %v7962 = vunpack.c.l.b16 %v7754
  %v7963 = vunpack.c.l.b16 %v7755
  %v7964 = vunpack.c.l.b16 %v7756
  %v7965 = vunpack.c.l.b16 %v7757
  %v7966 = vunpack.c.l.b16 %v7758
  %v7967 = vunpack.c.l.b16 %v7759
  %v7968 = vunpack.c.l.b16 %v7760
  %v7969 = vunpack.c.l.b16 %v7761
  %v7970 = vunpack.c.l.b16 %v7762
  %v7971 = vunpack.c.l.b16 %v7763
  %v7972 = vunpack.c.l.b16 %v7764
  %v7973 = vunpack.c.l.b16 %v7765
  %v7974 = vunpack.c.l.b16 %v7766
  %v7975 = vunpack.c.l.b16 %v7767
  %v7976 = vunpack.c.l.b16 %v7768
  %v7977 = vunpack.c.l.b16 %v7769
  %v7978 = vunpack.c.l.b16 %v7770
  %v7979 = vunpack.c.l.b16 %v7771
  %v7980 = vunpack.c.l.b16 %v7772
  %v7981 = vunpack.c.l.b16 %v7773
  %v7982 = vunpack.c.l.b16 %v7774
  %v7983 = vunpack.c.l.b16 %v7775
  %v7984 = vunpack.c.l.b16 %v7776
  %v7985 = vunpack.c.l.b16 %v7777
  %v7986 = vunpack.c.l.b16 %v7778
  %v7987 = vunpack.c.l.b16 %v7779
  %v7988 = vunpack.c.l.b16 %v7780
  %v7989 = vunpack.c.l.b16 %v7781
  %v7990 = vunpack.c.l.b16 %v7782
  %v7991 = vunpack.c.l.b16 %v7783
  %v7992 = vunpack.c.l.b16 %v7784
  %v7993 = vunpack.c.l.b16 %v7785
  %v7994 = vunpack.c.l.b16 %v7786
  %v7995 = vunpack.c.l.b16 %v7787
  %v7996 = vunpack.c.l.b16 %v7788
  %v7997 = vunpack.c.l.b16 %v7789
  %v7998 = vunpack.c.l.b16 %v7790
  %v7999 = vunpack.c.l.b16 %v7791
  %v8000 = vunpack.c.l.b16 %v7792
  %v8001 = vunpack.c.l.b16 %v7793
  %v8002 = vunpack.c.l.b16 %v7794
  %v8003 = vunpack.c.l.b16 %v7795
  %v8004 = vunpack.c.l.b16 %v7796
  %v8005 = vunpack.c.l.b16 %v7797
  %v8006 = vunpack.c.l.b16 %v7798
  %v8007 = vunpack.c.l.b16 %v7799
  %v8008 = vunpack.c.l.b16 %v7800
  %v8009 = vunpack.c.l.b16 %v7801
  %v8010 = vunpack.c.l.b16 %v7802
  %v8011 = vunpack.c.l.b16 %v7803
  %v8012 = vunpack.c.l.b16 %v7804
  %v8013 = vunpack.c.l.b16 %v7805
  %v8014 = vunpack.c.l.b16 %v7806
  %v8015 = vunpack.c.l.b16 %v7807
  %v8016 = vunpack.c.l.b16 %v7808
  %v8017 = vunpack.c.l.b16 %v7809
  %v8018 = vunpack.c.l.b16 %v7810
  %v8019 = vunpack.c.l.b16 %v7811
  %v8020 = vunpack.c.l.b16 %v7812
  %v8021 = vunpack.c.l.b16 %v7813
  %v8022 = vunpack.c.l.b16 %v7814
  %v8023 = vunpack.c.l.b16 %v7815
  %v8024 = vunpack.c.l.b16 %v7816
  %v8025 = vunpack.c.l.b16 %v7817
  %v8026 = vsel %vm6997, %v7933, %v7930
  %v8027 = vsel %vm6999, %v7936, %v8026
  %v8028 = vsel %vm7001, %v7939, %v8027
  %v8029 = vsel %vm7003, %v7942, %v8028
  %v8030 = vsel %vm7005, %v7945, %v8029
  %v8031 = vsel %vm7007, %v7948, %v8030
  %v8032 = vsel %vm7009, %v7951, %v8031
  %v8033 = vsel %vm6997, %v7934, %v7931
  %v8034 = vsel %vm6999, %v7937, %v8033
  %v8035 = vsel %vm7001, %v7940, %v8034
  %v8036 = vsel %vm7003, %v7943, %v8035
  %v8037 = vsel %vm7005, %v7946, %v8036
  %v8038 = vsel %vm7007, %v7949, %v8037
  %v8039 = vsel %vm7009, %v7952, %v8038
  %v8040 = vsel %vm6997, %v7935, %v7932
  %v8041 = vsel %vm6999, %v7938, %v8040
  %v8042 = vsel %vm7001, %v7941, %v8041
  %v8043 = vsel %vm7003, %v7944, %v8042
  %v8044 = vsel %vm7005, %v7947, %v8043
  %v8045 = vsel %vm7007, %v7950, %v8044
  %v8046 = vsel %vm7009, %v7953, %v8045
  %v8047 = vsel %vm6997, %v7957, %v7954
  %v8048 = vsel %vm6999, %v7960, %v8047
  %v8049 = vsel %vm7001, %v7963, %v8048
  %v8050 = vsel %vm7003, %v7966, %v8049
  %v8051 = vsel %vm7005, %v7969, %v8050
  %v8052 = vsel %vm7007, %v7972, %v8051
  %v8053 = vsel %vm7009, %v7975, %v8052
  %v8054 = vsel %vm6997, %v7958, %v7955
  %v8055 = vsel %vm6999, %v7961, %v8054
  %v8056 = vsel %vm7001, %v7964, %v8055
  %v8057 = vsel %vm7003, %v7967, %v8056
  %v8058 = vsel %vm7005, %v7970, %v8057
  %v8059 = vsel %vm7007, %v7973, %v8058
  %v8060 = vsel %vm7009, %v7976, %v8059
  %v8061 = vsel %vm6997, %v7959, %v7956
  %v8062 = vsel %vm6999, %v7962, %v8061
  %v8063 = vsel %vm7001, %v7965, %v8062
  %v8064 = vsel %vm7003, %v7968, %v8063
  %v8065 = vsel %vm7005, %v7971, %v8064
  %v8066 = vsel %vm7007, %v7974, %v8065
  %v8067 = vsel %vm7009, %v7977, %v8066
  %v8068 = vsel %vm6997, %v7981, %v7978
  %v8069 = vsel %vm6999, %v7984, %v8068
  %v8070 = vsel %vm7001, %v7987, %v8069
  %v8071 = vsel %vm7003, %v7990, %v8070
  %v8072 = vsel %vm7005, %v7993, %v8071
  %v8073 = vsel %vm7007, %v7996, %v8072
  %v8074 = vsel %vm7009, %v7999, %v8073
  %v8075 = vsel %vm6997, %v7982, %v7979
  %v8076 = vsel %vm6999, %v7985, %v8075
  %v8077 = vsel %vm7001, %v7988, %v8076
  %v8078 = vsel %vm7003, %v7991, %v8077
  %v8079 = vsel %vm7005, %v7994, %v8078
  %v8080 = vsel %vm7007, %v7997, %v8079
  %v8081 = vsel %vm7009, %v8000, %v8080
  %v8082 = vsel %vm6997, %v7983, %v7980
  %v8083 = vsel %vm6999, %v7986, %v8082
  %v8084 = vsel %vm7001, %v7989, %v8083
  %v8085 = vsel %vm7003, %v7992, %v8084
  %v8086 = vsel %vm7005, %v7995, %v8085
  %v8087 = vsel %vm7007, %v7998, %v8086
  %v8088 = vsel %vm7009, %v8001, %v8087
  %v8089 = vsel %vm6997, %v8005, %v8002
  %v8090 = vsel %vm6999, %v8008, %v8089
  %v8091 = vsel %vm7001, %v8011, %v8090
  %v8092 = vsel %vm7003, %v8014, %v8091
  %v8093 = vsel %vm7005, %v8017, %v8092
  %v8094 = vsel %vm7007, %v8020, %v8093
  %v8095 = vsel %vm7009, %v8023, %v8094
  %v8096 = vsel %vm6997, %v8006, %v8003
  %v8097 = vsel %vm6999, %v8009, %v8096
  %v8098 = vsel %vm7001, %v8012, %v8097
  %v8099 = vsel %vm7003, %v8015, %v8098
  %v8100 = vsel %vm7005, %v8018, %v8099
  %v8101 = vsel %vm7007, %v8021, %v8100
  %v8102 = vsel %vm7009, %v8024, %v8101
  %v8103 = vsel %vm6997, %v8007, %v8004
  %v8104 = vsel %vm6999, %v8010, %v8103
  %v8105 = vsel %vm7001, %v8013, %v8104
  %v8106 = vsel %vm7003, %v8016, %v8105
  %v8107 = vsel %vm7005, %v8019, %v8106
  %v8108 = vsel %vm7007, %v8022, %v8107
  %v8109 = vsel %vm7009, %v8025, %v8108
  %v8110 = vpack.c.b16 %v8053, %v8032
  %v8111 = vpack.c.b16 %v8060, %v8039
  %v8112 = vpack.c.b16 %v8067, %v8046
  %v8113 = vpack.c.b16 %v8095, %v8074
  %v8114 = vpack.c.b16 %v8102, %v8081
  %v8115 = vpack.c.b16 %v8109, %v8088
  %v8218 = vunpack.c.l.b16 %v4053
  %v8219 = vunpack.c.h.b16 %v4053
  %v8220 = vunpack.c.l.b16 %v4054
  %v8221 = vunpack.c.l.b16 %v4055
  %v8222 = vunpack.c.h.b16 %v4055
  %v8223 = vunpack.c.l.b16 %v4056
  %v8224 = vunpack.c.l.b16 %v4057
  %v8225 = vunpack.c.h.b16 %v4057
  %v8226 = vunpack.c.l.b16 %v4058
  %v8227 = vunpack.c.l.b16 %v4059
  %v8228 = vunpack.c.h.b16 %v4059
  %v8229 = vunpack.c.l.b16 %v4060
  %v8230 = vunpack.c.l.b16 %v4061
  %v8231 = vunpack.c.h.b16 %v4061
  %v8232 = vunpack.c.l.b16 %v4062
  %v8233 = vunpack.c.l.b16 %v4063
  %v8234 = vunpack.c.h.b16 %v4063
  %v8235 = vunpack.c.l.b16 %v4064
  %v8236 = vunpack.c.l.b16 %v4065
  %v8237 = vunpack.c.h.b16 %v4065
  %v8238 = vunpack.c.l.b16 %v4066
  %v8239 = vunpack.c.l.b16 %v4067
  %v8240 = vunpack.c.h.b16 %v4067
  %v8241 = vunpack.c.l.b16 %v4068
  %v8242 = vunpack.c.l.b16 %v4069
  %v8243 = vunpack.c.h.b16 %v4069
  %v8244 = vunpack.c.l.b16 %v4070
  %v8245 = vunpack.c.l.b16 %v4071
  %v8246 = vunpack.c.h.b16 %v4071
  %v8247 = vunpack.c.l.b16 %v4072
  %v8248 = vunpack.c.l.b16 %v4073
  %v8249 = vunpack.c.h.b16 %v4073
  %v8250 = vunpack.c.l.b16 %v4074
  %v8251 = vunpack.c.l.b16 %v4075
  %v8252 = vunpack.c.h.b16 %v4075
  %v8253 = vunpack.c.l.b16 %v4076
  %v8254 = vunpack.c.l.b16 %v4077
  %v8255 = vunpack.c.h.b16 %v4077
  %v8256 = vunpack.c.l.b16 %v4078
  %v8257 = vunpack.c.l.b16 %v4079
  %v8258 = vunpack.c.h.b16 %v4079
  %v8259 = vunpack.c.l.b16 %v4080
  %v8260 = vunpack.c.l.b16 %v4081
  %v8261 = vunpack.c.h.b16 %v4081
  %v8262 = vunpack.c.l.b16 %v4082
  %v8263 = vunpack.c.l.b16 %v4083
  %v8264 = vunpack.c.h.b16 %v4083
  %v8265 = vunpack.c.l.b16 %v4084
  %v8266 = vunpack.c.l.b16 %v4085
  %v8267 = vunpack.c.h.b16 %v4085
  %v8268 = vunpack.c.l.b16 %v4086
  %v8269 = vunpack.c.l.b16 %v4087
  %v8270 = vunpack.c.h.b16 %v4087
  %v8271 = vunpack.c.l.b16 %v4088
  %v8272 = vunpack.c.l.b16 %v4089
  %v8273 = vunpack.c.h.b16 %v4089
  %v8274 = vunpack.c.l.b16 %v4090
  %v8275 = vunpack.c.l.b16 %v4091
  %v8276 = vunpack.c.h.b16 %v4091
  %v8277 = vunpack.c.l.b16 %v4092
  %v8278 = vunpack.c.l.b16 %v4093
  %v8279 = vunpack.c.h.b16 %v4093
  %v8280 = vunpack.c.l.b16 %v4094
  %v8281 = vunpack.c.l.b16 %v4095
  %v8282 = vunpack.c.h.b16 %v4095
  %v8283 = vunpack.c.l.b16 %v4096
  %v8284 = vunpack.c.l.b16 %v4097
  %v8285 = vunpack.c.h.b16 %v4097
  %v8286 = vunpack.c.l.b16 %v4098
  %v8287 = vunpack.c.l.b16 %v4099
  %v8288 = vunpack.c.h.b16 %v4099
  %v8289 = vunpack.c.l.b16 %v4100
  %v8290 = vunpack.c.l.b16 %v4101
  %v8291 = vunpack.c.h.b16 %v4101
  %v8292 = vunpack.c.l.b16 %v4102
  %v8293 = vunpack.c.l.b16 %v4103
  %v8294 = vunpack.c.h.b16 %v4103
  %v8295 = vunpack.c.l.b16 %v4104
  %v8296 = vunpack.c.l.b16 %v4105
  %v8297 = vunpack.c.h.b16 %v4105
  %v8298 = vunpack.c.l.b16 %v4106
  %v8299 = vunpack.c.l.b16 %v4107
  %v8300 = vunpack.c.h.b16 %v4107
  %v8301 = vunpack.c.l.b16 %v4108
  %v8302 = vunpack.c.l.b16 %v4109
  %v8303 = vunpack.c.h.b16 %v4109
  %v8304 = vunpack.c.l.b16 %v4110
  %v8305 = vunpack.c.l.b16 %v4111
  %v8306 = vunpack.c.h.b16 %v4111
  %v8307 = vunpack.c.l.b16 %v4112
  %v8308 = vunpack.c.l.b16 %v4113
  %v8309 = vunpack.c.h.b16 %v4113
  %v8310 = vunpack.c.l.b16 %v4114
  %v8311 = vunpack.c.l.b16 %v4115
  %v8312 = vunpack.c.h.b16 %v4115
  %v8313 = vunpack.c.l.b16 %v4116
  %v8314 = vunpack.c.l.b16 %v4117
  %v8315 = vunpack.c.h.b16 %v4117
  %v8316 = vunpack.c.l.b16 %v4118
  %v8317 = vunpack.c.l.b16 %v4119
  %v8318 = vunpack.c.h.b16 %v4119
  %v8319 = vunpack.c.l.b16 %v4120
  %v8320 = vunpack.c.l.b16 %v4121
  %v8321 = vunpack.c.h.b16 %v4121
  %v8322 = vunpack.c.l.b16 %v4122
  %v8323 = vunpack.c.l.b16 %v4123
  %v8324 = vunpack.c.h.b16 %v4123
  %v8325 = vunpack.c.l.b16 %v4124
  %v8326 = vunpack.c.l.b16 %v4125
  %v8327 = vunpack.c.h.b16 %v4125
  %v8328 = vunpack.c.l.b16 %v4126
  %v8329 = vunpack.c.l.b16 %v4127
  %v8330 = vunpack.c.h.b16 %v4127
  %v8331 = vunpack.c.l.b16 %v4128
  %v8332 = vunpack.c.l.b16 %v4129
  %v8333 = vunpack.c.h.b16 %v4129
  %v8334 = vunpack.c.l.b16 %v4130
  %v8335 = vunpack.c.l.b16 %v4131
  %v8336 = vunpack.c.h.b16 %v4131
  %v8337 = vunpack.c.l.b16 %v4132
  %v8338 = vunpack.c.l.b16 %v4133
  %v8339 = vunpack.c.h.b16 %v4133
  %v8340 = vunpack.c.l.b16 %v4134
  %v8341 = vunpack.c.l.b16 %v4135
  %v8342 = vunpack.c.h.b16 %v4135
  %v8343 = vunpack.c.l.b16 %v4136
  %v8344 = vunpack.c.l.b16 %v4137
  %v8345 = vunpack.c.h.b16 %v4137
  %v8346 = vunpack.c.l.b16 %v4138
  %v8347 = vunpack.c.l.b16 %v4139
  %v8348 = vunpack.c.h.b16 %v4139
  %v8349 = vunpack.c.l.b16 %v4140
  %v8350 = vunpack.c.l.b16 %v4141
  %v8351 = vunpack.c.h.b16 %v4141
  %v8352 = vunpack.c.l.b16 %v4142
  %v8353 = vunpack.c.l.b16 %v4143
  %v8354 = vunpack.c.h.b16 %v4143
  %v8355 = vunpack.c.l.b16 %v4144
  %v8356 = vunpack.c.l.b16 %v4145
  %v8357 = vunpack.c.h.b16 %v4145
  %v8358 = vunpack.c.l.b16 %v4146
  %v8359 = vunpack.c.l.b16 %v4147
  %v8360 = vunpack.c.h.b16 %v4147
  %v8361 = vunpack.c.l.b16 %v4148
  %v8362 = vpack.c.b16 %v8221, %v8218
  %v8363 = vpack.c.b16 %v8222, %v8219
  %v8364 = vpack.c.b16 %v8223, %v8220
  %v8365 = vpack.c.b16 %v8227, %v8224
  %v8366 = vpack.c.b16 %v8228, %v8225
  %v8367 = vpack.c.b16 %v8229, %v8226
  %v8368 = vpack.c.b16 %v8233, %v8230
  %v8369 = vpack.c.b16 %v8234, %v8231
  %v8370 = vpack.c.b16 %v8235, %v8232
  %v8371 = vpack.c.b16 %v8239, %v8236
  %v8372 = vpack.c.b16 %v8240, %v8237
  %v8373 = vpack.c.b16 %v8241, %v8238
  %v8374 = vpack.c.b16 %v8245, %v8242
  %v8375 = vpack.c.b16 %v8246, %v8243
  %v8376 = vpack.c.b16 %v8247, %v8244
  %v8377 = vpack.c.b16 %v8251, %v8248
  %v8378 = vpack.c.b16 %v8252, %v8249
  %v8379 = vpack.c.b16 %v8253, %v8250
  %v8380 = vpack.c.b16 %v8257, %v8254
  %v8381 = vpack.c.b16 %v8258, %v8255
  %v8382 = vpack.c.b16 %v8259, %v8256
  %v8383 = vpack.c.b16 %v8263, %v8260
  %v8384 = vpack.c.b16 %v8264, %v8261
  %v8385 = vpack.c.b16 %v8265, %v8262
  %v8386 = vpack.c.b16 %v8269, %v8266
  %v8387 = vpack.c.b16 %v8270, %v8267
  %v8388 = vpack.c.b16 %v8271, %v8268
  %v8389 = vpack.c.b16 %v8275, %v8272
  %v8390 = vpack.c.b16 %v8276, %v8273
  %v8391 = vpack.c.b16 %v8277, %v8274
  %v8392 = vpack.c.b16 %v8281, %v8278
  %v8393 = vpack.c.b16 %v8282, %v8279
  %v8394 = vpack.c.b16 %v8283, %v8280
  %v8395 = vpack.c.b16 %v8287, %v8284
  %v8396 = vpack.c.b16 %v8288, %v8285
  %v8397 = vpack.c.b16 %v8289, %v8286
  %v8398 = vpack.c.b16 %v8293, %v8290
  %v8399 = vpack.c.b16 %v8294, %v8291
  %v8400 = vpack.c.b16 %v8295, %v8292
  %v8401 = vpack.c.b16 %v8299, %v8296
  %v8402 = vpack.c.b16 %v8300, %v8297
  %v8403 = vpack.c.b16 %v8301, %v8298
  %v8404 = vpack.c.b16 %v8305, %v8302
  %v8405 = vpack.c.b16 %v8306, %v8303
  %v8406 = vpack.c.b16 %v8307, %v8304
  %v8407 = vpack.c.b16 %v8311, %v8308
  %v8408 = vpack.c.b16 %v8312, %v8309
  %v8409 = vpack.c.b16 %v8313, %v8310
  %v8410 = vpack.c.b16 %v8317, %v8314
  %v8411 = vpack.c.b16 %v8318, %v8315
  %v8412 = vpack.c.b16 %v8319, %v8316
  %v8413 = vpack.c.b16 %v8323, %v8320
  %v8414 = vpack.c.b16 %v8324, %v8321
  %v8415 = vpack.c.b16 %v8325, %v8322
  %v8416 = vpack.c.b16 %v8329, %v8326
  %v8417 = vpack.c.b16 %v8330, %v8327
  %v8418 = vpack.c.b16 %v8331, %v8328
  %v8419 = vpack.c.b16 %v8335, %v8332
  %v8420 = vpack.c.b16 %v8336, %v8333
  %v8421 = vpack.c.b16 %v8337, %v8334
  %v8422 = vpack.c.b16 %v8341, %v8338
  %v8423 = vpack.c.b16 %v8342, %v8339
  %v8424 = vpack.c.b16 %v8343, %v8340
  %v8425 = vpack.c.b16 %v8347, %v8344
  %v8426 = vpack.c.b16 %v8348, %v8345
  %v8427 = vpack.c.b16 %v8349, %v8346
  %v8428 = vpack.c.b16 %v8353, %v8350
  %v8429 = vpack.c.b16 %v8354, %v8351
  %v8430 = vpack.c.b16 %v8355, %v8352
  %v8431 = vpack.c.b16 %v8359, %v8356
  %v8432 = vpack.c.b16 %v8360, %v8357
  %v8433 = vpack.c.b16 %v8361, %v8358
  %8506 = vmatprep.subr.bf16.mxu0 %v8384
  %8507 = vmatpush1.bf16.xpose.msra.mxu0 %v8383
  %8508 = vmatprep.subr.bf16.mxu0 %v8381
  %8509 = vmatpush1.bf16.xpose.msra.mxu0 %v8380
  %8510 = vmatprep.subr.bf16.mxu0 %v8378
  %8511 = vmatpush1.bf16.xpose.msra.mxu0 %v8377
  %8512 = vmatprep.subr.bf16.mxu0 %v8375
  %8513 = vmatpush1.bf16.xpose.msra.mxu0 %v8374
  %8514 = vmatprep.subr.bf16.mxu0 %v8372
  %8515 = vmatpush1.bf16.xpose.msra.mxu0 %v8371
  %8516 = vmatprep.subr.bf16.mxu0 %v8369
  %8517 = vmatpush1.bf16.xpose.msra.mxu0 %v8368
  %8518 = vmatprep.subr.bf16.mxu0 %v8366
  %8519 = vmatpush1.bf16.xpose.msra.mxu0 %v8365
  %8520 = vmatprep.subr.bf16.mxu0 %v8363
  %8521 = vmatpush1.bf16.xpose.msra.mxu0 %v8362
  %8522 = vmatprep.subr.bf16.mxu0 %v8408
  %8523 = vmatpush2.bf16.xpose.msra.mxu0 %v8407
  %8524 = vmatprep.subr.bf16.mxu0 %v8405
  %8525 = vmatpush2.bf16.xpose.msra.mxu0 %v8404
  %8526 = vmatprep.subr.bf16.mxu0 %v8402
  %8527 = vmatpush2.bf16.xpose.msra.mxu0 %v8401
  %8528 = vmatprep.subr.bf16.mxu0 %v8399
  %8529 = vmatpush2.bf16.xpose.msra.mxu0 %v8398
  %8530 = vmatprep.subr.bf16.mxu0 %v8396
  %8531 = vmatpush2.bf16.xpose.msra.mxu0 %v8395
  %8532 = vmatprep.subr.bf16.mxu0 %v8393
  %8533 = vmatpush2.bf16.xpose.msra.mxu0 %v8392
  %8534 = vmatprep.subr.bf16.mxu0 %v8390
  %8535 = vmatpush2.bf16.xpose.msra.mxu0 %v8389
  %8536 = vmatprep.subr.bf16.mxu0 %v8387
  %8537 = vmatpush2.bf16.xpose.msra.mxu0 %v8386
  %8538 = vmatprep.mubr.bf16.mxu0 %v8111
  %8539 = vmatmul.mubr.bf16.gmra.mxu0 %v8110
  %v8540 = vpop.f32.mrf.mxu0
  %v8541 = vadd.f32 %v7822, %v8540
  %v8542 = vpop.f32.mrf.mxu0
  %v8543 = vadd.f32 %v7826, %v8542
  %v8544 = vpop.f32.mrf.mxu0
  %v8545 = vadd.f32 %v7822, %v8544
  %v8546 = vpop.f32.mrf.mxu0
  %v8547 = vadd.f32 %v7826, %v8546
  %8548 = vmatprep.mubr.bf16.mxu0 %v8114
  %8549 = vmatmul.mubr.bf16.gmra.mxu0 %v8113
  %v8550 = vpop.f32.mrf.mxu0
  %v8551 = vadd.f32 %v7822, %v8550
  %v8552 = vpop.f32.mrf.mxu0
  %v8553 = vadd.f32 %v7826, %v8552
  %v8554 = vpop.f32.mrf.mxu0
  %v8555 = vadd.f32 %v7822, %v8554
  %v8556 = vpop.f32.mrf.mxu0
  %v8557 = vadd.f32 %v7826, %v8556
  %8558 = vdwg.mxu0
  %8559 = vmatprep.subr.bf16.mxu0 0
  %8560 = vmatpush1.bf16.xpose.msra.mxu0 %v8385
  %8561 = vmatprep.subr.bf16.mxu0 0
  %8562 = vmatpush1.bf16.xpose.msra.mxu0 %v8382
  %8563 = vmatprep.subr.bf16.mxu0 0
  %8564 = vmatpush1.bf16.xpose.msra.mxu0 %v8379
  %8565 = vmatprep.subr.bf16.mxu0 0
  %8566 = vmatpush1.bf16.xpose.msra.mxu0 %v8376
  %8567 = vmatprep.subr.bf16.mxu0 0
  %8568 = vmatpush1.bf16.xpose.msra.mxu0 %v8373
  %8569 = vmatprep.subr.bf16.mxu0 0
  %8570 = vmatpush1.bf16.xpose.msra.mxu0 %v8370
  %8571 = vmatprep.subr.bf16.mxu0 0
  %8572 = vmatpush1.bf16.xpose.msra.mxu0 %v8367
  %8573 = vmatprep.subr.bf16.mxu0 0
  %8574 = vmatpush1.bf16.xpose.msra.mxu0 %v8364
  %8575 = vmatprep.subr.bf16.mxu0 0
  %8576 = vmatpush2.bf16.xpose.msra.mxu0 %v8409
  %8577 = vmatprep.subr.bf16.mxu0 0
  %8578 = vmatpush2.bf16.xpose.msra.mxu0 %v8406
  %8579 = vmatprep.subr.bf16.mxu0 0
  %8580 = vmatpush2.bf16.xpose.msra.mxu0 %v8403
  %8581 = vmatprep.subr.bf16.mxu0 0
  %8582 = vmatpush2.bf16.xpose.msra.mxu0 %v8400
  %8583 = vmatprep.subr.bf16.mxu0 0
  %8584 = vmatpush2.bf16.xpose.msra.mxu0 %v8397
  %8585 = vmatprep.subr.bf16.mxu0 0
  %8586 = vmatpush2.bf16.xpose.msra.mxu0 %v8394
  %8587 = vmatprep.subr.bf16.mxu0 0
  %8588 = vmatpush2.bf16.xpose.msra.mxu0 %v8391
  %8589 = vmatprep.subr.bf16.mxu0 0
  %8590 = vmatpush2.bf16.xpose.msra.mxu0 %v8388
  %8591 = vmatprep.mubr.bf16.mxu0 0
  %8592 = vmatmul.mubr.bf16.gmra.mxu0 %v8112
  %v8593 = vpop.f32.mrf.mxu0
  %v8594 = vadd.f32 %v8541, %v8593
  %v8595 = vpop.f32.mrf.mxu0
  %v8596 = vadd.f32 %v8543, %v8595
  %v8597 = vpop.f32.mrf.mxu0
  %v8598 = vadd.f32 %v8545, %v8597
  %v8599 = vpop.f32.mrf.mxu0
  %v8600 = vadd.f32 %v8547, %v8599
  %8601 = vmatprep.mubr.bf16.mxu0 0
  %8602 = vmatmul.mubr.bf16.gmra.mxu0 %v8115
  %v8603 = vpop.f32.mrf.mxu0
  %v8604 = vadd.f32 %v8551, %v8603
  %v8605 = vpop.f32.mrf.mxu0
  %v8606 = vadd.f32 %v8553, %v8605
  %v8607 = vpop.f32.mrf.mxu0
  %v8608 = vadd.f32 %v8555, %v8607
  %v8609 = vpop.f32.mrf.mxu0
  %v8610 = vadd.f32 %v8557, %v8609
  %8611 = vdwg.mxu0
  %8612 = vmatprep.subr.bf16.mxu0 %v8432
  %8613 = vmatpush1.bf16.xpose.msra.mxu0 %v8431
  %8614 = vmatprep.subr.bf16.mxu0 %v8429
  %8615 = vmatpush1.bf16.xpose.msra.mxu0 %v8428
  %8616 = vmatprep.subr.bf16.mxu0 %v8426
  %8617 = vmatpush1.bf16.xpose.msra.mxu0 %v8425
  %8618 = vmatprep.subr.bf16.mxu0 %v8423
  %8619 = vmatpush1.bf16.xpose.msra.mxu0 %v8422
  %8620 = vmatprep.subr.bf16.mxu0 %v8420
  %8621 = vmatpush1.bf16.xpose.msra.mxu0 %v8419
  %8622 = vmatprep.subr.bf16.mxu0 %v8417
  %8623 = vmatpush1.bf16.xpose.msra.mxu0 %v8416
  %8624 = vmatprep.subr.bf16.mxu0 %v8414
  %8625 = vmatpush1.bf16.xpose.msra.mxu0 %v8413
  %8626 = vmatprep.subr.bf16.mxu0 %v8411
  %8627 = vmatpush1.bf16.xpose.msra.mxu0 %v8410
  %8628 = vmatprep.subr.bf16.mxu0 0
  %8629 = vmatpush2.bf16.xpose.msra.mxu0 0
  %8630 = vmatprep.subr.bf16.mxu0 0
  %8631 = vmatpush2.bf16.xpose.msra.mxu0 0
  %8632 = vmatprep.subr.bf16.mxu0 0
  %8633 = vmatpush2.bf16.xpose.msra.mxu0 0
  %8634 = vmatprep.subr.bf16.mxu0 0
  %8635 = vmatpush2.bf16.xpose.msra.mxu0 0
  %8636 = vmatprep.subr.bf16.mxu0 0
  %8637 = vmatpush2.bf16.xpose.msra.mxu0 0
  %8638 = vmatprep.subr.bf16.mxu0 0
  %8639 = vmatpush2.bf16.xpose.msra.mxu0 0
  %8640 = vmatprep.subr.bf16.mxu0 0
  %8641 = vmatpush2.bf16.xpose.msra.mxu0 0
  %8642 = vmatprep.subr.bf16.mxu0 0
  %8643 = vmatpush2.bf16.xpose.msra.mxu0 0
  %8644 = vmatprep.mubr.bf16.mxu0 %v8111
  %8645 = vmatmul.mubr.bf16.gmra.mxu0 %v8110
  %v8646 = vpop.f32.mrf.mxu0
  %v8647 = vadd.f32 %v7830, %v8646
  %v8648 = vpop.f32.mrf.mxu0
  %v8649 = vpop.f32.mrf.mxu0
  %v8650 = vadd.f32 %v7830, %v8649
  %v8651 = vpop.f32.mrf.mxu0
  %8652 = vmatprep.mubr.bf16.mxu0 %v8114
  %8653 = vmatmul.mubr.bf16.gmra.mxu0 %v8113
  %v8654 = vpop.f32.mrf.mxu0
  %v8655 = vadd.f32 %v7830, %v8654
  %v8656 = vpop.f32.mrf.mxu0
  %v8657 = vpop.f32.mrf.mxu0
  %v8658 = vadd.f32 %v7830, %v8657
  %v8659 = vpop.f32.mrf.mxu0
  %8660 = vdwg.mxu0
  %8661 = vmatprep.subr.bf16.mxu0 0
  %8662 = vmatpush1.bf16.xpose.msra.mxu0 %v8433
  %8663 = vmatprep.subr.bf16.mxu0 0
  %8664 = vmatpush1.bf16.xpose.msra.mxu0 %v8430
  %8665 = vmatprep.subr.bf16.mxu0 0
  %8666 = vmatpush1.bf16.xpose.msra.mxu0 %v8427
  %8667 = vmatprep.subr.bf16.mxu0 0
  %8668 = vmatpush1.bf16.xpose.msra.mxu0 %v8424
  %8669 = vmatprep.subr.bf16.mxu0 0
  %8670 = vmatpush1.bf16.xpose.msra.mxu0 %v8421
  %8671 = vmatprep.subr.bf16.mxu0 0
  %8672 = vmatpush1.bf16.xpose.msra.mxu0 %v8418
  %8673 = vmatprep.subr.bf16.mxu0 0
  %8674 = vmatpush1.bf16.xpose.msra.mxu0 %v8415
  %8675 = vmatprep.subr.bf16.mxu0 0
  %8676 = vmatpush1.bf16.xpose.msra.mxu0 %v8412
  %8677 = vmatprep.subr.bf16.mxu0 0
  %8678 = vmatpush2.bf16.xpose.msra.mxu0 0
  %8679 = vmatprep.subr.bf16.mxu0 0
  %8680 = vmatpush2.bf16.xpose.msra.mxu0 0
  %8681 = vmatprep.subr.bf16.mxu0 0
  %8682 = vmatpush2.bf16.xpose.msra.mxu0 0
  %8683 = vmatprep.subr.bf16.mxu0 0
  %8684 = vmatpush2.bf16.xpose.msra.mxu0 0
  %8685 = vmatprep.subr.bf16.mxu0 0
  %8686 = vmatpush2.bf16.xpose.msra.mxu0 0
  %8687 = vmatprep.subr.bf16.mxu0 0
  %8688 = vmatpush2.bf16.xpose.msra.mxu0 0
  %8689 = vmatprep.subr.bf16.mxu0 0
  %8690 = vmatpush2.bf16.xpose.msra.mxu0 0
  %8691 = vmatprep.subr.bf16.mxu0 0
  %8692 = vmatpush2.bf16.xpose.msra.mxu0 0
  %8693 = vmatprep.mubr.bf16.mxu0 0
  %8694 = vmatmul.mubr.bf16.gmra.mxu0 %v8112
  %v8695 = vpop.f32.mrf.mxu0
  %v8696 = vadd.f32 %v8647, %v8695
  %v8697 = vpop.f32.mrf.mxu0
  %v8698 = vpop.f32.mrf.mxu0
  %v8699 = vadd.f32 %v8650, %v8698
  %v8700 = vpop.f32.mrf.mxu0
  %8701 = vmatprep.mubr.bf16.mxu0 0
  %8702 = vmatmul.mubr.bf16.gmra.mxu0 %v8115
  %v8703 = vpop.f32.mrf.mxu0
  %v8704 = vadd.f32 %v8655, %v8703
  %v8705 = vpop.f32.mrf.mxu0
  %v8706 = vpop.f32.mrf.mxu0
  %v8707 = vadd.f32 %v8658, %v8706
  %v8708 = vpop.f32.mrf.mxu0
  %8709 = vdwg.mxu0
  %v8710 = vtanh.pop %v8594
  %v8711 = vtanh.pop %v8596
  %v8712 = vtanh.pop %v8696
  %v8713 = vtanh.pop %v8598
  %v8714 = vtanh.pop %v8600
  %v8715 = vtanh.pop %v8699
  %v8716 = vtanh.pop %v8604
  %v8717 = vtanh.pop %v8606
  %v8718 = vtanh.pop %v8704
  %v8719 = vtanh.pop %v8608
  %v8720 = vtanh.pop %v8610
  %v8721 = vtanh.pop %v8707
  %v8723 = vlaneseq
  %v8724 = vshrl.u32 %v8723, 7
  %v8725 = vsub.s32 0, %v8724
  %v8726 = vrot.slane %v4150, %v8725
  %v8727 = vlaneseq
  %v8728 = vshrl.u32 %v8727, 7
  %v8729 = vsub.s32 1, %v8728
  %v8730 = vrot.slane %v4150, %v8729
  %v8731 = vlaneseq
  %v8732 = vshrl.u32 %v8731, 7
  %v8733 = vsub.s32 2, %v8732
  %v8734 = vrot.slane %v4150, %v8733
  %v8738 = vmul.f32 %v8710, %v8726
  %v8739 = vmul.f32 %v8711, %v8730
  %v8740 = vmul.f32 %v8712, %v8734
  %v8741 = vmul.f32 %v8713, %v8726
  %v8742 = vmul.f32 %v8714, %v8730
  %v8743 = vmul.f32 %v8715, %v8734
  %v8744 = vmul.f32 %v8716, %v8726
  %v8745 = vmul.f32 %v8717, %v8730
  %v8746 = vmul.f32 %v8718, %v8734
  %v8747 = vmul.f32 %v8719, %v8726
  %v8748 = vmul.f32 %v8720, %v8730
  %v8749 = vmul.f32 %v8721, %v8734
  %v8750 = vadd.f32 %v8738, %v8739
  %v8751 = vadd.f32 %v8750, %v8740
  %8752 = vadd.xlane.f32.xlu0 %v8751
  %v8753 = vpop.xlane.xlu0 %8752
  %v8754 = vadd.f32 %v8741, %v8742
  %v8755 = vadd.f32 %v8754, %v8743
  %8756 = vadd.xlane.f32.xlu0 %v8755
  %v8757 = vpop.xlane.xlu0 %8756
  %v8758 = vadd.f32 %v8744, %v8745
  %v8759 = vadd.f32 %v8758, %v8746
  %8760 = vadd.xlane.f32.xlu0 %v8759
  %v8761 = vpop.xlane.xlu0 %8760
  %v8762 = vadd.f32 %v8747, %v8748
  %v8763 = vadd.f32 %v8762, %v8749
  %8764 = vadd.xlane.f32.xlu0 %v8763
  %v8765 = vpop.xlane.xlu0 %8764
  %v8766 = vstv %s4151
  %v8767 = vadd.f32 %v8753, %v8766
  %v8768 = vadd.f32 %v8757, %v8766
  %v8769 = vadd.f32 %v8761, %v8766
  %v8770 = vadd.f32 %v8765, %v8766
  %v8771 = vsub.f32 0.0, %v8767
  %v8772 = vsub.f32 0.0, %v8768
  %v8773 = vsub.f32 0.0, %v8769
  %v8774 = vsub.f32 0.0, %v8770
  %v8775 = vmul.f32 %v8771, 1.442695
  %v8776 = vpow.pop %v8775
  %v8777 = vmul.f32 %v8772, 1.442695
  %v8778 = vpow.pop %v8777
  %v8779 = vmul.f32 %v8773, 1.442695
  %v8780 = vpow.pop %v8779
  %v8781 = vmul.f32 %v8774, 1.442695
  %v8782 = vpow.pop %v8781
  %v8783 = vadd.f32 %v8776, 1.0
  %v8784 = vadd.f32 %v8778, 1.0
  %v8785 = vadd.f32 %v8780, 1.0
  %v8786 = vadd.f32 %v8782, 1.0
  %v8787 = vrcp.pop %v8783
  %v8788 = vmul.f32 1.0, %v8787
  %v8789 = vrcp.pop %v8784
  %v8790 = vmul.f32 1.0, %v8789
  %v8791 = vrcp.pop %v8785
  %v8792 = vmul.f32 1.0, %v8791
  %v8793 = vrcp.pop %v8786
  %v8794 = vmul.f32 1.0, %v8793
  %v8799 = vlaneseq
  %v8800 = vshrl.u32 %v8799, 7
  %v8801 = vsub.s32 %v67, %v8800
  %v8802 = vrot.slane %v8788, %v8801
  %v8803 = vadd.s32 %v67, 4294967288
  %v8804 = vlaneseq
  %v8805 = vshrl.u32 %v8804, 7
  %v8806 = vsub.s32 %v8803, %v8805
  %v8807 = vrot.slane %v8790, %v8806
  %vm8808 = vcmask 130112
  %v8809 = vsel %vm8808, %v8807, %v8802
  %v8810 = vadd.s32 %v67, 4294967280
  %v8811 = vlaneseq
  %v8812 = vshrl.u32 %v8811, 7
  %v8813 = vsub.s32 %v8810, %v8812
  %v8814 = vrot.slane %v8792, %v8813
  %vm8815 = vcmask 195712
  %v8816 = vsel %vm8815, %v8814, %v8809
  %v8817 = vadd.s32 %v67, 4294967272
  %v8818 = vlaneseq
  %v8819 = vshrl.u32 %v8818, 7
  %v8820 = vsub.s32 %v8817, %v8819
  %v8821 = vrot.slane %v8794, %v8820
  %vm8822 = vcmask 261312
  %v8823 = vsel %vm8822, %v8821, %v8816
  %vm8825 = vcmask 253952
  %8826 = vst.msk [vmem:[%s9] sm:$0x1] %vm8825, %v8823
  %v8831 = vlaneseq
  %v8832 = vshrl.u32 %v8831, 7
  %v8833 = vsub.s32 %v67, %v8832
  %v8834 = vrot.slane %v7039, %v8833
  %v8835 = vlaneseq
  %v8836 = vshrl.u32 %v8835, 7
  %v8837 = vsub.s32 %v8803, %v8836
  %v8838 = vrot.slane %v7042, %v8837
  %v8839 = vsel %vm8808, %v8838, %v8834
  %v8840 = vlaneseq
  %v8841 = vshrl.u32 %v8840, 7
  %v8842 = vsub.s32 %v8810, %v8841
  %v8843 = vrot.slane %v7045, %v8842
  %v8844 = vsel %vm8815, %v8843, %v8839
  %v8845 = vlaneseq
  %v8846 = vshrl.u32 %v8845, 7
  %v8847 = vsub.s32 %v8817, %v8846
  %v8848 = vrot.slane %v7048, %v8847
  %v8849 = vsel %vm8822, %v8848, %v8844
  %8851 = vst.msk [vmem:[%s9 + $0x1] sm:$0x1] %vm8825, %v8849
  // Predicated region
  $region38: #{_classifier_forward_impl.1} parent=0 // pred_check
    _
  $region39: #{_classifier_forward_impl.1} parent=0 // pred_check_branch
    %8853 = sbr.rel (0) target = $region41
  $region40: #{_classifier_forward_impl.1} parent=0 // pred_region
    _
  $region41: #{_classifier_forward_impl.1} parent=0 // pred_fallthru
    _
  // Predicated region
  $region42: #{_classifier_forward_impl.1} parent=0 // pred_check
    _
  $region43: #{_classifier_forward_impl.1} parent=0 // pred_check_branch
    %8855 = sbr.rel (0) target = $region45
  $region44: #{_classifier_forward_impl.1} parent=0 // pred_region
    _
  $region45: #{_classifier_forward_impl.1} parent=0 // pred_fallthru
    _

</llo_original>
